<compile_context>
chip_gen: v6e
topology: v6e:2x2x1
jax: 0.10.0
libtpu: 0.0.40
codegen_flags: <defaults>
</compile_context>

<pallas_src>
import math

import jax
import jax.numpy as jnp
from jax.experimental import pallas as pl
from jax.experimental.pallas import tpu as pltpu


def _san_sent_encoder_kernel(
    x_ref,        # (TB, S, D)  inputs for TB batch elements (bf16)
    mcol_ref,     # (TB, S, 1)  mask, column layout (bf16, 0/1 -> exact mult)
    kbias_ref,    # (TB, 1, S)  precomputed additive key-mask bias (f32)
    wqkv_ref,     # (D, 3D)     fused [Wq | Wk | Wv@Wo] weights (bf16)
    bqkv_ref,     # (1, 3D)     fused [bq | bk | bv@Wo] biases  (f32)
    bo_ref,       # (1, D)      output-projection bias (f32), added post-pool
    out_ref,      # (TB, D)     max-pooled output (f32)
):
    TB, S, D = x_ref.shape

    # inputs = inputs * mask.unsqueeze(-1)   (0/1 mask, exact in bf16)
    xm = (x_ref[...] * mcol_ref[...]).reshape(TB * S, D)

    # Fused Q/K/V' projection: one (TB*S, D) x (D, 3D) MXU matmul,
    # bf16 operands, f32 accumulation.  V' already carries Wo (fused).
    qkv = jnp.dot(xm, wqkv_ref[...],
                  preferred_element_type=jnp.float32) + bqkv_ref[...]
    q = qkv[:, :D].reshape(TB, S, D)
    k = qkv[:, D:2 * D].reshape(TB, S, D)
    v = qkv[:, 2 * D:].reshape(TB, S, D)      # = (xm @ Wv + bv) @ Wo

    # Per-batch-element scaled-dot-product attention (tiny (S,S) blocks).
    scale = 1.0 / math.sqrt(D)
    scores = jnp.einsum("bqd,bkd->bqk", q, k,
                        preferred_element_type=jnp.float32) * scale   # (TB,S,S)
    scores = scores + kbias_ref[...]          # mask padded keys (bcast over q)

    # numerically stable masked softmax over keys (f32)
    scores = scores - jnp.max(scores, axis=-1, keepdims=True)
    p = jnp.exp(scores)
    p = p * pl.reciprocal(jnp.sum(p, axis=-1, keepdims=True), approx=True)

    # ctx = p @ v'  ==  (p @ v) @ Wo   (output projection already folded in)
    ctx = jnp.einsum("bqk,bkd->bqd", p, v,
                     preferred_element_type=jnp.float32)              # (TB,S,D)

    # AdaptiveMaxPool1d(1) over the sequence dimension, then add bo
    # (constant over S, so it commutes with the max).  Dense (TB, D) store.
    # TODO(synk): padded query rows participate in the max-pool, matching the
    # given module; some SAN variants mask them to -inf before pooling.
    out_ref[...] = (jnp.max(ctx, axis=1) + bo_ref[...]).astype(out_ref.dtype)


def _pick_tb(B, S, target_rows=2048, max_score_elems=1 << 20):
    """Pick TB = batch elements per grid step.

    Priorities (in order):
      * legality: TB divides B and the (TB, D) output tile obeys the (8,128)
        BlockSpec rule (TB % 8 == 0 or TB == B);
      * >= 2 grid steps so dimension_semantics=("parallel",) can use both
        v7x TensorCores;
      * VMEM safety: TB*S <= target_rows and the f32 (TB,S,S) scores block
        stays small, so intermediates fit v5e's 16 MiB scoped-VMEM default;
      * an even number of grid steps (balanced across 2 cores);
      * then the biggest block possible (block size is the dominant lever:
        amortizes ~0.35 us/step grid overhead and MXU weight re-pushes).
    """
    cands = [tb for tb in range(1, B + 1)
             if B % tb == 0 and (tb % 8 == 0 or tb == B)]

    def key(tb):
        steps = B // tb
        rows = tb * S
        fits = (rows <= target_rows) and (tb * S * S <= max_score_elems)
        return (steps >= 2, fits, steps % 2 == 0, rows if fits else -rows)

    return max(cands, key=key)


def san_sent_encoder(inputs, mask, params):
    """inputs: (B, S, D) f32, mask: (B, S) f32.  Returns (B, 1, D) f32."""
    B, S, D = inputs.shape
    wq, bq, wk, bk, wv, bv, wo, bo = params

    # Fold the output projection into V (compose in f32, then cast to bf16).
    wv_f = jnp.dot(wv.astype(jnp.float32), wo.astype(jnp.float32))   # (D, D)
    bv_f = jnp.dot(bv.astype(jnp.float32), wo.astype(jnp.float32))   # (1, D)

    wqkv = jnp.concatenate(
        [wq.astype(jnp.float32), wk.astype(jnp.float32), wv_f],
        axis=1).astype(jnp.bfloat16)                                  # (D, 3D)
    bqkv = jnp.concatenate(
        [bq.astype(jnp.float32), bk.astype(jnp.float32), bv_f],
        axis=1).astype(jnp.float32)                                   # (1, 3D)
    bo_f = bo.astype(jnp.float32)                                     # (1, D)

    # bf16 activations (halves the dominant DMA stream); 0/1 mask in bf16 is
    # exact.  Key-mask additive bias precomputed once (row layout, f32).
    x_bf16 = inputs.astype(jnp.bfloat16)
    mask_col = mask.reshape(B, S, 1).astype(jnp.bfloat16)
    key_bias = ((1.0 - mask) * (-1e9)).reshape(B, 1, S).astype(jnp.float32)

    TB = _pick_tb(B, S)
    grid = (B // TB,)

    out = pl.pallas_call(
        _san_sent_encoder_kernel,
        out_shape=jax.ShapeDtypeStruct((B, D), jnp.float32),
        grid_spec=pltpu.PrefetchScalarGridSpec(
            num_scalar_prefetch=0,
            grid=grid,
            in_specs=[
                pl.BlockSpec((TB, S, D), lambda b: (b, 0, 0)),   # inputs (bf16)
                pl.BlockSpec((TB, S, 1), lambda b: (b, 0, 0)),   # mask (col)
                pl.BlockSpec((TB, 1, S), lambda b: (b, 0, 0)),   # key bias (row)
                pl.BlockSpec((D, 3 * D), lambda b: (0, 0)),      # fused Wqkv'
                pl.BlockSpec((1, 3 * D), lambda b: (0, 0)),      # fused bqkv'
                pl.BlockSpec((1, D), lambda b: (0, 0)),          # bo
            ],
            out_specs=pl.BlockSpec((TB, D), lambda b: (b, 0)),
        ),
        compiler_params=pltpu.CompilerParams(
            dimension_semantics=("parallel",),
        ),
    )(x_bf16, mask_col, key_bias, wqkv, bqkv, bo_f)

    return out.reshape(B, 1, D)


def _reference(inputs, mask, params, matmul_dtype=jnp.float32):
    """Pure-JAX reference of the same forward pass (unfused Q/K/V/out chain).
    `matmul_dtype=bf16` mirrors the kernel's bf16 matmul operands (f32 acc)."""
    wq, bq, wk, bk, wv, bv, wo, bo = params
    B, S, D = inputs.shape

    def mm(a, w):
        return jnp.dot(a.astype(matmul_dtype), w.astype(matmul_dtype),
                       preferred_element_type=jnp.float32)

    xm = inputs * mask[:, :, None]
    q = mm(xm, wq) + bq
    k = mm(xm, wk) + bk
    v = mm(xm, wv) + bv
    scores = jnp.einsum("bqd,bkd->bqk", q, k,
                        preferred_element_type=jnp.float32) / math.sqrt(D)
    scores = scores + (1.0 - mask[:, None, :]) * (-1e9)
    p = jax.nn.softmax(scores, axis=-1)
    ctx = jnp.einsum("bqk,bkd->bqd", p, v, preferred_element_type=jnp.float32)
    outs = mm(ctx, wo) + bo
    return jnp.max(outs, axis=1, keepdims=True)   # (B, 1, D)


if __name__ == "__main__":
    # Small but MXU-meaningful shapes: D must be lane-sized (128) and B large
    # enough to exercise the TB-batched grid (TB=32 -> grid=(2,)).
    B, S, D = 64, 8, 128   # batch, n_sent, d_hid

    key = jax.random.PRNGKey(0)
    k_x, k_q, k_k, k_v, k_o, k_b = jax.random.split(key, 6)

    inputs = jax.random.normal(k_x, (B, S, D), dtype=jnp.float32)

    # deterministic mask: varying numbers of valid sentences per batch element
    lengths = 1 + (jnp.arange(B) % S)                       # in [1, S]
    mask = (jnp.arange(S)[None, :] < lengths[:, None]).astype(jnp.float32)

    scale = 1.0 / math.sqrt(D)
    bias_init = jax.random.normal(k_b, (4, 1, D), dtype=jnp.float32) * 0.1
    params = (
        jax.random.normal(k_q, (D, D), dtype=jnp.float32) * scale, bias_init[0],
        jax.random.normal(k_k, (D, D), dtype=jnp.float32) * scale, bias_init[1],
        jax.random.normal(k_v, (D, D), dtype=jnp.float32) * scale, bias_init[2],
        jax.random.normal(k_o, (D, D), dtype=jnp.float32) * scale, bias_init[3],
    )

    out = san_sent_encoder(inputs, mask, params)
    out = jax.block_until_ready(out)

    # Compare against a reference that mirrors the kernel's bf16 matmul inputs
    # (the kernel additionally fuses Wv@Wo in f32 and uses an approximate
    # softmax reciprocal; both effects are well inside the tolerance).
    ref = _reference(inputs, mask, params, matmul_dtype=jnp.bfloat16)

    assert out.shape == (B, 1, D), out.shape
    assert jnp.allclose(out, ref, rtol=2e-2, atol=2e-2), (
        "mismatch vs reference; max abs diff = %e" % float(jnp.max(jnp.abs(out - ref)))
    )

    print("KERNEL_OK")
</pallas_src>

<mosaic_0001>
module attributes {stable_mosaic.version = 11 : i64} {
  func.func @_san_sent_encoder_kernel(%arg0: i32, %arg1: memref<32x8x128xbf16, #tpu.memory_space<vmem>>, %arg2: memref<32x8x1xbf16, #tpu.memory_space<vmem>>, %arg3: memref<32x1x8xf32, #tpu.memory_space<vmem>>, %arg4: memref<128x384xbf16, #tpu.memory_space<vmem>>, %arg5: memref<1x384xf32, #tpu.memory_space<vmem>>, %arg6: memref<1x128xf32, #tpu.memory_space<vmem>>, %arg7: memref<32x128xf32, #tpu.memory_space<vmem>>) attributes {dimension_semantics = [#tpu.dimension_semantics<parallel>], iteration_bounds = array<i64: 2>, scalar_prefetch = 0 : i64, scratch_operands = 0 : i64, tpu.core_type = #tpu.core_type<tc>, window_params = [{transform_indices = @transform_0, window_bounds = array<i64: 32, 8, 128>}, {transform_indices = @transform_1, window_bounds = array<i64: 32, 8, 1>}, {transform_indices = @transform_2, window_bounds = array<i64: 32, 1, 8>}, {pipeline_mode = #tpu.pipeline_mode<synchronous>, transform_indices = @transform_3, window_bounds = array<i64: 128, 384>}, {pipeline_mode = #tpu.pipeline_mode<synchronous>, transform_indices = @transform_4, window_bounds = array<i64: 1, 384>}, {pipeline_mode = #tpu.pipeline_mode<synchronous>, transform_indices = @transform_5, window_bounds = array<i64: 1, 128>}, {transform_indices = @transform_6, window_bounds = array<i64: 32, 128>}]} {
    %c0 = arith.constant 0 : index
    %c0_0 = arith.constant 0 : index
    %c0_1 = arith.constant 0 : index
    %0 = vector.load %arg1[%c0, %c0_0, %c0_1] : memref<32x8x128xbf16, #tpu.memory_space<vmem>>, vector<32x8x128xbf16>
    %c0_2 = arith.constant 0 : index
    %c0_3 = arith.constant 0 : index
    %c0_4 = arith.constant 0 : index
    %1 = vector.load %arg2[%c0_2, %c0_3, %c0_4] : memref<32x8x1xbf16, #tpu.memory_space<vmem>>, vector<32x8x1xbf16>
    %2 = vector.broadcast %1 : vector<32x8x1xbf16> to vector<32x8x128xbf16>
    %3 = arith.mulf %0, %2 : vector<32x8x128xbf16>
    %4 = vector.shape_cast %3 : vector<32x8x128xbf16> to vector<256x128xbf16>
    %c0_5 = arith.constant 0 : index
    %c0_6 = arith.constant 0 : index
    %5 = vector.load %arg4[%c0_5, %c0_6] : memref<128x384xbf16, #tpu.memory_space<vmem>>, vector<128x384xbf16>
    %cst = arith.constant dense<0.000000e+00> : vector<256x384xf32>
    %6 = tpu.matmul %4, %5, %cst {dimension_numbers = #tpu.dot_dimension_numbers<[1], [0], [0], [1], [0, 0, 1, 1], [], []>} : vector<256x128xbf16>, vector<128x384xbf16>, vector<256x384xf32> -> vector<256x384xf32>
    %c0_7 = arith.constant 0 : index
    %c0_8 = arith.constant 0 : index
    %7 = vector.load %arg5[%c0_7, %c0_8] : memref<1x384xf32, #tpu.memory_space<vmem>>, vector<1x384xf32>
    %8 = vector.broadcast %7 : vector<1x384xf32> to vector<256x384xf32>
    %9 = arith.addf %6, %8 : vector<256x384xf32>
    %10 = vector.extract_strided_slice %9 {offsets = [0, 0], sizes = [256, 128], strides = [1, 1]} : vector<256x384xf32> to vector<256x128xf32>
    %11 = vector.shape_cast %10 : vector<256x128xf32> to vector<32x8x128xf32>
    %12 = vector.extract_strided_slice %9 {offsets = [0, 128], sizes = [256, 128], strides = [1, 1]} : vector<256x384xf32> to vector<256x128xf32>
    %13 = vector.shape_cast %12 : vector<256x128xf32> to vector<32x8x128xf32>
    %14 = vector.extract_strided_slice %9 {offsets = [0, 256], sizes = [256, 128], strides = [1, 1]} : vector<256x384xf32> to vector<256x128xf32>
    %15 = vector.shape_cast %14 : vector<256x128xf32> to vector<32x8x128xf32>
    "tpu.trace_start"() <{level = 10 : i32, message = "bqd,bkd->bqk"}> : () -> ()
    %cst_9 = arith.constant dense<0.000000e+00> : vector<32x8x8xf32>
    %16 = tpu.matmul %11, %13, %cst_9 {dimension_numbers = #tpu.dot_dimension_numbers<[2], [2], [1], [1], [0, 0, 0, 1, 1, 1], [0], [0]>} : vector<32x8x128xf32>, vector<32x8x128xf32>, vector<32x8x8xf32> -> vector<32x8x8xf32>
    "tpu.trace_stop"() : () -> ()
    %cst_10 = arith.constant 0.0883883461 : f32
    %17 = vector.broadcast %cst_10 : f32 to vector<32x8x8xf32>
    %18 = arith.mulf %16, %17 : vector<32x8x8xf32>
    %c0_11 = arith.constant 0 : index
    %c0_12 = arith.constant 0 : index
    %c0_13 = arith.constant 0 : index
    %19 = vector.load %arg3[%c0_11, %c0_12, %c0_13] : memref<32x1x8xf32, #tpu.memory_space<vmem>>, vector<32x1x8xf32>
    %20 = vector.broadcast %19 : vector<32x1x8xf32> to vector<32x8x8xf32>
    %21 = arith.addf %18, %20 : vector<32x8x8xf32>
    %cst_14 = arith.constant dense<0xFF800000> : vector<32x8xf32>
    %22 = vector.multi_reduction <maximumf>, %21, %cst_14 [2] : vector<32x8x8xf32> to vector<32x8xf32>
    %23 = vector.shape_cast %22 : vector<32x8xf32> to vector<32x8x1xf32>
    %24 = vector.broadcast %23 : vector<32x8x1xf32> to vector<32x8x8xf32>
    %25 = arith.subf %21, %24 : vector<32x8x8xf32>
    %26 = math.exp %25 : vector<32x8x8xf32>
    %cst_15 = arith.constant dense<0.000000e+00> : vector<32x8xf32>
    %27 = vector.multi_reduction <add>, %26, %cst_15 [2] : vector<32x8x8xf32> to vector<32x8xf32>
    %28 = vector.shape_cast %27 : vector<32x8xf32> to vector<32x8x1xf32>
    %29 = tpu.reciprocal %28 {approx = true} : vector<32x8x1xf32> -> vector<32x8x1xf32>
    %30 = vector.broadcast %29 : vector<32x8x1xf32> to vector<32x8x8xf32>
    %31 = arith.mulf %26, %30 : vector<32x8x8xf32>
    "tpu.trace_start"() <{level = 10 : i32, message = "bqk,bkd->bqd"}> : () -> ()
    %cst_16 = arith.constant dense<0.000000e+00> : vector<32x8x128xf32>
    %32 = tpu.matmul %31, %15, %cst_16 {dimension_numbers = #tpu.dot_dimension_numbers<[2], [1], [1], [2], [0, 0, 0, 1, 1, 2], [0], [0]>} : vector<32x8x8xf32>, vector<32x8x128xf32>, vector<32x8x128xf32> -> vector<32x8x128xf32>
    "tpu.trace_stop"() : () -> ()
    %cst_17 = arith.constant dense<0xFF800000> : vector<32x128xf32>
    %33 = vector.multi_reduction <maximumf>, %32, %cst_17 [1] : vector<32x8x128xf32> to vector<32x128xf32>
    %c0_18 = arith.constant 0 : index
    %c0_19 = arith.constant 0 : index
    %34 = vector.load %arg6[%c0_18, %c0_19] : memref<1x128xf32, #tpu.memory_space<vmem>>, vector<1x128xf32>
    %35 = vector.broadcast %34 : vector<1x128xf32> to vector<32x128xf32>
    %36 = arith.addf %33, %35 : vector<32x128xf32>
    %c0_20 = arith.constant 0 : index
    %c0_21 = arith.constant 0 : index
    %37 = vector.load %arg7[%c0_20, %c0_21] : memref<32x128xf32, #tpu.memory_space<vmem>>, vector<32x128xf32>
    tpu.vector_store %arg7[%c0_20, %c0_21], %36 {strides = array<i32>} : memref<32x128xf32, #tpu.memory_space<vmem>>, vector<32x128xf32>,
    return
  }
  func.func @transform_0(%arg0: i32) -> (i32, i32, i32) {
    %c0_i32 = arith.constant 0 : i32
    %c0_i32_0 = arith.constant 0 : i32
    %c0_i32_1 = arith.constant 0 : i32
    return %arg0, %c0_i32, %c0_i32_0 : i32, i32, i32
  }
  func.func @transform_1(%arg0: i32) -> (i32, i32, i32) {
    %c0_i32 = arith.constant 0 : i32
    %c0_i32_0 = arith.constant 0 : i32
    %c0_i32_1 = arith.constant 0 : i32
    return %arg0, %c0_i32, %c0_i32_0 : i32, i32, i32
  }
  func.func @transform_2(%arg0: i32) -> (i32, i32, i32) {
    %c0_i32 = arith.constant 0 : i32
    %c0_i32_0 = arith.constant 0 : i32
    %c0_i32_1 = arith.constant 0 : i32
    return %arg0, %c0_i32, %c0_i32_0 : i32, i32, i32
  }
  func.func @transform_3(%arg0: i32) -> (i32, i32) {
    %c0_i32 = arith.constant 0 : i32
    %c0_i32_0 = arith.constant 0 : i32
    %c0_i32_1 = arith.constant 0 : i32
    return %c0_i32, %c0_i32_0 : i32, i32
  }
  func.func @transform_4(%arg0: i32) -> (i32, i32) {
    %c0_i32 = arith.constant 0 : i32
    %c0_i32_0 = arith.constant 0 : i32
    %c0_i32_1 = arith.constant 0 : i32
    return %c0_i32, %c0_i32_0 : i32, i32
  }
  func.func @transform_5(%arg0: i32) -> (i32, i32) {
    %c0_i32 = arith.constant 0 : i32
    %c0_i32_0 = arith.constant 0 : i32
    %c0_i32_1 = arith.constant 0 : i32
    return %c0_i32, %c0_i32_0 : i32, i32
  }
  func.func @transform_6(%arg0: i32) -> (i32, i32) {
    %c0_i32 = arith.constant 0 : i32
    %c0_i32_0 = arith.constant 0 : i32
    return %arg0, %c0_i32 : i32, i32
  }
}

</mosaic_0001>

<llo_original>
// kernel: tpu_custom_call.1
$region0: #{tpu_custom_call.1}
  #allocation0 [shape = 'u32[]', space=smem, size = 0x4, offset = 0x4, fixed_abs, tag = 'smem constant byte address 0x4 - core index']
  #allocation1 [shape = 'u32[144,128]{1,0:T(1,128)}', space=vmem, size = 0x12000, scoped, tag = 'internal scratch']
  %s0 = inlined_call_operand.vmem [shape: bf16[64,8,128], index: 0, kind: input, shape index: {}]
  %s1 = inlined_call_operand.vmem [shape: bf16[64,8,1], index: 1, kind: input, shape index: {}]
  %s2 = inlined_call_operand.vmem [shape: f32[64,1,8], index: 2, kind: input, shape index: {}]
  %s3 = inlined_call_operand.hbm [shape: bf16[128,384], index: 3, kind: input, shape index: {}]
  %s4 = inlined_call_operand.vmem [shape: f32[1,384], index: 4, kind: input, shape index: {}]
  %s5 = inlined_call_operand.vmem [shape: f32[1,128], index: 5, kind: input, shape index: {}]
  %s6 = inlined_call_operand.hbm [shape: f32[64,128], index: 6, kind: output, shape index: {}]
  %s7 = sld [smem:[#allocation0]]
  $region61: #{tpu_custom_call.1} parent=0
    _
  %s9 = ssub.s32 1, %s7
  %s10 = scalar_select 0, %s9, %s7
  $region1: #{tpu_custom_call.1} parent=0
    #allocation2 [shape = 'u8[98304]{0}', space=vmem, size = 0x18000, scoped, tag = 'input window, operand 3, single buffered']
    #allocation3 [shape = 's32[2]{0}', space=sflag, size = 0x8, scoped, tag = 'scoped memory for tpu_custom_call.1']
    #allocation4 [shape = 's32[2]{0}', space=sflag, size = 0x8, scoped, tag = 'scoped memory for tpu_custom_call.1']
    #allocation5 [shape = 'u8[32768]{0}', space=vmem, size = 0x8000, scoped, tag = 'output window, operand 0']
    %11 = vsyncpa [#allocation3], 0
    %12 = vsyncpa [#allocation4], 0
    %s13 = scalar_lea.sflag [#allocation4], 1
    %14 = vsyncpa %s13, 0
    loop: start=0, step=1, limit=4
    $region2: #{tpu_custom_call.1} parent=1 // loop_pre_header
      _
    $region3: #{tpu_custom_call.1} parent=1 // loop_header
      %s16 = sphi 0, %s20
      %p17 = scmp.ge.s32.totalorder %s16, 4
      %s26 = sphi 0, %s28
      %s29 = sphi 0, %s26
      %s30 = sphi 0, %s29
      %s46 = sphi 0, %s30
      %s52 = sphi 0, %s54
      %s55 = sphi 0, %s52
      %s56 = sphi 0, %s55
      %s72 = sphi 0, %s56
      %s78 = sphi 0, %s80
      %s81 = sphi 0, %s78
      %s82 = sphi 0, %s81
      %s98 = sphi 0, %s82
      %s102 = sphi 0, %s102
      %s104 = sphi 0, %s102
      %s105 = sphi 0, %s104
      %s119 = sphi 0, %s105
      %s123 = sphi 0, %s123
      %s125 = sphi 0, %s123
      %s126 = sphi 0, %s125
      %s140 = sphi 0, %s126
      %s144 = sphi 0, %s144
      %s146 = sphi 0, %s144
      %s147 = sphi 0, %s146
      %s161 = sphi 0, %s147
      %s167 = sphi 0, %s169
      %s170 = sphi 0, %s167
      %s171 = sphi 0, %s170
      %s187 = sphi 0, %s171
    $region4: #{tpu_custom_call.1} parent=1 // loop_header_branch
      %19 = sbr.rel (%p17) target = $region8
    $region5: #{tpu_custom_call.1} parent=1 // loop_body
      %s21 = ssub.s32 %s16, 1
      %s22 = ssub.s32 %s16, 2
      %s23 = sadd.s32 %s16, 1
      %s24 = ssub.s32 %s16, %s23
      %p25 = scmp.eq.s32.totalorder %s24, 0
      %s27 = sadd.s32 %s26, 1
      %s28 = scalar_select %p25, %s26, %s27
      %p31 = pneg %p25
      %p32 = scmp.eq.s32.totalorder %s16, 1
      %p33 = por %p31, %p32
      %p34 = scmp.ne.s32.totalorder %s26, %s29
      %p35 = scmp.eq.s32.totalorder %s16, 0
      %p36 = por %p34, %p35
      %p37 = scmp.ne.s32.totalorder %s26, %s29
      %p38 = scmp.eq.s32.totalorder %s21, 1
      %p39 = por %p37, %p38
      %p40 = scmp.ne.s32.totalorder %s29, %s30
      %p41 = scmp.eq.s32.totalorder %s21, 0
      %p42 = por %p40, %p41
      %p43 = scmp.ne.s32.totalorder %s29, %s30
      %p44 = scmp.eq.s32.totalorder %s22, 1
      %p45 = por %p43, %p44
      %p47 = scmp.ne.s32.totalorder %s30, %s46
      %p48 = scmp.eq.s32.totalorder %s22, 0
      %p49 = por %p47, %p48
      %s50 = ssub.s32 %s16, %s23
      %p51 = scmp.eq.s32.totalorder %s50, 0
      %s53 = sadd.s32 %s52, 1
      %s54 = scalar_select %p51, %s52, %s53
      %p57 = pneg %p51
      %p58 = scmp.eq.s32.totalorder %s16, 1
      %p59 = por %p57, %p58
      %p60 = scmp.ne.s32.totalorder %s52, %s55
      %p61 = scmp.eq.s32.totalorder %s16, 0
      %p62 = por %p60, %p61
      %p63 = scmp.ne.s32.totalorder %s52, %s55
      %p64 = scmp.eq.s32.totalorder %s21, 1
      %p65 = por %p63, %p64
      %p66 = scmp.ne.s32.totalorder %s55, %s56
      %p67 = scmp.eq.s32.totalorder %s21, 0
      %p68 = por %p66, %p67
      %p69 = scmp.ne.s32.totalorder %s55, %s56
      %p70 = scmp.eq.s32.totalorder %s22, 1
      %p71 = por %p69, %p70
      %p73 = scmp.ne.s32.totalorder %s56, %s72
      %p74 = scmp.eq.s32.totalorder %s22, 0
      %p75 = por %p73, %p74
      %s76 = ssub.s32 %s16, %s23
      %p77 = scmp.eq.s32.totalorder %s76, 0
      %s79 = sadd.s32 %s78, 1
      %s80 = scalar_select %p77, %s78, %s79
      %p83 = pneg %p77
      %p84 = scmp.eq.s32.totalorder %s16, 1
      %p85 = por %p83, %p84
      %p86 = scmp.ne.s32.totalorder %s78, %s81
      %p87 = scmp.eq.s32.totalorder %s16, 0
      %p88 = por %p86, %p87
      %p89 = scmp.ne.s32.totalorder %s78, %s81
      %p90 = scmp.eq.s32.totalorder %s21, 1
      %p91 = por %p89, %p90
      %p92 = scmp.ne.s32.totalorder %s81, %s82
      %p93 = scmp.eq.s32.totalorder %s21, 0
      %p94 = por %p92, %p93
      %p95 = scmp.ne.s32.totalorder %s81, %s82
      %p96 = scmp.eq.s32.totalorder %s22, 1
      %p97 = por %p95, %p96
      %p99 = scmp.ne.s32.totalorder %s82, %s98
      %p100 = scmp.eq.s32.totalorder %s22, 0
      %p101 = por %p99, %p100
      %s103 = sadd.s32 %s102, 1
      %p106 = scmp.eq.s32.totalorder %s16, 1
      %p107 = scmp.ne.s32.totalorder %s102, %s104
      %p108 = scmp.eq.s32.totalorder %s16, 0
      %p109 = por %p107, %p108
      %p110 = scmp.ne.s32.totalorder %s102, %s104
      %p111 = scmp.eq.s32.totalorder %s21, 1
      %p112 = por %p110, %p111
      %p113 = scmp.ne.s32.totalorder %s104, %s105
      %p114 = scmp.eq.s32.totalorder %s21, 0
      %p115 = por %p113, %p114
      %p116 = scmp.ne.s32.totalorder %s104, %s105
      %p117 = scmp.eq.s32.totalorder %s22, 1
      %p118 = por %p116, %p117
      %p120 = scmp.ne.s32.totalorder %s105, %s119
      %p121 = scmp.eq.s32.totalorder %s22, 0
      %p122 = por %p120, %p121
      %s124 = sadd.s32 %s123, 1
      %p127 = scmp.eq.s32.totalorder %s16, 1
      %p128 = scmp.ne.s32.totalorder %s123, %s125
      %p129 = scmp.eq.s32.totalorder %s16, 0
      %p130 = por %p128, %p129
      %p131 = scmp.ne.s32.totalorder %s123, %s125
      %p132 = scmp.eq.s32.totalorder %s21, 1
      %p133 = por %p131, %p132
      %p134 = scmp.ne.s32.totalorder %s125, %s126
      %p135 = scmp.eq.s32.totalorder %s21, 0
      %p136 = por %p134, %p135
      %p137 = scmp.ne.s32.totalorder %s125, %s126
      %p138 = scmp.eq.s32.totalorder %s22, 1
      %p139 = por %p137, %p138
      %p141 = scmp.ne.s32.totalorder %s126, %s140
      %p142 = scmp.eq.s32.totalorder %s22, 0
      %p143 = por %p141, %p142
      %s145 = sadd.s32 %s144, 1
      %p148 = scmp.eq.s32.totalorder %s16, 1
      %p149 = scmp.ne.s32.totalorder %s144, %s146
      %p150 = scmp.eq.s32.totalorder %s16, 0
      %p151 = por %p149, %p150
      %p152 = scmp.ne.s32.totalorder %s144, %s146
      %p153 = scmp.eq.s32.totalorder %s21, 1
      %p154 = por %p152, %p153
      %p155 = scmp.ne.s32.totalorder %s146, %s147
      %p156 = scmp.eq.s32.totalorder %s21, 0
      %p157 = por %p155, %p156
      %p158 = scmp.ne.s32.totalorder %s146, %s147
      %p159 = scmp.eq.s32.totalorder %s22, 1
      %p160 = por %p158, %p159
      %p162 = scmp.ne.s32.totalorder %s147, %s161
      %p163 = scmp.eq.s32.totalorder %s22, 0
      %p164 = por %p162, %p163
      %s165 = ssub.s32 %s16, %s23
      %p166 = scmp.eq.s32.totalorder %s165, 0
      %s168 = sadd.s32 %s167, 1
      %s169 = scalar_select %p166, %s167, %s168
      %p172 = pneg %p166
      %p173 = scmp.eq.s32.totalorder %s16, 1
      %p174 = por %p172, %p173
      %p175 = scmp.ne.s32.totalorder %s167, %s170
      %p176 = scmp.eq.s32.totalorder %s16, 0
      %p177 = por %p175, %p176
      %p178 = scmp.ne.s32.totalorder %s167, %s170
      %p179 = scmp.eq.s32.totalorder %s21, 1
      %p180 = por %p178, %p179
      %p181 = scmp.ne.s32.totalorder %s170, %s171
      %p182 = scmp.eq.s32.totalorder %s21, 0
      %p183 = por %p181, %p182
      %p184 = scmp.ne.s32.totalorder %s170, %s171
      %p185 = scmp.eq.s32.totalorder %s22, 1
      %p186 = por %p184, %p185
      %p188 = scmp.ne.s32.totalorder %s171, %s187
      %p189 = scmp.eq.s32.totalorder %s22, 0
      %p190 = por %p188, %p189
      %p191 = scmp.le.s32.totalorder 1, %s16
      %p192 = scmp.lt.s32.totalorder %s16, 3
      %p193 = pnand %p191, %p192
      %p194 = pneg %p193
      // Predicated region
      $region9: #{tpu_custom_call.1} parent=5 // pred_check
        _
      $region10: #{tpu_custom_call.1} parent=5 // pred_check_branch
        %196 = sbr.rel (%p193) target = $region12
      $region11: #{tpu_custom_call.1} parent=5 // pred_region
        %s197 = ssub.s32 %s16, 1
        // Predicated region
        $region13: #{tpu_custom_call.1} parent=11 // pred_check
          %p198 = pneg %p115
        $region14: #{tpu_custom_call.1} parent=11 // pred_check_branch
          %200 = sbr.rel (%p198) target = $region16
        $region15: #{tpu_custom_call.1} parent=11 // pred_region
          %s202 = ssub.s32 3072, 3072
          %203 = vsyncadd [#allocation3], %s202
          %s204 = sshll.u32 [#allocation2], 4
          %s205 = int_to_ptr.vmem [resolvable:$true] %s204
          %210 = dma.hbm_to_vmem [thread:$0]  %s3, 3072, %s205, [#allocation3], 192, 192, 12
        $region16: #{tpu_custom_call.1} parent=11 // pred_fallthru
          _
        // Predicated region
        $region17: #{tpu_custom_call.1} parent=11 // pred_check
          %p211 = pneg %p136
        $region18: #{tpu_custom_call.1} parent=11 // pred_check_branch
          %213 = sbr.rel (%p211) target = $region20
        $region19: #{tpu_custom_call.1} parent=11 // pred_region
          _
        $region20: #{tpu_custom_call.1} parent=11 // pred_fallthru
          _
        // Predicated region
        $region21: #{tpu_custom_call.1} parent=11 // pred_check
          %p214 = pneg %p157
        $region22: #{tpu_custom_call.1} parent=11 // pred_check_branch
          %216 = sbr.rel (%p214) target = $region24
        $region23: #{tpu_custom_call.1} parent=11 // pred_region
          _
        $region24: #{tpu_custom_call.1} parent=11 // pred_fallthru
          _
      $region12: #{tpu_custom_call.1} parent=5 // pred_fallthru
        _
      %p217 = scmp.lt.s32.totalorder %s16, 2
      // Predicated region
      $region25: #{tpu_custom_call.1} parent=5 // pred_check
        %p218 = pneg %p217
      $region26: #{tpu_custom_call.1} parent=5 // pred_check_branch
        %220 = sbr.rel (%p218) target = $region28
      $region27: #{tpu_custom_call.1} parent=5 // pred_region
        // Predicated region
        $region29: #{tpu_custom_call.1} parent=27 // pred_check
          %p221 = pneg %p36
        $region30: #{tpu_custom_call.1} parent=27 // pred_check_branch
          %223 = sbr.rel (%p221) target = $region32
        $region31: #{tpu_custom_call.1} parent=27 // pred_region
          %s224 = smul.u32 32, %s16
          %p225 = scmp.lt.s32.totalorder %s224, 63
          %s226 = scalar_select %p225, %s224, 63
          %s227 = smul.addr %s226, 4
          %s228 = scalar_lea.vmem %s0, %s227
          %s229 = smul.u32 32, %s16
        $region32: #{tpu_custom_call.1} parent=27 // pred_fallthru
          _
        // Predicated region
        $region33: #{tpu_custom_call.1} parent=27 // pred_check
          %p230 = pneg %p62
        $region34: #{tpu_custom_call.1} parent=27 // pred_check_branch
          %232 = sbr.rel (%p230) target = $region36
        $region35: #{tpu_custom_call.1} parent=27 // pred_region
          %s233 = smul.u32 32, %s16
          %p234 = scmp.lt.s32.totalorder %s233, 63
          %s235 = scalar_select %p234, %s233, 63
          %s236 = smul.addr %s235, 4
          %s237 = scalar_lea.vmem %s1, %s236
          %s238 = smul.u32 32, %s16
        $region36: #{tpu_custom_call.1} parent=27 // pred_fallthru
          _
        // Predicated region
        $region37: #{tpu_custom_call.1} parent=27 // pred_check
          %p239 = pneg %p88
        $region38: #{tpu_custom_call.1} parent=27 // pred_check_branch
          %241 = sbr.rel (%p239) target = $region40
        $region39: #{tpu_custom_call.1} parent=27 // pred_region
          %s242 = smul.u32 32, %s16
          %p243 = scmp.lt.s32.totalorder %s242, 63
          %s244 = scalar_select %p243, %s242, 63
          %s245 = scalar_lea.vmem %s2, %s244
          %s246 = smul.u32 32, %s16
        $region40: #{tpu_custom_call.1} parent=27 // pred_fallthru
          _
      $region28: #{tpu_custom_call.1} parent=5 // pred_fallthru
        _
      %p247 = scmp.le.s32.totalorder 1, %s16
      %p248 = scmp.lt.s32.totalorder %s16, 3
      %p249 = pnand %p247, %p248
      %p250 = pneg %p249
      // Predicated region
      $region41: #{tpu_custom_call.1} parent=5 // pred_check
        _
      $region42: #{tpu_custom_call.1} parent=5 // pred_check_branch
        %252 = sbr.rel (%p249) target = $region44
      $region43: #{tpu_custom_call.1} parent=5 // pred_region
        %s253 = ssub.s32 %s16, 1
        // Predicated region
        $region45: #{tpu_custom_call.1} parent=43 // pred_check
          %p254 = pneg %p115
        $region46: #{tpu_custom_call.1} parent=43 // pred_check_branch
          %256 = sbr.rel (%p254) target = $region48
        $region47: #{tpu_custom_call.1} parent=43 // pred_region
          %257 = dma.done [#allocation3], 3072
        $region48: #{tpu_custom_call.1} parent=43 // pred_fallthru
          _
        %s258 = smul.u32 32, %s21
        %p259 = scmp.lt.s32.totalorder %s258, 63
        %s260 = scalar_select %p259, %s258, 63
        %s261 = smul.addr %s260, 4
        %s262 = scalar_lea.vmem %s0, %s261
        %p263 = pneg %p42
        %p264 = pneg %p39
        %s265 = smul.u32 32, %s21
        %p266 = scmp.lt.s32.totalorder %s265, 63
        %s267 = scalar_select %p266, %s265, 63
        %s268 = smul.addr %s267, 4
        %s269 = scalar_lea.vmem %s1, %s268
        %p270 = pneg %p68
        %p271 = pneg %p65
        %s272 = smul.u32 32, %s21
        %p273 = scmp.lt.s32.totalorder %s272, 63
        %s274 = scalar_select %p273, %s272, 63
        %s275 = scalar_lea.vmem %s2, %s274
        %p276 = pneg %p94
        %p277 = pneg %p91
        %p278 = pneg %p115
        %p279 = pneg %p112
        %p280 = pneg %p136
        %p281 = pneg %p133
        %p282 = pneg %p157
        %p283 = pneg %p154
        %p284 = pneg %p183
        %p285 = pneg %p180
        %s286 = sand.u32 %s170, 1
        %s287 = scalar_lea.sflag [#allocation4], %s286
        %s288 = sand.u32 %s170, 1
        %s289 = smul.addr %s288, 32
        %s290 = scalar_lea.vmem [#allocation5], %s289
        %s291 = smul.u32 32, %s21
        %p292 = scmp.lt.s32.totalorder %s291, 63
        %s293 = scalar_select %p292, %s291, 63
        %s294 = smul.addr %s293, 4
        %s295 = scalar_lea.vmem %s0, %s294
        %s296 = smul.u32 32, %s21
        %s297 = smul.u32 32, %s21
        %p298 = scmp.lt.s32.totalorder %s297, 63
        %s299 = scalar_select %p298, %s297, 63
        %s300 = smul.addr %s299, 4
        %s301 = scalar_lea.vmem %s1, %s300
        %s302 = smul.u32 32, %s21
        %s303 = smul.u32 32, %s21
        %p304 = scmp.lt.s32.totalorder %s303, 63
        %s305 = scalar_select %p304, %s303, 63
        %s306 = scalar_lea.vmem %s2, %s305
        %s307 = smul.u32 32, %s21
        %s308 = smul.u32 4, %s21
        %v310 = vld [vmem:[%s295] sm:$0xf]
        %v311 = vld [vmem:[%s295 + $0x4] sm:$0xf]
        %v312 = vld [vmem:[%s295 + $0x8] sm:$0xf]
        %v313 = vld [vmem:[%s295 + $0xc] sm:$0xf]
        %v314 = vld [vmem:[%s295 + $0x10] sm:$0xf]
        %v315 = vld [vmem:[%s295 + $0x14] sm:$0xf]
        %v316 = vld [vmem:[%s295 + $0x18] sm:$0xf]
        %v317 = vld [vmem:[%s295 + $0x1c] sm:$0xf]
        %v318 = vld [vmem:[%s295 + $0x20] sm:$0xf]
        %v319 = vld [vmem:[%s295 + $0x24] sm:$0xf]
        %v320 = vld [vmem:[%s295 + $0x28] sm:$0xf]
        %v321 = vld [vmem:[%s295 + $0x2c] sm:$0xf]
        %v322 = vld [vmem:[%s295 + $0x30] sm:$0xf]
        %v323 = vld [vmem:[%s295 + $0x34] sm:$0xf]
        %v324 = vld [vmem:[%s295 + $0x38] sm:$0xf]
        %v325 = vld [vmem:[%s295 + $0x3c] sm:$0xf]
        %v326 = vld [vmem:[%s295 + $0x40] sm:$0xf]
        %v327 = vld [vmem:[%s295 + $0x44] sm:$0xf]
        %v328 = vld [vmem:[%s295 + $0x48] sm:$0xf]
        %v329 = vld [vmem:[%s295 + $0x4c] sm:$0xf]
        %v330 = vld [vmem:[%s295 + $0x50] sm:$0xf]
        %v331 = vld [vmem:[%s295 + $0x54] sm:$0xf]
        %v332 = vld [vmem:[%s295 + $0x58] sm:$0xf]
        %v333 = vld [vmem:[%s295 + $0x5c] sm:$0xf]
        %v334 = vld [vmem:[%s295 + $0x60] sm:$0xf]
        %v335 = vld [vmem:[%s295 + $0x64] sm:$0xf]
        %v336 = vld [vmem:[%s295 + $0x68] sm:$0xf]
        %v337 = vld [vmem:[%s295 + $0x6c] sm:$0xf]
        %v338 = vld [vmem:[%s295 + $0x70] sm:$0xf]
        %v339 = vld [vmem:[%s295 + $0x74] sm:$0xf]
        %v340 = vld [vmem:[%s295 + $0x78] sm:$0xf]
        %v341 = vld [vmem:[%s295 + $0x7c] sm:$0xf]
        %v342 = vld [vmem:[%s301] sm:$0xf]
        %v343 = vld [vmem:[%s301 + $0x4] sm:$0xf]
        %v344 = vld [vmem:[%s301 + $0x8] sm:$0xf]
        %v345 = vld [vmem:[%s301 + $0xc] sm:$0xf]
        %v346 = vld [vmem:[%s301 + $0x10] sm:$0xf]
        %v347 = vld [vmem:[%s301 + $0x14] sm:$0xf]
        %v348 = vld [vmem:[%s301 + $0x18] sm:$0xf]
        %v349 = vld [vmem:[%s301 + $0x1c] sm:$0xf]
        %v350 = vld [vmem:[%s301 + $0x20] sm:$0xf]
        %v351 = vld [vmem:[%s301 + $0x24] sm:$0xf]
        %v352 = vld [vmem:[%s301 + $0x28] sm:$0xf]
        %v353 = vld [vmem:[%s301 + $0x2c] sm:$0xf]
        %v354 = vld [vmem:[%s301 + $0x30] sm:$0xf]
        %v355 = vld [vmem:[%s301 + $0x34] sm:$0xf]
        %v356 = vld [vmem:[%s301 + $0x38] sm:$0xf]
        %v357 = vld [vmem:[%s301 + $0x3c] sm:$0xf]
        %v358 = vld [vmem:[%s301 + $0x40] sm:$0xf]
        %v359 = vld [vmem:[%s301 + $0x44] sm:$0xf]
        %v360 = vld [vmem:[%s301 + $0x48] sm:$0xf]
        %v361 = vld [vmem:[%s301 + $0x4c] sm:$0xf]
        %v362 = vld [vmem:[%s301 + $0x50] sm:$0xf]
        %v363 = vld [vmem:[%s301 + $0x54] sm:$0xf]
        %v364 = vld [vmem:[%s301 + $0x58] sm:$0xf]
        %v365 = vld [vmem:[%s301 + $0x5c] sm:$0xf]
        %v366 = vld [vmem:[%s301 + $0x60] sm:$0xf]
        %v367 = vld [vmem:[%s301 + $0x64] sm:$0xf]
        %v368 = vld [vmem:[%s301 + $0x68] sm:$0xf]
        %v369 = vld [vmem:[%s301 + $0x6c] sm:$0xf]
        %v370 = vld [vmem:[%s301 + $0x70] sm:$0xf]
        %v371 = vld [vmem:[%s301 + $0x74] sm:$0xf]
        %v372 = vld [vmem:[%s301 + $0x78] sm:$0xf]
        %v373 = vld [vmem:[%s301 + $0x7c] sm:$0xf]
        %375 = vset.pattern.permute.xlu0 0
        %376 = vperm.xlu0 %375, %v342
        %v377 = vpop.permute.xlu0 %376
        %v380 = vunpack.c.l.s4 839922192
        %v381 = vunpack.c.0.s8 %v380
        %v382 = vlaneseq
        %v383 = vshrl.u32 %v382, 7
        %v384 = vsub.s32 %v381, %v383
        %v385 = vrot.slane %v377, %v384
        %387 = vset.pattern.permute.xlu0 0
        %388 = vperm.xlu0 %387, %v343
        %v389 = vpop.permute.xlu0 %388
        %v392 = vunpack.c.l.s4 839922192
        %v393 = vunpack.c.0.s8 %v392
        %v394 = vlaneseq
        %v395 = vshrl.u32 %v394, 7
        %v396 = vsub.s32 %v393, %v395
        %v397 = vrot.slane %v389, %v396
        %399 = vset.pattern.permute.xlu0 0
        %400 = vperm.xlu0 %399, %v344
        %v401 = vpop.permute.xlu0 %400
        %v404 = vunpack.c.l.s4 839922192
        %v405 = vunpack.c.0.s8 %v404
        %v406 = vlaneseq
        %v407 = vshrl.u32 %v406, 7
        %v408 = vsub.s32 %v405, %v407
        %v409 = vrot.slane %v401, %v408
        %411 = vset.pattern.permute.xlu0 0
        %412 = vperm.xlu0 %411, %v345
        %v413 = vpop.permute.xlu0 %412
        %v416 = vunpack.c.l.s4 839922192
        %v417 = vunpack.c.0.s8 %v416
        %v418 = vlaneseq
        %v419 = vshrl.u32 %v418, 7
        %v420 = vsub.s32 %v417, %v419
        %v421 = vrot.slane %v413, %v420
        %423 = vset.pattern.permute.xlu0 0
        %424 = vperm.xlu0 %423, %v346
        %v425 = vpop.permute.xlu0 %424
        %v428 = vunpack.c.l.s4 839922192
        %v429 = vunpack.c.0.s8 %v428
        %v430 = vlaneseq
        %v431 = vshrl.u32 %v430, 7
        %v432 = vsub.s32 %v429, %v431
        %v433 = vrot.slane %v425, %v432
        %435 = vset.pattern.permute.xlu0 0
        %436 = vperm.xlu0 %435, %v347
        %v437 = vpop.permute.xlu0 %436
        %v440 = vunpack.c.l.s4 839922192
        %v441 = vunpack.c.0.s8 %v440
        %v442 = vlaneseq
        %v443 = vshrl.u32 %v442, 7
        %v444 = vsub.s32 %v441, %v443
        %v445 = vrot.slane %v437, %v444
        %447 = vset.pattern.permute.xlu0 0
        %448 = vperm.xlu0 %447, %v348
        %v449 = vpop.permute.xlu0 %448
        %v452 = vunpack.c.l.s4 839922192
        %v453 = vunpack.c.0.s8 %v452
        %v454 = vlaneseq
        %v455 = vshrl.u32 %v454, 7
        %v456 = vsub.s32 %v453, %v455
        %v457 = vrot.slane %v449, %v456
        %459 = vset.pattern.permute.xlu0 0
        %460 = vperm.xlu0 %459, %v349
        %v461 = vpop.permute.xlu0 %460
        %v464 = vunpack.c.l.s4 839922192
        %v465 = vunpack.c.0.s8 %v464
        %v466 = vlaneseq
        %v467 = vshrl.u32 %v466, 7
        %v468 = vsub.s32 %v465, %v467
        %v469 = vrot.slane %v461, %v468
        %471 = vset.pattern.permute.xlu0 0
        %472 = vperm.xlu0 %471, %v350
        %v473 = vpop.permute.xlu0 %472
        %v476 = vunpack.c.l.s4 839922192
        %v477 = vunpack.c.0.s8 %v476
        %v478 = vlaneseq
        %v479 = vshrl.u32 %v478, 7
        %v480 = vsub.s32 %v477, %v479
        %v481 = vrot.slane %v473, %v480
        %483 = vset.pattern.permute.xlu0 0
        %484 = vperm.xlu0 %483, %v351
        %v485 = vpop.permute.xlu0 %484
        %v488 = vunpack.c.l.s4 839922192
        %v489 = vunpack.c.0.s8 %v488
        %v490 = vlaneseq
        %v491 = vshrl.u32 %v490, 7
        %v492 = vsub.s32 %v489, %v491
        %v493 = vrot.slane %v485, %v492
        %495 = vset.pattern.permute.xlu0 0
        %496 = vperm.xlu0 %495, %v352
        %v497 = vpop.permute.xlu0 %496
        %v500 = vunpack.c.l.s4 839922192
        %v501 = vunpack.c.0.s8 %v500
        %v502 = vlaneseq
        %v503 = vshrl.u32 %v502, 7
        %v504 = vsub.s32 %v501, %v503
        %v505 = vrot.slane %v497, %v504
        %507 = vset.pattern.permute.xlu0 0
        %508 = vperm.xlu0 %507, %v353
        %v509 = vpop.permute.xlu0 %508
        %v512 = vunpack.c.l.s4 839922192
        %v513 = vunpack.c.0.s8 %v512
        %v514 = vlaneseq
        %v515 = vshrl.u32 %v514, 7
        %v516 = vsub.s32 %v513, %v515
        %v517 = vrot.slane %v509, %v516
        %519 = vset.pattern.permute.xlu0 0
        %520 = vperm.xlu0 %519, %v354
        %v521 = vpop.permute.xlu0 %520
        %v524 = vunpack.c.l.s4 839922192
        %v525 = vunpack.c.0.s8 %v524
        %v526 = vlaneseq
        %v527 = vshrl.u32 %v526, 7
        %v528 = vsub.s32 %v525, %v527
        %v529 = vrot.slane %v521, %v528
        %531 = vset.pattern.permute.xlu0 0
        %532 = vperm.xlu0 %531, %v355
        %v533 = vpop.permute.xlu0 %532
        %v536 = vunpack.c.l.s4 839922192
        %v537 = vunpack.c.0.s8 %v536
        %v538 = vlaneseq
        %v539 = vshrl.u32 %v538, 7
        %v540 = vsub.s32 %v537, %v539
        %v541 = vrot.slane %v533, %v540
        %543 = vset.pattern.permute.xlu0 0
        %544 = vperm.xlu0 %543, %v356
        %v545 = vpop.permute.xlu0 %544
        %v548 = vunpack.c.l.s4 839922192
        %v549 = vunpack.c.0.s8 %v548
        %v550 = vlaneseq
        %v551 = vshrl.u32 %v550, 7
        %v552 = vsub.s32 %v549, %v551
        %v553 = vrot.slane %v545, %v552
        %555 = vset.pattern.permute.xlu0 0
        %556 = vperm.xlu0 %555, %v357
        %v557 = vpop.permute.xlu0 %556
        %v560 = vunpack.c.l.s4 839922192
        %v561 = vunpack.c.0.s8 %v560
        %v562 = vlaneseq
        %v563 = vshrl.u32 %v562, 7
        %v564 = vsub.s32 %v561, %v563
        %v565 = vrot.slane %v557, %v564
        %567 = vset.pattern.permute.xlu0 0
        %568 = vperm.xlu0 %567, %v358
        %v569 = vpop.permute.xlu0 %568
        %v572 = vunpack.c.l.s4 839922192
        %v573 = vunpack.c.0.s8 %v572
        %v574 = vlaneseq
        %v575 = vshrl.u32 %v574, 7
        %v576 = vsub.s32 %v573, %v575
        %v577 = vrot.slane %v569, %v576
        %579 = vset.pattern.permute.xlu0 0
        %580 = vperm.xlu0 %579, %v359
        %v581 = vpop.permute.xlu0 %580
        %v584 = vunpack.c.l.s4 839922192
        %v585 = vunpack.c.0.s8 %v584
        %v586 = vlaneseq
        %v587 = vshrl.u32 %v586, 7
        %v588 = vsub.s32 %v585, %v587
        %v589 = vrot.slane %v581, %v588
        %591 = vset.pattern.permute.xlu0 0
        %592 = vperm.xlu0 %591, %v360
        %v593 = vpop.permute.xlu0 %592
        %v596 = vunpack.c.l.s4 839922192
        %v597 = vunpack.c.0.s8 %v596
        %v598 = vlaneseq
        %v599 = vshrl.u32 %v598, 7
        %v600 = vsub.s32 %v597, %v599
        %v601 = vrot.slane %v593, %v600
        %603 = vset.pattern.permute.xlu0 0
        %604 = vperm.xlu0 %603, %v361
        %v605 = vpop.permute.xlu0 %604
        %v608 = vunpack.c.l.s4 839922192
        %v609 = vunpack.c.0.s8 %v608
        %v610 = vlaneseq
        %v611 = vshrl.u32 %v610, 7
        %v612 = vsub.s32 %v609, %v611
        %v613 = vrot.slane %v605, %v612
        %615 = vset.pattern.permute.xlu0 0
        %616 = vperm.xlu0 %615, %v362
        %v617 = vpop.permute.xlu0 %616
        %v620 = vunpack.c.l.s4 839922192
        %v621 = vunpack.c.0.s8 %v620
        %v622 = vlaneseq
        %v623 = vshrl.u32 %v622, 7
        %v624 = vsub.s32 %v621, %v623
        %v625 = vrot.slane %v617, %v624
        %627 = vset.pattern.permute.xlu0 0
        %628 = vperm.xlu0 %627, %v363
        %v629 = vpop.permute.xlu0 %628
        %v632 = vunpack.c.l.s4 839922192
        %v633 = vunpack.c.0.s8 %v632
        %v634 = vlaneseq
        %v635 = vshrl.u32 %v634, 7
        %v636 = vsub.s32 %v633, %v635
        %v637 = vrot.slane %v629, %v636
        %639 = vset.pattern.permute.xlu0 0
        %640 = vperm.xlu0 %639, %v364
        %v641 = vpop.permute.xlu0 %640
        %v644 = vunpack.c.l.s4 839922192
        %v645 = vunpack.c.0.s8 %v644
        %v646 = vlaneseq
        %v647 = vshrl.u32 %v646, 7
        %v648 = vsub.s32 %v645, %v647
        %v649 = vrot.slane %v641, %v648
        %651 = vset.pattern.permute.xlu0 0
        %652 = vperm.xlu0 %651, %v365
        %v653 = vpop.permute.xlu0 %652
        %v656 = vunpack.c.l.s4 839922192
        %v657 = vunpack.c.0.s8 %v656
        %v658 = vlaneseq
        %v659 = vshrl.u32 %v658, 7
        %v660 = vsub.s32 %v657, %v659
        %v661 = vrot.slane %v653, %v660
        %663 = vset.pattern.permute.xlu0 0
        %664 = vperm.xlu0 %663, %v366
        %v665 = vpop.permute.xlu0 %664
        %v668 = vunpack.c.l.s4 839922192
        %v669 = vunpack.c.0.s8 %v668
        %v670 = vlaneseq
        %v671 = vshrl.u32 %v670, 7
        %v672 = vsub.s32 %v669, %v671
        %v673 = vrot.slane %v665, %v672
        %675 = vset.pattern.permute.xlu0 0
        %676 = vperm.xlu0 %675, %v367
        %v677 = vpop.permute.xlu0 %676
        %v680 = vunpack.c.l.s4 839922192
        %v681 = vunpack.c.0.s8 %v680
        %v682 = vlaneseq
        %v683 = vshrl.u32 %v682, 7
        %v684 = vsub.s32 %v681, %v683
        %v685 = vrot.slane %v677, %v684
        %687 = vset.pattern.permute.xlu0 0
        %688 = vperm.xlu0 %687, %v368
        %v689 = vpop.permute.xlu0 %688
        %v692 = vunpack.c.l.s4 839922192
        %v693 = vunpack.c.0.s8 %v692
        %v694 = vlaneseq
        %v695 = vshrl.u32 %v694, 7
        %v696 = vsub.s32 %v693, %v695
        %v697 = vrot.slane %v689, %v696
        %699 = vset.pattern.permute.xlu0 0
        %700 = vperm.xlu0 %699, %v369
        %v701 = vpop.permute.xlu0 %700
        %v704 = vunpack.c.l.s4 839922192
        %v705 = vunpack.c.0.s8 %v704
        %v706 = vlaneseq
        %v707 = vshrl.u32 %v706, 7
        %v708 = vsub.s32 %v705, %v707
        %v709 = vrot.slane %v701, %v708
        %711 = vset.pattern.permute.xlu0 0
        %712 = vperm.xlu0 %711, %v370
        %v713 = vpop.permute.xlu0 %712
        %v716 = vunpack.c.l.s4 839922192
        %v717 = vunpack.c.0.s8 %v716
        %v718 = vlaneseq
        %v719 = vshrl.u32 %v718, 7
        %v720 = vsub.s32 %v717, %v719
        %v721 = vrot.slane %v713, %v720
        %723 = vset.pattern.permute.xlu0 0
        %724 = vperm.xlu0 %723, %v371
        %v725 = vpop.permute.xlu0 %724
        %v728 = vunpack.c.l.s4 839922192
        %v729 = vunpack.c.0.s8 %v728
        %v730 = vlaneseq
        %v731 = vshrl.u32 %v730, 7
        %v732 = vsub.s32 %v729, %v731
        %v733 = vrot.slane %v725, %v732
        %735 = vset.pattern.permute.xlu0 0
        %736 = vperm.xlu0 %735, %v372
        %v737 = vpop.permute.xlu0 %736
        %v740 = vunpack.c.l.s4 839922192
        %v741 = vunpack.c.0.s8 %v740
        %v742 = vlaneseq
        %v743 = vshrl.u32 %v742, 7
        %v744 = vsub.s32 %v741, %v743
        %v745 = vrot.slane %v737, %v744
        %747 = vset.pattern.permute.xlu0 0
        %748 = vperm.xlu0 %747, %v373
        %v749 = vpop.permute.xlu0 %748
        %v752 = vunpack.c.l.s4 839922192
        %v753 = vunpack.c.0.s8 %v752
        %v754 = vlaneseq
        %v755 = vshrl.u32 %v754, 7
        %v756 = vsub.s32 %v753, %v755
        %v757 = vrot.slane %v749, %v756
        %v758 = vmul.bf16 %v310, %v385
        %v759 = vmul.bf16 %v311, %v397
        %v760 = vmul.bf16 %v312, %v409
        %v761 = vmul.bf16 %v313, %v421
        %v762 = vmul.bf16 %v314, %v433
        %v763 = vmul.bf16 %v315, %v445
        %v764 = vmul.bf16 %v316, %v457
        %v765 = vmul.bf16 %v317, %v469
        %v766 = vmul.bf16 %v318, %v481
        %v767 = vmul.bf16 %v319, %v493
        %v768 = vmul.bf16 %v320, %v505
        %v769 = vmul.bf16 %v321, %v517
        %v770 = vmul.bf16 %v322, %v529
        %v771 = vmul.bf16 %v323, %v541
        %v772 = vmul.bf16 %v324, %v553
        %v773 = vmul.bf16 %v325, %v565
        %v774 = vmul.bf16 %v326, %v577
        %v775 = vmul.bf16 %v327, %v589
        %v776 = vmul.bf16 %v328, %v601
        %v777 = vmul.bf16 %v329, %v613
        %v778 = vmul.bf16 %v330, %v625
        %v779 = vmul.bf16 %v331, %v637
        %v780 = vmul.bf16 %v332, %v649
        %v781 = vmul.bf16 %v333, %v661
        %v782 = vmul.bf16 %v334, %v673
        %v783 = vmul.bf16 %v335, %v685
        %v784 = vmul.bf16 %v336, %v697
        %v785 = vmul.bf16 %v337, %v709
        %v786 = vmul.bf16 %v338, %v721
        %v787 = vmul.bf16 %v339, %v733
        %v788 = vmul.bf16 %v340, %v745
        %v789 = vmul.bf16 %v341, %v757
        %v790 = vld [vmem:[#allocation2] sm:$0xff]
        %v791 = vld [vmem:[#allocation2 + $0x8] sm:$0xf]
        %v792 = vld [vmem:[#allocation2 + $0xc] sm:$0xff]
        %v793 = vld [vmem:[#allocation2 + $0x14] sm:$0xf]
        %v794 = vld [vmem:[#allocation2 + $0x18] sm:$0xff]
        %v795 = vld [vmem:[#allocation2 + $0x20] sm:$0xf]
        %v796 = vld [vmem:[#allocation2 + $0x24] sm:$0xff]
        %v797 = vld [vmem:[#allocation2 + $0x2c] sm:$0xf]
        %v798 = vld [vmem:[#allocation2 + $0x30] sm:$0xff]
        %v799 = vld [vmem:[#allocation2 + $0x38] sm:$0xf]
        %v800 = vld [vmem:[#allocation2 + $0x3c] sm:$0xff]
        %v801 = vld [vmem:[#allocation2 + $0x44] sm:$0xf]
        %v802 = vld [vmem:[#allocation2 + $0x48] sm:$0xff]
        %v803 = vld [vmem:[#allocation2 + $0x50] sm:$0xf]
        %v804 = vld [vmem:[#allocation2 + $0x54] sm:$0xff]
        %v805 = vld [vmem:[#allocation2 + $0x5c] sm:$0xf]
        %v806 = vld [vmem:[#allocation2 + $0x60] sm:$0xff]
        %v807 = vld [vmem:[#allocation2 + $0x68] sm:$0xf]
        %v808 = vld [vmem:[#allocation2 + $0x6c] sm:$0xff]
        %v809 = vld [vmem:[#allocation2 + $0x74] sm:$0xf]
        %v810 = vld [vmem:[#allocation2 + $0x78] sm:$0xff]
        %v811 = vld [vmem:[#allocation2 + $0x80] sm:$0xf]
        %v812 = vld [vmem:[#allocation2 + $0x84] sm:$0xff]
        %v813 = vld [vmem:[#allocation2 + $0x8c] sm:$0xf]
        %v814 = vld [vmem:[#allocation2 + $0x90] sm:$0xff]
        %v815 = vld [vmem:[#allocation2 + $0x98] sm:$0xf]
        %v816 = vld [vmem:[#allocation2 + $0x9c] sm:$0xff]
        %v817 = vld [vmem:[#allocation2 + $0xa4] sm:$0xf]
        %v818 = vld [vmem:[#allocation2 + $0xa8] sm:$0xff]
        %v819 = vld [vmem:[#allocation2 + $0xb0] sm:$0xf]
        %v820 = vld [vmem:[#allocation2 + $0xb4] sm:$0xff]
        %v821 = vld [vmem:[#allocation2 + $0xbc] sm:$0xf]
        %v822 = vld [vmem:[%s4] sm:$0x7]
        %v824 = vlaneseq
        %v825 = vshrl.u32 %v824, 7
        %v826 = vsub.s32 0, %v825
        %v827 = vrot.slane %v822, %v826
        %v828 = vlaneseq
        %v829 = vshrl.u32 %v828, 7
        %v830 = vsub.s32 1, %v829
        %v831 = vrot.slane %v822, %v830
        %v832 = vlaneseq
        %v833 = vshrl.u32 %v832, 7
        %v834 = vsub.s32 2, %v833
        %v835 = vrot.slane %v822, %v834
        %v871 = vunpack.c.l.b16 %v758
        %v872 = vunpack.c.l.b16 %v759
        %v873 = vunpack.c.l.b16 %v760
        %v874 = vunpack.c.l.b16 %v761
        %v875 = vunpack.c.l.b16 %v762
        %v876 = vunpack.c.l.b16 %v763
        %v877 = vunpack.c.l.b16 %v764
        %v878 = vunpack.c.l.b16 %v765
        %v879 = vunpack.c.l.b16 %v766
        %v880 = vunpack.c.l.b16 %v767
        %v881 = vunpack.c.l.b16 %v768
        %v882 = vunpack.c.l.b16 %v769
        %v883 = vunpack.c.l.b16 %v770
        %v884 = vunpack.c.l.b16 %v771
        %v885 = vunpack.c.l.b16 %v772
        %v886 = vunpack.c.l.b16 %v773
        %v887 = vunpack.c.l.b16 %v774
        %v888 = vunpack.c.l.b16 %v775
        %v889 = vunpack.c.l.b16 %v776
        %v890 = vunpack.c.l.b16 %v777
        %v891 = vunpack.c.l.b16 %v778
        %v892 = vunpack.c.l.b16 %v779
        %v893 = vunpack.c.l.b16 %v780
        %v894 = vunpack.c.l.b16 %v781
        %v895 = vunpack.c.l.b16 %v782
        %v896 = vunpack.c.l.b16 %v783
        %v897 = vunpack.c.l.b16 %v784
        %v898 = vunpack.c.l.b16 %v785
        %v899 = vunpack.c.l.b16 %v786
        %v900 = vunpack.c.l.b16 %v787
        %v901 = vunpack.c.l.b16 %v788
        %v902 = vunpack.c.l.b16 %v789
        %v903 = vpack.c.b16 %v872, %v871
        %v904 = vpack.c.b16 %v874, %v873
        %v905 = vpack.c.b16 %v876, %v875
        %v906 = vpack.c.b16 %v878, %v877
        %v907 = vpack.c.b16 %v880, %v879
        %v908 = vpack.c.b16 %v882, %v881
        %v909 = vpack.c.b16 %v884, %v883
        %v910 = vpack.c.b16 %v886, %v885
        %v911 = vpack.c.b16 %v888, %v887
        %v912 = vpack.c.b16 %v890, %v889
        %v913 = vpack.c.b16 %v892, %v891
        %v914 = vpack.c.b16 %v894, %v893
        %v915 = vpack.c.b16 %v896, %v895
        %v916 = vpack.c.b16 %v898, %v897
        %v917 = vpack.c.b16 %v900, %v899
        %v918 = vpack.c.b16 %v902, %v901
        %v967 = vunpack.c.l.b16 %v790
        %v968 = vunpack.c.h.b16 %v790
        %v969 = vunpack.c.l.b16 %v791
        %v970 = vunpack.c.l.b16 %v792
        %v971 = vunpack.c.h.b16 %v792
        %v972 = vunpack.c.l.b16 %v793
        %v973 = vunpack.c.l.b16 %v794
        %v974 = vunpack.c.h.b16 %v794
        %v975 = vunpack.c.l.b16 %v795
        %v976 = vunpack.c.l.b16 %v796
        %v977 = vunpack.c.h.b16 %v796
        %v978 = vunpack.c.l.b16 %v797
        %v979 = vunpack.c.l.b16 %v798
        %v980 = vunpack.c.h.b16 %v798
        %v981 = vunpack.c.l.b16 %v799
        %v982 = vunpack.c.l.b16 %v800
        %v983 = vunpack.c.h.b16 %v800
        %v984 = vunpack.c.l.b16 %v801
        %v985 = vunpack.c.l.b16 %v802
        %v986 = vunpack.c.h.b16 %v802
        %v987 = vunpack.c.l.b16 %v803
        %v988 = vunpack.c.l.b16 %v804
        %v989 = vunpack.c.h.b16 %v804
        %v990 = vunpack.c.l.b16 %v805
        %v991 = vunpack.c.l.b16 %v806
        %v992 = vunpack.c.h.b16 %v806
        %v993 = vunpack.c.l.b16 %v807
        %v994 = vunpack.c.l.b16 %v808
        %v995 = vunpack.c.h.b16 %v808
        %v996 = vunpack.c.l.b16 %v809
        %v997 = vunpack.c.l.b16 %v810
        %v998 = vunpack.c.h.b16 %v810
        %v999 = vunpack.c.l.b16 %v811
        %v1000 = vunpack.c.l.b16 %v812
        %v1001 = vunpack.c.h.b16 %v812
        %v1002 = vunpack.c.l.b16 %v813
        %v1003 = vunpack.c.l.b16 %v814
        %v1004 = vunpack.c.h.b16 %v814
        %v1005 = vunpack.c.l.b16 %v815
        %v1006 = vunpack.c.l.b16 %v816
        %v1007 = vunpack.c.h.b16 %v816
        %v1008 = vunpack.c.l.b16 %v817
        %v1009 = vunpack.c.l.b16 %v818
        %v1010 = vunpack.c.h.b16 %v818
        %v1011 = vunpack.c.l.b16 %v819
        %v1012 = vunpack.c.l.b16 %v820
        %v1013 = vunpack.c.h.b16 %v820
        %v1014 = vunpack.c.l.b16 %v821
        %v1015 = vpack.c.b16 %v970, %v967
        %v1016 = vpack.c.b16 %v971, %v968
        %v1017 = vpack.c.b16 %v972, %v969
        %v1018 = vpack.c.b16 %v976, %v973
        %v1019 = vpack.c.b16 %v977, %v974
        %v1020 = vpack.c.b16 %v978, %v975
        %v1021 = vpack.c.b16 %v982, %v979
        %v1022 = vpack.c.b16 %v983, %v980
        %v1023 = vpack.c.b16 %v984, %v981
        %v1024 = vpack.c.b16 %v988, %v985
        %v1025 = vpack.c.b16 %v989, %v986
        %v1026 = vpack.c.b16 %v990, %v987
        %v1027 = vpack.c.b16 %v994, %v991
        %v1028 = vpack.c.b16 %v995, %v992
        %v1029 = vpack.c.b16 %v996, %v993
        %v1030 = vpack.c.b16 %v1000, %v997
        %v1031 = vpack.c.b16 %v1001, %v998
        %v1032 = vpack.c.b16 %v1002, %v999
        %v1033 = vpack.c.b16 %v1006, %v1003
        %v1034 = vpack.c.b16 %v1007, %v1004
        %v1035 = vpack.c.b16 %v1008, %v1005
        %v1036 = vpack.c.b16 %v1012, %v1009
        %v1037 = vpack.c.b16 %v1013, %v1010
        %v1038 = vpack.c.b16 %v1014, %v1011
        %1063 = vmatprep.subr.bf16.mxu0 %v1037
        %1064 = vmatpush1.bf16.msra.mxu0 %v1036
        %1065 = vmatprep.subr.bf16.mxu0 %v1034
        %1066 = vmatpush1.bf16.msra.mxu0 %v1033
        %1067 = vmatprep.subr.bf16.mxu0 %v1031
        %1068 = vmatpush1.bf16.msra.mxu0 %v1030
        %1069 = vmatprep.subr.bf16.mxu0 %v1028
        %1070 = vmatpush1.bf16.msra.mxu0 %v1027
        %1071 = vmatprep.subr.bf16.mxu0 %v1025
        %1072 = vmatpush1.bf16.msra.mxu0 %v1024
        %1073 = vmatprep.subr.bf16.mxu0 %v1022
        %1074 = vmatpush1.bf16.msra.mxu0 %v1021
        %1075 = vmatprep.subr.bf16.mxu0 %v1019
        %1076 = vmatpush1.bf16.msra.mxu0 %v1018
        %1077 = vmatprep.subr.bf16.mxu0 %v1016
        %1078 = vmatpush1.bf16.msra.mxu0 %v1015
        %1079 = vmatprep.subr.bf16.mxu0 0
        %1080 = vmatpush2.bf16.msra.mxu0 0
        %1081 = vmatprep.subr.bf16.mxu0 0
        %1082 = vmatpush2.bf16.msra.mxu0 0
        %1083 = vmatprep.subr.bf16.mxu0 0
        %1084 = vmatpush2.bf16.msra.mxu0 0
        %1085 = vmatprep.subr.bf16.mxu0 0
        %1086 = vmatpush2.bf16.msra.mxu0 0
        %1087 = vmatprep.subr.bf16.mxu0 0
        %1088 = vmatpush2.bf16.msra.mxu0 0
        %1089 = vmatprep.subr.bf16.mxu0 0
        %1090 = vmatpush2.bf16.msra.mxu0 0
        %1091 = vmatprep.subr.bf16.mxu0 0
        %1092 = vmatpush2.bf16.msra.mxu0 0
        %1093 = vmatprep.subr.bf16.mxu0 0
        %1094 = vmatpush2.bf16.msra.mxu0 0
        %1095 = vmatprep.mubr.bf16.mxu0 0
        %1096 = vmatmul.mubr.bf16.gmra.mxu0 %v903
        %v1097 = vpop.f32.mrf.mxu0
        %v1098 = vadd.f32 %v827, %v1097
        %v1099 = vpop.f32.mrf.mxu0
        %v1100 = vadd.f32 %v831, %v1099
        %v1101 = vpop.f32.mrf.mxu0
        %v1102 = vadd.f32 %v827, %v1101
        %v1103 = vpop.f32.mrf.mxu0
        %v1104 = vadd.f32 %v831, %v1103
        %1105 = vmatprep.mubr.bf16.mxu0 0
        %1106 = vmatmul.mubr.bf16.gmra.mxu0 %v904
        %v1107 = vpop.f32.mrf.mxu0
        %v1108 = vadd.f32 %v827, %v1107
        %v1109 = vpop.f32.mrf.mxu0
        %v1110 = vadd.f32 %v831, %v1109
        %v1111 = vpop.f32.mrf.mxu0
        %v1112 = vadd.f32 %v827, %v1111
        %v1113 = vpop.f32.mrf.mxu0
        %v1114 = vadd.f32 %v831, %v1113
        %1115 = vmatprep.mubr.bf16.mxu0 0
        %1116 = vmatmul.mubr.bf16.gmra.mxu0 %v905
        %v1117 = vpop.f32.mrf.mxu0
        %v1118 = vadd.f32 %v827, %v1117
        %v1119 = vpop.f32.mrf.mxu0
        %v1120 = vadd.f32 %v831, %v1119
        %v1121 = vpop.f32.mrf.mxu0
        %v1122 = vadd.f32 %v827, %v1121
        %v1123 = vpop.f32.mrf.mxu0
        %v1124 = vadd.f32 %v831, %v1123
        %1125 = vmatprep.mubr.bf16.mxu0 0
        %1126 = vmatmul.mubr.bf16.gmra.mxu0 %v906
        %v1127 = vpop.f32.mrf.mxu0
        %v1128 = vadd.f32 %v827, %v1127
        %v1129 = vpop.f32.mrf.mxu0
        %v1130 = vadd.f32 %v831, %v1129
        %v1131 = vpop.f32.mrf.mxu0
        %v1132 = vadd.f32 %v827, %v1131
        %v1133 = vpop.f32.mrf.mxu0
        %v1134 = vadd.f32 %v831, %v1133
        %1135 = vmatprep.mubr.bf16.mxu0 0
        %1136 = vmatmul.mubr.bf16.gmra.mxu0 %v907
        %v1137 = vpop.f32.mrf.mxu0
        %v1138 = vadd.f32 %v827, %v1137
        %v1139 = vpop.f32.mrf.mxu0
        %v1140 = vadd.f32 %v831, %v1139
        %v1141 = vpop.f32.mrf.mxu0
        %v1142 = vadd.f32 %v827, %v1141
        %v1143 = vpop.f32.mrf.mxu0
        %v1144 = vadd.f32 %v831, %v1143
        %1145 = vmatprep.mubr.bf16.mxu0 0
        %1146 = vmatmul.mubr.bf16.gmra.mxu0 %v908
        %v1147 = vpop.f32.mrf.mxu0
        %v1148 = vadd.f32 %v827, %v1147
        %v1149 = vpop.f32.mrf.mxu0
        %v1150 = vadd.f32 %v831, %v1149
        %v1151 = vpop.f32.mrf.mxu0
        %v1152 = vadd.f32 %v827, %v1151
        %v1153 = vpop.f32.mrf.mxu0
        %v1154 = vadd.f32 %v831, %v1153
        %1155 = vmatprep.mubr.bf16.mxu0 0
        %1156 = vmatmul.mubr.bf16.gmra.mxu0 %v909
        %v1157 = vpop.f32.mrf.mxu0
        %v1158 = vadd.f32 %v827, %v1157
        %v1159 = vpop.f32.mrf.mxu0
        %v1160 = vadd.f32 %v831, %v1159
        %v1161 = vpop.f32.mrf.mxu0
        %v1162 = vadd.f32 %v827, %v1161
        %v1163 = vpop.f32.mrf.mxu0
        %v1164 = vadd.f32 %v831, %v1163
        %1165 = vmatprep.mubr.bf16.mxu0 0
        %1166 = vmatmul.mubr.bf16.gmra.mxu0 %v910
        %v1167 = vpop.f32.mrf.mxu0
        %v1168 = vadd.f32 %v827, %v1167
        %v1169 = vpop.f32.mrf.mxu0
        %v1170 = vadd.f32 %v831, %v1169
        %v1171 = vpop.f32.mrf.mxu0
        %v1172 = vadd.f32 %v827, %v1171
        %v1173 = vpop.f32.mrf.mxu0
        %v1174 = vadd.f32 %v831, %v1173
        %1175 = vmatprep.mubr.bf16.mxu0 0
        %1176 = vmatmul.mubr.bf16.gmra.mxu0 %v911
        %v1177 = vpop.f32.mrf.mxu0
        %v1178 = vadd.f32 %v827, %v1177
        %v1179 = vpop.f32.mrf.mxu0
        %v1180 = vadd.f32 %v831, %v1179
        %v1181 = vpop.f32.mrf.mxu0
        %v1182 = vadd.f32 %v827, %v1181
        %v1183 = vpop.f32.mrf.mxu0
        %v1184 = vadd.f32 %v831, %v1183
        %1185 = vmatprep.mubr.bf16.mxu0 0
        %1186 = vmatmul.mubr.bf16.gmra.mxu0 %v912
        %v1187 = vpop.f32.mrf.mxu0
        %v1188 = vadd.f32 %v827, %v1187
        %v1189 = vpop.f32.mrf.mxu0
        %v1190 = vadd.f32 %v831, %v1189
        %v1191 = vpop.f32.mrf.mxu0
        %v1192 = vadd.f32 %v827, %v1191
        %v1193 = vpop.f32.mrf.mxu0
        %v1194 = vadd.f32 %v831, %v1193
        %1195 = vmatprep.mubr.bf16.mxu0 0
        %1196 = vmatmul.mubr.bf16.gmra.mxu0 %v913
        %v1197 = vpop.f32.mrf.mxu0
        %v1198 = vadd.f32 %v827, %v1197
        %v1199 = vpop.f32.mrf.mxu0
        %v1200 = vadd.f32 %v831, %v1199
        %v1201 = vpop.f32.mrf.mxu0
        %v1202 = vadd.f32 %v827, %v1201
        %v1203 = vpop.f32.mrf.mxu0
        %v1204 = vadd.f32 %v831, %v1203
        %1205 = vmatprep.mubr.bf16.mxu0 0
        %1206 = vmatmul.mubr.bf16.gmra.mxu0 %v914
        %v1207 = vpop.f32.mrf.mxu0
        %v1208 = vadd.f32 %v827, %v1207
        %v1209 = vpop.f32.mrf.mxu0
        %v1210 = vadd.f32 %v831, %v1209
        %v1211 = vpop.f32.mrf.mxu0
        %v1212 = vadd.f32 %v827, %v1211
        %v1213 = vpop.f32.mrf.mxu0
        %v1214 = vadd.f32 %v831, %v1213
        %1215 = vmatprep.mubr.bf16.mxu0 0
        %1216 = vmatmul.mubr.bf16.gmra.mxu0 %v915
        %v1217 = vpop.f32.mrf.mxu0
        %v1218 = vadd.f32 %v827, %v1217
        %v1219 = vpop.f32.mrf.mxu0
        %v1220 = vadd.f32 %v831, %v1219
        %v1221 = vpop.f32.mrf.mxu0
        %v1222 = vadd.f32 %v827, %v1221
        %v1223 = vpop.f32.mrf.mxu0
        %v1224 = vadd.f32 %v831, %v1223
        %1225 = vmatprep.mubr.bf16.mxu0 0
        %1226 = vmatmul.mubr.bf16.gmra.mxu0 %v916
        %v1227 = vpop.f32.mrf.mxu0
        %v1228 = vadd.f32 %v827, %v1227
        %v1229 = vpop.f32.mrf.mxu0
        %v1230 = vadd.f32 %v831, %v1229
        %v1231 = vpop.f32.mrf.mxu0
        %v1232 = vadd.f32 %v827, %v1231
        %v1233 = vpop.f32.mrf.mxu0
        %v1234 = vadd.f32 %v831, %v1233
        %1235 = vmatprep.mubr.bf16.mxu0 0
        %1236 = vmatmul.mubr.bf16.gmra.mxu0 %v917
        %v1237 = vpop.f32.mrf.mxu0
        %v1238 = vadd.f32 %v827, %v1237
        %v1239 = vpop.f32.mrf.mxu0
        %v1240 = vadd.f32 %v831, %v1239
        %v1241 = vpop.f32.mrf.mxu0
        %v1242 = vadd.f32 %v827, %v1241
        %v1243 = vpop.f32.mrf.mxu0
        %v1244 = vadd.f32 %v831, %v1243
        %1245 = vmatprep.mubr.bf16.mxu0 0
        %1246 = vmatmul.mubr.bf16.gmra.mxu0 %v918
        %v1247 = vpop.f32.mrf.mxu0
        %v1248 = vadd.f32 %v827, %v1247
        %v1249 = vpop.f32.mrf.mxu0
        %v1250 = vadd.f32 %v831, %v1249
        %v1251 = vpop.f32.mrf.mxu0
        %v1252 = vadd.f32 %v827, %v1251
        %v1253 = vpop.f32.mrf.mxu0
        %v1254 = vadd.f32 %v831, %v1253
        %1255 = vdwg.mxu0
        %1256 = vmatprep.subr.bf16.mxu0 0
        %1257 = vmatpush1.bf16.msra.mxu0 %v1038
        %1258 = vmatprep.subr.bf16.mxu0 0
        %1259 = vmatpush1.bf16.msra.mxu0 %v1035
        %1260 = vmatprep.subr.bf16.mxu0 0
        %1261 = vmatpush1.bf16.msra.mxu0 %v1032
        %1262 = vmatprep.subr.bf16.mxu0 0
        %1263 = vmatpush1.bf16.msra.mxu0 %v1029
        %1264 = vmatprep.subr.bf16.mxu0 0
        %1265 = vmatpush1.bf16.msra.mxu0 %v1026
        %1266 = vmatprep.subr.bf16.mxu0 0
        %1267 = vmatpush1.bf16.msra.mxu0 %v1023
        %1268 = vmatprep.subr.bf16.mxu0 0
        %1269 = vmatpush1.bf16.msra.mxu0 %v1020
        %1270 = vmatprep.subr.bf16.mxu0 0
        %1271 = vmatpush1.bf16.msra.mxu0 %v1017
        %1272 = vmatprep.subr.bf16.mxu0 0
        %1273 = vmatpush2.bf16.msra.mxu0 0
        %1274 = vmatprep.subr.bf16.mxu0 0
        %1275 = vmatpush2.bf16.msra.mxu0 0
        %1276 = vmatprep.subr.bf16.mxu0 0
        %1277 = vmatpush2.bf16.msra.mxu0 0
        %1278 = vmatprep.subr.bf16.mxu0 0
        %1279 = vmatpush2.bf16.msra.mxu0 0
        %1280 = vmatprep.subr.bf16.mxu0 0
        %1281 = vmatpush2.bf16.msra.mxu0 0
        %1282 = vmatprep.subr.bf16.mxu0 0
        %1283 = vmatpush2.bf16.msra.mxu0 0
        %1284 = vmatprep.subr.bf16.mxu0 0
        %1285 = vmatpush2.bf16.msra.mxu0 0
        %1286 = vmatprep.subr.bf16.mxu0 0
        %1287 = vmatpush2.bf16.msra.mxu0 0
        %1288 = vmatprep.mubr.bf16.mxu0 0
        %1289 = vmatmul.mubr.bf16.gmra.mxu0 %v903
        %v1290 = vpop.f32.mrf.mxu0
        %v1291 = vadd.f32 %v835, %v1290
        %v1292 = vpop.f32.mrf.mxu0
        %v1293 = vpop.f32.mrf.mxu0
        %v1294 = vadd.f32 %v835, %v1293
        %v1295 = vpop.f32.mrf.mxu0
        %1296 = vmatprep.mubr.bf16.mxu0 0
        %1297 = vmatmul.mubr.bf16.gmra.mxu0 %v904
        %v1298 = vpop.f32.mrf.mxu0
        %v1299 = vadd.f32 %v835, %v1298
        %v1300 = vpop.f32.mrf.mxu0
        %v1301 = vpop.f32.mrf.mxu0
        %v1302 = vadd.f32 %v835, %v1301
        %v1303 = vpop.f32.mrf.mxu0
        %1304 = vmatprep.mubr.bf16.mxu0 0
        %1305 = vmatmul.mubr.bf16.gmra.mxu0 %v905
        %v1306 = vpop.f32.mrf.mxu0
        %v1307 = vadd.f32 %v835, %v1306
        %v1308 = vpop.f32.mrf.mxu0
        %v1309 = vpop.f32.mrf.mxu0
        %v1310 = vadd.f32 %v835, %v1309
        %v1311 = vpop.f32.mrf.mxu0
        %1312 = vmatprep.mubr.bf16.mxu0 0
        %1313 = vmatmul.mubr.bf16.gmra.mxu0 %v906
        %v1314 = vpop.f32.mrf.mxu0
        %v1315 = vadd.f32 %v835, %v1314
        %v1316 = vpop.f32.mrf.mxu0
        %v1317 = vpop.f32.mrf.mxu0
        %v1318 = vadd.f32 %v835, %v1317
        %v1319 = vpop.f32.mrf.mxu0
        %1320 = vmatprep.mubr.bf16.mxu0 0
        %1321 = vmatmul.mubr.bf16.gmra.mxu0 %v907
        %v1322 = vpop.f32.mrf.mxu0
        %v1323 = vadd.f32 %v835, %v1322
        %v1324 = vpop.f32.mrf.mxu0
        %v1325 = vpop.f32.mrf.mxu0
        %v1326 = vadd.f32 %v835, %v1325
        %v1327 = vpop.f32.mrf.mxu0
        %1328 = vmatprep.mubr.bf16.mxu0 0
        %1329 = vmatmul.mubr.bf16.gmra.mxu0 %v908
        %v1330 = vpop.f32.mrf.mxu0
        %v1331 = vadd.f32 %v835, %v1330
        %v1332 = vpop.f32.mrf.mxu0
        %v1333 = vpop.f32.mrf.mxu0
        %v1334 = vadd.f32 %v835, %v1333
        %v1335 = vpop.f32.mrf.mxu0
        %1336 = vmatprep.mubr.bf16.mxu0 0
        %1337 = vmatmul.mubr.bf16.gmra.mxu0 %v909
        %v1338 = vpop.f32.mrf.mxu0
        %v1339 = vadd.f32 %v835, %v1338
        %v1340 = vpop.f32.mrf.mxu0
        %v1341 = vpop.f32.mrf.mxu0
        %v1342 = vadd.f32 %v835, %v1341
        %v1343 = vpop.f32.mrf.mxu0
        %1344 = vmatprep.mubr.bf16.mxu0 0
        %1345 = vmatmul.mubr.bf16.gmra.mxu0 %v910
        %v1346 = vpop.f32.mrf.mxu0
        %v1347 = vadd.f32 %v835, %v1346
        %v1348 = vpop.f32.mrf.mxu0
        %v1349 = vpop.f32.mrf.mxu0
        %v1350 = vadd.f32 %v835, %v1349
        %v1351 = vpop.f32.mrf.mxu0
        %1352 = vmatprep.mubr.bf16.mxu0 0
        %1353 = vmatmul.mubr.bf16.gmra.mxu0 %v911
        %v1354 = vpop.f32.mrf.mxu0
        %v1355 = vadd.f32 %v835, %v1354
        %v1356 = vpop.f32.mrf.mxu0
        %v1357 = vpop.f32.mrf.mxu0
        %v1358 = vadd.f32 %v835, %v1357
        %v1359 = vpop.f32.mrf.mxu0
        %1360 = vmatprep.mubr.bf16.mxu0 0
        %1361 = vmatmul.mubr.bf16.gmra.mxu0 %v912
        %v1362 = vpop.f32.mrf.mxu0
        %v1363 = vadd.f32 %v835, %v1362
        %v1364 = vpop.f32.mrf.mxu0
        %v1365 = vpop.f32.mrf.mxu0
        %v1366 = vadd.f32 %v835, %v1365
        %v1367 = vpop.f32.mrf.mxu0
        %1368 = vmatprep.mubr.bf16.mxu0 0
        %1369 = vmatmul.mubr.bf16.gmra.mxu0 %v913
        %v1370 = vpop.f32.mrf.mxu0
        %v1371 = vadd.f32 %v835, %v1370
        %v1372 = vpop.f32.mrf.mxu0
        %v1373 = vpop.f32.mrf.mxu0
        %v1374 = vadd.f32 %v835, %v1373
        %v1375 = vpop.f32.mrf.mxu0
        %1376 = vmatprep.mubr.bf16.mxu0 0
        %1377 = vmatmul.mubr.bf16.gmra.mxu0 %v914
        %v1378 = vpop.f32.mrf.mxu0
        %v1379 = vadd.f32 %v835, %v1378
        %v1380 = vpop.f32.mrf.mxu0
        %v1381 = vpop.f32.mrf.mxu0
        %v1382 = vadd.f32 %v835, %v1381
        %v1383 = vpop.f32.mrf.mxu0
        %1384 = vmatprep.mubr.bf16.mxu0 0
        %1385 = vmatmul.mubr.bf16.gmra.mxu0 %v915
        %v1386 = vpop.f32.mrf.mxu0
        %v1387 = vadd.f32 %v835, %v1386
        %v1388 = vpop.f32.mrf.mxu0
        %v1389 = vpop.f32.mrf.mxu0
        %v1390 = vadd.f32 %v835, %v1389
        %v1391 = vpop.f32.mrf.mxu0
        %1392 = vmatprep.mubr.bf16.mxu0 0
        %1393 = vmatmul.mubr.bf16.gmra.mxu0 %v916
        %v1394 = vpop.f32.mrf.mxu0
        %v1395 = vadd.f32 %v835, %v1394
        %v1396 = vpop.f32.mrf.mxu0
        %v1397 = vpop.f32.mrf.mxu0
        %v1398 = vadd.f32 %v835, %v1397
        %v1399 = vpop.f32.mrf.mxu0
        %1400 = vmatprep.mubr.bf16.mxu0 0
        %1401 = vmatmul.mubr.bf16.gmra.mxu0 %v917
        %v1402 = vpop.f32.mrf.mxu0
        %v1403 = vadd.f32 %v835, %v1402
        %v1404 = vpop.f32.mrf.mxu0
        %v1405 = vpop.f32.mrf.mxu0
        %v1406 = vadd.f32 %v835, %v1405
        %v1407 = vpop.f32.mrf.mxu0
        %1408 = vmatprep.mubr.bf16.mxu0 0
        %1409 = vmatmul.mubr.bf16.gmra.mxu0 %v918
        %v1410 = vpop.f32.mrf.mxu0
        %v1411 = vadd.f32 %v835, %v1410
        %v1412 = vpop.f32.mrf.mxu0
        %v1413 = vpop.f32.mrf.mxu0
        %v1414 = vadd.f32 %v835, %v1413
        %v1415 = vpop.f32.mrf.mxu0
        %1416 = vdwg.mxu0
        %1417 = vmatprep.subr.mxu0 0.0
        %1418 = vmatpush1.xpose.msra.mxu0 0.0
        %1419 = vmatprep.subr.mxu0 0.0
        %1420 = vmatpush1.xpose.msra.mxu0 0.0
        %1421 = vmatprep.subr.mxu0 0.0
        %1422 = vmatpush1.xpose.msra.mxu0 0.0
        %1423 = vmatprep.subr.mxu0 0.0
        %1424 = vmatpush1.xpose.msra.mxu0 0.0
        %1425 = vmatprep.subr.mxu0 0.0
        %1426 = vmatpush1.xpose.msra.mxu0 0.0
        %1427 = vmatprep.subr.mxu0 0.0
        %1428 = vmatpush1.xpose.msra.mxu0 0.0
        %1429 = vmatprep.subr.mxu0 0.0
        %1430 = vmatpush1.xpose.msra.mxu0 0.0
        %1431 = vmatprep.subr.mxu0 0.0
        %1432 = vmatpush1.xpose.msra.mxu0 0.0
        %1433 = vmatprep.subr.mxu0 0.0
        %1434 = vmatpush1.xpose.msra.mxu0 0.0
        %1435 = vmatprep.subr.mxu0 0.0
        %1436 = vmatpush1.xpose.msra.mxu0 0.0
        %1437 = vmatprep.subr.mxu0 0.0
        %1438 = vmatpush1.xpose.msra.mxu0 0.0
        %1439 = vmatprep.subr.mxu0 0.0
        %1440 = vmatpush1.xpose.msra.mxu0 0.0
        %1441 = vmatprep.subr.mxu0 0.0
        %1442 = vmatpush1.xpose.msra.mxu0 0.0
        %1443 = vmatprep.subr.mxu0 0.0
        %1444 = vmatpush1.xpose.msra.mxu0 0.0
        %1445 = vmatprep.subr.mxu0 0.0
        %1446 = vmatpush1.xpose.msra.mxu0 0.0
        %1447 = vmatprep.subr.mxu0 0.0
        %1448 = vmatpush1.xpose.msra.mxu0 %v1100
        %1449 = vmatprep.subr.mxu0 0.0
        %1450 = vmatpush2.xpose.msra.mxu0 0.0
        %1451 = vmatprep.subr.mxu0 0.0
        %1452 = vmatpush2.xpose.msra.mxu0 0.0
        %1453 = vmatprep.subr.mxu0 0.0
        %1454 = vmatpush2.xpose.msra.mxu0 0.0
        %1455 = vmatprep.subr.mxu0 0.0
        %1456 = vmatpush2.xpose.msra.mxu0 0.0
        %1457 = vmatprep.subr.mxu0 0.0
        %1458 = vmatpush2.xpose.msra.mxu0 0.0
        %1459 = vmatprep.subr.mxu0 0.0
        %1460 = vmatpush2.xpose.msra.mxu0 0.0
        %1461 = vmatprep.subr.mxu0 0.0
        %1462 = vmatpush2.xpose.msra.mxu0 0.0
        %1463 = vmatprep.subr.mxu0 0.0
        %1464 = vmatpush2.xpose.msra.mxu0 0.0
        %1465 = vmatprep.subr.mxu0 0.0
        %1466 = vmatpush2.xpose.msra.mxu0 0.0
        %1467 = vmatprep.subr.mxu0 0.0
        %1468 = vmatpush2.xpose.msra.mxu0 0.0
        %1469 = vmatprep.subr.mxu0 0.0
        %1470 = vmatpush2.xpose.msra.mxu0 0.0
        %1471 = vmatprep.subr.mxu0 0.0
        %1472 = vmatpush2.xpose.msra.mxu0 0.0
        %1473 = vmatprep.subr.mxu0 0.0
        %1474 = vmatpush2.xpose.msra.mxu0 0.0
        %1475 = vmatprep.subr.mxu0 0.0
        %1476 = vmatpush2.xpose.msra.mxu0 0.0
        %1477 = vmatprep.subr.mxu0 0.0
        %1478 = vmatpush2.xpose.msra.mxu0 0.0
        %1479 = vmatprep.subr.mxu0 0.0
        %1480 = vmatpush2.xpose.msra.mxu0 0.0
        %1481 = vmatprep.mubr.f32.mxu0 0.0
        %1482 = vmatmul.mubr.f32.gmra.mxu0 %v1098
        %v1483 = vpop.f32.mrf.mxu0
        %v1484 = vadd.f32 0.0, %v1483
        %v1485 = vpop.f32.mrf.mxu0
        %1486 = vdwg.mxu0
        %1487 = vmatprep.subr.mxu0 0.0
        %1488 = vmatpush1.xpose.msra.mxu0 0.0
        %1489 = vmatprep.subr.mxu0 0.0
        %1490 = vmatpush1.xpose.msra.mxu0 0.0
        %1491 = vmatprep.subr.mxu0 0.0
        %1492 = vmatpush1.xpose.msra.mxu0 0.0
        %1493 = vmatprep.subr.mxu0 0.0
        %1494 = vmatpush1.xpose.msra.mxu0 0.0
        %1495 = vmatprep.subr.mxu0 0.0
        %1496 = vmatpush1.xpose.msra.mxu0 0.0
        %1497 = vmatprep.subr.mxu0 0.0
        %1498 = vmatpush1.xpose.msra.mxu0 0.0
        %1499 = vmatprep.subr.mxu0 0.0
        %1500 = vmatpush1.xpose.msra.mxu0 0.0
        %1501 = vmatprep.subr.mxu0 0.0
        %1502 = vmatpush1.xpose.msra.mxu0 0.0
        %1503 = vmatprep.subr.mxu0 0.0
        %1504 = vmatpush1.xpose.msra.mxu0 0.0
        %1505 = vmatprep.subr.mxu0 0.0
        %1506 = vmatpush1.xpose.msra.mxu0 0.0
        %1507 = vmatprep.subr.mxu0 0.0
        %1508 = vmatpush1.xpose.msra.mxu0 0.0
        %1509 = vmatprep.subr.mxu0 0.0
        %1510 = vmatpush1.xpose.msra.mxu0 0.0
        %1511 = vmatprep.subr.mxu0 0.0
        %1512 = vmatpush1.xpose.msra.mxu0 0.0
        %1513 = vmatprep.subr.mxu0 0.0
        %1514 = vmatpush1.xpose.msra.mxu0 0.0
        %1515 = vmatprep.subr.mxu0 0.0
        %1516 = vmatpush1.xpose.msra.mxu0 0.0
        %1517 = vmatprep.subr.mxu0 0.0
        %1518 = vmatpush1.xpose.msra.mxu0 %v1104
        %1519 = vmatprep.subr.mxu0 0.0
        %1520 = vmatpush2.xpose.msra.mxu0 0.0
        %1521 = vmatprep.subr.mxu0 0.0
        %1522 = vmatpush2.xpose.msra.mxu0 0.0
        %1523 = vmatprep.subr.mxu0 0.0
        %1524 = vmatpush2.xpose.msra.mxu0 0.0
        %1525 = vmatprep.subr.mxu0 0.0
        %1526 = vmatpush2.xpose.msra.mxu0 0.0
        %1527 = vmatprep.subr.mxu0 0.0
        %1528 = vmatpush2.xpose.msra.mxu0 0.0
        %1529 = vmatprep.subr.mxu0 0.0
        %1530 = vmatpush2.xpose.msra.mxu0 0.0
        %1531 = vmatprep.subr.mxu0 0.0
        %1532 = vmatpush2.xpose.msra.mxu0 0.0
        %1533 = vmatprep.subr.mxu0 0.0
        %1534 = vmatpush2.xpose.msra.mxu0 0.0
        %1535 = vmatprep.subr.mxu0 0.0
        %1536 = vmatpush2.xpose.msra.mxu0 0.0
        %1537 = vmatprep.subr.mxu0 0.0
        %1538 = vmatpush2.xpose.msra.mxu0 0.0
        %1539 = vmatprep.subr.mxu0 0.0
        %1540 = vmatpush2.xpose.msra.mxu0 0.0
        %1541 = vmatprep.subr.mxu0 0.0
        %1542 = vmatpush2.xpose.msra.mxu0 0.0
        %1543 = vmatprep.subr.mxu0 0.0
        %1544 = vmatpush2.xpose.msra.mxu0 0.0
        %1545 = vmatprep.subr.mxu0 0.0
        %1546 = vmatpush2.xpose.msra.mxu0 0.0
        %1547 = vmatprep.subr.mxu0 0.0
        %1548 = vmatpush2.xpose.msra.mxu0 0.0
        %1549 = vmatprep.subr.mxu0 0.0
        %1550 = vmatpush2.xpose.msra.mxu0 0.0
        %1551 = vmatprep.mubr.f32.mxu0 0.0
        %1552 = vmatmul.mubr.f32.gmra.mxu0 %v1102
        %v1553 = vpop.f32.mrf.mxu0
        %v1554 = vadd.f32 0.0, %v1553
        %v1555 = vpop.f32.mrf.mxu0
        %1556 = vdwg.mxu0
        %1557 = vmatprep.subr.mxu0 0.0
        %1558 = vmatpush1.xpose.msra.mxu0 0.0
        %1559 = vmatprep.subr.mxu0 0.0
        %1560 = vmatpush1.xpose.msra.mxu0 0.0
        %1561 = vmatprep.subr.mxu0 0.0
        %1562 = vmatpush1.xpose.msra.mxu0 0.0
        %1563 = vmatprep.subr.mxu0 0.0
        %1564 = vmatpush1.xpose.msra.mxu0 0.0
        %1565 = vmatprep.subr.mxu0 0.0
        %1566 = vmatpush1.xpose.msra.mxu0 0.0
        %1567 = vmatprep.subr.mxu0 0.0
        %1568 = vmatpush1.xpose.msra.mxu0 0.0
        %1569 = vmatprep.subr.mxu0 0.0
        %1570 = vmatpush1.xpose.msra.mxu0 0.0
        %1571 = vmatprep.subr.mxu0 0.0
        %1572 = vmatpush1.xpose.msra.mxu0 0.0
        %1573 = vmatprep.subr.mxu0 0.0
        %1574 = vmatpush1.xpose.msra.mxu0 0.0
        %1575 = vmatprep.subr.mxu0 0.0
        %1576 = vmatpush1.xpose.msra.mxu0 0.0
        %1577 = vmatprep.subr.mxu0 0.0
        %1578 = vmatpush1.xpose.msra.mxu0 0.0
        %1579 = vmatprep.subr.mxu0 0.0
        %1580 = vmatpush1.xpose.msra.mxu0 0.0
        %1581 = vmatprep.subr.mxu0 0.0
        %1582 = vmatpush1.xpose.msra.mxu0 0.0
        %1583 = vmatprep.subr.mxu0 0.0
        %1584 = vmatpush1.xpose.msra.mxu0 0.0
        %1585 = vmatprep.subr.mxu0 0.0
        %1586 = vmatpush1.xpose.msra.mxu0 0.0
        %1587 = vmatprep.subr.mxu0 0.0
        %1588 = vmatpush1.xpose.msra.mxu0 %v1110
        %1589 = vmatprep.subr.mxu0 0.0
        %1590 = vmatpush2.xpose.msra.mxu0 0.0
        %1591 = vmatprep.subr.mxu0 0.0
        %1592 = vmatpush2.xpose.msra.mxu0 0.0
        %1593 = vmatprep.subr.mxu0 0.0
        %1594 = vmatpush2.xpose.msra.mxu0 0.0
        %1595 = vmatprep.subr.mxu0 0.0
        %1596 = vmatpush2.xpose.msra.mxu0 0.0
        %1597 = vmatprep.subr.mxu0 0.0
        %1598 = vmatpush2.xpose.msra.mxu0 0.0
        %1599 = vmatprep.subr.mxu0 0.0
        %1600 = vmatpush2.xpose.msra.mxu0 0.0
        %1601 = vmatprep.subr.mxu0 0.0
        %1602 = vmatpush2.xpose.msra.mxu0 0.0
        %1603 = vmatprep.subr.mxu0 0.0
        %1604 = vmatpush2.xpose.msra.mxu0 0.0
        %1605 = vmatprep.subr.mxu0 0.0
        %1606 = vmatpush2.xpose.msra.mxu0 0.0
        %1607 = vmatprep.subr.mxu0 0.0
        %1608 = vmatpush2.xpose.msra.mxu0 0.0
        %1609 = vmatprep.subr.mxu0 0.0
        %1610 = vmatpush2.xpose.msra.mxu0 0.0
        %1611 = vmatprep.subr.mxu0 0.0
        %1612 = vmatpush2.xpose.msra.mxu0 0.0
        %1613 = vmatprep.subr.mxu0 0.0
        %1614 = vmatpush2.xpose.msra.mxu0 0.0
        %1615 = vmatprep.subr.mxu0 0.0
        %1616 = vmatpush2.xpose.msra.mxu0 0.0
        %1617 = vmatprep.subr.mxu0 0.0
        %1618 = vmatpush2.xpose.msra.mxu0 0.0
        %1619 = vmatprep.subr.mxu0 0.0
        %1620 = vmatpush2.xpose.msra.mxu0 0.0
        %1621 = vmatprep.mubr.f32.mxu0 0.0
        %1622 = vmatmul.mubr.f32.gmra.mxu0 %v1108
        %v1623 = vpop.f32.mrf.mxu0
        %v1624 = vadd.f32 0.0, %v1623
        %v1625 = vpop.f32.mrf.mxu0
        %1626 = vdwg.mxu0
        %1627 = vmatprep.subr.mxu0 0.0
        %1628 = vmatpush1.xpose.msra.mxu0 0.0
        %1629 = vmatprep.subr.mxu0 0.0
        %1630 = vmatpush1.xpose.msra.mxu0 0.0
        %1631 = vmatprep.subr.mxu0 0.0
        %1632 = vmatpush1.xpose.msra.mxu0 0.0
        %1633 = vmatprep.subr.mxu0 0.0
        %1634 = vmatpush1.xpose.msra.mxu0 0.0
        %1635 = vmatprep.subr.mxu0 0.0
        %1636 = vmatpush1.xpose.msra.mxu0 0.0
        %1637 = vmatprep.subr.mxu0 0.0
        %1638 = vmatpush1.xpose.msra.mxu0 0.0
        %1639 = vmatprep.subr.mxu0 0.0
        %1640 = vmatpush1.xpose.msra.mxu0 0.0
        %1641 = vmatprep.subr.mxu0 0.0
        %1642 = vmatpush1.xpose.msra.mxu0 0.0
        %1643 = vmatprep.subr.mxu0 0.0
        %1644 = vmatpush1.xpose.msra.mxu0 0.0
        %1645 = vmatprep.subr.mxu0 0.0
        %1646 = vmatpush1.xpose.msra.mxu0 0.0
        %1647 = vmatprep.subr.mxu0 0.0
        %1648 = vmatpush1.xpose.msra.mxu0 0.0
        %1649 = vmatprep.subr.mxu0 0.0
        %1650 = vmatpush1.xpose.msra.mxu0 0.0
        %1651 = vmatprep.subr.mxu0 0.0
        %1652 = vmatpush1.xpose.msra.mxu0 0.0
        %1653 = vmatprep.subr.mxu0 0.0
        %1654 = vmatpush1.xpose.msra.mxu0 0.0
        %1655 = vmatprep.subr.mxu0 0.0
        %1656 = vmatpush1.xpose.msra.mxu0 0.0
        %1657 = vmatprep.subr.mxu0 0.0
        %1658 = vmatpush1.xpose.msra.mxu0 %v1114
        %1659 = vmatprep.subr.mxu0 0.0
        %1660 = vmatpush2.xpose.msra.mxu0 0.0
        %1661 = vmatprep.subr.mxu0 0.0
        %1662 = vmatpush2.xpose.msra.mxu0 0.0
        %1663 = vmatprep.subr.mxu0 0.0
        %1664 = vmatpush2.xpose.msra.mxu0 0.0
        %1665 = vmatprep.subr.mxu0 0.0
        %1666 = vmatpush2.xpose.msra.mxu0 0.0
        %1667 = vmatprep.subr.mxu0 0.0
        %1668 = vmatpush2.xpose.msra.mxu0 0.0
        %1669 = vmatprep.subr.mxu0 0.0
        %1670 = vmatpush2.xpose.msra.mxu0 0.0
        %1671 = vmatprep.subr.mxu0 0.0
        %1672 = vmatpush2.xpose.msra.mxu0 0.0
        %1673 = vmatprep.subr.mxu0 0.0
        %1674 = vmatpush2.xpose.msra.mxu0 0.0
        %1675 = vmatprep.subr.mxu0 0.0
        %1676 = vmatpush2.xpose.msra.mxu0 0.0
        %1677 = vmatprep.subr.mxu0 0.0
        %1678 = vmatpush2.xpose.msra.mxu0 0.0
        %1679 = vmatprep.subr.mxu0 0.0
        %1680 = vmatpush2.xpose.msra.mxu0 0.0
        %1681 = vmatprep.subr.mxu0 0.0
        %1682 = vmatpush2.xpose.msra.mxu0 0.0
        %1683 = vmatprep.subr.mxu0 0.0
        %1684 = vmatpush2.xpose.msra.mxu0 0.0
        %1685 = vmatprep.subr.mxu0 0.0
        %1686 = vmatpush2.xpose.msra.mxu0 0.0
        %1687 = vmatprep.subr.mxu0 0.0
        %1688 = vmatpush2.xpose.msra.mxu0 0.0
        %1689 = vmatprep.subr.mxu0 0.0
        %1690 = vmatpush2.xpose.msra.mxu0 0.0
        %1691 = vmatprep.mubr.f32.mxu0 0.0
        %1692 = vmatmul.mubr.f32.gmra.mxu0 %v1112
        %v1693 = vpop.f32.mrf.mxu0
        %v1694 = vadd.f32 0.0, %v1693
        %v1695 = vpop.f32.mrf.mxu0
        %1696 = vdwg.mxu0
        %1697 = vmatprep.subr.mxu0 0.0
        %1698 = vmatpush1.xpose.msra.mxu0 0.0
        %1699 = vmatprep.subr.mxu0 0.0
        %1700 = vmatpush1.xpose.msra.mxu0 0.0
        %1701 = vmatprep.subr.mxu0 0.0
        %1702 = vmatpush1.xpose.msra.mxu0 0.0
        %1703 = vmatprep.subr.mxu0 0.0
        %1704 = vmatpush1.xpose.msra.mxu0 0.0
        %1705 = vmatprep.subr.mxu0 0.0
        %1706 = vmatpush1.xpose.msra.mxu0 0.0
        %1707 = vmatprep.subr.mxu0 0.0
        %1708 = vmatpush1.xpose.msra.mxu0 0.0
        %1709 = vmatprep.subr.mxu0 0.0
        %1710 = vmatpush1.xpose.msra.mxu0 0.0
        %1711 = vmatprep.subr.mxu0 0.0
        %1712 = vmatpush1.xpose.msra.mxu0 0.0
        %1713 = vmatprep.subr.mxu0 0.0
        %1714 = vmatpush1.xpose.msra.mxu0 0.0
        %1715 = vmatprep.subr.mxu0 0.0
        %1716 = vmatpush1.xpose.msra.mxu0 0.0
        %1717 = vmatprep.subr.mxu0 0.0
        %1718 = vmatpush1.xpose.msra.mxu0 0.0
        %1719 = vmatprep.subr.mxu0 0.0
        %1720 = vmatpush1.xpose.msra.mxu0 0.0
        %1721 = vmatprep.subr.mxu0 0.0
        %1722 = vmatpush1.xpose.msra.mxu0 0.0
        %1723 = vmatprep.subr.mxu0 0.0
        %1724 = vmatpush1.xpose.msra.mxu0 0.0
        %1725 = vmatprep.subr.mxu0 0.0
        %1726 = vmatpush1.xpose.msra.mxu0 0.0
        %1727 = vmatprep.subr.mxu0 0.0
        %1728 = vmatpush1.xpose.msra.mxu0 %v1120
        %1729 = vmatprep.subr.mxu0 0.0
        %1730 = vmatpush2.xpose.msra.mxu0 0.0
        %1731 = vmatprep.subr.mxu0 0.0
        %1732 = vmatpush2.xpose.msra.mxu0 0.0
        %1733 = vmatprep.subr.mxu0 0.0
        %1734 = vmatpush2.xpose.msra.mxu0 0.0
        %1735 = vmatprep.subr.mxu0 0.0
        %1736 = vmatpush2.xpose.msra.mxu0 0.0
        %1737 = vmatprep.subr.mxu0 0.0
        %1738 = vmatpush2.xpose.msra.mxu0 0.0
        %1739 = vmatprep.subr.mxu0 0.0
        %1740 = vmatpush2.xpose.msra.mxu0 0.0
        %1741 = vmatprep.subr.mxu0 0.0
        %1742 = vmatpush2.xpose.msra.mxu0 0.0
        %1743 = vmatprep.subr.mxu0 0.0
        %1744 = vmatpush2.xpose.msra.mxu0 0.0
        %1745 = vmatprep.subr.mxu0 0.0
        %1746 = vmatpush2.xpose.msra.mxu0 0.0
        %1747 = vmatprep.subr.mxu0 0.0
        %1748 = vmatpush2.xpose.msra.mxu0 0.0
        %1749 = vmatprep.subr.mxu0 0.0
        %1750 = vmatpush2.xpose.msra.mxu0 0.0
        %1751 = vmatprep.subr.mxu0 0.0
        %1752 = vmatpush2.xpose.msra.mxu0 0.0
        %1753 = vmatprep.subr.mxu0 0.0
        %1754 = vmatpush2.xpose.msra.mxu0 0.0
        %1755 = vmatprep.subr.mxu0 0.0
        %1756 = vmatpush2.xpose.msra.mxu0 0.0
        %1757 = vmatprep.subr.mxu0 0.0
        %1758 = vmatpush2.xpose.msra.mxu0 0.0
        %1759 = vmatprep.subr.mxu0 0.0
        %1760 = vmatpush2.xpose.msra.mxu0 0.0
        %1761 = vmatprep.mubr.f32.mxu0 0.0
        %1762 = vmatmul.mubr.f32.gmra.mxu0 %v1118
        %v1763 = vpop.f32.mrf.mxu0
        %v1764 = vadd.f32 0.0, %v1763
        %v1765 = vpop.f32.mrf.mxu0
        %1766 = vdwg.mxu0
        %1767 = vmatprep.subr.mxu0 0.0
        %1768 = vmatpush1.xpose.msra.mxu0 0.0
        %1769 = vmatprep.subr.mxu0 0.0
        %1770 = vmatpush1.xpose.msra.mxu0 0.0
        %1771 = vmatprep.subr.mxu0 0.0
        %1772 = vmatpush1.xpose.msra.mxu0 0.0
        %1773 = vmatprep.subr.mxu0 0.0
        %1774 = vmatpush1.xpose.msra.mxu0 0.0
        %1775 = vmatprep.subr.mxu0 0.0
        %1776 = vmatpush1.xpose.msra.mxu0 0.0
        %1777 = vmatprep.subr.mxu0 0.0
        %1778 = vmatpush1.xpose.msra.mxu0 0.0
        %1779 = vmatprep.subr.mxu0 0.0
        %1780 = vmatpush1.xpose.msra.mxu0 0.0
        %1781 = vmatprep.subr.mxu0 0.0
        %1782 = vmatpush1.xpose.msra.mxu0 0.0
        %1783 = vmatprep.subr.mxu0 0.0
        %1784 = vmatpush1.xpose.msra.mxu0 0.0
        %1785 = vmatprep.subr.mxu0 0.0
        %1786 = vmatpush1.xpose.msra.mxu0 0.0
        %1787 = vmatprep.subr.mxu0 0.0
        %1788 = vmatpush1.xpose.msra.mxu0 0.0
        %1789 = vmatprep.subr.mxu0 0.0
        %1790 = vmatpush1.xpose.msra.mxu0 0.0
        %1791 = vmatprep.subr.mxu0 0.0
        %1792 = vmatpush1.xpose.msra.mxu0 0.0
        %1793 = vmatprep.subr.mxu0 0.0
        %1794 = vmatpush1.xpose.msra.mxu0 0.0
        %1795 = vmatprep.subr.mxu0 0.0
        %1796 = vmatpush1.xpose.msra.mxu0 0.0
        %1797 = vmatprep.subr.mxu0 0.0
        %1798 = vmatpush1.xpose.msra.mxu0 %v1124
        %1799 = vmatprep.subr.mxu0 0.0
        %1800 = vmatpush2.xpose.msra.mxu0 0.0
        %1801 = vmatprep.subr.mxu0 0.0
        %1802 = vmatpush2.xpose.msra.mxu0 0.0
        %1803 = vmatprep.subr.mxu0 0.0
        %1804 = vmatpush2.xpose.msra.mxu0 0.0
        %1805 = vmatprep.subr.mxu0 0.0
        %1806 = vmatpush2.xpose.msra.mxu0 0.0
        %1807 = vmatprep.subr.mxu0 0.0
        %1808 = vmatpush2.xpose.msra.mxu0 0.0
        %1809 = vmatprep.subr.mxu0 0.0
        %1810 = vmatpush2.xpose.msra.mxu0 0.0
        %1811 = vmatprep.subr.mxu0 0.0
        %1812 = vmatpush2.xpose.msra.mxu0 0.0
        %1813 = vmatprep.subr.mxu0 0.0
        %1814 = vmatpush2.xpose.msra.mxu0 0.0
        %1815 = vmatprep.subr.mxu0 0.0
        %1816 = vmatpush2.xpose.msra.mxu0 0.0
        %1817 = vmatprep.subr.mxu0 0.0
        %1818 = vmatpush2.xpose.msra.mxu0 0.0
        %1819 = vmatprep.subr.mxu0 0.0
        %1820 = vmatpush2.xpose.msra.mxu0 0.0
        %1821 = vmatprep.subr.mxu0 0.0
        %1822 = vmatpush2.xpose.msra.mxu0 0.0
        %1823 = vmatprep.subr.mxu0 0.0
        %1824 = vmatpush2.xpose.msra.mxu0 0.0
        %1825 = vmatprep.subr.mxu0 0.0
        %1826 = vmatpush2.xpose.msra.mxu0 0.0
        %1827 = vmatprep.subr.mxu0 0.0
        %1828 = vmatpush2.xpose.msra.mxu0 0.0
        %1829 = vmatprep.subr.mxu0 0.0
        %1830 = vmatpush2.xpose.msra.mxu0 0.0
        %1831 = vmatprep.mubr.f32.mxu0 0.0
        %1832 = vmatmul.mubr.f32.gmra.mxu0 %v1122
        %v1833 = vpop.f32.mrf.mxu0
        %v1834 = vadd.f32 0.0, %v1833
        %v1835 = vpop.f32.mrf.mxu0
        %1836 = vdwg.mxu0
        %1837 = vmatprep.subr.mxu0 0.0
        %1838 = vmatpush1.xpose.msra.mxu0 0.0
        %1839 = vmatprep.subr.mxu0 0.0
        %1840 = vmatpush1.xpose.msra.mxu0 0.0
        %1841 = vmatprep.subr.mxu0 0.0
        %1842 = vmatpush1.xpose.msra.mxu0 0.0
        %1843 = vmatprep.subr.mxu0 0.0
        %1844 = vmatpush1.xpose.msra.mxu0 0.0
        %1845 = vmatprep.subr.mxu0 0.0
        %1846 = vmatpush1.xpose.msra.mxu0 0.0
        %1847 = vmatprep.subr.mxu0 0.0
        %1848 = vmatpush1.xpose.msra.mxu0 0.0
        %1849 = vmatprep.subr.mxu0 0.0
        %1850 = vmatpush1.xpose.msra.mxu0 0.0
        %1851 = vmatprep.subr.mxu0 0.0
        %1852 = vmatpush1.xpose.msra.mxu0 0.0
        %1853 = vmatprep.subr.mxu0 0.0
        %1854 = vmatpush1.xpose.msra.mxu0 0.0
        %1855 = vmatprep.subr.mxu0 0.0
        %1856 = vmatpush1.xpose.msra.mxu0 0.0
        %1857 = vmatprep.subr.mxu0 0.0
        %1858 = vmatpush1.xpose.msra.mxu0 0.0
        %1859 = vmatprep.subr.mxu0 0.0
        %1860 = vmatpush1.xpose.msra.mxu0 0.0
        %1861 = vmatprep.subr.mxu0 0.0
        %1862 = vmatpush1.xpose.msra.mxu0 0.0
        %1863 = vmatprep.subr.mxu0 0.0
        %1864 = vmatpush1.xpose.msra.mxu0 0.0
        %1865 = vmatprep.subr.mxu0 0.0
        %1866 = vmatpush1.xpose.msra.mxu0 0.0
        %1867 = vmatprep.subr.mxu0 0.0
        %1868 = vmatpush1.xpose.msra.mxu0 %v1130
        %1869 = vmatprep.subr.mxu0 0.0
        %1870 = vmatpush2.xpose.msra.mxu0 0.0
        %1871 = vmatprep.subr.mxu0 0.0
        %1872 = vmatpush2.xpose.msra.mxu0 0.0
        %1873 = vmatprep.subr.mxu0 0.0
        %1874 = vmatpush2.xpose.msra.mxu0 0.0
        %1875 = vmatprep.subr.mxu0 0.0
        %1876 = vmatpush2.xpose.msra.mxu0 0.0
        %1877 = vmatprep.subr.mxu0 0.0
        %1878 = vmatpush2.xpose.msra.mxu0 0.0
        %1879 = vmatprep.subr.mxu0 0.0
        %1880 = vmatpush2.xpose.msra.mxu0 0.0
        %1881 = vmatprep.subr.mxu0 0.0
        %1882 = vmatpush2.xpose.msra.mxu0 0.0
        %1883 = vmatprep.subr.mxu0 0.0
        %1884 = vmatpush2.xpose.msra.mxu0 0.0
        %1885 = vmatprep.subr.mxu0 0.0
        %1886 = vmatpush2.xpose.msra.mxu0 0.0
        %1887 = vmatprep.subr.mxu0 0.0
        %1888 = vmatpush2.xpose.msra.mxu0 0.0
        %1889 = vmatprep.subr.mxu0 0.0
        %1890 = vmatpush2.xpose.msra.mxu0 0.0
        %1891 = vmatprep.subr.mxu0 0.0
        %1892 = vmatpush2.xpose.msra.mxu0 0.0
        %1893 = vmatprep.subr.mxu0 0.0
        %1894 = vmatpush2.xpose.msra.mxu0 0.0
        %1895 = vmatprep.subr.mxu0 0.0
        %1896 = vmatpush2.xpose.msra.mxu0 0.0
        %1897 = vmatprep.subr.mxu0 0.0
        %1898 = vmatpush2.xpose.msra.mxu0 0.0
        %1899 = vmatprep.subr.mxu0 0.0
        %1900 = vmatpush2.xpose.msra.mxu0 0.0
        %1901 = vmatprep.mubr.f32.mxu0 0.0
        %1902 = vmatmul.mubr.f32.gmra.mxu0 %v1128
        %v1903 = vpop.f32.mrf.mxu0
        %v1904 = vadd.f32 0.0, %v1903
        %v1905 = vpop.f32.mrf.mxu0
        %1906 = vdwg.mxu0
        %1907 = vmatprep.subr.mxu0 0.0
        %1908 = vmatpush1.xpose.msra.mxu0 0.0
        %1909 = vmatprep.subr.mxu0 0.0
        %1910 = vmatpush1.xpose.msra.mxu0 0.0
        %1911 = vmatprep.subr.mxu0 0.0
        %1912 = vmatpush1.xpose.msra.mxu0 0.0
        %1913 = vmatprep.subr.mxu0 0.0
        %1914 = vmatpush1.xpose.msra.mxu0 0.0
        %1915 = vmatprep.subr.mxu0 0.0
        %1916 = vmatpush1.xpose.msra.mxu0 0.0
        %1917 = vmatprep.subr.mxu0 0.0
        %1918 = vmatpush1.xpose.msra.mxu0 0.0
        %1919 = vmatprep.subr.mxu0 0.0
        %1920 = vmatpush1.xpose.msra.mxu0 0.0
        %1921 = vmatprep.subr.mxu0 0.0
        %1922 = vmatpush1.xpose.msra.mxu0 0.0
        %1923 = vmatprep.subr.mxu0 0.0
        %1924 = vmatpush1.xpose.msra.mxu0 0.0
        %1925 = vmatprep.subr.mxu0 0.0
        %1926 = vmatpush1.xpose.msra.mxu0 0.0
        %1927 = vmatprep.subr.mxu0 0.0
        %1928 = vmatpush1.xpose.msra.mxu0 0.0
        %1929 = vmatprep.subr.mxu0 0.0
        %1930 = vmatpush1.xpose.msra.mxu0 0.0
        %1931 = vmatprep.subr.mxu0 0.0
        %1932 = vmatpush1.xpose.msra.mxu0 0.0
        %1933 = vmatprep.subr.mxu0 0.0
        %1934 = vmatpush1.xpose.msra.mxu0 0.0
        %1935 = vmatprep.subr.mxu0 0.0
        %1936 = vmatpush1.xpose.msra.mxu0 0.0
        %1937 = vmatprep.subr.mxu0 0.0
        %1938 = vmatpush1.xpose.msra.mxu0 %v1134
        %1939 = vmatprep.subr.mxu0 0.0
        %1940 = vmatpush2.xpose.msra.mxu0 0.0
        %1941 = vmatprep.subr.mxu0 0.0
        %1942 = vmatpush2.xpose.msra.mxu0 0.0
        %1943 = vmatprep.subr.mxu0 0.0
        %1944 = vmatpush2.xpose.msra.mxu0 0.0
        %1945 = vmatprep.subr.mxu0 0.0
        %1946 = vmatpush2.xpose.msra.mxu0 0.0
        %1947 = vmatprep.subr.mxu0 0.0
        %1948 = vmatpush2.xpose.msra.mxu0 0.0
        %1949 = vmatprep.subr.mxu0 0.0
        %1950 = vmatpush2.xpose.msra.mxu0 0.0
        %1951 = vmatprep.subr.mxu0 0.0
        %1952 = vmatpush2.xpose.msra.mxu0 0.0
        %1953 = vmatprep.subr.mxu0 0.0
        %1954 = vmatpush2.xpose.msra.mxu0 0.0
        %1955 = vmatprep.subr.mxu0 0.0
        %1956 = vmatpush2.xpose.msra.mxu0 0.0
        %1957 = vmatprep.subr.mxu0 0.0
        %1958 = vmatpush2.xpose.msra.mxu0 0.0
        %1959 = vmatprep.subr.mxu0 0.0
        %1960 = vmatpush2.xpose.msra.mxu0 0.0
        %1961 = vmatprep.subr.mxu0 0.0
        %1962 = vmatpush2.xpose.msra.mxu0 0.0
        %1963 = vmatprep.subr.mxu0 0.0
        %1964 = vmatpush2.xpose.msra.mxu0 0.0
        %1965 = vmatprep.subr.mxu0 0.0
        %1966 = vmatpush2.xpose.msra.mxu0 0.0
        %1967 = vmatprep.subr.mxu0 0.0
        %1968 = vmatpush2.xpose.msra.mxu0 0.0
        %1969 = vmatprep.subr.mxu0 0.0
        %1970 = vmatpush2.xpose.msra.mxu0 0.0
        %1971 = vmatprep.mubr.f32.mxu0 0.0
        %1972 = vmatmul.mubr.f32.gmra.mxu0 %v1132
        %v1973 = vpop.f32.mrf.mxu0
        %v1974 = vadd.f32 0.0, %v1973
        %v1975 = vpop.f32.mrf.mxu0
        %1976 = vdwg.mxu0
        %1977 = vmatprep.subr.mxu0 0.0
        %1978 = vmatpush1.xpose.msra.mxu0 0.0
        %1979 = vmatprep.subr.mxu0 0.0
        %1980 = vmatpush1.xpose.msra.mxu0 0.0
        %1981 = vmatprep.subr.mxu0 0.0
        %1982 = vmatpush1.xpose.msra.mxu0 0.0
        %1983 = vmatprep.subr.mxu0 0.0
        %1984 = vmatpush1.xpose.msra.mxu0 0.0
        %1985 = vmatprep.subr.mxu0 0.0
        %1986 = vmatpush1.xpose.msra.mxu0 0.0
        %1987 = vmatprep.subr.mxu0 0.0
        %1988 = vmatpush1.xpose.msra.mxu0 0.0
        %1989 = vmatprep.subr.mxu0 0.0
        %1990 = vmatpush1.xpose.msra.mxu0 0.0
        %1991 = vmatprep.subr.mxu0 0.0
        %1992 = vmatpush1.xpose.msra.mxu0 0.0
        %1993 = vmatprep.subr.mxu0 0.0
        %1994 = vmatpush1.xpose.msra.mxu0 0.0
        %1995 = vmatprep.subr.mxu0 0.0
        %1996 = vmatpush1.xpose.msra.mxu0 0.0
        %1997 = vmatprep.subr.mxu0 0.0
        %1998 = vmatpush1.xpose.msra.mxu0 0.0
        %1999 = vmatprep.subr.mxu0 0.0
        %2000 = vmatpush1.xpose.msra.mxu0 0.0
        %2001 = vmatprep.subr.mxu0 0.0
        %2002 = vmatpush1.xpose.msra.mxu0 0.0
        %2003 = vmatprep.subr.mxu0 0.0
        %2004 = vmatpush1.xpose.msra.mxu0 0.0
        %2005 = vmatprep.subr.mxu0 0.0
        %2006 = vmatpush1.xpose.msra.mxu0 0.0
        %2007 = vmatprep.subr.mxu0 0.0
        %2008 = vmatpush1.xpose.msra.mxu0 %v1140
        %2009 = vmatprep.subr.mxu0 0.0
        %2010 = vmatpush2.xpose.msra.mxu0 0.0
        %2011 = vmatprep.subr.mxu0 0.0
        %2012 = vmatpush2.xpose.msra.mxu0 0.0
        %2013 = vmatprep.subr.mxu0 0.0
        %2014 = vmatpush2.xpose.msra.mxu0 0.0
        %2015 = vmatprep.subr.mxu0 0.0
        %2016 = vmatpush2.xpose.msra.mxu0 0.0
        %2017 = vmatprep.subr.mxu0 0.0
        %2018 = vmatpush2.xpose.msra.mxu0 0.0
        %2019 = vmatprep.subr.mxu0 0.0
        %2020 = vmatpush2.xpose.msra.mxu0 0.0
        %2021 = vmatprep.subr.mxu0 0.0
        %2022 = vmatpush2.xpose.msra.mxu0 0.0
        %2023 = vmatprep.subr.mxu0 0.0
        %2024 = vmatpush2.xpose.msra.mxu0 0.0
        %2025 = vmatprep.subr.mxu0 0.0
        %2026 = vmatpush2.xpose.msra.mxu0 0.0
        %2027 = vmatprep.subr.mxu0 0.0
        %2028 = vmatpush2.xpose.msra.mxu0 0.0
        %2029 = vmatprep.subr.mxu0 0.0
        %2030 = vmatpush2.xpose.msra.mxu0 0.0
        %2031 = vmatprep.subr.mxu0 0.0
        %2032 = vmatpush2.xpose.msra.mxu0 0.0
        %2033 = vmatprep.subr.mxu0 0.0
        %2034 = vmatpush2.xpose.msra.mxu0 0.0
        %2035 = vmatprep.subr.mxu0 0.0
        %2036 = vmatpush2.xpose.msra.mxu0 0.0
        %2037 = vmatprep.subr.mxu0 0.0
        %2038 = vmatpush2.xpose.msra.mxu0 0.0
        %2039 = vmatprep.subr.mxu0 0.0
        %2040 = vmatpush2.xpose.msra.mxu0 0.0
        %2041 = vmatprep.mubr.f32.mxu0 0.0
        %2042 = vmatmul.mubr.f32.gmra.mxu0 %v1138
        %v2043 = vpop.f32.mrf.mxu0
        %v2044 = vadd.f32 0.0, %v2043
        %v2045 = vpop.f32.mrf.mxu0
        %2046 = vdwg.mxu0
        %2047 = vmatprep.subr.mxu0 0.0
        %2048 = vmatpush1.xpose.msra.mxu0 0.0
        %2049 = vmatprep.subr.mxu0 0.0
        %2050 = vmatpush1.xpose.msra.mxu0 0.0
        %2051 = vmatprep.subr.mxu0 0.0
        %2052 = vmatpush1.xpose.msra.mxu0 0.0
        %2053 = vmatprep.subr.mxu0 0.0
        %2054 = vmatpush1.xpose.msra.mxu0 0.0
        %2055 = vmatprep.subr.mxu0 0.0
        %2056 = vmatpush1.xpose.msra.mxu0 0.0
        %2057 = vmatprep.subr.mxu0 0.0
        %2058 = vmatpush1.xpose.msra.mxu0 0.0
        %2059 = vmatprep.subr.mxu0 0.0
        %2060 = vmatpush1.xpose.msra.mxu0 0.0
        %2061 = vmatprep.subr.mxu0 0.0
        %2062 = vmatpush1.xpose.msra.mxu0 0.0
        %2063 = vmatprep.subr.mxu0 0.0
        %2064 = vmatpush1.xpose.msra.mxu0 0.0
        %2065 = vmatprep.subr.mxu0 0.0
        %2066 = vmatpush1.xpose.msra.mxu0 0.0
        %2067 = vmatprep.subr.mxu0 0.0
        %2068 = vmatpush1.xpose.msra.mxu0 0.0
        %2069 = vmatprep.subr.mxu0 0.0
        %2070 = vmatpush1.xpose.msra.mxu0 0.0
        %2071 = vmatprep.subr.mxu0 0.0
        %2072 = vmatpush1.xpose.msra.mxu0 0.0
        %2073 = vmatprep.subr.mxu0 0.0
        %2074 = vmatpush1.xpose.msra.mxu0 0.0
        %2075 = vmatprep.subr.mxu0 0.0
        %2076 = vmatpush1.xpose.msra.mxu0 0.0
        %2077 = vmatprep.subr.mxu0 0.0
        %2078 = vmatpush1.xpose.msra.mxu0 %v1144
        %2079 = vmatprep.subr.mxu0 0.0
        %2080 = vmatpush2.xpose.msra.mxu0 0.0
        %2081 = vmatprep.subr.mxu0 0.0
        %2082 = vmatpush2.xpose.msra.mxu0 0.0
        %2083 = vmatprep.subr.mxu0 0.0
        %2084 = vmatpush2.xpose.msra.mxu0 0.0
        %2085 = vmatprep.subr.mxu0 0.0
        %2086 = vmatpush2.xpose.msra.mxu0 0.0
        %2087 = vmatprep.subr.mxu0 0.0
        %2088 = vmatpush2.xpose.msra.mxu0 0.0
        %2089 = vmatprep.subr.mxu0 0.0
        %2090 = vmatpush2.xpose.msra.mxu0 0.0
        %2091 = vmatprep.subr.mxu0 0.0
        %2092 = vmatpush2.xpose.msra.mxu0 0.0
        %2093 = vmatprep.subr.mxu0 0.0
        %2094 = vmatpush2.xpose.msra.mxu0 0.0
        %2095 = vmatprep.subr.mxu0 0.0
        %2096 = vmatpush2.xpose.msra.mxu0 0.0
        %2097 = vmatprep.subr.mxu0 0.0
        %2098 = vmatpush2.xpose.msra.mxu0 0.0
        %2099 = vmatprep.subr.mxu0 0.0
        %2100 = vmatpush2.xpose.msra.mxu0 0.0
        %2101 = vmatprep.subr.mxu0 0.0
        %2102 = vmatpush2.xpose.msra.mxu0 0.0
        %2103 = vmatprep.subr.mxu0 0.0
        %2104 = vmatpush2.xpose.msra.mxu0 0.0
        %2105 = vmatprep.subr.mxu0 0.0
        %2106 = vmatpush2.xpose.msra.mxu0 0.0
        %2107 = vmatprep.subr.mxu0 0.0
        %2108 = vmatpush2.xpose.msra.mxu0 0.0
        %2109 = vmatprep.subr.mxu0 0.0
        %2110 = vmatpush2.xpose.msra.mxu0 0.0
        %2111 = vmatprep.mubr.f32.mxu0 0.0
        %2112 = vmatmul.mubr.f32.gmra.mxu0 %v1142
        %v2113 = vpop.f32.mrf.mxu0
        %v2114 = vadd.f32 0.0, %v2113
        %v2115 = vpop.f32.mrf.mxu0
        %2116 = vdwg.mxu0
        %2117 = vmatprep.subr.mxu0 0.0
        %2118 = vmatpush1.xpose.msra.mxu0 0.0
        %2119 = vmatprep.subr.mxu0 0.0
        %2120 = vmatpush1.xpose.msra.mxu0 0.0
        %2121 = vmatprep.subr.mxu0 0.0
        %2122 = vmatpush1.xpose.msra.mxu0 0.0
        %2123 = vmatprep.subr.mxu0 0.0
        %2124 = vmatpush1.xpose.msra.mxu0 0.0
        %2125 = vmatprep.subr.mxu0 0.0
        %2126 = vmatpush1.xpose.msra.mxu0 0.0
        %2127 = vmatprep.subr.mxu0 0.0
        %2128 = vmatpush1.xpose.msra.mxu0 0.0
        %2129 = vmatprep.subr.mxu0 0.0
        %2130 = vmatpush1.xpose.msra.mxu0 0.0
        %2131 = vmatprep.subr.mxu0 0.0
        %2132 = vmatpush1.xpose.msra.mxu0 0.0
        %2133 = vmatprep.subr.mxu0 0.0
        %2134 = vmatpush1.xpose.msra.mxu0 0.0
        %2135 = vmatprep.subr.mxu0 0.0
        %2136 = vmatpush1.xpose.msra.mxu0 0.0
        %2137 = vmatprep.subr.mxu0 0.0
        %2138 = vmatpush1.xpose.msra.mxu0 0.0
        %2139 = vmatprep.subr.mxu0 0.0
        %2140 = vmatpush1.xpose.msra.mxu0 0.0
        %2141 = vmatprep.subr.mxu0 0.0
        %2142 = vmatpush1.xpose.msra.mxu0 0.0
        %2143 = vmatprep.subr.mxu0 0.0
        %2144 = vmatpush1.xpose.msra.mxu0 0.0
        %2145 = vmatprep.subr.mxu0 0.0
        %2146 = vmatpush1.xpose.msra.mxu0 0.0
        %2147 = vmatprep.subr.mxu0 0.0
        %2148 = vmatpush1.xpose.msra.mxu0 %v1150
        %2149 = vmatprep.subr.mxu0 0.0
        %2150 = vmatpush2.xpose.msra.mxu0 0.0
        %2151 = vmatprep.subr.mxu0 0.0
        %2152 = vmatpush2.xpose.msra.mxu0 0.0
        %2153 = vmatprep.subr.mxu0 0.0
        %2154 = vmatpush2.xpose.msra.mxu0 0.0
        %2155 = vmatprep.subr.mxu0 0.0
        %2156 = vmatpush2.xpose.msra.mxu0 0.0
        %2157 = vmatprep.subr.mxu0 0.0
        %2158 = vmatpush2.xpose.msra.mxu0 0.0
        %2159 = vmatprep.subr.mxu0 0.0
        %2160 = vmatpush2.xpose.msra.mxu0 0.0
        %2161 = vmatprep.subr.mxu0 0.0
        %2162 = vmatpush2.xpose.msra.mxu0 0.0
        %2163 = vmatprep.subr.mxu0 0.0
        %2164 = vmatpush2.xpose.msra.mxu0 0.0
        %2165 = vmatprep.subr.mxu0 0.0
        %2166 = vmatpush2.xpose.msra.mxu0 0.0
        %2167 = vmatprep.subr.mxu0 0.0
        %2168 = vmatpush2.xpose.msra.mxu0 0.0
        %2169 = vmatprep.subr.mxu0 0.0
        %2170 = vmatpush2.xpose.msra.mxu0 0.0
        %2171 = vmatprep.subr.mxu0 0.0
        %2172 = vmatpush2.xpose.msra.mxu0 0.0
        %2173 = vmatprep.subr.mxu0 0.0
        %2174 = vmatpush2.xpose.msra.mxu0 0.0
        %2175 = vmatprep.subr.mxu0 0.0
        %2176 = vmatpush2.xpose.msra.mxu0 0.0
        %2177 = vmatprep.subr.mxu0 0.0
        %2178 = vmatpush2.xpose.msra.mxu0 0.0
        %2179 = vmatprep.subr.mxu0 0.0
        %2180 = vmatpush2.xpose.msra.mxu0 0.0
        %2181 = vmatprep.mubr.f32.mxu0 0.0
        %2182 = vmatmul.mubr.f32.gmra.mxu0 %v1148
        %v2183 = vpop.f32.mrf.mxu0
        %v2184 = vadd.f32 0.0, %v2183
        %v2185 = vpop.f32.mrf.mxu0
        %2186 = vdwg.mxu0
        %2187 = vmatprep.subr.mxu0 0.0
        %2188 = vmatpush1.xpose.msra.mxu0 0.0
        %2189 = vmatprep.subr.mxu0 0.0
        %2190 = vmatpush1.xpose.msra.mxu0 0.0
        %2191 = vmatprep.subr.mxu0 0.0
        %2192 = vmatpush1.xpose.msra.mxu0 0.0
        %2193 = vmatprep.subr.mxu0 0.0
        %2194 = vmatpush1.xpose.msra.mxu0 0.0
        %2195 = vmatprep.subr.mxu0 0.0
        %2196 = vmatpush1.xpose.msra.mxu0 0.0
        %2197 = vmatprep.subr.mxu0 0.0
        %2198 = vmatpush1.xpose.msra.mxu0 0.0
        %2199 = vmatprep.subr.mxu0 0.0
        %2200 = vmatpush1.xpose.msra.mxu0 0.0
        %2201 = vmatprep.subr.mxu0 0.0
        %2202 = vmatpush1.xpose.msra.mxu0 0.0
        %2203 = vmatprep.subr.mxu0 0.0
        %2204 = vmatpush1.xpose.msra.mxu0 0.0
        %2205 = vmatprep.subr.mxu0 0.0
        %2206 = vmatpush1.xpose.msra.mxu0 0.0
        %2207 = vmatprep.subr.mxu0 0.0
        %2208 = vmatpush1.xpose.msra.mxu0 0.0
        %2209 = vmatprep.subr.mxu0 0.0
        %2210 = vmatpush1.xpose.msra.mxu0 0.0
        %2211 = vmatprep.subr.mxu0 0.0
        %2212 = vmatpush1.xpose.msra.mxu0 0.0
        %2213 = vmatprep.subr.mxu0 0.0
        %2214 = vmatpush1.xpose.msra.mxu0 0.0
        %2215 = vmatprep.subr.mxu0 0.0
        %2216 = vmatpush1.xpose.msra.mxu0 0.0
        %2217 = vmatprep.subr.mxu0 0.0
        %2218 = vmatpush1.xpose.msra.mxu0 %v1154
        %2219 = vmatprep.subr.mxu0 0.0
        %2220 = vmatpush2.xpose.msra.mxu0 0.0
        %2221 = vmatprep.subr.mxu0 0.0
        %2222 = vmatpush2.xpose.msra.mxu0 0.0
        %2223 = vmatprep.subr.mxu0 0.0
        %2224 = vmatpush2.xpose.msra.mxu0 0.0
        %2225 = vmatprep.subr.mxu0 0.0
        %2226 = vmatpush2.xpose.msra.mxu0 0.0
        %2227 = vmatprep.subr.mxu0 0.0
        %2228 = vmatpush2.xpose.msra.mxu0 0.0
        %2229 = vmatprep.subr.mxu0 0.0
        %2230 = vmatpush2.xpose.msra.mxu0 0.0
        %2231 = vmatprep.subr.mxu0 0.0
        %2232 = vmatpush2.xpose.msra.mxu0 0.0
        %2233 = vmatprep.subr.mxu0 0.0
        %2234 = vmatpush2.xpose.msra.mxu0 0.0
        %2235 = vmatprep.subr.mxu0 0.0
        %2236 = vmatpush2.xpose.msra.mxu0 0.0
        %2237 = vmatprep.subr.mxu0 0.0
        %2238 = vmatpush2.xpose.msra.mxu0 0.0
        %2239 = vmatprep.subr.mxu0 0.0
        %2240 = vmatpush2.xpose.msra.mxu0 0.0
        %2241 = vmatprep.subr.mxu0 0.0
        %2242 = vmatpush2.xpose.msra.mxu0 0.0
        %2243 = vmatprep.subr.mxu0 0.0
        %2244 = vmatpush2.xpose.msra.mxu0 0.0
        %2245 = vmatprep.subr.mxu0 0.0
        %2246 = vmatpush2.xpose.msra.mxu0 0.0
        %2247 = vmatprep.subr.mxu0 0.0
        %2248 = vmatpush2.xpose.msra.mxu0 0.0
        %2249 = vmatprep.subr.mxu0 0.0
        %2250 = vmatpush2.xpose.msra.mxu0 0.0
        %2251 = vmatprep.mubr.f32.mxu0 0.0
        %2252 = vmatmul.mubr.f32.gmra.mxu0 %v1152
        %v2253 = vpop.f32.mrf.mxu0
        %v2254 = vadd.f32 0.0, %v2253
        %v2255 = vpop.f32.mrf.mxu0
        %2256 = vdwg.mxu0
        %2257 = vmatprep.subr.mxu0 0.0
        %2258 = vmatpush1.xpose.msra.mxu0 0.0
        %2259 = vmatprep.subr.mxu0 0.0
        %2260 = vmatpush1.xpose.msra.mxu0 0.0
        %2261 = vmatprep.subr.mxu0 0.0
        %2262 = vmatpush1.xpose.msra.mxu0 0.0
        %2263 = vmatprep.subr.mxu0 0.0
        %2264 = vmatpush1.xpose.msra.mxu0 0.0
        %2265 = vmatprep.subr.mxu0 0.0
        %2266 = vmatpush1.xpose.msra.mxu0 0.0
        %2267 = vmatprep.subr.mxu0 0.0
        %2268 = vmatpush1.xpose.msra.mxu0 0.0
        %2269 = vmatprep.subr.mxu0 0.0
        %2270 = vmatpush1.xpose.msra.mxu0 0.0
        %2271 = vmatprep.subr.mxu0 0.0
        %2272 = vmatpush1.xpose.msra.mxu0 0.0
        %2273 = vmatprep.subr.mxu0 0.0
        %2274 = vmatpush1.xpose.msra.mxu0 0.0
        %2275 = vmatprep.subr.mxu0 0.0
        %2276 = vmatpush1.xpose.msra.mxu0 0.0
        %2277 = vmatprep.subr.mxu0 0.0
        %2278 = vmatpush1.xpose.msra.mxu0 0.0
        %2279 = vmatprep.subr.mxu0 0.0
        %2280 = vmatpush1.xpose.msra.mxu0 0.0
        %2281 = vmatprep.subr.mxu0 0.0
        %2282 = vmatpush1.xpose.msra.mxu0 0.0
        %2283 = vmatprep.subr.mxu0 0.0
        %2284 = vmatpush1.xpose.msra.mxu0 0.0
        %2285 = vmatprep.subr.mxu0 0.0
        %2286 = vmatpush1.xpose.msra.mxu0 0.0
        %2287 = vmatprep.subr.mxu0 0.0
        %2288 = vmatpush1.xpose.msra.mxu0 %v1160
        %2289 = vmatprep.subr.mxu0 0.0
        %2290 = vmatpush2.xpose.msra.mxu0 0.0
        %2291 = vmatprep.subr.mxu0 0.0
        %2292 = vmatpush2.xpose.msra.mxu0 0.0
        %2293 = vmatprep.subr.mxu0 0.0
        %2294 = vmatpush2.xpose.msra.mxu0 0.0
        %2295 = vmatprep.subr.mxu0 0.0
        %2296 = vmatpush2.xpose.msra.mxu0 0.0
        %2297 = vmatprep.subr.mxu0 0.0
        %2298 = vmatpush2.xpose.msra.mxu0 0.0
        %2299 = vmatprep.subr.mxu0 0.0
        %2300 = vmatpush2.xpose.msra.mxu0 0.0
        %2301 = vmatprep.subr.mxu0 0.0
        %2302 = vmatpush2.xpose.msra.mxu0 0.0
        %2303 = vmatprep.subr.mxu0 0.0
        %2304 = vmatpush2.xpose.msra.mxu0 0.0
        %2305 = vmatprep.subr.mxu0 0.0
        %2306 = vmatpush2.xpose.msra.mxu0 0.0
        %2307 = vmatprep.subr.mxu0 0.0
        %2308 = vmatpush2.xpose.msra.mxu0 0.0
        %2309 = vmatprep.subr.mxu0 0.0
        %2310 = vmatpush2.xpose.msra.mxu0 0.0
        %2311 = vmatprep.subr.mxu0 0.0
        %2312 = vmatpush2.xpose.msra.mxu0 0.0
        %2313 = vmatprep.subr.mxu0 0.0
        %2314 = vmatpush2.xpose.msra.mxu0 0.0
        %2315 = vmatprep.subr.mxu0 0.0
        %2316 = vmatpush2.xpose.msra.mxu0 0.0
        %2317 = vmatprep.subr.mxu0 0.0
        %2318 = vmatpush2.xpose.msra.mxu0 0.0
        %2319 = vmatprep.subr.mxu0 0.0
        %2320 = vmatpush2.xpose.msra.mxu0 0.0
        %2321 = vmatprep.mubr.f32.mxu0 0.0
        %2322 = vmatmul.mubr.f32.gmra.mxu0 %v1158
        %v2323 = vpop.f32.mrf.mxu0
        %v2324 = vadd.f32 0.0, %v2323
        %v2325 = vpop.f32.mrf.mxu0
        %2326 = vdwg.mxu0
        %2327 = vmatprep.subr.mxu0 0.0
        %2328 = vmatpush1.xpose.msra.mxu0 0.0
        %2329 = vmatprep.subr.mxu0 0.0
        %2330 = vmatpush1.xpose.msra.mxu0 0.0
        %2331 = vmatprep.subr.mxu0 0.0
        %2332 = vmatpush1.xpose.msra.mxu0 0.0
        %2333 = vmatprep.subr.mxu0 0.0
        %2334 = vmatpush1.xpose.msra.mxu0 0.0
        %2335 = vmatprep.subr.mxu0 0.0
        %2336 = vmatpush1.xpose.msra.mxu0 0.0
        %2337 = vmatprep.subr.mxu0 0.0
        %2338 = vmatpush1.xpose.msra.mxu0 0.0
        %2339 = vmatprep.subr.mxu0 0.0
        %2340 = vmatpush1.xpose.msra.mxu0 0.0
        %2341 = vmatprep.subr.mxu0 0.0
        %2342 = vmatpush1.xpose.msra.mxu0 0.0
        %2343 = vmatprep.subr.mxu0 0.0
        %2344 = vmatpush1.xpose.msra.mxu0 0.0
        %2345 = vmatprep.subr.mxu0 0.0
        %2346 = vmatpush1.xpose.msra.mxu0 0.0
        %2347 = vmatprep.subr.mxu0 0.0
        %2348 = vmatpush1.xpose.msra.mxu0 0.0
        %2349 = vmatprep.subr.mxu0 0.0
        %2350 = vmatpush1.xpose.msra.mxu0 0.0
        %2351 = vmatprep.subr.mxu0 0.0
        %2352 = vmatpush1.xpose.msra.mxu0 0.0
        %2353 = vmatprep.subr.mxu0 0.0
        %2354 = vmatpush1.xpose.msra.mxu0 0.0
        %2355 = vmatprep.subr.mxu0 0.0
        %2356 = vmatpush1.xpose.msra.mxu0 0.0
        %2357 = vmatprep.subr.mxu0 0.0
        %2358 = vmatpush1.xpose.msra.mxu0 %v1164
        %2359 = vmatprep.subr.mxu0 0.0
        %2360 = vmatpush2.xpose.msra.mxu0 0.0
        %2361 = vmatprep.subr.mxu0 0.0
        %2362 = vmatpush2.xpose.msra.mxu0 0.0
        %2363 = vmatprep.subr.mxu0 0.0
        %2364 = vmatpush2.xpose.msra.mxu0 0.0
        %2365 = vmatprep.subr.mxu0 0.0
        %2366 = vmatpush2.xpose.msra.mxu0 0.0
        %2367 = vmatprep.subr.mxu0 0.0
        %2368 = vmatpush2.xpose.msra.mxu0 0.0
        %2369 = vmatprep.subr.mxu0 0.0
        %2370 = vmatpush2.xpose.msra.mxu0 0.0
        %2371 = vmatprep.subr.mxu0 0.0
        %2372 = vmatpush2.xpose.msra.mxu0 0.0
        %2373 = vmatprep.subr.mxu0 0.0
        %2374 = vmatpush2.xpose.msra.mxu0 0.0
        %2375 = vmatprep.subr.mxu0 0.0
        %2376 = vmatpush2.xpose.msra.mxu0 0.0
        %2377 = vmatprep.subr.mxu0 0.0
        %2378 = vmatpush2.xpose.msra.mxu0 0.0
        %2379 = vmatprep.subr.mxu0 0.0
        %2380 = vmatpush2.xpose.msra.mxu0 0.0
        %2381 = vmatprep.subr.mxu0 0.0
        %2382 = vmatpush2.xpose.msra.mxu0 0.0
        %2383 = vmatprep.subr.mxu0 0.0
        %2384 = vmatpush2.xpose.msra.mxu0 0.0
        %2385 = vmatprep.subr.mxu0 0.0
        %2386 = vmatpush2.xpose.msra.mxu0 0.0
        %2387 = vmatprep.subr.mxu0 0.0
        %2388 = vmatpush2.xpose.msra.mxu0 0.0
        %2389 = vmatprep.subr.mxu0 0.0
        %2390 = vmatpush2.xpose.msra.mxu0 0.0
        %2391 = vmatprep.mubr.f32.mxu0 0.0
        %2392 = vmatmul.mubr.f32.gmra.mxu0 %v1162
        %v2393 = vpop.f32.mrf.mxu0
        %v2394 = vadd.f32 0.0, %v2393
        %v2395 = vpop.f32.mrf.mxu0
        %2396 = vdwg.mxu0
        %2397 = vmatprep.subr.mxu0 0.0
        %2398 = vmatpush1.xpose.msra.mxu0 0.0
        %2399 = vmatprep.subr.mxu0 0.0
        %2400 = vmatpush1.xpose.msra.mxu0 0.0
        %2401 = vmatprep.subr.mxu0 0.0
        %2402 = vmatpush1.xpose.msra.mxu0 0.0
        %2403 = vmatprep.subr.mxu0 0.0
        %2404 = vmatpush1.xpose.msra.mxu0 0.0
        %2405 = vmatprep.subr.mxu0 0.0
        %2406 = vmatpush1.xpose.msra.mxu0 0.0
        %2407 = vmatprep.subr.mxu0 0.0
        %2408 = vmatpush1.xpose.msra.mxu0 0.0
        %2409 = vmatprep.subr.mxu0 0.0
        %2410 = vmatpush1.xpose.msra.mxu0 0.0
        %2411 = vmatprep.subr.mxu0 0.0
        %2412 = vmatpush1.xpose.msra.mxu0 0.0
        %2413 = vmatprep.subr.mxu0 0.0
        %2414 = vmatpush1.xpose.msra.mxu0 0.0
        %2415 = vmatprep.subr.mxu0 0.0
        %2416 = vmatpush1.xpose.msra.mxu0 0.0
        %2417 = vmatprep.subr.mxu0 0.0
        %2418 = vmatpush1.xpose.msra.mxu0 0.0
        %2419 = vmatprep.subr.mxu0 0.0
        %2420 = vmatpush1.xpose.msra.mxu0 0.0
        %2421 = vmatprep.subr.mxu0 0.0
        %2422 = vmatpush1.xpose.msra.mxu0 0.0
        %2423 = vmatprep.subr.mxu0 0.0
        %2424 = vmatpush1.xpose.msra.mxu0 0.0
        %2425 = vmatprep.subr.mxu0 0.0
        %2426 = vmatpush1.xpose.msra.mxu0 0.0
        %2427 = vmatprep.subr.mxu0 0.0
        %2428 = vmatpush1.xpose.msra.mxu0 %v1170
        %2429 = vmatprep.subr.mxu0 0.0
        %2430 = vmatpush2.xpose.msra.mxu0 0.0
        %2431 = vmatprep.subr.mxu0 0.0
        %2432 = vmatpush2.xpose.msra.mxu0 0.0
        %2433 = vmatprep.subr.mxu0 0.0
        %2434 = vmatpush2.xpose.msra.mxu0 0.0
        %2435 = vmatprep.subr.mxu0 0.0
        %2436 = vmatpush2.xpose.msra.mxu0 0.0
        %2437 = vmatprep.subr.mxu0 0.0
        %2438 = vmatpush2.xpose.msra.mxu0 0.0
        %2439 = vmatprep.subr.mxu0 0.0
        %2440 = vmatpush2.xpose.msra.mxu0 0.0
        %2441 = vmatprep.subr.mxu0 0.0
        %2442 = vmatpush2.xpose.msra.mxu0 0.0
        %2443 = vmatprep.subr.mxu0 0.0
        %2444 = vmatpush2.xpose.msra.mxu0 0.0
        %2445 = vmatprep.subr.mxu0 0.0
        %2446 = vmatpush2.xpose.msra.mxu0 0.0
        %2447 = vmatprep.subr.mxu0 0.0
        %2448 = vmatpush2.xpose.msra.mxu0 0.0
        %2449 = vmatprep.subr.mxu0 0.0
        %2450 = vmatpush2.xpose.msra.mxu0 0.0
        %2451 = vmatprep.subr.mxu0 0.0
        %2452 = vmatpush2.xpose.msra.mxu0 0.0
        %2453 = vmatprep.subr.mxu0 0.0
        %2454 = vmatpush2.xpose.msra.mxu0 0.0
        %2455 = vmatprep.subr.mxu0 0.0
        %2456 = vmatpush2.xpose.msra.mxu0 0.0
        %2457 = vmatprep.subr.mxu0 0.0
        %2458 = vmatpush2.xpose.msra.mxu0 0.0
        %2459 = vmatprep.subr.mxu0 0.0
        %2460 = vmatpush2.xpose.msra.mxu0 0.0
        %2461 = vmatprep.mubr.f32.mxu0 0.0
        %2462 = vmatmul.mubr.f32.gmra.mxu0 %v1168
        %v2463 = vpop.f32.mrf.mxu0
        %v2464 = vadd.f32 0.0, %v2463
        %v2465 = vpop.f32.mrf.mxu0
        %2466 = vdwg.mxu0
        %2467 = vmatprep.subr.mxu0 0.0
        %2468 = vmatpush1.xpose.msra.mxu0 0.0
        %2469 = vmatprep.subr.mxu0 0.0
        %2470 = vmatpush1.xpose.msra.mxu0 0.0
        %2471 = vmatprep.subr.mxu0 0.0
        %2472 = vmatpush1.xpose.msra.mxu0 0.0
        %2473 = vmatprep.subr.mxu0 0.0
        %2474 = vmatpush1.xpose.msra.mxu0 0.0
        %2475 = vmatprep.subr.mxu0 0.0
        %2476 = vmatpush1.xpose.msra.mxu0 0.0
        %2477 = vmatprep.subr.mxu0 0.0
        %2478 = vmatpush1.xpose.msra.mxu0 0.0
        %2479 = vmatprep.subr.mxu0 0.0
        %2480 = vmatpush1.xpose.msra.mxu0 0.0
        %2481 = vmatprep.subr.mxu0 0.0
        %2482 = vmatpush1.xpose.msra.mxu0 0.0
        %2483 = vmatprep.subr.mxu0 0.0
        %2484 = vmatpush1.xpose.msra.mxu0 0.0
        %2485 = vmatprep.subr.mxu0 0.0
        %2486 = vmatpush1.xpose.msra.mxu0 0.0
        %2487 = vmatprep.subr.mxu0 0.0
        %2488 = vmatpush1.xpose.msra.mxu0 0.0
        %2489 = vmatprep.subr.mxu0 0.0
        %2490 = vmatpush1.xpose.msra.mxu0 0.0
        %2491 = vmatprep.subr.mxu0 0.0
        %2492 = vmatpush1.xpose.msra.mxu0 0.0
        %2493 = vmatprep.subr.mxu0 0.0
        %2494 = vmatpush1.xpose.msra.mxu0 0.0
        %2495 = vmatprep.subr.mxu0 0.0
        %2496 = vmatpush1.xpose.msra.mxu0 0.0
        %2497 = vmatprep.subr.mxu0 0.0
        %2498 = vmatpush1.xpose.msra.mxu0 %v1174
        %2499 = vmatprep.subr.mxu0 0.0
        %2500 = vmatpush2.xpose.msra.mxu0 0.0
        %2501 = vmatprep.subr.mxu0 0.0
        %2502 = vmatpush2.xpose.msra.mxu0 0.0
        %2503 = vmatprep.subr.mxu0 0.0
        %2504 = vmatpush2.xpose.msra.mxu0 0.0
        %2505 = vmatprep.subr.mxu0 0.0
        %2506 = vmatpush2.xpose.msra.mxu0 0.0
        %2507 = vmatprep.subr.mxu0 0.0
        %2508 = vmatpush2.xpose.msra.mxu0 0.0
        %2509 = vmatprep.subr.mxu0 0.0
        %2510 = vmatpush2.xpose.msra.mxu0 0.0
        %2511 = vmatprep.subr.mxu0 0.0
        %2512 = vmatpush2.xpose.msra.mxu0 0.0
        %2513 = vmatprep.subr.mxu0 0.0
        %2514 = vmatpush2.xpose.msra.mxu0 0.0
        %2515 = vmatprep.subr.mxu0 0.0
        %2516 = vmatpush2.xpose.msra.mxu0 0.0
        %2517 = vmatprep.subr.mxu0 0.0
        %2518 = vmatpush2.xpose.msra.mxu0 0.0
        %2519 = vmatprep.subr.mxu0 0.0
        %2520 = vmatpush2.xpose.msra.mxu0 0.0
        %2521 = vmatprep.subr.mxu0 0.0
        %2522 = vmatpush2.xpose.msra.mxu0 0.0
        %2523 = vmatprep.subr.mxu0 0.0
        %2524 = vmatpush2.xpose.msra.mxu0 0.0
        %2525 = vmatprep.subr.mxu0 0.0
        %2526 = vmatpush2.xpose.msra.mxu0 0.0
        %2527 = vmatprep.subr.mxu0 0.0
        %2528 = vmatpush2.xpose.msra.mxu0 0.0
        %2529 = vmatprep.subr.mxu0 0.0
        %2530 = vmatpush2.xpose.msra.mxu0 0.0
        %2531 = vmatprep.mubr.f32.mxu0 0.0
        %2532 = vmatmul.mubr.f32.gmra.mxu0 %v1172
        %v2533 = vpop.f32.mrf.mxu0
        %v2534 = vadd.f32 0.0, %v2533
        %v2535 = vpop.f32.mrf.mxu0
        %2536 = vdwg.mxu0
        %2537 = vmatprep.subr.mxu0 0.0
        %2538 = vmatpush1.xpose.msra.mxu0 0.0
        %2539 = vmatprep.subr.mxu0 0.0
        %2540 = vmatpush1.xpose.msra.mxu0 0.0
        %2541 = vmatprep.subr.mxu0 0.0
        %2542 = vmatpush1.xpose.msra.mxu0 0.0
        %2543 = vmatprep.subr.mxu0 0.0
        %2544 = vmatpush1.xpose.msra.mxu0 0.0
        %2545 = vmatprep.subr.mxu0 0.0
        %2546 = vmatpush1.xpose.msra.mxu0 0.0
        %2547 = vmatprep.subr.mxu0 0.0
        %2548 = vmatpush1.xpose.msra.mxu0 0.0
        %2549 = vmatprep.subr.mxu0 0.0
        %2550 = vmatpush1.xpose.msra.mxu0 0.0
        %2551 = vmatprep.subr.mxu0 0.0
        %2552 = vmatpush1.xpose.msra.mxu0 0.0
        %2553 = vmatprep.subr.mxu0 0.0
        %2554 = vmatpush1.xpose.msra.mxu0 0.0
        %2555 = vmatprep.subr.mxu0 0.0
        %2556 = vmatpush1.xpose.msra.mxu0 0.0
        %2557 = vmatprep.subr.mxu0 0.0
        %2558 = vmatpush1.xpose.msra.mxu0 0.0
        %2559 = vmatprep.subr.mxu0 0.0
        %2560 = vmatpush1.xpose.msra.mxu0 0.0
        %2561 = vmatprep.subr.mxu0 0.0
        %2562 = vmatpush1.xpose.msra.mxu0 0.0
        %2563 = vmatprep.subr.mxu0 0.0
        %2564 = vmatpush1.xpose.msra.mxu0 0.0
        %2565 = vmatprep.subr.mxu0 0.0
        %2566 = vmatpush1.xpose.msra.mxu0 0.0
        %2567 = vmatprep.subr.mxu0 0.0
        %2568 = vmatpush1.xpose.msra.mxu0 %v1180
        %2569 = vmatprep.subr.mxu0 0.0
        %2570 = vmatpush2.xpose.msra.mxu0 0.0
        %2571 = vmatprep.subr.mxu0 0.0
        %2572 = vmatpush2.xpose.msra.mxu0 0.0
        %2573 = vmatprep.subr.mxu0 0.0
        %2574 = vmatpush2.xpose.msra.mxu0 0.0
        %2575 = vmatprep.subr.mxu0 0.0
        %2576 = vmatpush2.xpose.msra.mxu0 0.0
        %2577 = vmatprep.subr.mxu0 0.0
        %2578 = vmatpush2.xpose.msra.mxu0 0.0
        %2579 = vmatprep.subr.mxu0 0.0
        %2580 = vmatpush2.xpose.msra.mxu0 0.0
        %2581 = vmatprep.subr.mxu0 0.0
        %2582 = vmatpush2.xpose.msra.mxu0 0.0
        %2583 = vmatprep.subr.mxu0 0.0
        %2584 = vmatpush2.xpose.msra.mxu0 0.0
        %2585 = vmatprep.subr.mxu0 0.0
        %2586 = vmatpush2.xpose.msra.mxu0 0.0
        %2587 = vmatprep.subr.mxu0 0.0
        %2588 = vmatpush2.xpose.msra.mxu0 0.0
        %2589 = vmatprep.subr.mxu0 0.0
        %2590 = vmatpush2.xpose.msra.mxu0 0.0
        %2591 = vmatprep.subr.mxu0 0.0
        %2592 = vmatpush2.xpose.msra.mxu0 0.0
        %2593 = vmatprep.subr.mxu0 0.0
        %2594 = vmatpush2.xpose.msra.mxu0 0.0
        %2595 = vmatprep.subr.mxu0 0.0
        %2596 = vmatpush2.xpose.msra.mxu0 0.0
        %2597 = vmatprep.subr.mxu0 0.0
        %2598 = vmatpush2.xpose.msra.mxu0 0.0
        %2599 = vmatprep.subr.mxu0 0.0
        %2600 = vmatpush2.xpose.msra.mxu0 0.0
        %2601 = vmatprep.mubr.f32.mxu0 0.0
        %2602 = vmatmul.mubr.f32.gmra.mxu0 %v1178
        %v2603 = vpop.f32.mrf.mxu0
        %v2604 = vadd.f32 0.0, %v2603
        %v2605 = vpop.f32.mrf.mxu0
        %2606 = vdwg.mxu0
        %2607 = vmatprep.subr.mxu0 0.0
        %2608 = vmatpush1.xpose.msra.mxu0 0.0
        %2609 = vmatprep.subr.mxu0 0.0
        %2610 = vmatpush1.xpose.msra.mxu0 0.0
        %2611 = vmatprep.subr.mxu0 0.0
        %2612 = vmatpush1.xpose.msra.mxu0 0.0
        %2613 = vmatprep.subr.mxu0 0.0
        %2614 = vmatpush1.xpose.msra.mxu0 0.0
        %2615 = vmatprep.subr.mxu0 0.0
        %2616 = vmatpush1.xpose.msra.mxu0 0.0
        %2617 = vmatprep.subr.mxu0 0.0
        %2618 = vmatpush1.xpose.msra.mxu0 0.0
        %2619 = vmatprep.subr.mxu0 0.0
        %2620 = vmatpush1.xpose.msra.mxu0 0.0
        %2621 = vmatprep.subr.mxu0 0.0
        %2622 = vmatpush1.xpose.msra.mxu0 0.0
        %2623 = vmatprep.subr.mxu0 0.0
        %2624 = vmatpush1.xpose.msra.mxu0 0.0
        %2625 = vmatprep.subr.mxu0 0.0
        %2626 = vmatpush1.xpose.msra.mxu0 0.0
        %2627 = vmatprep.subr.mxu0 0.0
        %2628 = vmatpush1.xpose.msra.mxu0 0.0
        %2629 = vmatprep.subr.mxu0 0.0
        %2630 = vmatpush1.xpose.msra.mxu0 0.0
        %2631 = vmatprep.subr.mxu0 0.0
        %2632 = vmatpush1.xpose.msra.mxu0 0.0
        %2633 = vmatprep.subr.mxu0 0.0
        %2634 = vmatpush1.xpose.msra.mxu0 0.0
        %2635 = vmatprep.subr.mxu0 0.0
        %2636 = vmatpush1.xpose.msra.mxu0 0.0
        %2637 = vmatprep.subr.mxu0 0.0
        %2638 = vmatpush1.xpose.msra.mxu0 %v1184
        %2639 = vmatprep.subr.mxu0 0.0
        %2640 = vmatpush2.xpose.msra.mxu0 0.0
        %2641 = vmatprep.subr.mxu0 0.0
        %2642 = vmatpush2.xpose.msra.mxu0 0.0
        %2643 = vmatprep.subr.mxu0 0.0
        %2644 = vmatpush2.xpose.msra.mxu0 0.0
        %2645 = vmatprep.subr.mxu0 0.0
        %2646 = vmatpush2.xpose.msra.mxu0 0.0
        %2647 = vmatprep.subr.mxu0 0.0
        %2648 = vmatpush2.xpose.msra.mxu0 0.0
        %2649 = vmatprep.subr.mxu0 0.0
        %2650 = vmatpush2.xpose.msra.mxu0 0.0
        %2651 = vmatprep.subr.mxu0 0.0
        %2652 = vmatpush2.xpose.msra.mxu0 0.0
        %2653 = vmatprep.subr.mxu0 0.0
        %2654 = vmatpush2.xpose.msra.mxu0 0.0
        %2655 = vmatprep.subr.mxu0 0.0
        %2656 = vmatpush2.xpose.msra.mxu0 0.0
        %2657 = vmatprep.subr.mxu0 0.0
        %2658 = vmatpush2.xpose.msra.mxu0 0.0
        %2659 = vmatprep.subr.mxu0 0.0
        %2660 = vmatpush2.xpose.msra.mxu0 0.0
        %2661 = vmatprep.subr.mxu0 0.0
        %2662 = vmatpush2.xpose.msra.mxu0 0.0
        %2663 = vmatprep.subr.mxu0 0.0
        %2664 = vmatpush2.xpose.msra.mxu0 0.0
        %2665 = vmatprep.subr.mxu0 0.0
        %2666 = vmatpush2.xpose.msra.mxu0 0.0
        %2667 = vmatprep.subr.mxu0 0.0
        %2668 = vmatpush2.xpose.msra.mxu0 0.0
        %2669 = vmatprep.subr.mxu0 0.0
        %2670 = vmatpush2.xpose.msra.mxu0 0.0
        %2671 = vmatprep.mubr.f32.mxu0 0.0
        %2672 = vmatmul.mubr.f32.gmra.mxu0 %v1182
        %v2673 = vpop.f32.mrf.mxu0
        %v2674 = vadd.f32 0.0, %v2673
        %v2675 = vpop.f32.mrf.mxu0
        %2676 = vdwg.mxu0
        %2677 = vmatprep.subr.mxu0 0.0
        %2678 = vmatpush1.xpose.msra.mxu0 0.0
        %2679 = vmatprep.subr.mxu0 0.0
        %2680 = vmatpush1.xpose.msra.mxu0 0.0
        %2681 = vmatprep.subr.mxu0 0.0
        %2682 = vmatpush1.xpose.msra.mxu0 0.0
        %2683 = vmatprep.subr.mxu0 0.0
        %2684 = vmatpush1.xpose.msra.mxu0 0.0
        %2685 = vmatprep.subr.mxu0 0.0
        %2686 = vmatpush1.xpose.msra.mxu0 0.0
        %2687 = vmatprep.subr.mxu0 0.0
        %2688 = vmatpush1.xpose.msra.mxu0 0.0
        %2689 = vmatprep.subr.mxu0 0.0
        %2690 = vmatpush1.xpose.msra.mxu0 0.0
        %2691 = vmatprep.subr.mxu0 0.0
        %2692 = vmatpush1.xpose.msra.mxu0 0.0
        %2693 = vmatprep.subr.mxu0 0.0
        %2694 = vmatpush1.xpose.msra.mxu0 0.0
        %2695 = vmatprep.subr.mxu0 0.0
        %2696 = vmatpush1.xpose.msra.mxu0 0.0
        %2697 = vmatprep.subr.mxu0 0.0
        %2698 = vmatpush1.xpose.msra.mxu0 0.0
        %2699 = vmatprep.subr.mxu0 0.0
        %2700 = vmatpush1.xpose.msra.mxu0 0.0
        %2701 = vmatprep.subr.mxu0 0.0
        %2702 = vmatpush1.xpose.msra.mxu0 0.0
        %2703 = vmatprep.subr.mxu0 0.0
        %2704 = vmatpush1.xpose.msra.mxu0 0.0
        %2705 = vmatprep.subr.mxu0 0.0
        %2706 = vmatpush1.xpose.msra.mxu0 0.0
        %2707 = vmatprep.subr.mxu0 0.0
        %2708 = vmatpush1.xpose.msra.mxu0 %v1190
        %2709 = vmatprep.subr.mxu0 0.0
        %2710 = vmatpush2.xpose.msra.mxu0 0.0
        %2711 = vmatprep.subr.mxu0 0.0
        %2712 = vmatpush2.xpose.msra.mxu0 0.0
        %2713 = vmatprep.subr.mxu0 0.0
        %2714 = vmatpush2.xpose.msra.mxu0 0.0
        %2715 = vmatprep.subr.mxu0 0.0
        %2716 = vmatpush2.xpose.msra.mxu0 0.0
        %2717 = vmatprep.subr.mxu0 0.0
        %2718 = vmatpush2.xpose.msra.mxu0 0.0
        %2719 = vmatprep.subr.mxu0 0.0
        %2720 = vmatpush2.xpose.msra.mxu0 0.0
        %2721 = vmatprep.subr.mxu0 0.0
        %2722 = vmatpush2.xpose.msra.mxu0 0.0
        %2723 = vmatprep.subr.mxu0 0.0
        %2724 = vmatpush2.xpose.msra.mxu0 0.0
        %2725 = vmatprep.subr.mxu0 0.0
        %2726 = vmatpush2.xpose.msra.mxu0 0.0
        %2727 = vmatprep.subr.mxu0 0.0
        %2728 = vmatpush2.xpose.msra.mxu0 0.0
        %2729 = vmatprep.subr.mxu0 0.0
        %2730 = vmatpush2.xpose.msra.mxu0 0.0
        %2731 = vmatprep.subr.mxu0 0.0
        %2732 = vmatpush2.xpose.msra.mxu0 0.0
        %2733 = vmatprep.subr.mxu0 0.0
        %2734 = vmatpush2.xpose.msra.mxu0 0.0
        %2735 = vmatprep.subr.mxu0 0.0
        %2736 = vmatpush2.xpose.msra.mxu0 0.0
        %2737 = vmatprep.subr.mxu0 0.0
        %2738 = vmatpush2.xpose.msra.mxu0 0.0
        %2739 = vmatprep.subr.mxu0 0.0
        %2740 = vmatpush2.xpose.msra.mxu0 0.0
        %2741 = vmatprep.mubr.f32.mxu0 0.0
        %2742 = vmatmul.mubr.f32.gmra.mxu0 %v1188
        %v2743 = vpop.f32.mrf.mxu0
        %v2744 = vadd.f32 0.0, %v2743
        %v2745 = vpop.f32.mrf.mxu0
        %2746 = vdwg.mxu0
        %2747 = vmatprep.subr.mxu0 0.0
        %2748 = vmatpush1.xpose.msra.mxu0 0.0
        %2749 = vmatprep.subr.mxu0 0.0
        %2750 = vmatpush1.xpose.msra.mxu0 0.0
        %2751 = vmatprep.subr.mxu0 0.0
        %2752 = vmatpush1.xpose.msra.mxu0 0.0
        %2753 = vmatprep.subr.mxu0 0.0
        %2754 = vmatpush1.xpose.msra.mxu0 0.0
        %2755 = vmatprep.subr.mxu0 0.0
        %2756 = vmatpush1.xpose.msra.mxu0 0.0
        %2757 = vmatprep.subr.mxu0 0.0
        %2758 = vmatpush1.xpose.msra.mxu0 0.0
        %2759 = vmatprep.subr.mxu0 0.0
        %2760 = vmatpush1.xpose.msra.mxu0 0.0
        %2761 = vmatprep.subr.mxu0 0.0
        %2762 = vmatpush1.xpose.msra.mxu0 0.0
        %2763 = vmatprep.subr.mxu0 0.0
        %2764 = vmatpush1.xpose.msra.mxu0 0.0
        %2765 = vmatprep.subr.mxu0 0.0
        %2766 = vmatpush1.xpose.msra.mxu0 0.0
        %2767 = vmatprep.subr.mxu0 0.0
        %2768 = vmatpush1.xpose.msra.mxu0 0.0
        %2769 = vmatprep.subr.mxu0 0.0
        %2770 = vmatpush1.xpose.msra.mxu0 0.0
        %2771 = vmatprep.subr.mxu0 0.0
        %2772 = vmatpush1.xpose.msra.mxu0 0.0
        %2773 = vmatprep.subr.mxu0 0.0
        %2774 = vmatpush1.xpose.msra.mxu0 0.0
        %2775 = vmatprep.subr.mxu0 0.0
        %2776 = vmatpush1.xpose.msra.mxu0 0.0
        %2777 = vmatprep.subr.mxu0 0.0
        %2778 = vmatpush1.xpose.msra.mxu0 %v1194
        %2779 = vmatprep.subr.mxu0 0.0
        %2780 = vmatpush2.xpose.msra.mxu0 0.0
        %2781 = vmatprep.subr.mxu0 0.0
        %2782 = vmatpush2.xpose.msra.mxu0 0.0
        %2783 = vmatprep.subr.mxu0 0.0
        %2784 = vmatpush2.xpose.msra.mxu0 0.0
        %2785 = vmatprep.subr.mxu0 0.0
        %2786 = vmatpush2.xpose.msra.mxu0 0.0
        %2787 = vmatprep.subr.mxu0 0.0
        %2788 = vmatpush2.xpose.msra.mxu0 0.0
        %2789 = vmatprep.subr.mxu0 0.0
        %2790 = vmatpush2.xpose.msra.mxu0 0.0
        %2791 = vmatprep.subr.mxu0 0.0
        %2792 = vmatpush2.xpose.msra.mxu0 0.0
        %2793 = vmatprep.subr.mxu0 0.0
        %2794 = vmatpush2.xpose.msra.mxu0 0.0
        %2795 = vmatprep.subr.mxu0 0.0
        %2796 = vmatpush2.xpose.msra.mxu0 0.0
        %2797 = vmatprep.subr.mxu0 0.0
        %2798 = vmatpush2.xpose.msra.mxu0 0.0
        %2799 = vmatprep.subr.mxu0 0.0
        %2800 = vmatpush2.xpose.msra.mxu0 0.0
        %2801 = vmatprep.subr.mxu0 0.0
        %2802 = vmatpush2.xpose.msra.mxu0 0.0
        %2803 = vmatprep.subr.mxu0 0.0
        %2804 = vmatpush2.xpose.msra.mxu0 0.0
        %2805 = vmatprep.subr.mxu0 0.0
        %2806 = vmatpush2.xpose.msra.mxu0 0.0
        %2807 = vmatprep.subr.mxu0 0.0
        %2808 = vmatpush2.xpose.msra.mxu0 0.0
        %2809 = vmatprep.subr.mxu0 0.0
        %2810 = vmatpush2.xpose.msra.mxu0 0.0
        %2811 = vmatprep.mubr.f32.mxu0 0.0
        %2812 = vmatmul.mubr.f32.gmra.mxu0 %v1192
        %v2813 = vpop.f32.mrf.mxu0
        %v2814 = vadd.f32 0.0, %v2813
        %v2815 = vpop.f32.mrf.mxu0
        %2816 = vdwg.mxu0
        %2817 = vmatprep.subr.mxu0 0.0
        %2818 = vmatpush1.xpose.msra.mxu0 0.0
        %2819 = vmatprep.subr.mxu0 0.0
        %2820 = vmatpush1.xpose.msra.mxu0 0.0
        %2821 = vmatprep.subr.mxu0 0.0
        %2822 = vmatpush1.xpose.msra.mxu0 0.0
        %2823 = vmatprep.subr.mxu0 0.0
        %2824 = vmatpush1.xpose.msra.mxu0 0.0
        %2825 = vmatprep.subr.mxu0 0.0
        %2826 = vmatpush1.xpose.msra.mxu0 0.0
        %2827 = vmatprep.subr.mxu0 0.0
        %2828 = vmatpush1.xpose.msra.mxu0 0.0
        %2829 = vmatprep.subr.mxu0 0.0
        %2830 = vmatpush1.xpose.msra.mxu0 0.0
        %2831 = vmatprep.subr.mxu0 0.0
        %2832 = vmatpush1.xpose.msra.mxu0 0.0
        %2833 = vmatprep.subr.mxu0 0.0
        %2834 = vmatpush1.xpose.msra.mxu0 0.0
        %2835 = vmatprep.subr.mxu0 0.0
        %2836 = vmatpush1.xpose.msra.mxu0 0.0
        %2837 = vmatprep.subr.mxu0 0.0
        %2838 = vmatpush1.xpose.msra.mxu0 0.0
        %2839 = vmatprep.subr.mxu0 0.0
        %2840 = vmatpush1.xpose.msra.mxu0 0.0
        %2841 = vmatprep.subr.mxu0 0.0
        %2842 = vmatpush1.xpose.msra.mxu0 0.0
        %2843 = vmatprep.subr.mxu0 0.0
        %2844 = vmatpush1.xpose.msra.mxu0 0.0
        %2845 = vmatprep.subr.mxu0 0.0
        %2846 = vmatpush1.xpose.msra.mxu0 0.0
        %2847 = vmatprep.subr.mxu0 0.0
        %2848 = vmatpush1.xpose.msra.mxu0 %v1200
        %2849 = vmatprep.subr.mxu0 0.0
        %2850 = vmatpush2.xpose.msra.mxu0 0.0
        %2851 = vmatprep.subr.mxu0 0.0
        %2852 = vmatpush2.xpose.msra.mxu0 0.0
        %2853 = vmatprep.subr.mxu0 0.0
        %2854 = vmatpush2.xpose.msra.mxu0 0.0
        %2855 = vmatprep.subr.mxu0 0.0
        %2856 = vmatpush2.xpose.msra.mxu0 0.0
        %2857 = vmatprep.subr.mxu0 0.0
        %2858 = vmatpush2.xpose.msra.mxu0 0.0
        %2859 = vmatprep.subr.mxu0 0.0
        %2860 = vmatpush2.xpose.msra.mxu0 0.0
        %2861 = vmatprep.subr.mxu0 0.0
        %2862 = vmatpush2.xpose.msra.mxu0 0.0
        %2863 = vmatprep.subr.mxu0 0.0
        %2864 = vmatpush2.xpose.msra.mxu0 0.0
        %2865 = vmatprep.subr.mxu0 0.0
        %2866 = vmatpush2.xpose.msra.mxu0 0.0
        %2867 = vmatprep.subr.mxu0 0.0
        %2868 = vmatpush2.xpose.msra.mxu0 0.0
        %2869 = vmatprep.subr.mxu0 0.0
        %2870 = vmatpush2.xpose.msra.mxu0 0.0
        %2871 = vmatprep.subr.mxu0 0.0
        %2872 = vmatpush2.xpose.msra.mxu0 0.0
        %2873 = vmatprep.subr.mxu0 0.0
        %2874 = vmatpush2.xpose.msra.mxu0 0.0
        %2875 = vmatprep.subr.mxu0 0.0
        %2876 = vmatpush2.xpose.msra.mxu0 0.0
        %2877 = vmatprep.subr.mxu0 0.0
        %2878 = vmatpush2.xpose.msra.mxu0 0.0
        %2879 = vmatprep.subr.mxu0 0.0
        %2880 = vmatpush2.xpose.msra.mxu0 0.0
        %2881 = vmatprep.mubr.f32.mxu0 0.0
        %2882 = vmatmul.mubr.f32.gmra.mxu0 %v1198
        %v2883 = vpop.f32.mrf.mxu0
        %v2884 = vadd.f32 0.0, %v2883
        %v2885 = vpop.f32.mrf.mxu0
        %2886 = vdwg.mxu0
        %2887 = vmatprep.subr.mxu0 0.0
        %2888 = vmatpush1.xpose.msra.mxu0 0.0
        %2889 = vmatprep.subr.mxu0 0.0
        %2890 = vmatpush1.xpose.msra.mxu0 0.0
        %2891 = vmatprep.subr.mxu0 0.0
        %2892 = vmatpush1.xpose.msra.mxu0 0.0
        %2893 = vmatprep.subr.mxu0 0.0
        %2894 = vmatpush1.xpose.msra.mxu0 0.0
        %2895 = vmatprep.subr.mxu0 0.0
        %2896 = vmatpush1.xpose.msra.mxu0 0.0
        %2897 = vmatprep.subr.mxu0 0.0
        %2898 = vmatpush1.xpose.msra.mxu0 0.0
        %2899 = vmatprep.subr.mxu0 0.0
        %2900 = vmatpush1.xpose.msra.mxu0 0.0
        %2901 = vmatprep.subr.mxu0 0.0
        %2902 = vmatpush1.xpose.msra.mxu0 0.0
        %2903 = vmatprep.subr.mxu0 0.0
        %2904 = vmatpush1.xpose.msra.mxu0 0.0
        %2905 = vmatprep.subr.mxu0 0.0
        %2906 = vmatpush1.xpose.msra.mxu0 0.0
        %2907 = vmatprep.subr.mxu0 0.0
        %2908 = vmatpush1.xpose.msra.mxu0 0.0
        %2909 = vmatprep.subr.mxu0 0.0
        %2910 = vmatpush1.xpose.msra.mxu0 0.0
        %2911 = vmatprep.subr.mxu0 0.0
        %2912 = vmatpush1.xpose.msra.mxu0 0.0
        %2913 = vmatprep.subr.mxu0 0.0
        %2914 = vmatpush1.xpose.msra.mxu0 0.0
        %2915 = vmatprep.subr.mxu0 0.0
        %2916 = vmatpush1.xpose.msra.mxu0 0.0
        %2917 = vmatprep.subr.mxu0 0.0
        %2918 = vmatpush1.xpose.msra.mxu0 %v1204
        %2919 = vmatprep.subr.mxu0 0.0
        %2920 = vmatpush2.xpose.msra.mxu0 0.0
        %2921 = vmatprep.subr.mxu0 0.0
        %2922 = vmatpush2.xpose.msra.mxu0 0.0
        %2923 = vmatprep.subr.mxu0 0.0
        %2924 = vmatpush2.xpose.msra.mxu0 0.0
        %2925 = vmatprep.subr.mxu0 0.0
        %2926 = vmatpush2.xpose.msra.mxu0 0.0
        %2927 = vmatprep.subr.mxu0 0.0
        %2928 = vmatpush2.xpose.msra.mxu0 0.0
        %2929 = vmatprep.subr.mxu0 0.0
        %2930 = vmatpush2.xpose.msra.mxu0 0.0
        %2931 = vmatprep.subr.mxu0 0.0
        %2932 = vmatpush2.xpose.msra.mxu0 0.0
        %2933 = vmatprep.subr.mxu0 0.0
        %2934 = vmatpush2.xpose.msra.mxu0 0.0
        %2935 = vmatprep.subr.mxu0 0.0
        %2936 = vmatpush2.xpose.msra.mxu0 0.0
        %2937 = vmatprep.subr.mxu0 0.0
        %2938 = vmatpush2.xpose.msra.mxu0 0.0
        %2939 = vmatprep.subr.mxu0 0.0
        %2940 = vmatpush2.xpose.msra.mxu0 0.0
        %2941 = vmatprep.subr.mxu0 0.0
        %2942 = vmatpush2.xpose.msra.mxu0 0.0
        %2943 = vmatprep.subr.mxu0 0.0
        %2944 = vmatpush2.xpose.msra.mxu0 0.0
        %2945 = vmatprep.subr.mxu0 0.0
        %2946 = vmatpush2.xpose.msra.mxu0 0.0
        %2947 = vmatprep.subr.mxu0 0.0
        %2948 = vmatpush2.xpose.msra.mxu0 0.0
        %2949 = vmatprep.subr.mxu0 0.0
        %2950 = vmatpush2.xpose.msra.mxu0 0.0
        %2951 = vmatprep.mubr.f32.mxu0 0.0
        %2952 = vmatmul.mubr.f32.gmra.mxu0 %v1202
        %v2953 = vpop.f32.mrf.mxu0
        %v2954 = vadd.f32 0.0, %v2953
        %v2955 = vpop.f32.mrf.mxu0
        %2956 = vdwg.mxu0
        %2957 = vmatprep.subr.mxu0 0.0
        %2958 = vmatpush1.xpose.msra.mxu0 0.0
        %2959 = vmatprep.subr.mxu0 0.0
        %2960 = vmatpush1.xpose.msra.mxu0 0.0
        %2961 = vmatprep.subr.mxu0 0.0
        %2962 = vmatpush1.xpose.msra.mxu0 0.0
        %2963 = vmatprep.subr.mxu0 0.0
        %2964 = vmatpush1.xpose.msra.mxu0 0.0
        %2965 = vmatprep.subr.mxu0 0.0
        %2966 = vmatpush1.xpose.msra.mxu0 0.0
        %2967 = vmatprep.subr.mxu0 0.0
        %2968 = vmatpush1.xpose.msra.mxu0 0.0
        %2969 = vmatprep.subr.mxu0 0.0
        %2970 = vmatpush1.xpose.msra.mxu0 0.0
        %2971 = vmatprep.subr.mxu0 0.0
        %2972 = vmatpush1.xpose.msra.mxu0 0.0
        %2973 = vmatprep.subr.mxu0 0.0
        %2974 = vmatpush1.xpose.msra.mxu0 0.0
        %2975 = vmatprep.subr.mxu0 0.0
        %2976 = vmatpush1.xpose.msra.mxu0 0.0
        %2977 = vmatprep.subr.mxu0 0.0
        %2978 = vmatpush1.xpose.msra.mxu0 0.0
        %2979 = vmatprep.subr.mxu0 0.0
        %2980 = vmatpush1.xpose.msra.mxu0 0.0
        %2981 = vmatprep.subr.mxu0 0.0
        %2982 = vmatpush1.xpose.msra.mxu0 0.0
        %2983 = vmatprep.subr.mxu0 0.0
        %2984 = vmatpush1.xpose.msra.mxu0 0.0
        %2985 = vmatprep.subr.mxu0 0.0
        %2986 = vmatpush1.xpose.msra.mxu0 0.0
        %2987 = vmatprep.subr.mxu0 0.0
        %2988 = vmatpush1.xpose.msra.mxu0 %v1210
        %2989 = vmatprep.subr.mxu0 0.0
        %2990 = vmatpush2.xpose.msra.mxu0 0.0
        %2991 = vmatprep.subr.mxu0 0.0
        %2992 = vmatpush2.xpose.msra.mxu0 0.0
        %2993 = vmatprep.subr.mxu0 0.0
        %2994 = vmatpush2.xpose.msra.mxu0 0.0
        %2995 = vmatprep.subr.mxu0 0.0
        %2996 = vmatpush2.xpose.msra.mxu0 0.0
        %2997 = vmatprep.subr.mxu0 0.0
        %2998 = vmatpush2.xpose.msra.mxu0 0.0
        %2999 = vmatprep.subr.mxu0 0.0
        %3000 = vmatpush2.xpose.msra.mxu0 0.0
        %3001 = vmatprep.subr.mxu0 0.0
        %3002 = vmatpush2.xpose.msra.mxu0 0.0
        %3003 = vmatprep.subr.mxu0 0.0
        %3004 = vmatpush2.xpose.msra.mxu0 0.0
        %3005 = vmatprep.subr.mxu0 0.0
        %3006 = vmatpush2.xpose.msra.mxu0 0.0
        %3007 = vmatprep.subr.mxu0 0.0
        %3008 = vmatpush2.xpose.msra.mxu0 0.0
        %3009 = vmatprep.subr.mxu0 0.0
        %3010 = vmatpush2.xpose.msra.mxu0 0.0
        %3011 = vmatprep.subr.mxu0 0.0
        %3012 = vmatpush2.xpose.msra.mxu0 0.0
        %3013 = vmatprep.subr.mxu0 0.0
        %3014 = vmatpush2.xpose.msra.mxu0 0.0
        %3015 = vmatprep.subr.mxu0 0.0
        %3016 = vmatpush2.xpose.msra.mxu0 0.0
        %3017 = vmatprep.subr.mxu0 0.0
        %3018 = vmatpush2.xpose.msra.mxu0 0.0
        %3019 = vmatprep.subr.mxu0 0.0
        %3020 = vmatpush2.xpose.msra.mxu0 0.0
        %3021 = vmatprep.mubr.f32.mxu0 0.0
        %3022 = vmatmul.mubr.f32.gmra.mxu0 %v1208
        %v3023 = vpop.f32.mrf.mxu0
        %v3024 = vadd.f32 0.0, %v3023
        %v3025 = vpop.f32.mrf.mxu0
        %3026 = vdwg.mxu0
        %3027 = vmatprep.subr.mxu0 0.0
        %3028 = vmatpush1.xpose.msra.mxu0 0.0
        %3029 = vmatprep.subr.mxu0 0.0
        %3030 = vmatpush1.xpose.msra.mxu0 0.0
        %3031 = vmatprep.subr.mxu0 0.0
        %3032 = vmatpush1.xpose.msra.mxu0 0.0
        %3033 = vmatprep.subr.mxu0 0.0
        %3034 = vmatpush1.xpose.msra.mxu0 0.0
        %3035 = vmatprep.subr.mxu0 0.0
        %3036 = vmatpush1.xpose.msra.mxu0 0.0
        %3037 = vmatprep.subr.mxu0 0.0
        %3038 = vmatpush1.xpose.msra.mxu0 0.0
        %3039 = vmatprep.subr.mxu0 0.0
        %3040 = vmatpush1.xpose.msra.mxu0 0.0
        %3041 = vmatprep.subr.mxu0 0.0
        %3042 = vmatpush1.xpose.msra.mxu0 0.0
        %3043 = vmatprep.subr.mxu0 0.0
        %3044 = vmatpush1.xpose.msra.mxu0 0.0
        %3045 = vmatprep.subr.mxu0 0.0
        %3046 = vmatpush1.xpose.msra.mxu0 0.0
        %3047 = vmatprep.subr.mxu0 0.0
        %3048 = vmatpush1.xpose.msra.mxu0 0.0
        %3049 = vmatprep.subr.mxu0 0.0
        %3050 = vmatpush1.xpose.msra.mxu0 0.0
        %3051 = vmatprep.subr.mxu0 0.0
        %3052 = vmatpush1.xpose.msra.mxu0 0.0
        %3053 = vmatprep.subr.mxu0 0.0
        %3054 = vmatpush1.xpose.msra.mxu0 0.0
        %3055 = vmatprep.subr.mxu0 0.0
        %3056 = vmatpush1.xpose.msra.mxu0 0.0
        %3057 = vmatprep.subr.mxu0 0.0
        %3058 = vmatpush1.xpose.msra.mxu0 %v1214
        %3059 = vmatprep.subr.mxu0 0.0
        %3060 = vmatpush2.xpose.msra.mxu0 0.0
        %3061 = vmatprep.subr.mxu0 0.0
        %3062 = vmatpush2.xpose.msra.mxu0 0.0
        %3063 = vmatprep.subr.mxu0 0.0
        %3064 = vmatpush2.xpose.msra.mxu0 0.0
        %3065 = vmatprep.subr.mxu0 0.0
        %3066 = vmatpush2.xpose.msra.mxu0 0.0
        %3067 = vmatprep.subr.mxu0 0.0
        %3068 = vmatpush2.xpose.msra.mxu0 0.0
        %3069 = vmatprep.subr.mxu0 0.0
        %3070 = vmatpush2.xpose.msra.mxu0 0.0
        %3071 = vmatprep.subr.mxu0 0.0
        %3072 = vmatpush2.xpose.msra.mxu0 0.0
        %3073 = vmatprep.subr.mxu0 0.0
        %3074 = vmatpush2.xpose.msra.mxu0 0.0
        %3075 = vmatprep.subr.mxu0 0.0
        %3076 = vmatpush2.xpose.msra.mxu0 0.0
        %3077 = vmatprep.subr.mxu0 0.0
        %3078 = vmatpush2.xpose.msra.mxu0 0.0
        %3079 = vmatprep.subr.mxu0 0.0
        %3080 = vmatpush2.xpose.msra.mxu0 0.0
        %3081 = vmatprep.subr.mxu0 0.0
        %3082 = vmatpush2.xpose.msra.mxu0 0.0
        %3083 = vmatprep.subr.mxu0 0.0
        %3084 = vmatpush2.xpose.msra.mxu0 0.0
        %3085 = vmatprep.subr.mxu0 0.0
        %3086 = vmatpush2.xpose.msra.mxu0 0.0
        %3087 = vmatprep.subr.mxu0 0.0
        %3088 = vmatpush2.xpose.msra.mxu0 0.0
        %3089 = vmatprep.subr.mxu0 0.0
        %3090 = vmatpush2.xpose.msra.mxu0 0.0
        %3091 = vmatprep.mubr.f32.mxu0 0.0
        %3092 = vmatmul.mubr.f32.gmra.mxu0 %v1212
        %v3093 = vpop.f32.mrf.mxu0
        %v3094 = vadd.f32 0.0, %v3093
        %v3095 = vpop.f32.mrf.mxu0
        %3096 = vdwg.mxu0
        %3097 = vmatprep.subr.mxu0 0.0
        %3098 = vmatpush1.xpose.msra.mxu0 0.0
        %3099 = vmatprep.subr.mxu0 0.0
        %3100 = vmatpush1.xpose.msra.mxu0 0.0
        %3101 = vmatprep.subr.mxu0 0.0
        %3102 = vmatpush1.xpose.msra.mxu0 0.0
        %3103 = vmatprep.subr.mxu0 0.0
        %3104 = vmatpush1.xpose.msra.mxu0 0.0
        %3105 = vmatprep.subr.mxu0 0.0
        %3106 = vmatpush1.xpose.msra.mxu0 0.0
        %3107 = vmatprep.subr.mxu0 0.0
        %3108 = vmatpush1.xpose.msra.mxu0 0.0
        %3109 = vmatprep.subr.mxu0 0.0
        %3110 = vmatpush1.xpose.msra.mxu0 0.0
        %3111 = vmatprep.subr.mxu0 0.0
        %3112 = vmatpush1.xpose.msra.mxu0 0.0
        %3113 = vmatprep.subr.mxu0 0.0
        %3114 = vmatpush1.xpose.msra.mxu0 0.0
        %3115 = vmatprep.subr.mxu0 0.0
        %3116 = vmatpush1.xpose.msra.mxu0 0.0
        %3117 = vmatprep.subr.mxu0 0.0
        %3118 = vmatpush1.xpose.msra.mxu0 0.0
        %3119 = vmatprep.subr.mxu0 0.0
        %3120 = vmatpush1.xpose.msra.mxu0 0.0
        %3121 = vmatprep.subr.mxu0 0.0
        %3122 = vmatpush1.xpose.msra.mxu0 0.0
        %3123 = vmatprep.subr.mxu0 0.0
        %3124 = vmatpush1.xpose.msra.mxu0 0.0
        %3125 = vmatprep.subr.mxu0 0.0
        %3126 = vmatpush1.xpose.msra.mxu0 0.0
        %3127 = vmatprep.subr.mxu0 0.0
        %3128 = vmatpush1.xpose.msra.mxu0 %v1220
        %3129 = vmatprep.subr.mxu0 0.0
        %3130 = vmatpush2.xpose.msra.mxu0 0.0
        %3131 = vmatprep.subr.mxu0 0.0
        %3132 = vmatpush2.xpose.msra.mxu0 0.0
        %3133 = vmatprep.subr.mxu0 0.0
        %3134 = vmatpush2.xpose.msra.mxu0 0.0
        %3135 = vmatprep.subr.mxu0 0.0
        %3136 = vmatpush2.xpose.msra.mxu0 0.0
        %3137 = vmatprep.subr.mxu0 0.0
        %3138 = vmatpush2.xpose.msra.mxu0 0.0
        %3139 = vmatprep.subr.mxu0 0.0
        %3140 = vmatpush2.xpose.msra.mxu0 0.0
        %3141 = vmatprep.subr.mxu0 0.0
        %3142 = vmatpush2.xpose.msra.mxu0 0.0
        %3143 = vmatprep.subr.mxu0 0.0
        %3144 = vmatpush2.xpose.msra.mxu0 0.0
        %3145 = vmatprep.subr.mxu0 0.0
        %3146 = vmatpush2.xpose.msra.mxu0 0.0
        %3147 = vmatprep.subr.mxu0 0.0
        %3148 = vmatpush2.xpose.msra.mxu0 0.0
        %3149 = vmatprep.subr.mxu0 0.0
        %3150 = vmatpush2.xpose.msra.mxu0 0.0
        %3151 = vmatprep.subr.mxu0 0.0
        %3152 = vmatpush2.xpose.msra.mxu0 0.0
        %3153 = vmatprep.subr.mxu0 0.0
        %3154 = vmatpush2.xpose.msra.mxu0 0.0
        %3155 = vmatprep.subr.mxu0 0.0
        %3156 = vmatpush2.xpose.msra.mxu0 0.0
        %3157 = vmatprep.subr.mxu0 0.0
        %3158 = vmatpush2.xpose.msra.mxu0 0.0
        %3159 = vmatprep.subr.mxu0 0.0
        %3160 = vmatpush2.xpose.msra.mxu0 0.0
        %3161 = vmatprep.mubr.f32.mxu0 0.0
        %3162 = vmatmul.mubr.f32.gmra.mxu0 %v1218
        %v3163 = vpop.f32.mrf.mxu0
        %v3164 = vadd.f32 0.0, %v3163
        %v3165 = vpop.f32.mrf.mxu0
        %3166 = vdwg.mxu0
        %3167 = vmatprep.subr.mxu0 0.0
        %3168 = vmatpush1.xpose.msra.mxu0 0.0
        %3169 = vmatprep.subr.mxu0 0.0
        %3170 = vmatpush1.xpose.msra.mxu0 0.0
        %3171 = vmatprep.subr.mxu0 0.0
        %3172 = vmatpush1.xpose.msra.mxu0 0.0
        %3173 = vmatprep.subr.mxu0 0.0
        %3174 = vmatpush1.xpose.msra.mxu0 0.0
        %3175 = vmatprep.subr.mxu0 0.0
        %3176 = vmatpush1.xpose.msra.mxu0 0.0
        %3177 = vmatprep.subr.mxu0 0.0
        %3178 = vmatpush1.xpose.msra.mxu0 0.0
        %3179 = vmatprep.subr.mxu0 0.0
        %3180 = vmatpush1.xpose.msra.mxu0 0.0
        %3181 = vmatprep.subr.mxu0 0.0
        %3182 = vmatpush1.xpose.msra.mxu0 0.0
        %3183 = vmatprep.subr.mxu0 0.0
        %3184 = vmatpush1.xpose.msra.mxu0 0.0
        %3185 = vmatprep.subr.mxu0 0.0
        %3186 = vmatpush1.xpose.msra.mxu0 0.0
        %3187 = vmatprep.subr.mxu0 0.0
        %3188 = vmatpush1.xpose.msra.mxu0 0.0
        %3189 = vmatprep.subr.mxu0 0.0
        %3190 = vmatpush1.xpose.msra.mxu0 0.0
        %3191 = vmatprep.subr.mxu0 0.0
        %3192 = vmatpush1.xpose.msra.mxu0 0.0
        %3193 = vmatprep.subr.mxu0 0.0
        %3194 = vmatpush1.xpose.msra.mxu0 0.0
        %3195 = vmatprep.subr.mxu0 0.0
        %3196 = vmatpush1.xpose.msra.mxu0 0.0
        %3197 = vmatprep.subr.mxu0 0.0
        %3198 = vmatpush1.xpose.msra.mxu0 %v1224
        %3199 = vmatprep.subr.mxu0 0.0
        %3200 = vmatpush2.xpose.msra.mxu0 0.0
        %3201 = vmatprep.subr.mxu0 0.0
        %3202 = vmatpush2.xpose.msra.mxu0 0.0
        %3203 = vmatprep.subr.mxu0 0.0
        %3204 = vmatpush2.xpose.msra.mxu0 0.0
        %3205 = vmatprep.subr.mxu0 0.0
        %3206 = vmatpush2.xpose.msra.mxu0 0.0
        %3207 = vmatprep.subr.mxu0 0.0
        %3208 = vmatpush2.xpose.msra.mxu0 0.0
        %3209 = vmatprep.subr.mxu0 0.0
        %3210 = vmatpush2.xpose.msra.mxu0 0.0
        %3211 = vmatprep.subr.mxu0 0.0
        %3212 = vmatpush2.xpose.msra.mxu0 0.0
        %3213 = vmatprep.subr.mxu0 0.0
        %3214 = vmatpush2.xpose.msra.mxu0 0.0
        %3215 = vmatprep.subr.mxu0 0.0
        %3216 = vmatpush2.xpose.msra.mxu0 0.0
        %3217 = vmatprep.subr.mxu0 0.0
        %3218 = vmatpush2.xpose.msra.mxu0 0.0
        %3219 = vmatprep.subr.mxu0 0.0
        %3220 = vmatpush2.xpose.msra.mxu0 0.0
        %3221 = vmatprep.subr.mxu0 0.0
        %3222 = vmatpush2.xpose.msra.mxu0 0.0
        %3223 = vmatprep.subr.mxu0 0.0
        %3224 = vmatpush2.xpose.msra.mxu0 0.0
        %3225 = vmatprep.subr.mxu0 0.0
        %3226 = vmatpush2.xpose.msra.mxu0 0.0
        %3227 = vmatprep.subr.mxu0 0.0
        %3228 = vmatpush2.xpose.msra.mxu0 0.0
        %3229 = vmatprep.subr.mxu0 0.0
        %3230 = vmatpush2.xpose.msra.mxu0 0.0
        %3231 = vmatprep.mubr.f32.mxu0 0.0
        %3232 = vmatmul.mubr.f32.gmra.mxu0 %v1222
        %v3233 = vpop.f32.mrf.mxu0
        %v3234 = vadd.f32 0.0, %v3233
        %v3235 = vpop.f32.mrf.mxu0
        %3236 = vdwg.mxu0
        %3237 = vmatprep.subr.mxu0 0.0
        %3238 = vmatpush1.xpose.msra.mxu0 0.0
        %3239 = vmatprep.subr.mxu0 0.0
        %3240 = vmatpush1.xpose.msra.mxu0 0.0
        %3241 = vmatprep.subr.mxu0 0.0
        %3242 = vmatpush1.xpose.msra.mxu0 0.0
        %3243 = vmatprep.subr.mxu0 0.0
        %3244 = vmatpush1.xpose.msra.mxu0 0.0
        %3245 = vmatprep.subr.mxu0 0.0
        %3246 = vmatpush1.xpose.msra.mxu0 0.0
        %3247 = vmatprep.subr.mxu0 0.0
        %3248 = vmatpush1.xpose.msra.mxu0 0.0
        %3249 = vmatprep.subr.mxu0 0.0
        %3250 = vmatpush1.xpose.msra.mxu0 0.0
        %3251 = vmatprep.subr.mxu0 0.0
        %3252 = vmatpush1.xpose.msra.mxu0 0.0
        %3253 = vmatprep.subr.mxu0 0.0
        %3254 = vmatpush1.xpose.msra.mxu0 0.0
        %3255 = vmatprep.subr.mxu0 0.0
        %3256 = vmatpush1.xpose.msra.mxu0 0.0
        %3257 = vmatprep.subr.mxu0 0.0
        %3258 = vmatpush1.xpose.msra.mxu0 0.0
        %3259 = vmatprep.subr.mxu0 0.0
        %3260 = vmatpush1.xpose.msra.mxu0 0.0
        %3261 = vmatprep.subr.mxu0 0.0
        %3262 = vmatpush1.xpose.msra.mxu0 0.0
        %3263 = vmatprep.subr.mxu0 0.0
        %3264 = vmatpush1.xpose.msra.mxu0 0.0
        %3265 = vmatprep.subr.mxu0 0.0
        %3266 = vmatpush1.xpose.msra.mxu0 0.0
        %3267 = vmatprep.subr.mxu0 0.0
        %3268 = vmatpush1.xpose.msra.mxu0 %v1230
        %3269 = vmatprep.subr.mxu0 0.0
        %3270 = vmatpush2.xpose.msra.mxu0 0.0
        %3271 = vmatprep.subr.mxu0 0.0
        %3272 = vmatpush2.xpose.msra.mxu0 0.0
        %3273 = vmatprep.subr.mxu0 0.0
        %3274 = vmatpush2.xpose.msra.mxu0 0.0
        %3275 = vmatprep.subr.mxu0 0.0
        %3276 = vmatpush2.xpose.msra.mxu0 0.0
        %3277 = vmatprep.subr.mxu0 0.0
        %3278 = vmatpush2.xpose.msra.mxu0 0.0
        %3279 = vmatprep.subr.mxu0 0.0
        %3280 = vmatpush2.xpose.msra.mxu0 0.0
        %3281 = vmatprep.subr.mxu0 0.0
        %3282 = vmatpush2.xpose.msra.mxu0 0.0
        %3283 = vmatprep.subr.mxu0 0.0
        %3284 = vmatpush2.xpose.msra.mxu0 0.0
        %3285 = vmatprep.subr.mxu0 0.0
        %3286 = vmatpush2.xpose.msra.mxu0 0.0
        %3287 = vmatprep.subr.mxu0 0.0
        %3288 = vmatpush2.xpose.msra.mxu0 0.0
        %3289 = vmatprep.subr.mxu0 0.0
        %3290 = vmatpush2.xpose.msra.mxu0 0.0
        %3291 = vmatprep.subr.mxu0 0.0
        %3292 = vmatpush2.xpose.msra.mxu0 0.0
        %3293 = vmatprep.subr.mxu0 0.0
        %3294 = vmatpush2.xpose.msra.mxu0 0.0
        %3295 = vmatprep.subr.mxu0 0.0
        %3296 = vmatpush2.xpose.msra.mxu0 0.0
        %3297 = vmatprep.subr.mxu0 0.0
        %3298 = vmatpush2.xpose.msra.mxu0 0.0
        %3299 = vmatprep.subr.mxu0 0.0
        %3300 = vmatpush2.xpose.msra.mxu0 0.0
        %3301 = vmatprep.mubr.f32.mxu0 0.0
        %3302 = vmatmul.mubr.f32.gmra.mxu0 %v1228
        %v3303 = vpop.f32.mrf.mxu0
        %v3304 = vadd.f32 0.0, %v3303
        %v3305 = vpop.f32.mrf.mxu0
        %3306 = vdwg.mxu0
        %3307 = vmatprep.subr.mxu0 0.0
        %3308 = vmatpush1.xpose.msra.mxu0 0.0
        %3309 = vmatprep.subr.mxu0 0.0
        %3310 = vmatpush1.xpose.msra.mxu0 0.0
        %3311 = vmatprep.subr.mxu0 0.0
        %3312 = vmatpush1.xpose.msra.mxu0 0.0
        %3313 = vmatprep.subr.mxu0 0.0
        %3314 = vmatpush1.xpose.msra.mxu0 0.0
        %3315 = vmatprep.subr.mxu0 0.0
        %3316 = vmatpush1.xpose.msra.mxu0 0.0
        %3317 = vmatprep.subr.mxu0 0.0
        %3318 = vmatpush1.xpose.msra.mxu0 0.0
        %3319 = vmatprep.subr.mxu0 0.0
        %3320 = vmatpush1.xpose.msra.mxu0 0.0
        %3321 = vmatprep.subr.mxu0 0.0
        %3322 = vmatpush1.xpose.msra.mxu0 0.0
        %3323 = vmatprep.subr.mxu0 0.0
        %3324 = vmatpush1.xpose.msra.mxu0 0.0
        %3325 = vmatprep.subr.mxu0 0.0
        %3326 = vmatpush1.xpose.msra.mxu0 0.0
        %3327 = vmatprep.subr.mxu0 0.0
        %3328 = vmatpush1.xpose.msra.mxu0 0.0
        %3329 = vmatprep.subr.mxu0 0.0
        %3330 = vmatpush1.xpose.msra.mxu0 0.0
        %3331 = vmatprep.subr.mxu0 0.0
        %3332 = vmatpush1.xpose.msra.mxu0 0.0
        %3333 = vmatprep.subr.mxu0 0.0
        %3334 = vmatpush1.xpose.msra.mxu0 0.0
        %3335 = vmatprep.subr.mxu0 0.0
        %3336 = vmatpush1.xpose.msra.mxu0 0.0
        %3337 = vmatprep.subr.mxu0 0.0
        %3338 = vmatpush1.xpose.msra.mxu0 %v1234
        %3339 = vmatprep.subr.mxu0 0.0
        %3340 = vmatpush2.xpose.msra.mxu0 0.0
        %3341 = vmatprep.subr.mxu0 0.0
        %3342 = vmatpush2.xpose.msra.mxu0 0.0
        %3343 = vmatprep.subr.mxu0 0.0
        %3344 = vmatpush2.xpose.msra.mxu0 0.0
        %3345 = vmatprep.subr.mxu0 0.0
        %3346 = vmatpush2.xpose.msra.mxu0 0.0
        %3347 = vmatprep.subr.mxu0 0.0
        %3348 = vmatpush2.xpose.msra.mxu0 0.0
        %3349 = vmatprep.subr.mxu0 0.0
        %3350 = vmatpush2.xpose.msra.mxu0 0.0
        %3351 = vmatprep.subr.mxu0 0.0
        %3352 = vmatpush2.xpose.msra.mxu0 0.0
        %3353 = vmatprep.subr.mxu0 0.0
        %3354 = vmatpush2.xpose.msra.mxu0 0.0
        %3355 = vmatprep.subr.mxu0 0.0
        %3356 = vmatpush2.xpose.msra.mxu0 0.0
        %3357 = vmatprep.subr.mxu0 0.0
        %3358 = vmatpush2.xpose.msra.mxu0 0.0
        %3359 = vmatprep.subr.mxu0 0.0
        %3360 = vmatpush2.xpose.msra.mxu0 0.0
        %3361 = vmatprep.subr.mxu0 0.0
        %3362 = vmatpush2.xpose.msra.mxu0 0.0
        %3363 = vmatprep.subr.mxu0 0.0
        %3364 = vmatpush2.xpose.msra.mxu0 0.0
        %3365 = vmatprep.subr.mxu0 0.0
        %3366 = vmatpush2.xpose.msra.mxu0 0.0
        %3367 = vmatprep.subr.mxu0 0.0
        %3368 = vmatpush2.xpose.msra.mxu0 0.0
        %3369 = vmatprep.subr.mxu0 0.0
        %3370 = vmatpush2.xpose.msra.mxu0 0.0
        %3371 = vmatprep.mubr.f32.mxu0 0.0
        %3372 = vmatmul.mubr.f32.gmra.mxu0 %v1232
        %v3373 = vpop.f32.mrf.mxu0
        %v3374 = vadd.f32 0.0, %v3373
        %v3375 = vpop.f32.mrf.mxu0
        %3376 = vdwg.mxu0
        %3377 = vmatprep.subr.mxu0 0.0
        %3378 = vmatpush1.xpose.msra.mxu0 0.0
        %3379 = vmatprep.subr.mxu0 0.0
        %3380 = vmatpush1.xpose.msra.mxu0 0.0
        %3381 = vmatprep.subr.mxu0 0.0
        %3382 = vmatpush1.xpose.msra.mxu0 0.0
        %3383 = vmatprep.subr.mxu0 0.0
        %3384 = vmatpush1.xpose.msra.mxu0 0.0
        %3385 = vmatprep.subr.mxu0 0.0
        %3386 = vmatpush1.xpose.msra.mxu0 0.0
        %3387 = vmatprep.subr.mxu0 0.0
        %3388 = vmatpush1.xpose.msra.mxu0 0.0
        %3389 = vmatprep.subr.mxu0 0.0
        %3390 = vmatpush1.xpose.msra.mxu0 0.0
        %3391 = vmatprep.subr.mxu0 0.0
        %3392 = vmatpush1.xpose.msra.mxu0 0.0
        %3393 = vmatprep.subr.mxu0 0.0
        %3394 = vmatpush1.xpose.msra.mxu0 0.0
        %3395 = vmatprep.subr.mxu0 0.0
        %3396 = vmatpush1.xpose.msra.mxu0 0.0
        %3397 = vmatprep.subr.mxu0 0.0
        %3398 = vmatpush1.xpose.msra.mxu0 0.0
        %3399 = vmatprep.subr.mxu0 0.0
        %3400 = vmatpush1.xpose.msra.mxu0 0.0
        %3401 = vmatprep.subr.mxu0 0.0
        %3402 = vmatpush1.xpose.msra.mxu0 0.0
        %3403 = vmatprep.subr.mxu0 0.0
        %3404 = vmatpush1.xpose.msra.mxu0 0.0
        %3405 = vmatprep.subr.mxu0 0.0
        %3406 = vmatpush1.xpose.msra.mxu0 0.0
        %3407 = vmatprep.subr.mxu0 0.0
        %3408 = vmatpush1.xpose.msra.mxu0 %v1240
        %3409 = vmatprep.subr.mxu0 0.0
        %3410 = vmatpush2.xpose.msra.mxu0 0.0
        %3411 = vmatprep.subr.mxu0 0.0
        %3412 = vmatpush2.xpose.msra.mxu0 0.0
        %3413 = vmatprep.subr.mxu0 0.0
        %3414 = vmatpush2.xpose.msra.mxu0 0.0
        %3415 = vmatprep.subr.mxu0 0.0
        %3416 = vmatpush2.xpose.msra.mxu0 0.0
        %3417 = vmatprep.subr.mxu0 0.0
        %3418 = vmatpush2.xpose.msra.mxu0 0.0
        %3419 = vmatprep.subr.mxu0 0.0
        %3420 = vmatpush2.xpose.msra.mxu0 0.0
        %3421 = vmatprep.subr.mxu0 0.0
        %3422 = vmatpush2.xpose.msra.mxu0 0.0
        %3423 = vmatprep.subr.mxu0 0.0
        %3424 = vmatpush2.xpose.msra.mxu0 0.0
        %3425 = vmatprep.subr.mxu0 0.0
        %3426 = vmatpush2.xpose.msra.mxu0 0.0
        %3427 = vmatprep.subr.mxu0 0.0
        %3428 = vmatpush2.xpose.msra.mxu0 0.0
        %3429 = vmatprep.subr.mxu0 0.0
        %3430 = vmatpush2.xpose.msra.mxu0 0.0
        %3431 = vmatprep.subr.mxu0 0.0
        %3432 = vmatpush2.xpose.msra.mxu0 0.0
        %3433 = vmatprep.subr.mxu0 0.0
        %3434 = vmatpush2.xpose.msra.mxu0 0.0
        %3435 = vmatprep.subr.mxu0 0.0
        %3436 = vmatpush2.xpose.msra.mxu0 0.0
        %3437 = vmatprep.subr.mxu0 0.0
        %3438 = vmatpush2.xpose.msra.mxu0 0.0
        %3439 = vmatprep.subr.mxu0 0.0
        %3440 = vmatpush2.xpose.msra.mxu0 0.0
        %3441 = vmatprep.mubr.f32.mxu0 0.0
        %3442 = vmatmul.mubr.f32.gmra.mxu0 %v1238
        %v3443 = vpop.f32.mrf.mxu0
        %v3444 = vadd.f32 0.0, %v3443
        %v3445 = vpop.f32.mrf.mxu0
        %3446 = vdwg.mxu0
        %3447 = vmatprep.subr.mxu0 0.0
        %3448 = vmatpush1.xpose.msra.mxu0 0.0
        %3449 = vmatprep.subr.mxu0 0.0
        %3450 = vmatpush1.xpose.msra.mxu0 0.0
        %3451 = vmatprep.subr.mxu0 0.0
        %3452 = vmatpush1.xpose.msra.mxu0 0.0
        %3453 = vmatprep.subr.mxu0 0.0
        %3454 = vmatpush1.xpose.msra.mxu0 0.0
        %3455 = vmatprep.subr.mxu0 0.0
        %3456 = vmatpush1.xpose.msra.mxu0 0.0
        %3457 = vmatprep.subr.mxu0 0.0
        %3458 = vmatpush1.xpose.msra.mxu0 0.0
        %3459 = vmatprep.subr.mxu0 0.0
        %3460 = vmatpush1.xpose.msra.mxu0 0.0
        %3461 = vmatprep.subr.mxu0 0.0
        %3462 = vmatpush1.xpose.msra.mxu0 0.0
        %3463 = vmatprep.subr.mxu0 0.0
        %3464 = vmatpush1.xpose.msra.mxu0 0.0
        %3465 = vmatprep.subr.mxu0 0.0
        %3466 = vmatpush1.xpose.msra.mxu0 0.0
        %3467 = vmatprep.subr.mxu0 0.0
        %3468 = vmatpush1.xpose.msra.mxu0 0.0
        %3469 = vmatprep.subr.mxu0 0.0
        %3470 = vmatpush1.xpose.msra.mxu0 0.0
        %3471 = vmatprep.subr.mxu0 0.0
        %3472 = vmatpush1.xpose.msra.mxu0 0.0
        %3473 = vmatprep.subr.mxu0 0.0
        %3474 = vmatpush1.xpose.msra.mxu0 0.0
        %3475 = vmatprep.subr.mxu0 0.0
        %3476 = vmatpush1.xpose.msra.mxu0 0.0
        %3477 = vmatprep.subr.mxu0 0.0
        %3478 = vmatpush1.xpose.msra.mxu0 %v1244
        %3479 = vmatprep.subr.mxu0 0.0
        %3480 = vmatpush2.xpose.msra.mxu0 0.0
        %3481 = vmatprep.subr.mxu0 0.0
        %3482 = vmatpush2.xpose.msra.mxu0 0.0
        %3483 = vmatprep.subr.mxu0 0.0
        %3484 = vmatpush2.xpose.msra.mxu0 0.0
        %3485 = vmatprep.subr.mxu0 0.0
        %3486 = vmatpush2.xpose.msra.mxu0 0.0
        %3487 = vmatprep.subr.mxu0 0.0
        %3488 = vmatpush2.xpose.msra.mxu0 0.0
        %3489 = vmatprep.subr.mxu0 0.0
        %3490 = vmatpush2.xpose.msra.mxu0 0.0
        %3491 = vmatprep.subr.mxu0 0.0
        %3492 = vmatpush2.xpose.msra.mxu0 0.0
        %3493 = vmatprep.subr.mxu0 0.0
        %3494 = vmatpush2.xpose.msra.mxu0 0.0
        %3495 = vmatprep.subr.mxu0 0.0
        %3496 = vmatpush2.xpose.msra.mxu0 0.0
        %3497 = vmatprep.subr.mxu0 0.0
        %3498 = vmatpush2.xpose.msra.mxu0 0.0
        %3499 = vmatprep.subr.mxu0 0.0
        %3500 = vmatpush2.xpose.msra.mxu0 0.0
        %3501 = vmatprep.subr.mxu0 0.0
        %3502 = vmatpush2.xpose.msra.mxu0 0.0
        %3503 = vmatprep.subr.mxu0 0.0
        %3504 = vmatpush2.xpose.msra.mxu0 0.0
        %3505 = vmatprep.subr.mxu0 0.0
        %3506 = vmatpush2.xpose.msra.mxu0 0.0
        %3507 = vmatprep.subr.mxu0 0.0
        %3508 = vmatpush2.xpose.msra.mxu0 0.0
        %3509 = vmatprep.subr.mxu0 0.0
        %3510 = vmatpush2.xpose.msra.mxu0 0.0
        %3511 = vmatprep.mubr.f32.mxu0 0.0
        %3512 = vmatmul.mubr.f32.gmra.mxu0 %v1242
        %v3513 = vpop.f32.mrf.mxu0
        %v3514 = vadd.f32 0.0, %v3513
        %v3515 = vpop.f32.mrf.mxu0
        %3516 = vdwg.mxu0
        %3517 = vmatprep.subr.mxu0 0.0
        %3518 = vmatpush1.xpose.msra.mxu0 0.0
        %3519 = vmatprep.subr.mxu0 0.0
        %3520 = vmatpush1.xpose.msra.mxu0 0.0
        %3521 = vmatprep.subr.mxu0 0.0
        %3522 = vmatpush1.xpose.msra.mxu0 0.0
        %3523 = vmatprep.subr.mxu0 0.0
        %3524 = vmatpush1.xpose.msra.mxu0 0.0
        %3525 = vmatprep.subr.mxu0 0.0
        %3526 = vmatpush1.xpose.msra.mxu0 0.0
        %3527 = vmatprep.subr.mxu0 0.0
        %3528 = vmatpush1.xpose.msra.mxu0 0.0
        %3529 = vmatprep.subr.mxu0 0.0
        %3530 = vmatpush1.xpose.msra.mxu0 0.0
        %3531 = vmatprep.subr.mxu0 0.0
        %3532 = vmatpush1.xpose.msra.mxu0 0.0
        %3533 = vmatprep.subr.mxu0 0.0
        %3534 = vmatpush1.xpose.msra.mxu0 0.0
        %3535 = vmatprep.subr.mxu0 0.0
        %3536 = vmatpush1.xpose.msra.mxu0 0.0
        %3537 = vmatprep.subr.mxu0 0.0
        %3538 = vmatpush1.xpose.msra.mxu0 0.0
        %3539 = vmatprep.subr.mxu0 0.0
        %3540 = vmatpush1.xpose.msra.mxu0 0.0
        %3541 = vmatprep.subr.mxu0 0.0
        %3542 = vmatpush1.xpose.msra.mxu0 0.0
        %3543 = vmatprep.subr.mxu0 0.0
        %3544 = vmatpush1.xpose.msra.mxu0 0.0
        %3545 = vmatprep.subr.mxu0 0.0
        %3546 = vmatpush1.xpose.msra.mxu0 0.0
        %3547 = vmatprep.subr.mxu0 0.0
        %3548 = vmatpush1.xpose.msra.mxu0 %v1250
        %3549 = vmatprep.subr.mxu0 0.0
        %3550 = vmatpush2.xpose.msra.mxu0 0.0
        %3551 = vmatprep.subr.mxu0 0.0
        %3552 = vmatpush2.xpose.msra.mxu0 0.0
        %3553 = vmatprep.subr.mxu0 0.0
        %3554 = vmatpush2.xpose.msra.mxu0 0.0
        %3555 = vmatprep.subr.mxu0 0.0
        %3556 = vmatpush2.xpose.msra.mxu0 0.0
        %3557 = vmatprep.subr.mxu0 0.0
        %3558 = vmatpush2.xpose.msra.mxu0 0.0
        %3559 = vmatprep.subr.mxu0 0.0
        %3560 = vmatpush2.xpose.msra.mxu0 0.0
        %3561 = vmatprep.subr.mxu0 0.0
        %3562 = vmatpush2.xpose.msra.mxu0 0.0
        %3563 = vmatprep.subr.mxu0 0.0
        %3564 = vmatpush2.xpose.msra.mxu0 0.0
        %3565 = vmatprep.subr.mxu0 0.0
        %3566 = vmatpush2.xpose.msra.mxu0 0.0
        %3567 = vmatprep.subr.mxu0 0.0
        %3568 = vmatpush2.xpose.msra.mxu0 0.0
        %3569 = vmatprep.subr.mxu0 0.0
        %3570 = vmatpush2.xpose.msra.mxu0 0.0
        %3571 = vmatprep.subr.mxu0 0.0
        %3572 = vmatpush2.xpose.msra.mxu0 0.0
        %3573 = vmatprep.subr.mxu0 0.0
        %3574 = vmatpush2.xpose.msra.mxu0 0.0
        %3575 = vmatprep.subr.mxu0 0.0
        %3576 = vmatpush2.xpose.msra.mxu0 0.0
        %3577 = vmatprep.subr.mxu0 0.0
        %3578 = vmatpush2.xpose.msra.mxu0 0.0
        %3579 = vmatprep.subr.mxu0 0.0
        %3580 = vmatpush2.xpose.msra.mxu0 0.0
        %3581 = vmatprep.mubr.f32.mxu0 0.0
        %3582 = vmatmul.mubr.f32.gmra.mxu0 %v1248
        %v3583 = vpop.f32.mrf.mxu0
        %v3584 = vadd.f32 0.0, %v3583
        %v3585 = vpop.f32.mrf.mxu0
        %3586 = vdwg.mxu0
        %3587 = vmatprep.subr.mxu0 0.0
        %3588 = vmatpush1.xpose.msra.mxu0 0.0
        %3589 = vmatprep.subr.mxu0 0.0
        %3590 = vmatpush1.xpose.msra.mxu0 0.0
        %3591 = vmatprep.subr.mxu0 0.0
        %3592 = vmatpush1.xpose.msra.mxu0 0.0
        %3593 = vmatprep.subr.mxu0 0.0
        %3594 = vmatpush1.xpose.msra.mxu0 0.0
        %3595 = vmatprep.subr.mxu0 0.0
        %3596 = vmatpush1.xpose.msra.mxu0 0.0
        %3597 = vmatprep.subr.mxu0 0.0
        %3598 = vmatpush1.xpose.msra.mxu0 0.0
        %3599 = vmatprep.subr.mxu0 0.0
        %3600 = vmatpush1.xpose.msra.mxu0 0.0
        %3601 = vmatprep.subr.mxu0 0.0
        %3602 = vmatpush1.xpose.msra.mxu0 0.0
        %3603 = vmatprep.subr.mxu0 0.0
        %3604 = vmatpush1.xpose.msra.mxu0 0.0
        %3605 = vmatprep.subr.mxu0 0.0
        %3606 = vmatpush1.xpose.msra.mxu0 0.0
        %3607 = vmatprep.subr.mxu0 0.0
        %3608 = vmatpush1.xpose.msra.mxu0 0.0
        %3609 = vmatprep.subr.mxu0 0.0
        %3610 = vmatpush1.xpose.msra.mxu0 0.0
        %3611 = vmatprep.subr.mxu0 0.0
        %3612 = vmatpush1.xpose.msra.mxu0 0.0
        %3613 = vmatprep.subr.mxu0 0.0
        %3614 = vmatpush1.xpose.msra.mxu0 0.0
        %3615 = vmatprep.subr.mxu0 0.0
        %3616 = vmatpush1.xpose.msra.mxu0 0.0
        %3617 = vmatprep.subr.mxu0 0.0
        %3618 = vmatpush1.xpose.msra.mxu0 %v1254
        %3619 = vmatprep.subr.mxu0 0.0
        %3620 = vmatpush2.xpose.msra.mxu0 0.0
        %3621 = vmatprep.subr.mxu0 0.0
        %3622 = vmatpush2.xpose.msra.mxu0 0.0
        %3623 = vmatprep.subr.mxu0 0.0
        %3624 = vmatpush2.xpose.msra.mxu0 0.0
        %3625 = vmatprep.subr.mxu0 0.0
        %3626 = vmatpush2.xpose.msra.mxu0 0.0
        %3627 = vmatprep.subr.mxu0 0.0
        %3628 = vmatpush2.xpose.msra.mxu0 0.0
        %3629 = vmatprep.subr.mxu0 0.0
        %3630 = vmatpush2.xpose.msra.mxu0 0.0
        %3631 = vmatprep.subr.mxu0 0.0
        %3632 = vmatpush2.xpose.msra.mxu0 0.0
        %3633 = vmatprep.subr.mxu0 0.0
        %3634 = vmatpush2.xpose.msra.mxu0 0.0
        %3635 = vmatprep.subr.mxu0 0.0
        %3636 = vmatpush2.xpose.msra.mxu0 0.0
        %3637 = vmatprep.subr.mxu0 0.0
        %3638 = vmatpush2.xpose.msra.mxu0 0.0
        %3639 = vmatprep.subr.mxu0 0.0
        %3640 = vmatpush2.xpose.msra.mxu0 0.0
        %3641 = vmatprep.subr.mxu0 0.0
        %3642 = vmatpush2.xpose.msra.mxu0 0.0
        %3643 = vmatprep.subr.mxu0 0.0
        %3644 = vmatpush2.xpose.msra.mxu0 0.0
        %3645 = vmatprep.subr.mxu0 0.0
        %3646 = vmatpush2.xpose.msra.mxu0 0.0
        %3647 = vmatprep.subr.mxu0 0.0
        %3648 = vmatpush2.xpose.msra.mxu0 0.0
        %3649 = vmatprep.subr.mxu0 0.0
        %3650 = vmatpush2.xpose.msra.mxu0 0.0
        %3651 = vmatprep.mubr.f32.mxu0 0.0
        %3652 = vmatmul.mubr.f32.gmra.mxu0 %v1252
        %v3653 = vpop.f32.mrf.mxu0
        %v3654 = vadd.f32 0.0, %v3653
        %v3655 = vpop.f32.mrf.mxu0
        %3656 = vdwg.mxu0
        %v3657 = vmul.f32 %v1484, 0.088388346
        %v3658 = vmul.f32 %v1554, 0.088388346
        %v3659 = vmul.f32 %v1624, 0.088388346
        %v3660 = vmul.f32 %v1694, 0.088388346
        %v3661 = vmul.f32 %v1764, 0.088388346
        %v3662 = vmul.f32 %v1834, 0.088388346
        %v3663 = vmul.f32 %v1904, 0.088388346
        %v3664 = vmul.f32 %v1974, 0.088388346
        %v3665 = vmul.f32 %v2044, 0.088388346
        %v3666 = vmul.f32 %v2114, 0.088388346
        %v3667 = vmul.f32 %v2184, 0.088388346
        %v3668 = vmul.f32 %v2254, 0.088388346
        %v3669 = vmul.f32 %v2324, 0.088388346
        %v3670 = vmul.f32 %v2394, 0.088388346
        %v3671 = vmul.f32 %v2464, 0.088388346
        %v3672 = vmul.f32 %v2534, 0.088388346
        %v3673 = vmul.f32 %v2604, 0.088388346
        %v3674 = vmul.f32 %v2674, 0.088388346
        %v3675 = vmul.f32 %v2744, 0.088388346
        %v3676 = vmul.f32 %v2814, 0.088388346
        %v3677 = vmul.f32 %v2884, 0.088388346
        %v3678 = vmul.f32 %v2954, 0.088388346
        %v3679 = vmul.f32 %v3024, 0.088388346
        %v3680 = vmul.f32 %v3094, 0.088388346
        %v3681 = vmul.f32 %v3164, 0.088388346
        %v3682 = vmul.f32 %v3234, 0.088388346
        %v3683 = vmul.f32 %v3304, 0.088388346
        %v3684 = vmul.f32 %v3374, 0.088388346
        %v3685 = vmul.f32 %v3444, 0.088388346
        %v3686 = vmul.f32 %v3514, 0.088388346
        %v3687 = vmul.f32 %v3584, 0.088388346
        %v3688 = vmul.f32 %v3654, 0.088388346
        %v3689 = vld [vmem:[%s306] sm:$0x1]
        %v3690 = vld [vmem:[%s306 + $0x1] sm:$0x1]
        %v3691 = vld [vmem:[%s306 + $0x2] sm:$0x1]
        %v3692 = vld [vmem:[%s306 + $0x3] sm:$0x1]
        %v3693 = vld [vmem:[%s306 + $0x4] sm:$0x1]
        %v3694 = vld [vmem:[%s306 + $0x5] sm:$0x1]
        %v3695 = vld [vmem:[%s306 + $0x6] sm:$0x1]
        %v3696 = vld [vmem:[%s306 + $0x7] sm:$0x1]
        %v3697 = vld [vmem:[%s306 + $0x8] sm:$0x1]
        %v3698 = vld [vmem:[%s306 + $0x9] sm:$0x1]
        %v3699 = vld [vmem:[%s306 + $0xa] sm:$0x1]
        %v3700 = vld [vmem:[%s306 + $0xb] sm:$0x1]
        %v3701 = vld [vmem:[%s306 + $0xc] sm:$0x1]
        %v3702 = vld [vmem:[%s306 + $0xd] sm:$0x1]
        %v3703 = vld [vmem:[%s306 + $0xe] sm:$0x1]
        %v3704 = vld [vmem:[%s306 + $0xf] sm:$0x1]
        %v3705 = vld [vmem:[%s306 + $0x10] sm:$0x1]
        %v3706 = vld [vmem:[%s306 + $0x11] sm:$0x1]
        %v3707 = vld [vmem:[%s306 + $0x12] sm:$0x1]
        %v3708 = vld [vmem:[%s306 + $0x13] sm:$0x1]
        %v3709 = vld [vmem:[%s306 + $0x14] sm:$0x1]
        %v3710 = vld [vmem:[%s306 + $0x15] sm:$0x1]
        %v3711 = vld [vmem:[%s306 + $0x16] sm:$0x1]
        %v3712 = vld [vmem:[%s306 + $0x17] sm:$0x1]
        %v3713 = vld [vmem:[%s306 + $0x18] sm:$0x1]
        %v3714 = vld [vmem:[%s306 + $0x19] sm:$0x1]
        %v3715 = vld [vmem:[%s306 + $0x1a] sm:$0x1]
        %v3716 = vld [vmem:[%s306 + $0x1b] sm:$0x1]
        %v3717 = vld [vmem:[%s306 + $0x1c] sm:$0x1]
        %v3718 = vld [vmem:[%s306 + $0x1d] sm:$0x1]
        %v3719 = vld [vmem:[%s306 + $0x1e] sm:$0x1]
        %v3720 = vld [vmem:[%s306 + $0x1f] sm:$0x1]
        %v3753 = vlaneseq
        %v3754 = vshrl.u32 %v3753, 7
        %v3755 = vsub.s32 0, %v3754
        %v3756 = vrot.slane %v3689, %v3755
        %v3757 = vlaneseq
        %v3758 = vshrl.u32 %v3757, 7
        %v3759 = vsub.s32 0, %v3758
        %v3760 = vrot.slane %v3690, %v3759
        %v3761 = vlaneseq
        %v3762 = vshrl.u32 %v3761, 7
        %v3763 = vsub.s32 0, %v3762
        %v3764 = vrot.slane %v3691, %v3763
        %v3765 = vlaneseq
        %v3766 = vshrl.u32 %v3765, 7
        %v3767 = vsub.s32 0, %v3766
        %v3768 = vrot.slane %v3692, %v3767
        %v3769 = vlaneseq
        %v3770 = vshrl.u32 %v3769, 7
        %v3771 = vsub.s32 0, %v3770
        %v3772 = vrot.slane %v3693, %v3771
        %v3773 = vlaneseq
        %v3774 = vshrl.u32 %v3773, 7
        %v3775 = vsub.s32 0, %v3774
        %v3776 = vrot.slane %v3694, %v3775
        %v3777 = vlaneseq
        %v3778 = vshrl.u32 %v3777, 7
        %v3779 = vsub.s32 0, %v3778
        %v3780 = vrot.slane %v3695, %v3779
        %v3781 = vlaneseq
        %v3782 = vshrl.u32 %v3781, 7
        %v3783 = vsub.s32 0, %v3782
        %v3784 = vrot.slane %v3696, %v3783
        %v3785 = vlaneseq
        %v3786 = vshrl.u32 %v3785, 7
        %v3787 = vsub.s32 0, %v3786
        %v3788 = vrot.slane %v3697, %v3787
        %v3789 = vlaneseq
        %v3790 = vshrl.u32 %v3789, 7
        %v3791 = vsub.s32 0, %v3790
        %v3792 = vrot.slane %v3698, %v3791
        %v3793 = vlaneseq
        %v3794 = vshrl.u32 %v3793, 7
        %v3795 = vsub.s32 0, %v3794
        %v3796 = vrot.slane %v3699, %v3795
        %v3797 = vlaneseq
        %v3798 = vshrl.u32 %v3797, 7
        %v3799 = vsub.s32 0, %v3798
        %v3800 = vrot.slane %v3700, %v3799
        %v3801 = vlaneseq
        %v3802 = vshrl.u32 %v3801, 7
        %v3803 = vsub.s32 0, %v3802
        %v3804 = vrot.slane %v3701, %v3803
        %v3805 = vlaneseq
        %v3806 = vshrl.u32 %v3805, 7
        %v3807 = vsub.s32 0, %v3806
        %v3808 = vrot.slane %v3702, %v3807
        %v3809 = vlaneseq
        %v3810 = vshrl.u32 %v3809, 7
        %v3811 = vsub.s32 0, %v3810
        %v3812 = vrot.slane %v3703, %v3811
        %v3813 = vlaneseq
        %v3814 = vshrl.u32 %v3813, 7
        %v3815 = vsub.s32 0, %v3814
        %v3816 = vrot.slane %v3704, %v3815
        %v3817 = vlaneseq
        %v3818 = vshrl.u32 %v3817, 7
        %v3819 = vsub.s32 0, %v3818
        %v3820 = vrot.slane %v3705, %v3819
        %v3821 = vlaneseq
        %v3822 = vshrl.u32 %v3821, 7
        %v3823 = vsub.s32 0, %v3822
        %v3824 = vrot.slane %v3706, %v3823
        %v3825 = vlaneseq
        %v3826 = vshrl.u32 %v3825, 7
        %v3827 = vsub.s32 0, %v3826
        %v3828 = vrot.slane %v3707, %v3827
        %v3829 = vlaneseq
        %v3830 = vshrl.u32 %v3829, 7
        %v3831 = vsub.s32 0, %v3830
        %v3832 = vrot.slane %v3708, %v3831
        %v3833 = vlaneseq
        %v3834 = vshrl.u32 %v3833, 7
        %v3835 = vsub.s32 0, %v3834
        %v3836 = vrot.slane %v3709, %v3835
        %v3837 = vlaneseq
        %v3838 = vshrl.u32 %v3837, 7
        %v3839 = vsub.s32 0, %v3838
        %v3840 = vrot.slane %v3710, %v3839
        %v3841 = vlaneseq
        %v3842 = vshrl.u32 %v3841, 7
        %v3843 = vsub.s32 0, %v3842
        %v3844 = vrot.slane %v3711, %v3843
        %v3845 = vlaneseq
        %v3846 = vshrl.u32 %v3845, 7
        %v3847 = vsub.s32 0, %v3846
        %v3848 = vrot.slane %v3712, %v3847
        %v3849 = vlaneseq
        %v3850 = vshrl.u32 %v3849, 7
        %v3851 = vsub.s32 0, %v3850
        %v3852 = vrot.slane %v3713, %v3851
        %v3853 = vlaneseq
        %v3854 = vshrl.u32 %v3853, 7
        %v3855 = vsub.s32 0, %v3854
        %v3856 = vrot.slane %v3714, %v3855
        %v3857 = vlaneseq
        %v3858 = vshrl.u32 %v3857, 7
        %v3859 = vsub.s32 0, %v3858
        %v3860 = vrot.slane %v3715, %v3859
        %v3861 = vlaneseq
        %v3862 = vshrl.u32 %v3861, 7
        %v3863 = vsub.s32 0, %v3862
        %v3864 = vrot.slane %v3716, %v3863
        %v3865 = vlaneseq
        %v3866 = vshrl.u32 %v3865, 7
        %v3867 = vsub.s32 0, %v3866
        %v3868 = vrot.slane %v3717, %v3867
        %v3869 = vlaneseq
        %v3870 = vshrl.u32 %v3869, 7
        %v3871 = vsub.s32 0, %v3870
        %v3872 = vrot.slane %v3718, %v3871
        %v3873 = vlaneseq
        %v3874 = vshrl.u32 %v3873, 7
        %v3875 = vsub.s32 0, %v3874
        %v3876 = vrot.slane %v3719, %v3875
        %v3877 = vlaneseq
        %v3878 = vshrl.u32 %v3877, 7
        %v3879 = vsub.s32 0, %v3878
        %v3880 = vrot.slane %v3720, %v3879
        %v3913 = vadd.f32 %v3657, %v3756
        %v3914 = vadd.f32 %v3658, %v3760
        %v3915 = vadd.f32 %v3659, %v3764
        %v3916 = vadd.f32 %v3660, %v3768
        %v3917 = vadd.f32 %v3661, %v3772
        %v3918 = vadd.f32 %v3662, %v3776
        %v3919 = vadd.f32 %v3663, %v3780
        %v3920 = vadd.f32 %v3664, %v3784
        %v3921 = vadd.f32 %v3665, %v3788
        %v3922 = vadd.f32 %v3666, %v3792
        %v3923 = vadd.f32 %v3667, %v3796
        %v3924 = vadd.f32 %v3668, %v3800
        %v3925 = vadd.f32 %v3669, %v3804
        %v3926 = vadd.f32 %v3670, %v3808
        %v3927 = vadd.f32 %v3671, %v3812
        %v3928 = vadd.f32 %v3672, %v3816
        %v3929 = vadd.f32 %v3673, %v3820
        %v3930 = vadd.f32 %v3674, %v3824
        %v3931 = vadd.f32 %v3675, %v3828
        %v3932 = vadd.f32 %v3676, %v3832
        %v3933 = vadd.f32 %v3677, %v3836
        %v3934 = vadd.f32 %v3678, %v3840
        %v3935 = vadd.f32 %v3679, %v3844
        %v3936 = vadd.f32 %v3680, %v3848
        %v3937 = vadd.f32 %v3681, %v3852
        %v3938 = vadd.f32 %v3682, %v3856
        %v3939 = vadd.f32 %v3683, %v3860
        %v3940 = vadd.f32 %v3684, %v3864
        %v3941 = vadd.f32 %v3685, %v3868
        %v3942 = vadd.f32 %v3686, %v3872
        %v3943 = vadd.f32 %v3687, %v3876
        %v3944 = vadd.f32 %v3688, %v3880
        %vm3945 = vcmask 64512
        %v3946 = vsel %vm3945, %v3913, -inf
        %3947 = vmax.xlane.f32.xlu0 %v3946
        %v3948 = vpop.xlane.xlu0 %3947
        %v3949 = vsel %vm3945, %v3914, -inf
        %3950 = vmax.xlane.f32.xlu0 %v3949
        %v3951 = vpop.xlane.xlu0 %3950
        %v3952 = vsel %vm3945, %v3915, -inf
        %3953 = vmax.xlane.f32.xlu0 %v3952
        %v3954 = vpop.xlane.xlu0 %3953
        %v3955 = vsel %vm3945, %v3916, -inf
        %3956 = vmax.xlane.f32.xlu0 %v3955
        %v3957 = vpop.xlane.xlu0 %3956
        %v3958 = vsel %vm3945, %v3917, -inf
        %3959 = vmax.xlane.f32.xlu0 %v3958
        %v3960 = vpop.xlane.xlu0 %3959
        %v3961 = vsel %vm3945, %v3918, -inf
        %3962 = vmax.xlane.f32.xlu0 %v3961
        %v3963 = vpop.xlane.xlu0 %3962
        %v3964 = vsel %vm3945, %v3919, -inf
        %3965 = vmax.xlane.f32.xlu0 %v3964
        %v3966 = vpop.xlane.xlu0 %3965
        %v3967 = vsel %vm3945, %v3920, -inf
        %3968 = vmax.xlane.f32.xlu0 %v3967
        %v3969 = vpop.xlane.xlu0 %3968
        %v3970 = vsel %vm3945, %v3921, -inf
        %3971 = vmax.xlane.f32.xlu0 %v3970
        %v3972 = vpop.xlane.xlu0 %3971
        %v3973 = vsel %vm3945, %v3922, -inf
        %3974 = vmax.xlane.f32.xlu0 %v3973
        %v3975 = vpop.xlane.xlu0 %3974
        %v3976 = vsel %vm3945, %v3923, -inf
        %3977 = vmax.xlane.f32.xlu0 %v3976
        %v3978 = vpop.xlane.xlu0 %3977
        %v3979 = vsel %vm3945, %v3924, -inf
        %3980 = vmax.xlane.f32.xlu0 %v3979
        %v3981 = vpop.xlane.xlu0 %3980
        %v3982 = vsel %vm3945, %v3925, -inf
        %3983 = vmax.xlane.f32.xlu0 %v3982
        %v3984 = vpop.xlane.xlu0 %3983
        %v3985 = vsel %vm3945, %v3926, -inf
        %3986 = vmax.xlane.f32.xlu0 %v3985
        %v3987 = vpop.xlane.xlu0 %3986
        %v3988 = vsel %vm3945, %v3927, -inf
        %3989 = vmax.xlane.f32.xlu0 %v3988
        %v3990 = vpop.xlane.xlu0 %3989
        %v3991 = vsel %vm3945, %v3928, -inf
        %3992 = vmax.xlane.f32.xlu0 %v3991
        %v3993 = vpop.xlane.xlu0 %3992
        %v3994 = vsel %vm3945, %v3929, -inf
        %3995 = vmax.xlane.f32.xlu0 %v3994
        %v3996 = vpop.xlane.xlu0 %3995
        %v3997 = vsel %vm3945, %v3930, -inf
        %3998 = vmax.xlane.f32.xlu0 %v3997
        %v3999 = vpop.xlane.xlu0 %3998
        %v4000 = vsel %vm3945, %v3931, -inf
        %4001 = vmax.xlane.f32.xlu0 %v4000
        %v4002 = vpop.xlane.xlu0 %4001
        %v4003 = vsel %vm3945, %v3932, -inf
        %4004 = vmax.xlane.f32.xlu0 %v4003
        %v4005 = vpop.xlane.xlu0 %4004
        %v4006 = vsel %vm3945, %v3933, -inf
        %4007 = vmax.xlane.f32.xlu0 %v4006
        %v4008 = vpop.xlane.xlu0 %4007
        %v4009 = vsel %vm3945, %v3934, -inf
        %4010 = vmax.xlane.f32.xlu0 %v4009
        %v4011 = vpop.xlane.xlu0 %4010
        %v4012 = vsel %vm3945, %v3935, -inf
        %4013 = vmax.xlane.f32.xlu0 %v4012
        %v4014 = vpop.xlane.xlu0 %4013
        %v4015 = vsel %vm3945, %v3936, -inf
        %4016 = vmax.xlane.f32.xlu0 %v4015
        %v4017 = vpop.xlane.xlu0 %4016
        %v4018 = vsel %vm3945, %v3937, -inf
        %4019 = vmax.xlane.f32.xlu0 %v4018
        %v4020 = vpop.xlane.xlu0 %4019
        %v4021 = vsel %vm3945, %v3938, -inf
        %4022 = vmax.xlane.f32.xlu0 %v4021
        %v4023 = vpop.xlane.xlu0 %4022
        %v4024 = vsel %vm3945, %v3939, -inf
        %4025 = vmax.xlane.f32.xlu0 %v4024
        %v4026 = vpop.xlane.xlu0 %4025
        %v4027 = vsel %vm3945, %v3940, -inf
        %4028 = vmax.xlane.f32.xlu0 %v4027
        %v4029 = vpop.xlane.xlu0 %4028
        %v4030 = vsel %vm3945, %v3941, -inf
        %4031 = vmax.xlane.f32.xlu0 %v4030
        %v4032 = vpop.xlane.xlu0 %4031
        %v4033 = vsel %vm3945, %v3942, -inf
        %4034 = vmax.xlane.f32.xlu0 %v4033
        %v4035 = vpop.xlane.xlu0 %4034
        %v4036 = vsel %vm3945, %v3943, -inf
        %4037 = vmax.xlane.f32.xlu0 %v4036
        %v4038 = vpop.xlane.xlu0 %4037
        %v4039 = vsel %vm3945, %v3944, -inf
        %4040 = vmax.xlane.f32.xlu0 %v4039
        %v4041 = vpop.xlane.xlu0 %4040
        %v4042 = vsub.f32 %v3913, %v3948
        %v4043 = vsub.f32 %v3914, %v3951
        %v4044 = vsub.f32 %v3915, %v3954
        %v4045 = vsub.f32 %v3916, %v3957
        %v4046 = vsub.f32 %v3917, %v3960
        %v4047 = vsub.f32 %v3918, %v3963
        %v4048 = vsub.f32 %v3919, %v3966
        %v4049 = vsub.f32 %v3920, %v3969
        %v4050 = vsub.f32 %v3921, %v3972
        %v4051 = vsub.f32 %v3922, %v3975
        %v4052 = vsub.f32 %v3923, %v3978
        %v4053 = vsub.f32 %v3924, %v3981
        %v4054 = vsub.f32 %v3925, %v3984
        %v4055 = vsub.f32 %v3926, %v3987
        %v4056 = vsub.f32 %v3927, %v3990
        %v4057 = vsub.f32 %v3928, %v3993
        %v4058 = vsub.f32 %v3929, %v3996
        %v4059 = vsub.f32 %v3930, %v3999
        %v4060 = vsub.f32 %v3931, %v4002
        %v4061 = vsub.f32 %v3932, %v4005
        %v4062 = vsub.f32 %v3933, %v4008
        %v4063 = vsub.f32 %v3934, %v4011
        %v4064 = vsub.f32 %v3935, %v4014
        %v4065 = vsub.f32 %v3936, %v4017
        %v4066 = vsub.f32 %v3937, %v4020
        %v4067 = vsub.f32 %v3938, %v4023
        %v4068 = vsub.f32 %v3939, %v4026
        %v4069 = vsub.f32 %v3940, %v4029
        %v4070 = vsub.f32 %v3941, %v4032
        %v4071 = vsub.f32 %v3942, %v4035
        %v4072 = vsub.f32 %v3943, %v4038
        %v4073 = vsub.f32 %v3944, %v4041
        %v4074 = vmul.f32 %v4042, 1.442695
        %v4075 = vpow.pop %v4074
        %v4076 = vmul.f32 %v4043, 1.442695
        %v4077 = vpow.pop %v4076
        %v4078 = vmul.f32 %v4044, 1.442695
        %v4079 = vpow.pop %v4078
        %v4080 = vmul.f32 %v4045, 1.442695
        %v4081 = vpow.pop %v4080
        %v4082 = vmul.f32 %v4046, 1.442695
        %v4083 = vpow.pop %v4082
        %v4084 = vmul.f32 %v4047, 1.442695
        %v4085 = vpow.pop %v4084
        %v4086 = vmul.f32 %v4048, 1.442695
        %v4087 = vpow.pop %v4086
        %v4088 = vmul.f32 %v4049, 1.442695
        %v4089 = vpow.pop %v4088
        %v4090 = vmul.f32 %v4050, 1.442695
        %v4091 = vpow.pop %v4090
        %v4092 = vmul.f32 %v4051, 1.442695
        %v4093 = vpow.pop %v4092
        %v4094 = vmul.f32 %v4052, 1.442695
        %v4095 = vpow.pop %v4094
        %v4096 = vmul.f32 %v4053, 1.442695
        %v4097 = vpow.pop %v4096
        %v4098 = vmul.f32 %v4054, 1.442695
        %v4099 = vpow.pop %v4098
        %v4100 = vmul.f32 %v4055, 1.442695
        %v4101 = vpow.pop %v4100
        %v4102 = vmul.f32 %v4056, 1.442695
        %v4103 = vpow.pop %v4102
        %v4104 = vmul.f32 %v4057, 1.442695
        %v4105 = vpow.pop %v4104
        %v4106 = vmul.f32 %v4058, 1.442695
        %v4107 = vpow.pop %v4106
        %v4108 = vmul.f32 %v4059, 1.442695
        %v4109 = vpow.pop %v4108
        %v4110 = vmul.f32 %v4060, 1.442695
        %v4111 = vpow.pop %v4110
        %v4112 = vmul.f32 %v4061, 1.442695
        %v4113 = vpow.pop %v4112
        %v4114 = vmul.f32 %v4062, 1.442695
        %v4115 = vpow.pop %v4114
        %v4116 = vmul.f32 %v4063, 1.442695
        %v4117 = vpow.pop %v4116
        %v4118 = vmul.f32 %v4064, 1.442695
        %v4119 = vpow.pop %v4118
        %v4120 = vmul.f32 %v4065, 1.442695
        %v4121 = vpow.pop %v4120
        %v4122 = vmul.f32 %v4066, 1.442695
        %v4123 = vpow.pop %v4122
        %v4124 = vmul.f32 %v4067, 1.442695
        %v4125 = vpow.pop %v4124
        %v4126 = vmul.f32 %v4068, 1.442695
        %v4127 = vpow.pop %v4126
        %v4128 = vmul.f32 %v4069, 1.442695
        %v4129 = vpow.pop %v4128
        %v4130 = vmul.f32 %v4070, 1.442695
        %v4131 = vpow.pop %v4130
        %v4132 = vmul.f32 %v4071, 1.442695
        %v4133 = vpow.pop %v4132
        %v4134 = vmul.f32 %v4072, 1.442695
        %v4135 = vpow.pop %v4134
        %v4136 = vmul.f32 %v4073, 1.442695
        %v4137 = vpow.pop %v4136
        %v4138 = vsel %vm3945, %v4075, 0.0
        %4139 = vadd.xlane.f32.xlu0 %v4138
        %v4140 = vpop.xlane.xlu0 %4139
        %v4141 = vsel %vm3945, %v4077, 0.0
        %4142 = vadd.xlane.f32.xlu0 %v4141
        %v4143 = vpop.xlane.xlu0 %4142
        %v4144 = vsel %vm3945, %v4079, 0.0
        %4145 = vadd.xlane.f32.xlu0 %v4144
        %v4146 = vpop.xlane.xlu0 %4145
        %v4147 = vsel %vm3945, %v4081, 0.0
        %4148 = vadd.xlane.f32.xlu0 %v4147
        %v4149 = vpop.xlane.xlu0 %4148
        %v4150 = vsel %vm3945, %v4083, 0.0
        %4151 = vadd.xlane.f32.xlu0 %v4150
        %v4152 = vpop.xlane.xlu0 %4151
        %v4153 = vsel %vm3945, %v4085, 0.0
        %4154 = vadd.xlane.f32.xlu0 %v4153
        %v4155 = vpop.xlane.xlu0 %4154
        %v4156 = vsel %vm3945, %v4087, 0.0
        %4157 = vadd.xlane.f32.xlu0 %v4156
        %v4158 = vpop.xlane.xlu0 %4157
        %v4159 = vsel %vm3945, %v4089, 0.0
        %4160 = vadd.xlane.f32.xlu0 %v4159
        %v4161 = vpop.xlane.xlu0 %4160
        %v4162 = vsel %vm3945, %v4091, 0.0
        %4163 = vadd.xlane.f32.xlu0 %v4162
        %v4164 = vpop.xlane.xlu0 %4163
        %v4165 = vsel %vm3945, %v4093, 0.0
        %4166 = vadd.xlane.f32.xlu0 %v4165
        %v4167 = vpop.xlane.xlu0 %4166
        %v4168 = vsel %vm3945, %v4095, 0.0
        %4169 = vadd.xlane.f32.xlu0 %v4168
        %v4170 = vpop.xlane.xlu0 %4169
        %v4171 = vsel %vm3945, %v4097, 0.0
        %4172 = vadd.xlane.f32.xlu0 %v4171
        %v4173 = vpop.xlane.xlu0 %4172
        %v4174 = vsel %vm3945, %v4099, 0.0
        %4175 = vadd.xlane.f32.xlu0 %v4174
        %v4176 = vpop.xlane.xlu0 %4175
        %v4177 = vsel %vm3945, %v4101, 0.0
        %4178 = vadd.xlane.f32.xlu0 %v4177
        %v4179 = vpop.xlane.xlu0 %4178
        %v4180 = vsel %vm3945, %v4103, 0.0
        %4181 = vadd.xlane.f32.xlu0 %v4180
        %v4182 = vpop.xlane.xlu0 %4181
        %v4183 = vsel %vm3945, %v4105, 0.0
        %4184 = vadd.xlane.f32.xlu0 %v4183
        %v4185 = vpop.xlane.xlu0 %4184
        %v4186 = vsel %vm3945, %v4107, 0.0
        %4187 = vadd.xlane.f32.xlu0 %v4186
        %v4188 = vpop.xlane.xlu0 %4187
        %v4189 = vsel %vm3945, %v4109, 0.0
        %4190 = vadd.xlane.f32.xlu0 %v4189
        %v4191 = vpop.xlane.xlu0 %4190
        %v4192 = vsel %vm3945, %v4111, 0.0
        %4193 = vadd.xlane.f32.xlu0 %v4192
        %v4194 = vpop.xlane.xlu0 %4193
        %v4195 = vsel %vm3945, %v4113, 0.0
        %4196 = vadd.xlane.f32.xlu0 %v4195
        %v4197 = vpop.xlane.xlu0 %4196
        %v4198 = vsel %vm3945, %v4115, 0.0
        %4199 = vadd.xlane.f32.xlu0 %v4198
        %v4200 = vpop.xlane.xlu0 %4199
        %v4201 = vsel %vm3945, %v4117, 0.0
        %4202 = vadd.xlane.f32.xlu0 %v4201
        %v4203 = vpop.xlane.xlu0 %4202
        %v4204 = vsel %vm3945, %v4119, 0.0
        %4205 = vadd.xlane.f32.xlu0 %v4204
        %v4206 = vpop.xlane.xlu0 %4205
        %v4207 = vsel %vm3945, %v4121, 0.0
        %4208 = vadd.xlane.f32.xlu0 %v4207
        %v4209 = vpop.xlane.xlu0 %4208
        %v4210 = vsel %vm3945, %v4123, 0.0
        %4211 = vadd.xlane.f32.xlu0 %v4210
        %v4212 = vpop.xlane.xlu0 %4211
        %v4213 = vsel %vm3945, %v4125, 0.0
        %4214 = vadd.xlane.f32.xlu0 %v4213
        %v4215 = vpop.xlane.xlu0 %4214
        %v4216 = vsel %vm3945, %v4127, 0.0
        %4217 = vadd.xlane.f32.xlu0 %v4216
        %v4218 = vpop.xlane.xlu0 %4217
        %v4219 = vsel %vm3945, %v4129, 0.0
        %4220 = vadd.xlane.f32.xlu0 %v4219
        %v4221 = vpop.xlane.xlu0 %4220
        %v4222 = vsel %vm3945, %v4131, 0.0
        %4223 = vadd.xlane.f32.xlu0 %v4222
        %v4224 = vpop.xlane.xlu0 %4223
        %v4225 = vsel %vm3945, %v4133, 0.0
        %4226 = vadd.xlane.f32.xlu0 %v4225
        %v4227 = vpop.xlane.xlu0 %4226
        %v4228 = vsel %vm3945, %v4135, 0.0
        %4229 = vadd.xlane.f32.xlu0 %v4228
        %v4230 = vpop.xlane.xlu0 %4229
        %v4231 = vsel %vm3945, %v4137, 0.0
        %4232 = vadd.xlane.f32.xlu0 %v4231
        %v4233 = vpop.xlane.xlu0 %4232
        %v4234 = vrcp.pop %v4140
        %v4235 = vrcp.pop %v4143
        %v4236 = vrcp.pop %v4146
        %v4237 = vrcp.pop %v4149
        %v4238 = vrcp.pop %v4152
        %v4239 = vrcp.pop %v4155
        %v4240 = vrcp.pop %v4158
        %v4241 = vrcp.pop %v4161
        %v4242 = vrcp.pop %v4164
        %v4243 = vrcp.pop %v4167
        %v4244 = vrcp.pop %v4170
        %v4245 = vrcp.pop %v4173
        %v4246 = vrcp.pop %v4176
        %v4247 = vrcp.pop %v4179
        %v4248 = vrcp.pop %v4182
        %v4249 = vrcp.pop %v4185
        %v4250 = vrcp.pop %v4188
        %v4251 = vrcp.pop %v4191
        %v4252 = vrcp.pop %v4194
        %v4253 = vrcp.pop %v4197
        %v4254 = vrcp.pop %v4200
        %v4255 = vrcp.pop %v4203
        %v4256 = vrcp.pop %v4206
        %v4257 = vrcp.pop %v4209
        %v4258 = vrcp.pop %v4212
        %v4259 = vrcp.pop %v4215
        %v4260 = vrcp.pop %v4218
        %v4261 = vrcp.pop %v4221
        %v4262 = vrcp.pop %v4224
        %v4263 = vrcp.pop %v4227
        %v4264 = vrcp.pop %v4230
        %v4265 = vrcp.pop %v4233
        %v4266 = vmul.f32 %v4075, %v4234
        %v4267 = vmul.f32 %v4077, %v4235
        %v4268 = vmul.f32 %v4079, %v4236
        %v4269 = vmul.f32 %v4081, %v4237
        %v4270 = vmul.f32 %v4083, %v4238
        %v4271 = vmul.f32 %v4085, %v4239
        %v4272 = vmul.f32 %v4087, %v4240
        %v4273 = vmul.f32 %v4089, %v4241
        %v4274 = vmul.f32 %v4091, %v4242
        %v4275 = vmul.f32 %v4093, %v4243
        %v4276 = vmul.f32 %v4095, %v4244
        %v4277 = vmul.f32 %v4097, %v4245
        %v4278 = vmul.f32 %v4099, %v4246
        %v4279 = vmul.f32 %v4101, %v4247
        %v4280 = vmul.f32 %v4103, %v4248
        %v4281 = vmul.f32 %v4105, %v4249
        %v4282 = vmul.f32 %v4107, %v4250
        %v4283 = vmul.f32 %v4109, %v4251
        %v4284 = vmul.f32 %v4111, %v4252
        %v4285 = vmul.f32 %v4113, %v4253
        %v4286 = vmul.f32 %v4115, %v4254
        %v4287 = vmul.f32 %v4117, %v4255
        %v4288 = vmul.f32 %v4119, %v4256
        %v4289 = vmul.f32 %v4121, %v4257
        %v4290 = vmul.f32 %v4123, %v4258
        %v4291 = vmul.f32 %v4125, %v4259
        %v4292 = vmul.f32 %v4127, %v4260
        %v4293 = vmul.f32 %v4129, %v4261
        %v4294 = vmul.f32 %v4131, %v4262
        %v4295 = vmul.f32 %v4133, %v4263
        %v4296 = vmul.f32 %v4135, %v4264
        %v4297 = vmul.f32 %v4137, %v4265
        %v4299 = vsel %vm3945, %v4266, 0
        %4301 = vmatprep.subr.mxu0 0.0
        %4302 = vmatpush1.msra.mxu0 0.0
        %4303 = vmatprep.subr.mxu0 0.0
        %4304 = vmatpush1.msra.mxu0 0.0
        %4305 = vmatprep.subr.mxu0 0.0
        %4306 = vmatpush1.msra.mxu0 0.0
        %4307 = vmatprep.subr.mxu0 0.0
        %4308 = vmatpush1.msra.mxu0 0.0
        %4309 = vmatprep.subr.mxu0 0.0
        %4310 = vmatpush1.msra.mxu0 0.0
        %4311 = vmatprep.subr.mxu0 0.0
        %4312 = vmatpush1.msra.mxu0 0.0
        %4313 = vmatprep.subr.mxu0 0.0
        %4314 = vmatpush1.msra.mxu0 0.0
        %4315 = vmatprep.subr.mxu0 0.0
        %4316 = vmatpush1.msra.mxu0 0.0
        %4317 = vmatprep.subr.mxu0 0.0
        %4318 = vmatpush1.msra.mxu0 0.0
        %4319 = vmatprep.subr.mxu0 0.0
        %4320 = vmatpush1.msra.mxu0 0.0
        %4321 = vmatprep.subr.mxu0 0.0
        %4322 = vmatpush1.msra.mxu0 0.0
        %4323 = vmatprep.subr.mxu0 0.0
        %4324 = vmatpush1.msra.mxu0 0.0
        %4325 = vmatprep.subr.mxu0 0.0
        %4326 = vmatpush1.msra.mxu0 0.0
        %4327 = vmatprep.subr.mxu0 0.0
        %4328 = vmatpush1.msra.mxu0 0.0
        %4329 = vmatprep.subr.mxu0 0.0
        %4330 = vmatpush1.msra.mxu0 0.0
        %4331 = vmatprep.subr.mxu0 0.0
        %4332 = vmatpush1.msra.mxu0 %v1291
        %4333 = vmatprep.subr.mxu0 0.0
        %4334 = vmatpush2.msra.mxu0 0.0
        %4335 = vmatprep.subr.mxu0 0.0
        %4336 = vmatpush2.msra.mxu0 0.0
        %4337 = vmatprep.subr.mxu0 0.0
        %4338 = vmatpush2.msra.mxu0 0.0
        %4339 = vmatprep.subr.mxu0 0.0
        %4340 = vmatpush2.msra.mxu0 0.0
        %4341 = vmatprep.subr.mxu0 0.0
        %4342 = vmatpush2.msra.mxu0 0.0
        %4343 = vmatprep.subr.mxu0 0.0
        %4344 = vmatpush2.msra.mxu0 0.0
        %4345 = vmatprep.subr.mxu0 0.0
        %4346 = vmatpush2.msra.mxu0 0.0
        %4347 = vmatprep.subr.mxu0 0.0
        %4348 = vmatpush2.msra.mxu0 0.0
        %4349 = vmatprep.subr.mxu0 0.0
        %4350 = vmatpush2.msra.mxu0 0.0
        %4351 = vmatprep.subr.mxu0 0.0
        %4352 = vmatpush2.msra.mxu0 0.0
        %4353 = vmatprep.subr.mxu0 0.0
        %4354 = vmatpush2.msra.mxu0 0.0
        %4355 = vmatprep.subr.mxu0 0.0
        %4356 = vmatpush2.msra.mxu0 0.0
        %4357 = vmatprep.subr.mxu0 0.0
        %4358 = vmatpush2.msra.mxu0 0.0
        %4359 = vmatprep.subr.mxu0 0.0
        %4360 = vmatpush2.msra.mxu0 0.0
        %4361 = vmatprep.subr.mxu0 0.0
        %4362 = vmatpush2.msra.mxu0 0.0
        %4363 = vmatprep.subr.mxu0 0.0
        %4364 = vmatpush2.msra.mxu0 0.0
        %4365 = vmatprep.mubr.f32.mxu0 0.0
        %4366 = vmatmul.mubr.f32.gmra.mxu0 %v4299
        %v4367 = vpop.f32.mrf.mxu0
        %v4368 = vadd.f32 0.0, %v4367
        %v4369 = vpop.f32.mrf.mxu0
        %4370 = vdwg.mxu0
        %v4372 = vsel %vm3945, %v4267, 0
        %4374 = vmatprep.subr.mxu0 0.0
        %4375 = vmatpush1.msra.mxu0 0.0
        %4376 = vmatprep.subr.mxu0 0.0
        %4377 = vmatpush1.msra.mxu0 0.0
        %4378 = vmatprep.subr.mxu0 0.0
        %4379 = vmatpush1.msra.mxu0 0.0
        %4380 = vmatprep.subr.mxu0 0.0
        %4381 = vmatpush1.msra.mxu0 0.0
        %4382 = vmatprep.subr.mxu0 0.0
        %4383 = vmatpush1.msra.mxu0 0.0
        %4384 = vmatprep.subr.mxu0 0.0
        %4385 = vmatpush1.msra.mxu0 0.0
        %4386 = vmatprep.subr.mxu0 0.0
        %4387 = vmatpush1.msra.mxu0 0.0
        %4388 = vmatprep.subr.mxu0 0.0
        %4389 = vmatpush1.msra.mxu0 0.0
        %4390 = vmatprep.subr.mxu0 0.0
        %4391 = vmatpush1.msra.mxu0 0.0
        %4392 = vmatprep.subr.mxu0 0.0
        %4393 = vmatpush1.msra.mxu0 0.0
        %4394 = vmatprep.subr.mxu0 0.0
        %4395 = vmatpush1.msra.mxu0 0.0
        %4396 = vmatprep.subr.mxu0 0.0
        %4397 = vmatpush1.msra.mxu0 0.0
        %4398 = vmatprep.subr.mxu0 0.0
        %4399 = vmatpush1.msra.mxu0 0.0
        %4400 = vmatprep.subr.mxu0 0.0
        %4401 = vmatpush1.msra.mxu0 0.0
        %4402 = vmatprep.subr.mxu0 0.0
        %4403 = vmatpush1.msra.mxu0 0.0
        %4404 = vmatprep.subr.mxu0 0.0
        %4405 = vmatpush1.msra.mxu0 %v1294
        %4406 = vmatprep.subr.mxu0 0.0
        %4407 = vmatpush2.msra.mxu0 0.0
        %4408 = vmatprep.subr.mxu0 0.0
        %4409 = vmatpush2.msra.mxu0 0.0
        %4410 = vmatprep.subr.mxu0 0.0
        %4411 = vmatpush2.msra.mxu0 0.0
        %4412 = vmatprep.subr.mxu0 0.0
        %4413 = vmatpush2.msra.mxu0 0.0
        %4414 = vmatprep.subr.mxu0 0.0
        %4415 = vmatpush2.msra.mxu0 0.0
        %4416 = vmatprep.subr.mxu0 0.0
        %4417 = vmatpush2.msra.mxu0 0.0
        %4418 = vmatprep.subr.mxu0 0.0
        %4419 = vmatpush2.msra.mxu0 0.0
        %4420 = vmatprep.subr.mxu0 0.0
        %4421 = vmatpush2.msra.mxu0 0.0
        %4422 = vmatprep.subr.mxu0 0.0
        %4423 = vmatpush2.msra.mxu0 0.0
        %4424 = vmatprep.subr.mxu0 0.0
        %4425 = vmatpush2.msra.mxu0 0.0
        %4426 = vmatprep.subr.mxu0 0.0
        %4427 = vmatpush2.msra.mxu0 0.0
        %4428 = vmatprep.subr.mxu0 0.0
        %4429 = vmatpush2.msra.mxu0 0.0
        %4430 = vmatprep.subr.mxu0 0.0
        %4431 = vmatpush2.msra.mxu0 0.0
        %4432 = vmatprep.subr.mxu0 0.0
        %4433 = vmatpush2.msra.mxu0 0.0
        %4434 = vmatprep.subr.mxu0 0.0
        %4435 = vmatpush2.msra.mxu0 0.0
        %4436 = vmatprep.subr.mxu0 0.0
        %4437 = vmatpush2.msra.mxu0 0.0
        %4438 = vmatprep.mubr.f32.mxu0 0.0
        %4439 = vmatmul.mubr.f32.gmra.mxu0 %v4372
        %v4440 = vpop.f32.mrf.mxu0
        %v4441 = vadd.f32 0.0, %v4440
        %v4442 = vpop.f32.mrf.mxu0
        %4443 = vdwg.mxu0
        %v4445 = vsel %vm3945, %v4268, 0
        %4447 = vmatprep.subr.mxu0 0.0
        %4448 = vmatpush1.msra.mxu0 0.0
        %4449 = vmatprep.subr.mxu0 0.0
        %4450 = vmatpush1.msra.mxu0 0.0
        %4451 = vmatprep.subr.mxu0 0.0
        %4452 = vmatpush1.msra.mxu0 0.0
        %4453 = vmatprep.subr.mxu0 0.0
        %4454 = vmatpush1.msra.mxu0 0.0
        %4455 = vmatprep.subr.mxu0 0.0
        %4456 = vmatpush1.msra.mxu0 0.0
        %4457 = vmatprep.subr.mxu0 0.0
        %4458 = vmatpush1.msra.mxu0 0.0
        %4459 = vmatprep.subr.mxu0 0.0
        %4460 = vmatpush1.msra.mxu0 0.0
        %4461 = vmatprep.subr.mxu0 0.0
        %4462 = vmatpush1.msra.mxu0 0.0
        %4463 = vmatprep.subr.mxu0 0.0
        %4464 = vmatpush1.msra.mxu0 0.0
        %4465 = vmatprep.subr.mxu0 0.0
        %4466 = vmatpush1.msra.mxu0 0.0
        %4467 = vmatprep.subr.mxu0 0.0
        %4468 = vmatpush1.msra.mxu0 0.0
        %4469 = vmatprep.subr.mxu0 0.0
        %4470 = vmatpush1.msra.mxu0 0.0
        %4471 = vmatprep.subr.mxu0 0.0
        %4472 = vmatpush1.msra.mxu0 0.0
        %4473 = vmatprep.subr.mxu0 0.0
        %4474 = vmatpush1.msra.mxu0 0.0
        %4475 = vmatprep.subr.mxu0 0.0
        %4476 = vmatpush1.msra.mxu0 0.0
        %4477 = vmatprep.subr.mxu0 0.0
        %4478 = vmatpush1.msra.mxu0 %v1299
        %4479 = vmatprep.subr.mxu0 0.0
        %4480 = vmatpush2.msra.mxu0 0.0
        %4481 = vmatprep.subr.mxu0 0.0
        %4482 = vmatpush2.msra.mxu0 0.0
        %4483 = vmatprep.subr.mxu0 0.0
        %4484 = vmatpush2.msra.mxu0 0.0
        %4485 = vmatprep.subr.mxu0 0.0
        %4486 = vmatpush2.msra.mxu0 0.0
        %4487 = vmatprep.subr.mxu0 0.0
        %4488 = vmatpush2.msra.mxu0 0.0
        %4489 = vmatprep.subr.mxu0 0.0
        %4490 = vmatpush2.msra.mxu0 0.0
        %4491 = vmatprep.subr.mxu0 0.0
        %4492 = vmatpush2.msra.mxu0 0.0
        %4493 = vmatprep.subr.mxu0 0.0
        %4494 = vmatpush2.msra.mxu0 0.0
        %4495 = vmatprep.subr.mxu0 0.0
        %4496 = vmatpush2.msra.mxu0 0.0
        %4497 = vmatprep.subr.mxu0 0.0
        %4498 = vmatpush2.msra.mxu0 0.0
        %4499 = vmatprep.subr.mxu0 0.0
        %4500 = vmatpush2.msra.mxu0 0.0
        %4501 = vmatprep.subr.mxu0 0.0
        %4502 = vmatpush2.msra.mxu0 0.0
        %4503 = vmatprep.subr.mxu0 0.0
        %4504 = vmatpush2.msra.mxu0 0.0
        %4505 = vmatprep.subr.mxu0 0.0
        %4506 = vmatpush2.msra.mxu0 0.0
        %4507 = vmatprep.subr.mxu0 0.0
        %4508 = vmatpush2.msra.mxu0 0.0
        %4509 = vmatprep.subr.mxu0 0.0
        %4510 = vmatpush2.msra.mxu0 0.0
        %4511 = vmatprep.mubr.f32.mxu0 0.0
        %4512 = vmatmul.mubr.f32.gmra.mxu0 %v4445
        %v4513 = vpop.f32.mrf.mxu0
        %v4514 = vadd.f32 0.0, %v4513
        %v4515 = vpop.f32.mrf.mxu0
        %4516 = vdwg.mxu0
        %v4518 = vsel %vm3945, %v4269, 0
        %4520 = vmatprep.subr.mxu0 0.0
        %4521 = vmatpush1.msra.mxu0 0.0
        %4522 = vmatprep.subr.mxu0 0.0
        %4523 = vmatpush1.msra.mxu0 0.0
        %4524 = vmatprep.subr.mxu0 0.0
        %4525 = vmatpush1.msra.mxu0 0.0
        %4526 = vmatprep.subr.mxu0 0.0
        %4527 = vmatpush1.msra.mxu0 0.0
        %4528 = vmatprep.subr.mxu0 0.0
        %4529 = vmatpush1.msra.mxu0 0.0
        %4530 = vmatprep.subr.mxu0 0.0
        %4531 = vmatpush1.msra.mxu0 0.0
        %4532 = vmatprep.subr.mxu0 0.0
        %4533 = vmatpush1.msra.mxu0 0.0
        %4534 = vmatprep.subr.mxu0 0.0
        %4535 = vmatpush1.msra.mxu0 0.0
        %4536 = vmatprep.subr.mxu0 0.0
        %4537 = vmatpush1.msra.mxu0 0.0
        %4538 = vmatprep.subr.mxu0 0.0
        %4539 = vmatpush1.msra.mxu0 0.0
        %4540 = vmatprep.subr.mxu0 0.0
        %4541 = vmatpush1.msra.mxu0 0.0
        %4542 = vmatprep.subr.mxu0 0.0
        %4543 = vmatpush1.msra.mxu0 0.0
        %4544 = vmatprep.subr.mxu0 0.0
        %4545 = vmatpush1.msra.mxu0 0.0
        %4546 = vmatprep.subr.mxu0 0.0
        %4547 = vmatpush1.msra.mxu0 0.0
        %4548 = vmatprep.subr.mxu0 0.0
        %4549 = vmatpush1.msra.mxu0 0.0
        %4550 = vmatprep.subr.mxu0 0.0
        %4551 = vmatpush1.msra.mxu0 %v1302
        %4552 = vmatprep.subr.mxu0 0.0
        %4553 = vmatpush2.msra.mxu0 0.0
        %4554 = vmatprep.subr.mxu0 0.0
        %4555 = vmatpush2.msra.mxu0 0.0
        %4556 = vmatprep.subr.mxu0 0.0
        %4557 = vmatpush2.msra.mxu0 0.0
        %4558 = vmatprep.subr.mxu0 0.0
        %4559 = vmatpush2.msra.mxu0 0.0
        %4560 = vmatprep.subr.mxu0 0.0
        %4561 = vmatpush2.msra.mxu0 0.0
        %4562 = vmatprep.subr.mxu0 0.0
        %4563 = vmatpush2.msra.mxu0 0.0
        %4564 = vmatprep.subr.mxu0 0.0
        %4565 = vmatpush2.msra.mxu0 0.0
        %4566 = vmatprep.subr.mxu0 0.0
        %4567 = vmatpush2.msra.mxu0 0.0
        %4568 = vmatprep.subr.mxu0 0.0
        %4569 = vmatpush2.msra.mxu0 0.0
        %4570 = vmatprep.subr.mxu0 0.0
        %4571 = vmatpush2.msra.mxu0 0.0
        %4572 = vmatprep.subr.mxu0 0.0
        %4573 = vmatpush2.msra.mxu0 0.0
        %4574 = vmatprep.subr.mxu0 0.0
        %4575 = vmatpush2.msra.mxu0 0.0
        %4576 = vmatprep.subr.mxu0 0.0
        %4577 = vmatpush2.msra.mxu0 0.0
        %4578 = vmatprep.subr.mxu0 0.0
        %4579 = vmatpush2.msra.mxu0 0.0
        %4580 = vmatprep.subr.mxu0 0.0
        %4581 = vmatpush2.msra.mxu0 0.0
        %4582 = vmatprep.subr.mxu0 0.0
        %4583 = vmatpush2.msra.mxu0 0.0
        %4584 = vmatprep.mubr.f32.mxu0 0.0
        %4585 = vmatmul.mubr.f32.gmra.mxu0 %v4518
        %v4586 = vpop.f32.mrf.mxu0
        %v4587 = vadd.f32 0.0, %v4586
        %v4588 = vpop.f32.mrf.mxu0
        %4589 = vdwg.mxu0
        %v4591 = vsel %vm3945, %v4270, 0
        %4593 = vmatprep.subr.mxu0 0.0
        %4594 = vmatpush1.msra.mxu0 0.0
        %4595 = vmatprep.subr.mxu0 0.0
        %4596 = vmatpush1.msra.mxu0 0.0
        %4597 = vmatprep.subr.mxu0 0.0
        %4598 = vmatpush1.msra.mxu0 0.0
        %4599 = vmatprep.subr.mxu0 0.0
        %4600 = vmatpush1.msra.mxu0 0.0
        %4601 = vmatprep.subr.mxu0 0.0
        %4602 = vmatpush1.msra.mxu0 0.0
        %4603 = vmatprep.subr.mxu0 0.0
        %4604 = vmatpush1.msra.mxu0 0.0
        %4605 = vmatprep.subr.mxu0 0.0
        %4606 = vmatpush1.msra.mxu0 0.0
        %4607 = vmatprep.subr.mxu0 0.0
        %4608 = vmatpush1.msra.mxu0 0.0
        %4609 = vmatprep.subr.mxu0 0.0
        %4610 = vmatpush1.msra.mxu0 0.0
        %4611 = vmatprep.subr.mxu0 0.0
        %4612 = vmatpush1.msra.mxu0 0.0
        %4613 = vmatprep.subr.mxu0 0.0
        %4614 = vmatpush1.msra.mxu0 0.0
        %4615 = vmatprep.subr.mxu0 0.0
        %4616 = vmatpush1.msra.mxu0 0.0
        %4617 = vmatprep.subr.mxu0 0.0
        %4618 = vmatpush1.msra.mxu0 0.0
        %4619 = vmatprep.subr.mxu0 0.0
        %4620 = vmatpush1.msra.mxu0 0.0
        %4621 = vmatprep.subr.mxu0 0.0
        %4622 = vmatpush1.msra.mxu0 0.0
        %4623 = vmatprep.subr.mxu0 0.0
        %4624 = vmatpush1.msra.mxu0 %v1307
        %4625 = vmatprep.subr.mxu0 0.0
        %4626 = vmatpush2.msra.mxu0 0.0
        %4627 = vmatprep.subr.mxu0 0.0
        %4628 = vmatpush2.msra.mxu0 0.0
        %4629 = vmatprep.subr.mxu0 0.0
        %4630 = vmatpush2.msra.mxu0 0.0
        %4631 = vmatprep.subr.mxu0 0.0
        %4632 = vmatpush2.msra.mxu0 0.0
        %4633 = vmatprep.subr.mxu0 0.0
        %4634 = vmatpush2.msra.mxu0 0.0
        %4635 = vmatprep.subr.mxu0 0.0
        %4636 = vmatpush2.msra.mxu0 0.0
        %4637 = vmatprep.subr.mxu0 0.0
        %4638 = vmatpush2.msra.mxu0 0.0
        %4639 = vmatprep.subr.mxu0 0.0
        %4640 = vmatpush2.msra.mxu0 0.0
        %4641 = vmatprep.subr.mxu0 0.0
        %4642 = vmatpush2.msra.mxu0 0.0
        %4643 = vmatprep.subr.mxu0 0.0
        %4644 = vmatpush2.msra.mxu0 0.0
        %4645 = vmatprep.subr.mxu0 0.0
        %4646 = vmatpush2.msra.mxu0 0.0
        %4647 = vmatprep.subr.mxu0 0.0
        %4648 = vmatpush2.msra.mxu0 0.0
        %4649 = vmatprep.subr.mxu0 0.0
        %4650 = vmatpush2.msra.mxu0 0.0
        %4651 = vmatprep.subr.mxu0 0.0
        %4652 = vmatpush2.msra.mxu0 0.0
        %4653 = vmatprep.subr.mxu0 0.0
        %4654 = vmatpush2.msra.mxu0 0.0
        %4655 = vmatprep.subr.mxu0 0.0
        %4656 = vmatpush2.msra.mxu0 0.0
        %4657 = vmatprep.mubr.f32.mxu0 0.0
        %4658 = vmatmul.mubr.f32.gmra.mxu0 %v4591
        %v4659 = vpop.f32.mrf.mxu0
        %v4660 = vadd.f32 0.0, %v4659
        %v4661 = vpop.f32.mrf.mxu0
        %4662 = vdwg.mxu0
        %v4664 = vsel %vm3945, %v4271, 0
        %4666 = vmatprep.subr.mxu0 0.0
        %4667 = vmatpush1.msra.mxu0 0.0
        %4668 = vmatprep.subr.mxu0 0.0
        %4669 = vmatpush1.msra.mxu0 0.0
        %4670 = vmatprep.subr.mxu0 0.0
        %4671 = vmatpush1.msra.mxu0 0.0
        %4672 = vmatprep.subr.mxu0 0.0
        %4673 = vmatpush1.msra.mxu0 0.0
        %4674 = vmatprep.subr.mxu0 0.0
        %4675 = vmatpush1.msra.mxu0 0.0
        %4676 = vmatprep.subr.mxu0 0.0
        %4677 = vmatpush1.msra.mxu0 0.0
        %4678 = vmatprep.subr.mxu0 0.0
        %4679 = vmatpush1.msra.mxu0 0.0
        %4680 = vmatprep.subr.mxu0 0.0
        %4681 = vmatpush1.msra.mxu0 0.0
        %4682 = vmatprep.subr.mxu0 0.0
        %4683 = vmatpush1.msra.mxu0 0.0
        %4684 = vmatprep.subr.mxu0 0.0
        %4685 = vmatpush1.msra.mxu0 0.0
        %4686 = vmatprep.subr.mxu0 0.0
        %4687 = vmatpush1.msra.mxu0 0.0
        %4688 = vmatprep.subr.mxu0 0.0
        %4689 = vmatpush1.msra.mxu0 0.0
        %4690 = vmatprep.subr.mxu0 0.0
        %4691 = vmatpush1.msra.mxu0 0.0
        %4692 = vmatprep.subr.mxu0 0.0
        %4693 = vmatpush1.msra.mxu0 0.0
        %4694 = vmatprep.subr.mxu0 0.0
        %4695 = vmatpush1.msra.mxu0 0.0
        %4696 = vmatprep.subr.mxu0 0.0
        %4697 = vmatpush1.msra.mxu0 %v1310
        %4698 = vmatprep.subr.mxu0 0.0
        %4699 = vmatpush2.msra.mxu0 0.0
        %4700 = vmatprep.subr.mxu0 0.0
        %4701 = vmatpush2.msra.mxu0 0.0
        %4702 = vmatprep.subr.mxu0 0.0
        %4703 = vmatpush2.msra.mxu0 0.0
        %4704 = vmatprep.subr.mxu0 0.0
        %4705 = vmatpush2.msra.mxu0 0.0
        %4706 = vmatprep.subr.mxu0 0.0
        %4707 = vmatpush2.msra.mxu0 0.0
        %4708 = vmatprep.subr.mxu0 0.0
        %4709 = vmatpush2.msra.mxu0 0.0
        %4710 = vmatprep.subr.mxu0 0.0
        %4711 = vmatpush2.msra.mxu0 0.0
        %4712 = vmatprep.subr.mxu0 0.0
        %4713 = vmatpush2.msra.mxu0 0.0
        %4714 = vmatprep.subr.mxu0 0.0
        %4715 = vmatpush2.msra.mxu0 0.0
        %4716 = vmatprep.subr.mxu0 0.0
        %4717 = vmatpush2.msra.mxu0 0.0
        %4718 = vmatprep.subr.mxu0 0.0
        %4719 = vmatpush2.msra.mxu0 0.0
        %4720 = vmatprep.subr.mxu0 0.0
        %4721 = vmatpush2.msra.mxu0 0.0
        %4722 = vmatprep.subr.mxu0 0.0
        %4723 = vmatpush2.msra.mxu0 0.0
        %4724 = vmatprep.subr.mxu0 0.0
        %4725 = vmatpush2.msra.mxu0 0.0
        %4726 = vmatprep.subr.mxu0 0.0
        %4727 = vmatpush2.msra.mxu0 0.0
        %4728 = vmatprep.subr.mxu0 0.0
        %4729 = vmatpush2.msra.mxu0 0.0
        %4730 = vmatprep.mubr.f32.mxu0 0.0
        %4731 = vmatmul.mubr.f32.gmra.mxu0 %v4664
        %v4732 = vpop.f32.mrf.mxu0
        %v4733 = vadd.f32 0.0, %v4732
        %v4734 = vpop.f32.mrf.mxu0
        %4735 = vdwg.mxu0
        %v4737 = vsel %vm3945, %v4272, 0
        %4739 = vmatprep.subr.mxu0 0.0
        %4740 = vmatpush1.msra.mxu0 0.0
        %4741 = vmatprep.subr.mxu0 0.0
        %4742 = vmatpush1.msra.mxu0 0.0
        %4743 = vmatprep.subr.mxu0 0.0
        %4744 = vmatpush1.msra.mxu0 0.0
        %4745 = vmatprep.subr.mxu0 0.0
        %4746 = vmatpush1.msra.mxu0 0.0
        %4747 = vmatprep.subr.mxu0 0.0
        %4748 = vmatpush1.msra.mxu0 0.0
        %4749 = vmatprep.subr.mxu0 0.0
        %4750 = vmatpush1.msra.mxu0 0.0
        %4751 = vmatprep.subr.mxu0 0.0
        %4752 = vmatpush1.msra.mxu0 0.0
        %4753 = vmatprep.subr.mxu0 0.0
        %4754 = vmatpush1.msra.mxu0 0.0
        %4755 = vmatprep.subr.mxu0 0.0
        %4756 = vmatpush1.msra.mxu0 0.0
        %4757 = vmatprep.subr.mxu0 0.0
        %4758 = vmatpush1.msra.mxu0 0.0
        %4759 = vmatprep.subr.mxu0 0.0
        %4760 = vmatpush1.msra.mxu0 0.0
        %4761 = vmatprep.subr.mxu0 0.0
        %4762 = vmatpush1.msra.mxu0 0.0
        %4763 = vmatprep.subr.mxu0 0.0
        %4764 = vmatpush1.msra.mxu0 0.0
        %4765 = vmatprep.subr.mxu0 0.0
        %4766 = vmatpush1.msra.mxu0 0.0
        %4767 = vmatprep.subr.mxu0 0.0
        %4768 = vmatpush1.msra.mxu0 0.0
        %4769 = vmatprep.subr.mxu0 0.0
        %4770 = vmatpush1.msra.mxu0 %v1315
        %4771 = vmatprep.subr.mxu0 0.0
        %4772 = vmatpush2.msra.mxu0 0.0
        %4773 = vmatprep.subr.mxu0 0.0
        %4774 = vmatpush2.msra.mxu0 0.0
        %4775 = vmatprep.subr.mxu0 0.0
        %4776 = vmatpush2.msra.mxu0 0.0
        %4777 = vmatprep.subr.mxu0 0.0
        %4778 = vmatpush2.msra.mxu0 0.0
        %4779 = vmatprep.subr.mxu0 0.0
        %4780 = vmatpush2.msra.mxu0 0.0
        %4781 = vmatprep.subr.mxu0 0.0
        %4782 = vmatpush2.msra.mxu0 0.0
        %4783 = vmatprep.subr.mxu0 0.0
        %4784 = vmatpush2.msra.mxu0 0.0
        %4785 = vmatprep.subr.mxu0 0.0
        %4786 = vmatpush2.msra.mxu0 0.0
        %4787 = vmatprep.subr.mxu0 0.0
        %4788 = vmatpush2.msra.mxu0 0.0
        %4789 = vmatprep.subr.mxu0 0.0
        %4790 = vmatpush2.msra.mxu0 0.0
        %4791 = vmatprep.subr.mxu0 0.0
        %4792 = vmatpush2.msra.mxu0 0.0
        %4793 = vmatprep.subr.mxu0 0.0
        %4794 = vmatpush2.msra.mxu0 0.0
        %4795 = vmatprep.subr.mxu0 0.0
        %4796 = vmatpush2.msra.mxu0 0.0
        %4797 = vmatprep.subr.mxu0 0.0
        %4798 = vmatpush2.msra.mxu0 0.0
        %4799 = vmatprep.subr.mxu0 0.0
        %4800 = vmatpush2.msra.mxu0 0.0
        %4801 = vmatprep.subr.mxu0 0.0
        %4802 = vmatpush2.msra.mxu0 0.0
        %4803 = vmatprep.mubr.f32.mxu0 0.0
        %4804 = vmatmul.mubr.f32.gmra.mxu0 %v4737
        %v4805 = vpop.f32.mrf.mxu0
        %v4806 = vadd.f32 0.0, %v4805
        %v4807 = vpop.f32.mrf.mxu0
        %4808 = vdwg.mxu0
        %v4810 = vsel %vm3945, %v4273, 0
        %4812 = vmatprep.subr.mxu0 0.0
        %4813 = vmatpush1.msra.mxu0 0.0
        %4814 = vmatprep.subr.mxu0 0.0
        %4815 = vmatpush1.msra.mxu0 0.0
        %4816 = vmatprep.subr.mxu0 0.0
        %4817 = vmatpush1.msra.mxu0 0.0
        %4818 = vmatprep.subr.mxu0 0.0
        %4819 = vmatpush1.msra.mxu0 0.0
        %4820 = vmatprep.subr.mxu0 0.0
        %4821 = vmatpush1.msra.mxu0 0.0
        %4822 = vmatprep.subr.mxu0 0.0
        %4823 = vmatpush1.msra.mxu0 0.0
        %4824 = vmatprep.subr.mxu0 0.0
        %4825 = vmatpush1.msra.mxu0 0.0
        %4826 = vmatprep.subr.mxu0 0.0
        %4827 = vmatpush1.msra.mxu0 0.0
        %4828 = vmatprep.subr.mxu0 0.0
        %4829 = vmatpush1.msra.mxu0 0.0
        %4830 = vmatprep.subr.mxu0 0.0
        %4831 = vmatpush1.msra.mxu0 0.0
        %4832 = vmatprep.subr.mxu0 0.0
        %4833 = vmatpush1.msra.mxu0 0.0
        %4834 = vmatprep.subr.mxu0 0.0
        %4835 = vmatpush1.msra.mxu0 0.0
        %4836 = vmatprep.subr.mxu0 0.0
        %4837 = vmatpush1.msra.mxu0 0.0
        %4838 = vmatprep.subr.mxu0 0.0
        %4839 = vmatpush1.msra.mxu0 0.0
        %4840 = vmatprep.subr.mxu0 0.0
        %4841 = vmatpush1.msra.mxu0 0.0
        %4842 = vmatprep.subr.mxu0 0.0
        %4843 = vmatpush1.msra.mxu0 %v1318
        %4844 = vmatprep.subr.mxu0 0.0
        %4845 = vmatpush2.msra.mxu0 0.0
        %4846 = vmatprep.subr.mxu0 0.0
        %4847 = vmatpush2.msra.mxu0 0.0
        %4848 = vmatprep.subr.mxu0 0.0
        %4849 = vmatpush2.msra.mxu0 0.0
        %4850 = vmatprep.subr.mxu0 0.0
        %4851 = vmatpush2.msra.mxu0 0.0
        %4852 = vmatprep.subr.mxu0 0.0
        %4853 = vmatpush2.msra.mxu0 0.0
        %4854 = vmatprep.subr.mxu0 0.0
        %4855 = vmatpush2.msra.mxu0 0.0
        %4856 = vmatprep.subr.mxu0 0.0
        %4857 = vmatpush2.msra.mxu0 0.0
        %4858 = vmatprep.subr.mxu0 0.0
        %4859 = vmatpush2.msra.mxu0 0.0
        %4860 = vmatprep.subr.mxu0 0.0
        %4861 = vmatpush2.msra.mxu0 0.0
        %4862 = vmatprep.subr.mxu0 0.0
        %4863 = vmatpush2.msra.mxu0 0.0
        %4864 = vmatprep.subr.mxu0 0.0
        %4865 = vmatpush2.msra.mxu0 0.0
        %4866 = vmatprep.subr.mxu0 0.0
        %4867 = vmatpush2.msra.mxu0 0.0
        %4868 = vmatprep.subr.mxu0 0.0
        %4869 = vmatpush2.msra.mxu0 0.0
        %4870 = vmatprep.subr.mxu0 0.0
        %4871 = vmatpush2.msra.mxu0 0.0
        %4872 = vmatprep.subr.mxu0 0.0
        %4873 = vmatpush2.msra.mxu0 0.0
        %4874 = vmatprep.subr.mxu0 0.0
        %4875 = vmatpush2.msra.mxu0 0.0
        %4876 = vmatprep.mubr.f32.mxu0 0.0
        %4877 = vmatmul.mubr.f32.gmra.mxu0 %v4810
        %v4878 = vpop.f32.mrf.mxu0
        %v4879 = vadd.f32 0.0, %v4878
        %v4880 = vpop.f32.mrf.mxu0
        %4881 = vdwg.mxu0
        %v4883 = vsel %vm3945, %v4274, 0
        %4885 = vmatprep.subr.mxu0 0.0
        %4886 = vmatpush1.msra.mxu0 0.0
        %4887 = vmatprep.subr.mxu0 0.0
        %4888 = vmatpush1.msra.mxu0 0.0
        %4889 = vmatprep.subr.mxu0 0.0
        %4890 = vmatpush1.msra.mxu0 0.0
        %4891 = vmatprep.subr.mxu0 0.0
        %4892 = vmatpush1.msra.mxu0 0.0
        %4893 = vmatprep.subr.mxu0 0.0
        %4894 = vmatpush1.msra.mxu0 0.0
        %4895 = vmatprep.subr.mxu0 0.0
        %4896 = vmatpush1.msra.mxu0 0.0
        %4897 = vmatprep.subr.mxu0 0.0
        %4898 = vmatpush1.msra.mxu0 0.0
        %4899 = vmatprep.subr.mxu0 0.0
        %4900 = vmatpush1.msra.mxu0 0.0
        %4901 = vmatprep.subr.mxu0 0.0
        %4902 = vmatpush1.msra.mxu0 0.0
        %4903 = vmatprep.subr.mxu0 0.0
        %4904 = vmatpush1.msra.mxu0 0.0
        %4905 = vmatprep.subr.mxu0 0.0
        %4906 = vmatpush1.msra.mxu0 0.0
        %4907 = vmatprep.subr.mxu0 0.0
        %4908 = vmatpush1.msra.mxu0 0.0
        %4909 = vmatprep.subr.mxu0 0.0
        %4910 = vmatpush1.msra.mxu0 0.0
        %4911 = vmatprep.subr.mxu0 0.0
        %4912 = vmatpush1.msra.mxu0 0.0
        %4913 = vmatprep.subr.mxu0 0.0
        %4914 = vmatpush1.msra.mxu0 0.0
        %4915 = vmatprep.subr.mxu0 0.0
        %4916 = vmatpush1.msra.mxu0 %v1323
        %4917 = vmatprep.subr.mxu0 0.0
        %4918 = vmatpush2.msra.mxu0 0.0
        %4919 = vmatprep.subr.mxu0 0.0
        %4920 = vmatpush2.msra.mxu0 0.0
        %4921 = vmatprep.subr.mxu0 0.0
        %4922 = vmatpush2.msra.mxu0 0.0
        %4923 = vmatprep.subr.mxu0 0.0
        %4924 = vmatpush2.msra.mxu0 0.0
        %4925 = vmatprep.subr.mxu0 0.0
        %4926 = vmatpush2.msra.mxu0 0.0
        %4927 = vmatprep.subr.mxu0 0.0
        %4928 = vmatpush2.msra.mxu0 0.0
        %4929 = vmatprep.subr.mxu0 0.0
        %4930 = vmatpush2.msra.mxu0 0.0
        %4931 = vmatprep.subr.mxu0 0.0
        %4932 = vmatpush2.msra.mxu0 0.0
        %4933 = vmatprep.subr.mxu0 0.0
        %4934 = vmatpush2.msra.mxu0 0.0
        %4935 = vmatprep.subr.mxu0 0.0
        %4936 = vmatpush2.msra.mxu0 0.0
        %4937 = vmatprep.subr.mxu0 0.0
        %4938 = vmatpush2.msra.mxu0 0.0
        %4939 = vmatprep.subr.mxu0 0.0
        %4940 = vmatpush2.msra.mxu0 0.0
        %4941 = vmatprep.subr.mxu0 0.0
        %4942 = vmatpush2.msra.mxu0 0.0
        %4943 = vmatprep.subr.mxu0 0.0
        %4944 = vmatpush2.msra.mxu0 0.0
        %4945 = vmatprep.subr.mxu0 0.0
        %4946 = vmatpush2.msra.mxu0 0.0
        %4947 = vmatprep.subr.mxu0 0.0
        %4948 = vmatpush2.msra.mxu0 0.0
        %4949 = vmatprep.mubr.f32.mxu0 0.0
        %4950 = vmatmul.mubr.f32.gmra.mxu0 %v4883
        %v4951 = vpop.f32.mrf.mxu0
        %v4952 = vadd.f32 0.0, %v4951
        %v4953 = vpop.f32.mrf.mxu0
        %4954 = vdwg.mxu0
        %v4956 = vsel %vm3945, %v4275, 0
        %4958 = vmatprep.subr.mxu0 0.0
        %4959 = vmatpush1.msra.mxu0 0.0
        %4960 = vmatprep.subr.mxu0 0.0
        %4961 = vmatpush1.msra.mxu0 0.0
        %4962 = vmatprep.subr.mxu0 0.0
        %4963 = vmatpush1.msra.mxu0 0.0
        %4964 = vmatprep.subr.mxu0 0.0
        %4965 = vmatpush1.msra.mxu0 0.0
        %4966 = vmatprep.subr.mxu0 0.0
        %4967 = vmatpush1.msra.mxu0 0.0
        %4968 = vmatprep.subr.mxu0 0.0
        %4969 = vmatpush1.msra.mxu0 0.0
        %4970 = vmatprep.subr.mxu0 0.0
        %4971 = vmatpush1.msra.mxu0 0.0
        %4972 = vmatprep.subr.mxu0 0.0
        %4973 = vmatpush1.msra.mxu0 0.0
        %4974 = vmatprep.subr.mxu0 0.0
        %4975 = vmatpush1.msra.mxu0 0.0
        %4976 = vmatprep.subr.mxu0 0.0
        %4977 = vmatpush1.msra.mxu0 0.0
        %4978 = vmatprep.subr.mxu0 0.0
        %4979 = vmatpush1.msra.mxu0 0.0
        %4980 = vmatprep.subr.mxu0 0.0
        %4981 = vmatpush1.msra.mxu0 0.0
        %4982 = vmatprep.subr.mxu0 0.0
        %4983 = vmatpush1.msra.mxu0 0.0
        %4984 = vmatprep.subr.mxu0 0.0
        %4985 = vmatpush1.msra.mxu0 0.0
        %4986 = vmatprep.subr.mxu0 0.0
        %4987 = vmatpush1.msra.mxu0 0.0
        %4988 = vmatprep.subr.mxu0 0.0
        %4989 = vmatpush1.msra.mxu0 %v1326
        %4990 = vmatprep.subr.mxu0 0.0
        %4991 = vmatpush2.msra.mxu0 0.0
        %4992 = vmatprep.subr.mxu0 0.0
        %4993 = vmatpush2.msra.mxu0 0.0
        %4994 = vmatprep.subr.mxu0 0.0
        %4995 = vmatpush2.msra.mxu0 0.0
        %4996 = vmatprep.subr.mxu0 0.0
        %4997 = vmatpush2.msra.mxu0 0.0
        %4998 = vmatprep.subr.mxu0 0.0
        %4999 = vmatpush2.msra.mxu0 0.0
        %5000 = vmatprep.subr.mxu0 0.0
        %5001 = vmatpush2.msra.mxu0 0.0
        %5002 = vmatprep.subr.mxu0 0.0
        %5003 = vmatpush2.msra.mxu0 0.0
        %5004 = vmatprep.subr.mxu0 0.0
        %5005 = vmatpush2.msra.mxu0 0.0
        %5006 = vmatprep.subr.mxu0 0.0
        %5007 = vmatpush2.msra.mxu0 0.0
        %5008 = vmatprep.subr.mxu0 0.0
        %5009 = vmatpush2.msra.mxu0 0.0
        %5010 = vmatprep.subr.mxu0 0.0
        %5011 = vmatpush2.msra.mxu0 0.0
        %5012 = vmatprep.subr.mxu0 0.0
        %5013 = vmatpush2.msra.mxu0 0.0
        %5014 = vmatprep.subr.mxu0 0.0
        %5015 = vmatpush2.msra.mxu0 0.0
        %5016 = vmatprep.subr.mxu0 0.0
        %5017 = vmatpush2.msra.mxu0 0.0
        %5018 = vmatprep.subr.mxu0 0.0
        %5019 = vmatpush2.msra.mxu0 0.0
        %5020 = vmatprep.subr.mxu0 0.0
        %5021 = vmatpush2.msra.mxu0 0.0
        %5022 = vmatprep.mubr.f32.mxu0 0.0
        %5023 = vmatmul.mubr.f32.gmra.mxu0 %v4956
        %v5024 = vpop.f32.mrf.mxu0
        %v5025 = vadd.f32 0.0, %v5024
        %v5026 = vpop.f32.mrf.mxu0
        %5027 = vdwg.mxu0
        %v5029 = vsel %vm3945, %v4276, 0
        %5031 = vmatprep.subr.mxu0 0.0
        %5032 = vmatpush1.msra.mxu0 0.0
        %5033 = vmatprep.subr.mxu0 0.0
        %5034 = vmatpush1.msra.mxu0 0.0
        %5035 = vmatprep.subr.mxu0 0.0
        %5036 = vmatpush1.msra.mxu0 0.0
        %5037 = vmatprep.subr.mxu0 0.0
        %5038 = vmatpush1.msra.mxu0 0.0
        %5039 = vmatprep.subr.mxu0 0.0
        %5040 = vmatpush1.msra.mxu0 0.0
        %5041 = vmatprep.subr.mxu0 0.0
        %5042 = vmatpush1.msra.mxu0 0.0
        %5043 = vmatprep.subr.mxu0 0.0
        %5044 = vmatpush1.msra.mxu0 0.0
        %5045 = vmatprep.subr.mxu0 0.0
        %5046 = vmatpush1.msra.mxu0 0.0
        %5047 = vmatprep.subr.mxu0 0.0
        %5048 = vmatpush1.msra.mxu0 0.0
        %5049 = vmatprep.subr.mxu0 0.0
        %5050 = vmatpush1.msra.mxu0 0.0
        %5051 = vmatprep.subr.mxu0 0.0
        %5052 = vmatpush1.msra.mxu0 0.0
        %5053 = vmatprep.subr.mxu0 0.0
        %5054 = vmatpush1.msra.mxu0 0.0
        %5055 = vmatprep.subr.mxu0 0.0
        %5056 = vmatpush1.msra.mxu0 0.0
        %5057 = vmatprep.subr.mxu0 0.0
        %5058 = vmatpush1.msra.mxu0 0.0
        %5059 = vmatprep.subr.mxu0 0.0
        %5060 = vmatpush1.msra.mxu0 0.0
        %5061 = vmatprep.subr.mxu0 0.0
        %5062 = vmatpush1.msra.mxu0 %v1331
        %5063 = vmatprep.subr.mxu0 0.0
        %5064 = vmatpush2.msra.mxu0 0.0
        %5065 = vmatprep.subr.mxu0 0.0
        %5066 = vmatpush2.msra.mxu0 0.0
        %5067 = vmatprep.subr.mxu0 0.0
        %5068 = vmatpush2.msra.mxu0 0.0
        %5069 = vmatprep.subr.mxu0 0.0
        %5070 = vmatpush2.msra.mxu0 0.0
        %5071 = vmatprep.subr.mxu0 0.0
        %5072 = vmatpush2.msra.mxu0 0.0
        %5073 = vmatprep.subr.mxu0 0.0
        %5074 = vmatpush2.msra.mxu0 0.0
        %5075 = vmatprep.subr.mxu0 0.0
        %5076 = vmatpush2.msra.mxu0 0.0
        %5077 = vmatprep.subr.mxu0 0.0
        %5078 = vmatpush2.msra.mxu0 0.0
        %5079 = vmatprep.subr.mxu0 0.0
        %5080 = vmatpush2.msra.mxu0 0.0
        %5081 = vmatprep.subr.mxu0 0.0
        %5082 = vmatpush2.msra.mxu0 0.0
        %5083 = vmatprep.subr.mxu0 0.0
        %5084 = vmatpush2.msra.mxu0 0.0
        %5085 = vmatprep.subr.mxu0 0.0
        %5086 = vmatpush2.msra.mxu0 0.0
        %5087 = vmatprep.subr.mxu0 0.0
        %5088 = vmatpush2.msra.mxu0 0.0
        %5089 = vmatprep.subr.mxu0 0.0
        %5090 = vmatpush2.msra.mxu0 0.0
        %5091 = vmatprep.subr.mxu0 0.0
        %5092 = vmatpush2.msra.mxu0 0.0
        %5093 = vmatprep.subr.mxu0 0.0
        %5094 = vmatpush2.msra.mxu0 0.0
        %5095 = vmatprep.mubr.f32.mxu0 0.0
        %5096 = vmatmul.mubr.f32.gmra.mxu0 %v5029
        %v5097 = vpop.f32.mrf.mxu0
        %v5098 = vadd.f32 0.0, %v5097
        %v5099 = vpop.f32.mrf.mxu0
        %5100 = vdwg.mxu0
        %v5102 = vsel %vm3945, %v4277, 0
        %5104 = vmatprep.subr.mxu0 0.0
        %5105 = vmatpush1.msra.mxu0 0.0
        %5106 = vmatprep.subr.mxu0 0.0
        %5107 = vmatpush1.msra.mxu0 0.0
        %5108 = vmatprep.subr.mxu0 0.0
        %5109 = vmatpush1.msra.mxu0 0.0
        %5110 = vmatprep.subr.mxu0 0.0
        %5111 = vmatpush1.msra.mxu0 0.0
        %5112 = vmatprep.subr.mxu0 0.0
        %5113 = vmatpush1.msra.mxu0 0.0
        %5114 = vmatprep.subr.mxu0 0.0
        %5115 = vmatpush1.msra.mxu0 0.0
        %5116 = vmatprep.subr.mxu0 0.0
        %5117 = vmatpush1.msra.mxu0 0.0
        %5118 = vmatprep.subr.mxu0 0.0
        %5119 = vmatpush1.msra.mxu0 0.0
        %5120 = vmatprep.subr.mxu0 0.0
        %5121 = vmatpush1.msra.mxu0 0.0
        %5122 = vmatprep.subr.mxu0 0.0
        %5123 = vmatpush1.msra.mxu0 0.0
        %5124 = vmatprep.subr.mxu0 0.0
        %5125 = vmatpush1.msra.mxu0 0.0
        %5126 = vmatprep.subr.mxu0 0.0
        %5127 = vmatpush1.msra.mxu0 0.0
        %5128 = vmatprep.subr.mxu0 0.0
        %5129 = vmatpush1.msra.mxu0 0.0
        %5130 = vmatprep.subr.mxu0 0.0
        %5131 = vmatpush1.msra.mxu0 0.0
        %5132 = vmatprep.subr.mxu0 0.0
        %5133 = vmatpush1.msra.mxu0 0.0
        %5134 = vmatprep.subr.mxu0 0.0
        %5135 = vmatpush1.msra.mxu0 %v1334
        %5136 = vmatprep.subr.mxu0 0.0
        %5137 = vmatpush2.msra.mxu0 0.0
        %5138 = vmatprep.subr.mxu0 0.0
        %5139 = vmatpush2.msra.mxu0 0.0
        %5140 = vmatprep.subr.mxu0 0.0
        %5141 = vmatpush2.msra.mxu0 0.0
        %5142 = vmatprep.subr.mxu0 0.0
        %5143 = vmatpush2.msra.mxu0 0.0
        %5144 = vmatprep.subr.mxu0 0.0
        %5145 = vmatpush2.msra.mxu0 0.0
        %5146 = vmatprep.subr.mxu0 0.0
        %5147 = vmatpush2.msra.mxu0 0.0
        %5148 = vmatprep.subr.mxu0 0.0
        %5149 = vmatpush2.msra.mxu0 0.0
        %5150 = vmatprep.subr.mxu0 0.0
        %5151 = vmatpush2.msra.mxu0 0.0
        %5152 = vmatprep.subr.mxu0 0.0
        %5153 = vmatpush2.msra.mxu0 0.0
        %5154 = vmatprep.subr.mxu0 0.0
        %5155 = vmatpush2.msra.mxu0 0.0
        %5156 = vmatprep.subr.mxu0 0.0
        %5157 = vmatpush2.msra.mxu0 0.0
        %5158 = vmatprep.subr.mxu0 0.0
        %5159 = vmatpush2.msra.mxu0 0.0
        %5160 = vmatprep.subr.mxu0 0.0
        %5161 = vmatpush2.msra.mxu0 0.0
        %5162 = vmatprep.subr.mxu0 0.0
        %5163 = vmatpush2.msra.mxu0 0.0
        %5164 = vmatprep.subr.mxu0 0.0
        %5165 = vmatpush2.msra.mxu0 0.0
        %5166 = vmatprep.subr.mxu0 0.0
        %5167 = vmatpush2.msra.mxu0 0.0
        %5168 = vmatprep.mubr.f32.mxu0 0.0
        %5169 = vmatmul.mubr.f32.gmra.mxu0 %v5102
        %v5170 = vpop.f32.mrf.mxu0
        %v5171 = vadd.f32 0.0, %v5170
        %v5172 = vpop.f32.mrf.mxu0
        %5173 = vdwg.mxu0
        %v5175 = vsel %vm3945, %v4278, 0
        %5177 = vmatprep.subr.mxu0 0.0
        %5178 = vmatpush1.msra.mxu0 0.0
        %5179 = vmatprep.subr.mxu0 0.0
        %5180 = vmatpush1.msra.mxu0 0.0
        %5181 = vmatprep.subr.mxu0 0.0
        %5182 = vmatpush1.msra.mxu0 0.0
        %5183 = vmatprep.subr.mxu0 0.0
        %5184 = vmatpush1.msra.mxu0 0.0
        %5185 = vmatprep.subr.mxu0 0.0
        %5186 = vmatpush1.msra.mxu0 0.0
        %5187 = vmatprep.subr.mxu0 0.0
        %5188 = vmatpush1.msra.mxu0 0.0
        %5189 = vmatprep.subr.mxu0 0.0
        %5190 = vmatpush1.msra.mxu0 0.0
        %5191 = vmatprep.subr.mxu0 0.0
        %5192 = vmatpush1.msra.mxu0 0.0
        %5193 = vmatprep.subr.mxu0 0.0
        %5194 = vmatpush1.msra.mxu0 0.0
        %5195 = vmatprep.subr.mxu0 0.0
        %5196 = vmatpush1.msra.mxu0 0.0
        %5197 = vmatprep.subr.mxu0 0.0
        %5198 = vmatpush1.msra.mxu0 0.0
        %5199 = vmatprep.subr.mxu0 0.0
        %5200 = vmatpush1.msra.mxu0 0.0
        %5201 = vmatprep.subr.mxu0 0.0
        %5202 = vmatpush1.msra.mxu0 0.0
        %5203 = vmatprep.subr.mxu0 0.0
        %5204 = vmatpush1.msra.mxu0 0.0
        %5205 = vmatprep.subr.mxu0 0.0
        %5206 = vmatpush1.msra.mxu0 0.0
        %5207 = vmatprep.subr.mxu0 0.0
        %5208 = vmatpush1.msra.mxu0 %v1339
        %5209 = vmatprep.subr.mxu0 0.0
        %5210 = vmatpush2.msra.mxu0 0.0
        %5211 = vmatprep.subr.mxu0 0.0
        %5212 = vmatpush2.msra.mxu0 0.0
        %5213 = vmatprep.subr.mxu0 0.0
        %5214 = vmatpush2.msra.mxu0 0.0
        %5215 = vmatprep.subr.mxu0 0.0
        %5216 = vmatpush2.msra.mxu0 0.0
        %5217 = vmatprep.subr.mxu0 0.0
        %5218 = vmatpush2.msra.mxu0 0.0
        %5219 = vmatprep.subr.mxu0 0.0
        %5220 = vmatpush2.msra.mxu0 0.0
        %5221 = vmatprep.subr.mxu0 0.0
        %5222 = vmatpush2.msra.mxu0 0.0
        %5223 = vmatprep.subr.mxu0 0.0
        %5224 = vmatpush2.msra.mxu0 0.0
        %5225 = vmatprep.subr.mxu0 0.0
        %5226 = vmatpush2.msra.mxu0 0.0
        %5227 = vmatprep.subr.mxu0 0.0
        %5228 = vmatpush2.msra.mxu0 0.0
        %5229 = vmatprep.subr.mxu0 0.0
        %5230 = vmatpush2.msra.mxu0 0.0
        %5231 = vmatprep.subr.mxu0 0.0
        %5232 = vmatpush2.msra.mxu0 0.0
        %5233 = vmatprep.subr.mxu0 0.0
        %5234 = vmatpush2.msra.mxu0 0.0
        %5235 = vmatprep.subr.mxu0 0.0
        %5236 = vmatpush2.msra.mxu0 0.0
        %5237 = vmatprep.subr.mxu0 0.0
        %5238 = vmatpush2.msra.mxu0 0.0
        %5239 = vmatprep.subr.mxu0 0.0
        %5240 = vmatpush2.msra.mxu0 0.0
        %5241 = vmatprep.mubr.f32.mxu0 0.0
        %5242 = vmatmul.mubr.f32.gmra.mxu0 %v5175
        %v5243 = vpop.f32.mrf.mxu0
        %v5244 = vadd.f32 0.0, %v5243
        %v5245 = vpop.f32.mrf.mxu0
        %5246 = vdwg.mxu0
        %v5248 = vsel %vm3945, %v4279, 0
        %5250 = vmatprep.subr.mxu0 0.0
        %5251 = vmatpush1.msra.mxu0 0.0
        %5252 = vmatprep.subr.mxu0 0.0
        %5253 = vmatpush1.msra.mxu0 0.0
        %5254 = vmatprep.subr.mxu0 0.0
        %5255 = vmatpush1.msra.mxu0 0.0
        %5256 = vmatprep.subr.mxu0 0.0
        %5257 = vmatpush1.msra.mxu0 0.0
        %5258 = vmatprep.subr.mxu0 0.0
        %5259 = vmatpush1.msra.mxu0 0.0
        %5260 = vmatprep.subr.mxu0 0.0
        %5261 = vmatpush1.msra.mxu0 0.0
        %5262 = vmatprep.subr.mxu0 0.0
        %5263 = vmatpush1.msra.mxu0 0.0
        %5264 = vmatprep.subr.mxu0 0.0
        %5265 = vmatpush1.msra.mxu0 0.0
        %5266 = vmatprep.subr.mxu0 0.0
        %5267 = vmatpush1.msra.mxu0 0.0
        %5268 = vmatprep.subr.mxu0 0.0
        %5269 = vmatpush1.msra.mxu0 0.0
        %5270 = vmatprep.subr.mxu0 0.0
        %5271 = vmatpush1.msra.mxu0 0.0
        %5272 = vmatprep.subr.mxu0 0.0
        %5273 = vmatpush1.msra.mxu0 0.0
        %5274 = vmatprep.subr.mxu0 0.0
        %5275 = vmatpush1.msra.mxu0 0.0
        %5276 = vmatprep.subr.mxu0 0.0
        %5277 = vmatpush1.msra.mxu0 0.0
        %5278 = vmatprep.subr.mxu0 0.0
        %5279 = vmatpush1.msra.mxu0 0.0
        %5280 = vmatprep.subr.mxu0 0.0
        %5281 = vmatpush1.msra.mxu0 %v1342
        %5282 = vmatprep.subr.mxu0 0.0
        %5283 = vmatpush2.msra.mxu0 0.0
        %5284 = vmatprep.subr.mxu0 0.0
        %5285 = vmatpush2.msra.mxu0 0.0
        %5286 = vmatprep.subr.mxu0 0.0
        %5287 = vmatpush2.msra.mxu0 0.0
        %5288 = vmatprep.subr.mxu0 0.0
        %5289 = vmatpush2.msra.mxu0 0.0
        %5290 = vmatprep.subr.mxu0 0.0
        %5291 = vmatpush2.msra.mxu0 0.0
        %5292 = vmatprep.subr.mxu0 0.0
        %5293 = vmatpush2.msra.mxu0 0.0
        %5294 = vmatprep.subr.mxu0 0.0
        %5295 = vmatpush2.msra.mxu0 0.0
        %5296 = vmatprep.subr.mxu0 0.0
        %5297 = vmatpush2.msra.mxu0 0.0
        %5298 = vmatprep.subr.mxu0 0.0
        %5299 = vmatpush2.msra.mxu0 0.0
        %5300 = vmatprep.subr.mxu0 0.0
        %5301 = vmatpush2.msra.mxu0 0.0
        %5302 = vmatprep.subr.mxu0 0.0
        %5303 = vmatpush2.msra.mxu0 0.0
        %5304 = vmatprep.subr.mxu0 0.0
        %5305 = vmatpush2.msra.mxu0 0.0
        %5306 = vmatprep.subr.mxu0 0.0
        %5307 = vmatpush2.msra.mxu0 0.0
        %5308 = vmatprep.subr.mxu0 0.0
        %5309 = vmatpush2.msra.mxu0 0.0
        %5310 = vmatprep.subr.mxu0 0.0
        %5311 = vmatpush2.msra.mxu0 0.0
        %5312 = vmatprep.subr.mxu0 0.0
        %5313 = vmatpush2.msra.mxu0 0.0
        %5314 = vmatprep.mubr.f32.mxu0 0.0
        %5315 = vmatmul.mubr.f32.gmra.mxu0 %v5248
        %v5316 = vpop.f32.mrf.mxu0
        %v5317 = vadd.f32 0.0, %v5316
        %v5318 = vpop.f32.mrf.mxu0
        %5319 = vdwg.mxu0
        %v5321 = vsel %vm3945, %v4280, 0
        %5323 = vmatprep.subr.mxu0 0.0
        %5324 = vmatpush1.msra.mxu0 0.0
        %5325 = vmatprep.subr.mxu0 0.0
        %5326 = vmatpush1.msra.mxu0 0.0
        %5327 = vmatprep.subr.mxu0 0.0
        %5328 = vmatpush1.msra.mxu0 0.0
        %5329 = vmatprep.subr.mxu0 0.0
        %5330 = vmatpush1.msra.mxu0 0.0
        %5331 = vmatprep.subr.mxu0 0.0
        %5332 = vmatpush1.msra.mxu0 0.0
        %5333 = vmatprep.subr.mxu0 0.0
        %5334 = vmatpush1.msra.mxu0 0.0
        %5335 = vmatprep.subr.mxu0 0.0
        %5336 = vmatpush1.msra.mxu0 0.0
        %5337 = vmatprep.subr.mxu0 0.0
        %5338 = vmatpush1.msra.mxu0 0.0
        %5339 = vmatprep.subr.mxu0 0.0
        %5340 = vmatpush1.msra.mxu0 0.0
        %5341 = vmatprep.subr.mxu0 0.0
        %5342 = vmatpush1.msra.mxu0 0.0
        %5343 = vmatprep.subr.mxu0 0.0
        %5344 = vmatpush1.msra.mxu0 0.0
        %5345 = vmatprep.subr.mxu0 0.0
        %5346 = vmatpush1.msra.mxu0 0.0
        %5347 = vmatprep.subr.mxu0 0.0
        %5348 = vmatpush1.msra.mxu0 0.0
        %5349 = vmatprep.subr.mxu0 0.0
        %5350 = vmatpush1.msra.mxu0 0.0
        %5351 = vmatprep.subr.mxu0 0.0
        %5352 = vmatpush1.msra.mxu0 0.0
        %5353 = vmatprep.subr.mxu0 0.0
        %5354 = vmatpush1.msra.mxu0 %v1347
        %5355 = vmatprep.subr.mxu0 0.0
        %5356 = vmatpush2.msra.mxu0 0.0
        %5357 = vmatprep.subr.mxu0 0.0
        %5358 = vmatpush2.msra.mxu0 0.0
        %5359 = vmatprep.subr.mxu0 0.0
        %5360 = vmatpush2.msra.mxu0 0.0
        %5361 = vmatprep.subr.mxu0 0.0
        %5362 = vmatpush2.msra.mxu0 0.0
        %5363 = vmatprep.subr.mxu0 0.0
        %5364 = vmatpush2.msra.mxu0 0.0
        %5365 = vmatprep.subr.mxu0 0.0
        %5366 = vmatpush2.msra.mxu0 0.0
        %5367 = vmatprep.subr.mxu0 0.0
        %5368 = vmatpush2.msra.mxu0 0.0
        %5369 = vmatprep.subr.mxu0 0.0
        %5370 = vmatpush2.msra.mxu0 0.0
        %5371 = vmatprep.subr.mxu0 0.0
        %5372 = vmatpush2.msra.mxu0 0.0
        %5373 = vmatprep.subr.mxu0 0.0
        %5374 = vmatpush2.msra.mxu0 0.0
        %5375 = vmatprep.subr.mxu0 0.0
        %5376 = vmatpush2.msra.mxu0 0.0
        %5377 = vmatprep.subr.mxu0 0.0
        %5378 = vmatpush2.msra.mxu0 0.0
        %5379 = vmatprep.subr.mxu0 0.0
        %5380 = vmatpush2.msra.mxu0 0.0
        %5381 = vmatprep.subr.mxu0 0.0
        %5382 = vmatpush2.msra.mxu0 0.0
        %5383 = vmatprep.subr.mxu0 0.0
        %5384 = vmatpush2.msra.mxu0 0.0
        %5385 = vmatprep.subr.mxu0 0.0
        %5386 = vmatpush2.msra.mxu0 0.0
        %5387 = vmatprep.mubr.f32.mxu0 0.0
        %5388 = vmatmul.mubr.f32.gmra.mxu0 %v5321
        %v5389 = vpop.f32.mrf.mxu0
        %v5390 = vadd.f32 0.0, %v5389
        %v5391 = vpop.f32.mrf.mxu0
        %5392 = vdwg.mxu0
        %v5394 = vsel %vm3945, %v4281, 0
        %5396 = vmatprep.subr.mxu0 0.0
        %5397 = vmatpush1.msra.mxu0 0.0
        %5398 = vmatprep.subr.mxu0 0.0
        %5399 = vmatpush1.msra.mxu0 0.0
        %5400 = vmatprep.subr.mxu0 0.0
        %5401 = vmatpush1.msra.mxu0 0.0
        %5402 = vmatprep.subr.mxu0 0.0
        %5403 = vmatpush1.msra.mxu0 0.0
        %5404 = vmatprep.subr.mxu0 0.0
        %5405 = vmatpush1.msra.mxu0 0.0
        %5406 = vmatprep.subr.mxu0 0.0
        %5407 = vmatpush1.msra.mxu0 0.0
        %5408 = vmatprep.subr.mxu0 0.0
        %5409 = vmatpush1.msra.mxu0 0.0
        %5410 = vmatprep.subr.mxu0 0.0
        %5411 = vmatpush1.msra.mxu0 0.0
        %5412 = vmatprep.subr.mxu0 0.0
        %5413 = vmatpush1.msra.mxu0 0.0
        %5414 = vmatprep.subr.mxu0 0.0
        %5415 = vmatpush1.msra.mxu0 0.0
        %5416 = vmatprep.subr.mxu0 0.0
        %5417 = vmatpush1.msra.mxu0 0.0
        %5418 = vmatprep.subr.mxu0 0.0
        %5419 = vmatpush1.msra.mxu0 0.0
        %5420 = vmatprep.subr.mxu0 0.0
        %5421 = vmatpush1.msra.mxu0 0.0
        %5422 = vmatprep.subr.mxu0 0.0
        %5423 = vmatpush1.msra.mxu0 0.0
        %5424 = vmatprep.subr.mxu0 0.0
        %5425 = vmatpush1.msra.mxu0 0.0
        %5426 = vmatprep.subr.mxu0 0.0
        %5427 = vmatpush1.msra.mxu0 %v1350
        %5428 = vmatprep.subr.mxu0 0.0
        %5429 = vmatpush2.msra.mxu0 0.0
        %5430 = vmatprep.subr.mxu0 0.0
        %5431 = vmatpush2.msra.mxu0 0.0
        %5432 = vmatprep.subr.mxu0 0.0
        %5433 = vmatpush2.msra.mxu0 0.0
        %5434 = vmatprep.subr.mxu0 0.0
        %5435 = vmatpush2.msra.mxu0 0.0
        %5436 = vmatprep.subr.mxu0 0.0
        %5437 = vmatpush2.msra.mxu0 0.0
        %5438 = vmatprep.subr.mxu0 0.0
        %5439 = vmatpush2.msra.mxu0 0.0
        %5440 = vmatprep.subr.mxu0 0.0
        %5441 = vmatpush2.msra.mxu0 0.0
        %5442 = vmatprep.subr.mxu0 0.0
        %5443 = vmatpush2.msra.mxu0 0.0
        %5444 = vmatprep.subr.mxu0 0.0
        %5445 = vmatpush2.msra.mxu0 0.0
        %5446 = vmatprep.subr.mxu0 0.0
        %5447 = vmatpush2.msra.mxu0 0.0
        %5448 = vmatprep.subr.mxu0 0.0
        %5449 = vmatpush2.msra.mxu0 0.0
        %5450 = vmatprep.subr.mxu0 0.0
        %5451 = vmatpush2.msra.mxu0 0.0
        %5452 = vmatprep.subr.mxu0 0.0
        %5453 = vmatpush2.msra.mxu0 0.0
        %5454 = vmatprep.subr.mxu0 0.0
        %5455 = vmatpush2.msra.mxu0 0.0
        %5456 = vmatprep.subr.mxu0 0.0
        %5457 = vmatpush2.msra.mxu0 0.0
        %5458 = vmatprep.subr.mxu0 0.0
        %5459 = vmatpush2.msra.mxu0 0.0
        %5460 = vmatprep.mubr.f32.mxu0 0.0
        %5461 = vmatmul.mubr.f32.gmra.mxu0 %v5394
        %v5462 = vpop.f32.mrf.mxu0
        %v5463 = vadd.f32 0.0, %v5462
        %v5464 = vpop.f32.mrf.mxu0
        %5465 = vdwg.mxu0
        %v5467 = vsel %vm3945, %v4282, 0
        %5469 = vmatprep.subr.mxu0 0.0
        %5470 = vmatpush1.msra.mxu0 0.0
        %5471 = vmatprep.subr.mxu0 0.0
        %5472 = vmatpush1.msra.mxu0 0.0
        %5473 = vmatprep.subr.mxu0 0.0
        %5474 = vmatpush1.msra.mxu0 0.0
        %5475 = vmatprep.subr.mxu0 0.0
        %5476 = vmatpush1.msra.mxu0 0.0
        %5477 = vmatprep.subr.mxu0 0.0
        %5478 = vmatpush1.msra.mxu0 0.0
        %5479 = vmatprep.subr.mxu0 0.0
        %5480 = vmatpush1.msra.mxu0 0.0
        %5481 = vmatprep.subr.mxu0 0.0
        %5482 = vmatpush1.msra.mxu0 0.0
        %5483 = vmatprep.subr.mxu0 0.0
        %5484 = vmatpush1.msra.mxu0 0.0
        %5485 = vmatprep.subr.mxu0 0.0
        %5486 = vmatpush1.msra.mxu0 0.0
        %5487 = vmatprep.subr.mxu0 0.0
        %5488 = vmatpush1.msra.mxu0 0.0
        %5489 = vmatprep.subr.mxu0 0.0
        %5490 = vmatpush1.msra.mxu0 0.0
        %5491 = vmatprep.subr.mxu0 0.0
        %5492 = vmatpush1.msra.mxu0 0.0
        %5493 = vmatprep.subr.mxu0 0.0
        %5494 = vmatpush1.msra.mxu0 0.0
        %5495 = vmatprep.subr.mxu0 0.0
        %5496 = vmatpush1.msra.mxu0 0.0
        %5497 = vmatprep.subr.mxu0 0.0
        %5498 = vmatpush1.msra.mxu0 0.0
        %5499 = vmatprep.subr.mxu0 0.0
        %5500 = vmatpush1.msra.mxu0 %v1355
        %5501 = vmatprep.subr.mxu0 0.0
        %5502 = vmatpush2.msra.mxu0 0.0
        %5503 = vmatprep.subr.mxu0 0.0
        %5504 = vmatpush2.msra.mxu0 0.0
        %5505 = vmatprep.subr.mxu0 0.0
        %5506 = vmatpush2.msra.mxu0 0.0
        %5507 = vmatprep.subr.mxu0 0.0
        %5508 = vmatpush2.msra.mxu0 0.0
        %5509 = vmatprep.subr.mxu0 0.0
        %5510 = vmatpush2.msra.mxu0 0.0
        %5511 = vmatprep.subr.mxu0 0.0
        %5512 = vmatpush2.msra.mxu0 0.0
        %5513 = vmatprep.subr.mxu0 0.0
        %5514 = vmatpush2.msra.mxu0 0.0
        %5515 = vmatprep.subr.mxu0 0.0
        %5516 = vmatpush2.msra.mxu0 0.0
        %5517 = vmatprep.subr.mxu0 0.0
        %5518 = vmatpush2.msra.mxu0 0.0
        %5519 = vmatprep.subr.mxu0 0.0
        %5520 = vmatpush2.msra.mxu0 0.0
        %5521 = vmatprep.subr.mxu0 0.0
        %5522 = vmatpush2.msra.mxu0 0.0
        %5523 = vmatprep.subr.mxu0 0.0
        %5524 = vmatpush2.msra.mxu0 0.0
        %5525 = vmatprep.subr.mxu0 0.0
        %5526 = vmatpush2.msra.mxu0 0.0
        %5527 = vmatprep.subr.mxu0 0.0
        %5528 = vmatpush2.msra.mxu0 0.0
        %5529 = vmatprep.subr.mxu0 0.0
        %5530 = vmatpush2.msra.mxu0 0.0
        %5531 = vmatprep.subr.mxu0 0.0
        %5532 = vmatpush2.msra.mxu0 0.0
        %5533 = vmatprep.mubr.f32.mxu0 0.0
        %5534 = vmatmul.mubr.f32.gmra.mxu0 %v5467
        %v5535 = vpop.f32.mrf.mxu0
        %v5536 = vadd.f32 0.0, %v5535
        %v5537 = vpop.f32.mrf.mxu0
        %5538 = vdwg.mxu0
        %v5540 = vsel %vm3945, %v4283, 0
        %5542 = vmatprep.subr.mxu0 0.0
        %5543 = vmatpush1.msra.mxu0 0.0
        %5544 = vmatprep.subr.mxu0 0.0
        %5545 = vmatpush1.msra.mxu0 0.0
        %5546 = vmatprep.subr.mxu0 0.0
        %5547 = vmatpush1.msra.mxu0 0.0
        %5548 = vmatprep.subr.mxu0 0.0
        %5549 = vmatpush1.msra.mxu0 0.0
        %5550 = vmatprep.subr.mxu0 0.0
        %5551 = vmatpush1.msra.mxu0 0.0
        %5552 = vmatprep.subr.mxu0 0.0
        %5553 = vmatpush1.msra.mxu0 0.0
        %5554 = vmatprep.subr.mxu0 0.0
        %5555 = vmatpush1.msra.mxu0 0.0
        %5556 = vmatprep.subr.mxu0 0.0
        %5557 = vmatpush1.msra.mxu0 0.0
        %5558 = vmatprep.subr.mxu0 0.0
        %5559 = vmatpush1.msra.mxu0 0.0
        %5560 = vmatprep.subr.mxu0 0.0
        %5561 = vmatpush1.msra.mxu0 0.0
        %5562 = vmatprep.subr.mxu0 0.0
        %5563 = vmatpush1.msra.mxu0 0.0
        %5564 = vmatprep.subr.mxu0 0.0
        %5565 = vmatpush1.msra.mxu0 0.0
        %5566 = vmatprep.subr.mxu0 0.0
        %5567 = vmatpush1.msra.mxu0 0.0
        %5568 = vmatprep.subr.mxu0 0.0
        %5569 = vmatpush1.msra.mxu0 0.0
        %5570 = vmatprep.subr.mxu0 0.0
        %5571 = vmatpush1.msra.mxu0 0.0
        %5572 = vmatprep.subr.mxu0 0.0
        %5573 = vmatpush1.msra.mxu0 %v1358
        %5574 = vmatprep.subr.mxu0 0.0
        %5575 = vmatpush2.msra.mxu0 0.0
        %5576 = vmatprep.subr.mxu0 0.0
        %5577 = vmatpush2.msra.mxu0 0.0
        %5578 = vmatprep.subr.mxu0 0.0
        %5579 = vmatpush2.msra.mxu0 0.0
        %5580 = vmatprep.subr.mxu0 0.0
        %5581 = vmatpush2.msra.mxu0 0.0
        %5582 = vmatprep.subr.mxu0 0.0
        %5583 = vmatpush2.msra.mxu0 0.0
        %5584 = vmatprep.subr.mxu0 0.0
        %5585 = vmatpush2.msra.mxu0 0.0
        %5586 = vmatprep.subr.mxu0 0.0
        %5587 = vmatpush2.msra.mxu0 0.0
        %5588 = vmatprep.subr.mxu0 0.0
        %5589 = vmatpush2.msra.mxu0 0.0
        %5590 = vmatprep.subr.mxu0 0.0
        %5591 = vmatpush2.msra.mxu0 0.0
        %5592 = vmatprep.subr.mxu0 0.0
        %5593 = vmatpush2.msra.mxu0 0.0
        %5594 = vmatprep.subr.mxu0 0.0
        %5595 = vmatpush2.msra.mxu0 0.0
        %5596 = vmatprep.subr.mxu0 0.0
        %5597 = vmatpush2.msra.mxu0 0.0
        %5598 = vmatprep.subr.mxu0 0.0
        %5599 = vmatpush2.msra.mxu0 0.0
        %5600 = vmatprep.subr.mxu0 0.0
        %5601 = vmatpush2.msra.mxu0 0.0
        %5602 = vmatprep.subr.mxu0 0.0
        %5603 = vmatpush2.msra.mxu0 0.0
        %5604 = vmatprep.subr.mxu0 0.0
        %5605 = vmatpush2.msra.mxu0 0.0
        %5606 = vmatprep.mubr.f32.mxu0 0.0
        %5607 = vmatmul.mubr.f32.gmra.mxu0 %v5540
        %v5608 = vpop.f32.mrf.mxu0
        %v5609 = vadd.f32 0.0, %v5608
        %v5610 = vpop.f32.mrf.mxu0
        %5611 = vdwg.mxu0
        %v5613 = vsel %vm3945, %v4284, 0
        %5615 = vmatprep.subr.mxu0 0.0
        %5616 = vmatpush1.msra.mxu0 0.0
        %5617 = vmatprep.subr.mxu0 0.0
        %5618 = vmatpush1.msra.mxu0 0.0
        %5619 = vmatprep.subr.mxu0 0.0
        %5620 = vmatpush1.msra.mxu0 0.0
        %5621 = vmatprep.subr.mxu0 0.0
        %5622 = vmatpush1.msra.mxu0 0.0
        %5623 = vmatprep.subr.mxu0 0.0
        %5624 = vmatpush1.msra.mxu0 0.0
        %5625 = vmatprep.subr.mxu0 0.0
        %5626 = vmatpush1.msra.mxu0 0.0
        %5627 = vmatprep.subr.mxu0 0.0
        %5628 = vmatpush1.msra.mxu0 0.0
        %5629 = vmatprep.subr.mxu0 0.0
        %5630 = vmatpush1.msra.mxu0 0.0
        %5631 = vmatprep.subr.mxu0 0.0
        %5632 = vmatpush1.msra.mxu0 0.0
        %5633 = vmatprep.subr.mxu0 0.0
        %5634 = vmatpush1.msra.mxu0 0.0
        %5635 = vmatprep.subr.mxu0 0.0
        %5636 = vmatpush1.msra.mxu0 0.0
        %5637 = vmatprep.subr.mxu0 0.0
        %5638 = vmatpush1.msra.mxu0 0.0
        %5639 = vmatprep.subr.mxu0 0.0
        %5640 = vmatpush1.msra.mxu0 0.0
        %5641 = vmatprep.subr.mxu0 0.0
        %5642 = vmatpush1.msra.mxu0 0.0
        %5643 = vmatprep.subr.mxu0 0.0
        %5644 = vmatpush1.msra.mxu0 0.0
        %5645 = vmatprep.subr.mxu0 0.0
        %5646 = vmatpush1.msra.mxu0 %v1363
        %5647 = vmatprep.subr.mxu0 0.0
        %5648 = vmatpush2.msra.mxu0 0.0
        %5649 = vmatprep.subr.mxu0 0.0
        %5650 = vmatpush2.msra.mxu0 0.0
        %5651 = vmatprep.subr.mxu0 0.0
        %5652 = vmatpush2.msra.mxu0 0.0
        %5653 = vmatprep.subr.mxu0 0.0
        %5654 = vmatpush2.msra.mxu0 0.0
        %5655 = vmatprep.subr.mxu0 0.0
        %5656 = vmatpush2.msra.mxu0 0.0
        %5657 = vmatprep.subr.mxu0 0.0
        %5658 = vmatpush2.msra.mxu0 0.0
        %5659 = vmatprep.subr.mxu0 0.0
        %5660 = vmatpush2.msra.mxu0 0.0
        %5661 = vmatprep.subr.mxu0 0.0
        %5662 = vmatpush2.msra.mxu0 0.0
        %5663 = vmatprep.subr.mxu0 0.0
        %5664 = vmatpush2.msra.mxu0 0.0
        %5665 = vmatprep.subr.mxu0 0.0
        %5666 = vmatpush2.msra.mxu0 0.0
        %5667 = vmatprep.subr.mxu0 0.0
        %5668 = vmatpush2.msra.mxu0 0.0
        %5669 = vmatprep.subr.mxu0 0.0
        %5670 = vmatpush2.msra.mxu0 0.0
        %5671 = vmatprep.subr.mxu0 0.0
        %5672 = vmatpush2.msra.mxu0 0.0
        %5673 = vmatprep.subr.mxu0 0.0
        %5674 = vmatpush2.msra.mxu0 0.0
        %5675 = vmatprep.subr.mxu0 0.0
        %5676 = vmatpush2.msra.mxu0 0.0
        %5677 = vmatprep.subr.mxu0 0.0
        %5678 = vmatpush2.msra.mxu0 0.0
        %5679 = vmatprep.mubr.f32.mxu0 0.0
        %5680 = vmatmul.mubr.f32.gmra.mxu0 %v5613
        %v5681 = vpop.f32.mrf.mxu0
        %v5682 = vadd.f32 0.0, %v5681
        %v5683 = vpop.f32.mrf.mxu0
        %5684 = vdwg.mxu0
        %v5686 = vsel %vm3945, %v4285, 0
        %5688 = vmatprep.subr.mxu0 0.0
        %5689 = vmatpush1.msra.mxu0 0.0
        %5690 = vmatprep.subr.mxu0 0.0
        %5691 = vmatpush1.msra.mxu0 0.0
        %5692 = vmatprep.subr.mxu0 0.0
        %5693 = vmatpush1.msra.mxu0 0.0
        %5694 = vmatprep.subr.mxu0 0.0
        %5695 = vmatpush1.msra.mxu0 0.0
        %5696 = vmatprep.subr.mxu0 0.0
        %5697 = vmatpush1.msra.mxu0 0.0
        %5698 = vmatprep.subr.mxu0 0.0
        %5699 = vmatpush1.msra.mxu0 0.0
        %5700 = vmatprep.subr.mxu0 0.0
        %5701 = vmatpush1.msra.mxu0 0.0
        %5702 = vmatprep.subr.mxu0 0.0
        %5703 = vmatpush1.msra.mxu0 0.0
        %5704 = vmatprep.subr.mxu0 0.0
        %5705 = vmatpush1.msra.mxu0 0.0
        %5706 = vmatprep.subr.mxu0 0.0
        %5707 = vmatpush1.msra.mxu0 0.0
        %5708 = vmatprep.subr.mxu0 0.0
        %5709 = vmatpush1.msra.mxu0 0.0
        %5710 = vmatprep.subr.mxu0 0.0
        %5711 = vmatpush1.msra.mxu0 0.0
        %5712 = vmatprep.subr.mxu0 0.0
        %5713 = vmatpush1.msra.mxu0 0.0
        %5714 = vmatprep.subr.mxu0 0.0
        %5715 = vmatpush1.msra.mxu0 0.0
        %5716 = vmatprep.subr.mxu0 0.0
        %5717 = vmatpush1.msra.mxu0 0.0
        %5718 = vmatprep.subr.mxu0 0.0
        %5719 = vmatpush1.msra.mxu0 %v1366
        %5720 = vmatprep.subr.mxu0 0.0
        %5721 = vmatpush2.msra.mxu0 0.0
        %5722 = vmatprep.subr.mxu0 0.0
        %5723 = vmatpush2.msra.mxu0 0.0
        %5724 = vmatprep.subr.mxu0 0.0
        %5725 = vmatpush2.msra.mxu0 0.0
        %5726 = vmatprep.subr.mxu0 0.0
        %5727 = vmatpush2.msra.mxu0 0.0
        %5728 = vmatprep.subr.mxu0 0.0
        %5729 = vmatpush2.msra.mxu0 0.0
        %5730 = vmatprep.subr.mxu0 0.0
        %5731 = vmatpush2.msra.mxu0 0.0
        %5732 = vmatprep.subr.mxu0 0.0
        %5733 = vmatpush2.msra.mxu0 0.0
        %5734 = vmatprep.subr.mxu0 0.0
        %5735 = vmatpush2.msra.mxu0 0.0
        %5736 = vmatprep.subr.mxu0 0.0
        %5737 = vmatpush2.msra.mxu0 0.0
        %5738 = vmatprep.subr.mxu0 0.0
        %5739 = vmatpush2.msra.mxu0 0.0
        %5740 = vmatprep.subr.mxu0 0.0
        %5741 = vmatpush2.msra.mxu0 0.0
        %5742 = vmatprep.subr.mxu0 0.0
        %5743 = vmatpush2.msra.mxu0 0.0
        %5744 = vmatprep.subr.mxu0 0.0
        %5745 = vmatpush2.msra.mxu0 0.0
        %5746 = vmatprep.subr.mxu0 0.0
        %5747 = vmatpush2.msra.mxu0 0.0
        %5748 = vmatprep.subr.mxu0 0.0
        %5749 = vmatpush2.msra.mxu0 0.0
        %5750 = vmatprep.subr.mxu0 0.0
        %5751 = vmatpush2.msra.mxu0 0.0
        %5752 = vmatprep.mubr.f32.mxu0 0.0
        %5753 = vmatmul.mubr.f32.gmra.mxu0 %v5686
        %v5754 = vpop.f32.mrf.mxu0
        %v5755 = vadd.f32 0.0, %v5754
        %v5756 = vpop.f32.mrf.mxu0
        %5757 = vdwg.mxu0
        %v5759 = vsel %vm3945, %v4286, 0
        %5761 = vmatprep.subr.mxu0 0.0
        %5762 = vmatpush1.msra.mxu0 0.0
        %5763 = vmatprep.subr.mxu0 0.0
        %5764 = vmatpush1.msra.mxu0 0.0
        %5765 = vmatprep.subr.mxu0 0.0
        %5766 = vmatpush1.msra.mxu0 0.0
        %5767 = vmatprep.subr.mxu0 0.0
        %5768 = vmatpush1.msra.mxu0 0.0
        %5769 = vmatprep.subr.mxu0 0.0
        %5770 = vmatpush1.msra.mxu0 0.0
        %5771 = vmatprep.subr.mxu0 0.0
        %5772 = vmatpush1.msra.mxu0 0.0
        %5773 = vmatprep.subr.mxu0 0.0
        %5774 = vmatpush1.msra.mxu0 0.0
        %5775 = vmatprep.subr.mxu0 0.0
        %5776 = vmatpush1.msra.mxu0 0.0
        %5777 = vmatprep.subr.mxu0 0.0
        %5778 = vmatpush1.msra.mxu0 0.0
        %5779 = vmatprep.subr.mxu0 0.0
        %5780 = vmatpush1.msra.mxu0 0.0
        %5781 = vmatprep.subr.mxu0 0.0
        %5782 = vmatpush1.msra.mxu0 0.0
        %5783 = vmatprep.subr.mxu0 0.0
        %5784 = vmatpush1.msra.mxu0 0.0
        %5785 = vmatprep.subr.mxu0 0.0
        %5786 = vmatpush1.msra.mxu0 0.0
        %5787 = vmatprep.subr.mxu0 0.0
        %5788 = vmatpush1.msra.mxu0 0.0
        %5789 = vmatprep.subr.mxu0 0.0
        %5790 = vmatpush1.msra.mxu0 0.0
        %5791 = vmatprep.subr.mxu0 0.0
        %5792 = vmatpush1.msra.mxu0 %v1371
        %5793 = vmatprep.subr.mxu0 0.0
        %5794 = vmatpush2.msra.mxu0 0.0
        %5795 = vmatprep.subr.mxu0 0.0
        %5796 = vmatpush2.msra.mxu0 0.0
        %5797 = vmatprep.subr.mxu0 0.0
        %5798 = vmatpush2.msra.mxu0 0.0
        %5799 = vmatprep.subr.mxu0 0.0
        %5800 = vmatpush2.msra.mxu0 0.0
        %5801 = vmatprep.subr.mxu0 0.0
        %5802 = vmatpush2.msra.mxu0 0.0
        %5803 = vmatprep.subr.mxu0 0.0
        %5804 = vmatpush2.msra.mxu0 0.0
        %5805 = vmatprep.subr.mxu0 0.0
        %5806 = vmatpush2.msra.mxu0 0.0
        %5807 = vmatprep.subr.mxu0 0.0
        %5808 = vmatpush2.msra.mxu0 0.0
        %5809 = vmatprep.subr.mxu0 0.0
        %5810 = vmatpush2.msra.mxu0 0.0
        %5811 = vmatprep.subr.mxu0 0.0
        %5812 = vmatpush2.msra.mxu0 0.0
        %5813 = vmatprep.subr.mxu0 0.0
        %5814 = vmatpush2.msra.mxu0 0.0
        %5815 = vmatprep.subr.mxu0 0.0
        %5816 = vmatpush2.msra.mxu0 0.0
        %5817 = vmatprep.subr.mxu0 0.0
        %5818 = vmatpush2.msra.mxu0 0.0
        %5819 = vmatprep.subr.mxu0 0.0
        %5820 = vmatpush2.msra.mxu0 0.0
        %5821 = vmatprep.subr.mxu0 0.0
        %5822 = vmatpush2.msra.mxu0 0.0
        %5823 = vmatprep.subr.mxu0 0.0
        %5824 = vmatpush2.msra.mxu0 0.0
        %5825 = vmatprep.mubr.f32.mxu0 0.0
        %5826 = vmatmul.mubr.f32.gmra.mxu0 %v5759
        %v5827 = vpop.f32.mrf.mxu0
        %v5828 = vadd.f32 0.0, %v5827
        %v5829 = vpop.f32.mrf.mxu0
        %5830 = vdwg.mxu0
        %v5832 = vsel %vm3945, %v4287, 0
        %5834 = vmatprep.subr.mxu0 0.0
        %5835 = vmatpush1.msra.mxu0 0.0
        %5836 = vmatprep.subr.mxu0 0.0
        %5837 = vmatpush1.msra.mxu0 0.0
        %5838 = vmatprep.subr.mxu0 0.0
        %5839 = vmatpush1.msra.mxu0 0.0
        %5840 = vmatprep.subr.mxu0 0.0
        %5841 = vmatpush1.msra.mxu0 0.0
        %5842 = vmatprep.subr.mxu0 0.0
        %5843 = vmatpush1.msra.mxu0 0.0
        %5844 = vmatprep.subr.mxu0 0.0
        %5845 = vmatpush1.msra.mxu0 0.0
        %5846 = vmatprep.subr.mxu0 0.0
        %5847 = vmatpush1.msra.mxu0 0.0
        %5848 = vmatprep.subr.mxu0 0.0
        %5849 = vmatpush1.msra.mxu0 0.0
        %5850 = vmatprep.subr.mxu0 0.0
        %5851 = vmatpush1.msra.mxu0 0.0
        %5852 = vmatprep.subr.mxu0 0.0
        %5853 = vmatpush1.msra.mxu0 0.0
        %5854 = vmatprep.subr.mxu0 0.0
        %5855 = vmatpush1.msra.mxu0 0.0
        %5856 = vmatprep.subr.mxu0 0.0
        %5857 = vmatpush1.msra.mxu0 0.0
        %5858 = vmatprep.subr.mxu0 0.0
        %5859 = vmatpush1.msra.mxu0 0.0
        %5860 = vmatprep.subr.mxu0 0.0
        %5861 = vmatpush1.msra.mxu0 0.0
        %5862 = vmatprep.subr.mxu0 0.0
        %5863 = vmatpush1.msra.mxu0 0.0
        %5864 = vmatprep.subr.mxu0 0.0
        %5865 = vmatpush1.msra.mxu0 %v1374
        %5866 = vmatprep.subr.mxu0 0.0
        %5867 = vmatpush2.msra.mxu0 0.0
        %5868 = vmatprep.subr.mxu0 0.0
        %5869 = vmatpush2.msra.mxu0 0.0
        %5870 = vmatprep.subr.mxu0 0.0
        %5871 = vmatpush2.msra.mxu0 0.0
        %5872 = vmatprep.subr.mxu0 0.0
        %5873 = vmatpush2.msra.mxu0 0.0
        %5874 = vmatprep.subr.mxu0 0.0
        %5875 = vmatpush2.msra.mxu0 0.0
        %5876 = vmatprep.subr.mxu0 0.0
        %5877 = vmatpush2.msra.mxu0 0.0
        %5878 = vmatprep.subr.mxu0 0.0
        %5879 = vmatpush2.msra.mxu0 0.0
        %5880 = vmatprep.subr.mxu0 0.0
        %5881 = vmatpush2.msra.mxu0 0.0
        %5882 = vmatprep.subr.mxu0 0.0
        %5883 = vmatpush2.msra.mxu0 0.0
        %5884 = vmatprep.subr.mxu0 0.0
        %5885 = vmatpush2.msra.mxu0 0.0
        %5886 = vmatprep.subr.mxu0 0.0
        %5887 = vmatpush2.msra.mxu0 0.0
        %5888 = vmatprep.subr.mxu0 0.0
        %5889 = vmatpush2.msra.mxu0 0.0
        %5890 = vmatprep.subr.mxu0 0.0
        %5891 = vmatpush2.msra.mxu0 0.0
        %5892 = vmatprep.subr.mxu0 0.0
        %5893 = vmatpush2.msra.mxu0 0.0
        %5894 = vmatprep.subr.mxu0 0.0
        %5895 = vmatpush2.msra.mxu0 0.0
        %5896 = vmatprep.subr.mxu0 0.0
        %5897 = vmatpush2.msra.mxu0 0.0
        %5898 = vmatprep.mubr.f32.mxu0 0.0
        %5899 = vmatmul.mubr.f32.gmra.mxu0 %v5832
        %v5900 = vpop.f32.mrf.mxu0
        %v5901 = vadd.f32 0.0, %v5900
        %v5902 = vpop.f32.mrf.mxu0
        %5903 = vdwg.mxu0
        %v5905 = vsel %vm3945, %v4288, 0
        %5907 = vmatprep.subr.mxu0 0.0
        %5908 = vmatpush1.msra.mxu0 0.0
        %5909 = vmatprep.subr.mxu0 0.0
        %5910 = vmatpush1.msra.mxu0 0.0
        %5911 = vmatprep.subr.mxu0 0.0
        %5912 = vmatpush1.msra.mxu0 0.0
        %5913 = vmatprep.subr.mxu0 0.0
        %5914 = vmatpush1.msra.mxu0 0.0
        %5915 = vmatprep.subr.mxu0 0.0
        %5916 = vmatpush1.msra.mxu0 0.0
        %5917 = vmatprep.subr.mxu0 0.0
        %5918 = vmatpush1.msra.mxu0 0.0
        %5919 = vmatprep.subr.mxu0 0.0
        %5920 = vmatpush1.msra.mxu0 0.0
        %5921 = vmatprep.subr.mxu0 0.0
        %5922 = vmatpush1.msra.mxu0 0.0
        %5923 = vmatprep.subr.mxu0 0.0
        %5924 = vmatpush1.msra.mxu0 0.0
        %5925 = vmatprep.subr.mxu0 0.0
        %5926 = vmatpush1.msra.mxu0 0.0
        %5927 = vmatprep.subr.mxu0 0.0
        %5928 = vmatpush1.msra.mxu0 0.0
        %5929 = vmatprep.subr.mxu0 0.0
        %5930 = vmatpush1.msra.mxu0 0.0
        %5931 = vmatprep.subr.mxu0 0.0
        %5932 = vmatpush1.msra.mxu0 0.0
        %5933 = vmatprep.subr.mxu0 0.0
        %5934 = vmatpush1.msra.mxu0 0.0
        %5935 = vmatprep.subr.mxu0 0.0
        %5936 = vmatpush1.msra.mxu0 0.0
        %5937 = vmatprep.subr.mxu0 0.0
        %5938 = vmatpush1.msra.mxu0 %v1379
        %5939 = vmatprep.subr.mxu0 0.0
        %5940 = vmatpush2.msra.mxu0 0.0
        %5941 = vmatprep.subr.mxu0 0.0
        %5942 = vmatpush2.msra.mxu0 0.0
        %5943 = vmatprep.subr.mxu0 0.0
        %5944 = vmatpush2.msra.mxu0 0.0
        %5945 = vmatprep.subr.mxu0 0.0
        %5946 = vmatpush2.msra.mxu0 0.0
        %5947 = vmatprep.subr.mxu0 0.0
        %5948 = vmatpush2.msra.mxu0 0.0
        %5949 = vmatprep.subr.mxu0 0.0
        %5950 = vmatpush2.msra.mxu0 0.0
        %5951 = vmatprep.subr.mxu0 0.0
        %5952 = vmatpush2.msra.mxu0 0.0
        %5953 = vmatprep.subr.mxu0 0.0
        %5954 = vmatpush2.msra.mxu0 0.0
        %5955 = vmatprep.subr.mxu0 0.0
        %5956 = vmatpush2.msra.mxu0 0.0
        %5957 = vmatprep.subr.mxu0 0.0
        %5958 = vmatpush2.msra.mxu0 0.0
        %5959 = vmatprep.subr.mxu0 0.0
        %5960 = vmatpush2.msra.mxu0 0.0
        %5961 = vmatprep.subr.mxu0 0.0
        %5962 = vmatpush2.msra.mxu0 0.0
        %5963 = vmatprep.subr.mxu0 0.0
        %5964 = vmatpush2.msra.mxu0 0.0
        %5965 = vmatprep.subr.mxu0 0.0
        %5966 = vmatpush2.msra.mxu0 0.0
        %5967 = vmatprep.subr.mxu0 0.0
        %5968 = vmatpush2.msra.mxu0 0.0
        %5969 = vmatprep.subr.mxu0 0.0
        %5970 = vmatpush2.msra.mxu0 0.0
        %5971 = vmatprep.mubr.f32.mxu0 0.0
        %5972 = vmatmul.mubr.f32.gmra.mxu0 %v5905
        %v5973 = vpop.f32.mrf.mxu0
        %v5974 = vadd.f32 0.0, %v5973
        %v5975 = vpop.f32.mrf.mxu0
        %5976 = vdwg.mxu0
        %v5978 = vsel %vm3945, %v4289, 0
        %5980 = vmatprep.subr.mxu0 0.0
        %5981 = vmatpush1.msra.mxu0 0.0
        %5982 = vmatprep.subr.mxu0 0.0
        %5983 = vmatpush1.msra.mxu0 0.0
        %5984 = vmatprep.subr.mxu0 0.0
        %5985 = vmatpush1.msra.mxu0 0.0
        %5986 = vmatprep.subr.mxu0 0.0
        %5987 = vmatpush1.msra.mxu0 0.0
        %5988 = vmatprep.subr.mxu0 0.0
        %5989 = vmatpush1.msra.mxu0 0.0
        %5990 = vmatprep.subr.mxu0 0.0
        %5991 = vmatpush1.msra.mxu0 0.0
        %5992 = vmatprep.subr.mxu0 0.0
        %5993 = vmatpush1.msra.mxu0 0.0
        %5994 = vmatprep.subr.mxu0 0.0
        %5995 = vmatpush1.msra.mxu0 0.0
        %5996 = vmatprep.subr.mxu0 0.0
        %5997 = vmatpush1.msra.mxu0 0.0
        %5998 = vmatprep.subr.mxu0 0.0
        %5999 = vmatpush1.msra.mxu0 0.0
        %6000 = vmatprep.subr.mxu0 0.0
        %6001 = vmatpush1.msra.mxu0 0.0
        %6002 = vmatprep.subr.mxu0 0.0
        %6003 = vmatpush1.msra.mxu0 0.0
        %6004 = vmatprep.subr.mxu0 0.0
        %6005 = vmatpush1.msra.mxu0 0.0
        %6006 = vmatprep.subr.mxu0 0.0
        %6007 = vmatpush1.msra.mxu0 0.0
        %6008 = vmatprep.subr.mxu0 0.0
        %6009 = vmatpush1.msra.mxu0 0.0
        %6010 = vmatprep.subr.mxu0 0.0
        %6011 = vmatpush1.msra.mxu0 %v1382
        %6012 = vmatprep.subr.mxu0 0.0
        %6013 = vmatpush2.msra.mxu0 0.0
        %6014 = vmatprep.subr.mxu0 0.0
        %6015 = vmatpush2.msra.mxu0 0.0
        %6016 = vmatprep.subr.mxu0 0.0
        %6017 = vmatpush2.msra.mxu0 0.0
        %6018 = vmatprep.subr.mxu0 0.0
        %6019 = vmatpush2.msra.mxu0 0.0
        %6020 = vmatprep.subr.mxu0 0.0
        %6021 = vmatpush2.msra.mxu0 0.0
        %6022 = vmatprep.subr.mxu0 0.0
        %6023 = vmatpush2.msra.mxu0 0.0
        %6024 = vmatprep.subr.mxu0 0.0
        %6025 = vmatpush2.msra.mxu0 0.0
        %6026 = vmatprep.subr.mxu0 0.0
        %6027 = vmatpush2.msra.mxu0 0.0
        %6028 = vmatprep.subr.mxu0 0.0
        %6029 = vmatpush2.msra.mxu0 0.0
        %6030 = vmatprep.subr.mxu0 0.0
        %6031 = vmatpush2.msra.mxu0 0.0
        %6032 = vmatprep.subr.mxu0 0.0
        %6033 = vmatpush2.msra.mxu0 0.0
        %6034 = vmatprep.subr.mxu0 0.0
        %6035 = vmatpush2.msra.mxu0 0.0
        %6036 = vmatprep.subr.mxu0 0.0
        %6037 = vmatpush2.msra.mxu0 0.0
        %6038 = vmatprep.subr.mxu0 0.0
        %6039 = vmatpush2.msra.mxu0 0.0
        %6040 = vmatprep.subr.mxu0 0.0
        %6041 = vmatpush2.msra.mxu0 0.0
        %6042 = vmatprep.subr.mxu0 0.0
        %6043 = vmatpush2.msra.mxu0 0.0
        %6044 = vmatprep.mubr.f32.mxu0 0.0
        %6045 = vmatmul.mubr.f32.gmra.mxu0 %v5978
        %v6046 = vpop.f32.mrf.mxu0
        %v6047 = vadd.f32 0.0, %v6046
        %v6048 = vpop.f32.mrf.mxu0
        %6049 = vdwg.mxu0
        %v6051 = vsel %vm3945, %v4290, 0
        %6053 = vmatprep.subr.mxu0 0.0
        %6054 = vmatpush1.msra.mxu0 0.0
        %6055 = vmatprep.subr.mxu0 0.0
        %6056 = vmatpush1.msra.mxu0 0.0
        %6057 = vmatprep.subr.mxu0 0.0
        %6058 = vmatpush1.msra.mxu0 0.0
        %6059 = vmatprep.subr.mxu0 0.0
        %6060 = vmatpush1.msra.mxu0 0.0
        %6061 = vmatprep.subr.mxu0 0.0
        %6062 = vmatpush1.msra.mxu0 0.0
        %6063 = vmatprep.subr.mxu0 0.0
        %6064 = vmatpush1.msra.mxu0 0.0
        %6065 = vmatprep.subr.mxu0 0.0
        %6066 = vmatpush1.msra.mxu0 0.0
        %6067 = vmatprep.subr.mxu0 0.0
        %6068 = vmatpush1.msra.mxu0 0.0
        %6069 = vmatprep.subr.mxu0 0.0
        %6070 = vmatpush1.msra.mxu0 0.0
        %6071 = vmatprep.subr.mxu0 0.0
        %6072 = vmatpush1.msra.mxu0 0.0
        %6073 = vmatprep.subr.mxu0 0.0
        %6074 = vmatpush1.msra.mxu0 0.0
        %6075 = vmatprep.subr.mxu0 0.0
        %6076 = vmatpush1.msra.mxu0 0.0
        %6077 = vmatprep.subr.mxu0 0.0
        %6078 = vmatpush1.msra.mxu0 0.0
        %6079 = vmatprep.subr.mxu0 0.0
        %6080 = vmatpush1.msra.mxu0 0.0
        %6081 = vmatprep.subr.mxu0 0.0
        %6082 = vmatpush1.msra.mxu0 0.0
        %6083 = vmatprep.subr.mxu0 0.0
        %6084 = vmatpush1.msra.mxu0 %v1387
        %6085 = vmatprep.subr.mxu0 0.0
        %6086 = vmatpush2.msra.mxu0 0.0
        %6087 = vmatprep.subr.mxu0 0.0
        %6088 = vmatpush2.msra.mxu0 0.0
        %6089 = vmatprep.subr.mxu0 0.0
        %6090 = vmatpush2.msra.mxu0 0.0
        %6091 = vmatprep.subr.mxu0 0.0
        %6092 = vmatpush2.msra.mxu0 0.0
        %6093 = vmatprep.subr.mxu0 0.0
        %6094 = vmatpush2.msra.mxu0 0.0
        %6095 = vmatprep.subr.mxu0 0.0
        %6096 = vmatpush2.msra.mxu0 0.0
        %6097 = vmatprep.subr.mxu0 0.0
        %6098 = vmatpush2.msra.mxu0 0.0
        %6099 = vmatprep.subr.mxu0 0.0
        %6100 = vmatpush2.msra.mxu0 0.0
        %6101 = vmatprep.subr.mxu0 0.0
        %6102 = vmatpush2.msra.mxu0 0.0
        %6103 = vmatprep.subr.mxu0 0.0
        %6104 = vmatpush2.msra.mxu0 0.0
        %6105 = vmatprep.subr.mxu0 0.0
        %6106 = vmatpush2.msra.mxu0 0.0
        %6107 = vmatprep.subr.mxu0 0.0
        %6108 = vmatpush2.msra.mxu0 0.0
        %6109 = vmatprep.subr.mxu0 0.0
        %6110 = vmatpush2.msra.mxu0 0.0
        %6111 = vmatprep.subr.mxu0 0.0
        %6112 = vmatpush2.msra.mxu0 0.0
        %6113 = vmatprep.subr.mxu0 0.0
        %6114 = vmatpush2.msra.mxu0 0.0
        %6115 = vmatprep.subr.mxu0 0.0
        %6116 = vmatpush2.msra.mxu0 0.0
        %6117 = vmatprep.mubr.f32.mxu0 0.0
        %6118 = vmatmul.mubr.f32.gmra.mxu0 %v6051
        %v6119 = vpop.f32.mrf.mxu0
        %v6120 = vadd.f32 0.0, %v6119
        %v6121 = vpop.f32.mrf.mxu0
        %6122 = vdwg.mxu0
        %v6124 = vsel %vm3945, %v4291, 0
        %6126 = vmatprep.subr.mxu0 0.0
        %6127 = vmatpush1.msra.mxu0 0.0
        %6128 = vmatprep.subr.mxu0 0.0
        %6129 = vmatpush1.msra.mxu0 0.0
        %6130 = vmatprep.subr.mxu0 0.0
        %6131 = vmatpush1.msra.mxu0 0.0
        %6132 = vmatprep.subr.mxu0 0.0
        %6133 = vmatpush1.msra.mxu0 0.0
        %6134 = vmatprep.subr.mxu0 0.0
        %6135 = vmatpush1.msra.mxu0 0.0
        %6136 = vmatprep.subr.mxu0 0.0
        %6137 = vmatpush1.msra.mxu0 0.0
        %6138 = vmatprep.subr.mxu0 0.0
        %6139 = vmatpush1.msra.mxu0 0.0
        %6140 = vmatprep.subr.mxu0 0.0
        %6141 = vmatpush1.msra.mxu0 0.0
        %6142 = vmatprep.subr.mxu0 0.0
        %6143 = vmatpush1.msra.mxu0 0.0
        %6144 = vmatprep.subr.mxu0 0.0
        %6145 = vmatpush1.msra.mxu0 0.0
        %6146 = vmatprep.subr.mxu0 0.0
        %6147 = vmatpush1.msra.mxu0 0.0
        %6148 = vmatprep.subr.mxu0 0.0
        %6149 = vmatpush1.msra.mxu0 0.0
        %6150 = vmatprep.subr.mxu0 0.0
        %6151 = vmatpush1.msra.mxu0 0.0
        %6152 = vmatprep.subr.mxu0 0.0
        %6153 = vmatpush1.msra.mxu0 0.0
        %6154 = vmatprep.subr.mxu0 0.0
        %6155 = vmatpush1.msra.mxu0 0.0
        %6156 = vmatprep.subr.mxu0 0.0
        %6157 = vmatpush1.msra.mxu0 %v1390
        %6158 = vmatprep.subr.mxu0 0.0
        %6159 = vmatpush2.msra.mxu0 0.0
        %6160 = vmatprep.subr.mxu0 0.0
        %6161 = vmatpush2.msra.mxu0 0.0
        %6162 = vmatprep.subr.mxu0 0.0
        %6163 = vmatpush2.msra.mxu0 0.0
        %6164 = vmatprep.subr.mxu0 0.0
        %6165 = vmatpush2.msra.mxu0 0.0
        %6166 = vmatprep.subr.mxu0 0.0
        %6167 = vmatpush2.msra.mxu0 0.0
        %6168 = vmatprep.subr.mxu0 0.0
        %6169 = vmatpush2.msra.mxu0 0.0
        %6170 = vmatprep.subr.mxu0 0.0
        %6171 = vmatpush2.msra.mxu0 0.0
        %6172 = vmatprep.subr.mxu0 0.0
        %6173 = vmatpush2.msra.mxu0 0.0
        %6174 = vmatprep.subr.mxu0 0.0
        %6175 = vmatpush2.msra.mxu0 0.0
        %6176 = vmatprep.subr.mxu0 0.0
        %6177 = vmatpush2.msra.mxu0 0.0
        %6178 = vmatprep.subr.mxu0 0.0
        %6179 = vmatpush2.msra.mxu0 0.0
        %6180 = vmatprep.subr.mxu0 0.0
        %6181 = vmatpush2.msra.mxu0 0.0
        %6182 = vmatprep.subr.mxu0 0.0
        %6183 = vmatpush2.msra.mxu0 0.0
        %6184 = vmatprep.subr.mxu0 0.0
        %6185 = vmatpush2.msra.mxu0 0.0
        %6186 = vmatprep.subr.mxu0 0.0
        %6187 = vmatpush2.msra.mxu0 0.0
        %6188 = vmatprep.subr.mxu0 0.0
        %6189 = vmatpush2.msra.mxu0 0.0
        %6190 = vmatprep.mubr.f32.mxu0 0.0
        %6191 = vmatmul.mubr.f32.gmra.mxu0 %v6124
        %v6192 = vpop.f32.mrf.mxu0
        %v6193 = vadd.f32 0.0, %v6192
        %v6194 = vpop.f32.mrf.mxu0
        %6195 = vdwg.mxu0
        %v6197 = vsel %vm3945, %v4292, 0
        %6199 = vmatprep.subr.mxu0 0.0
        %6200 = vmatpush1.msra.mxu0 0.0
        %6201 = vmatprep.subr.mxu0 0.0
        %6202 = vmatpush1.msra.mxu0 0.0
        %6203 = vmatprep.subr.mxu0 0.0
        %6204 = vmatpush1.msra.mxu0 0.0
        %6205 = vmatprep.subr.mxu0 0.0
        %6206 = vmatpush1.msra.mxu0 0.0
        %6207 = vmatprep.subr.mxu0 0.0
        %6208 = vmatpush1.msra.mxu0 0.0
        %6209 = vmatprep.subr.mxu0 0.0
        %6210 = vmatpush1.msra.mxu0 0.0
        %6211 = vmatprep.subr.mxu0 0.0
        %6212 = vmatpush1.msra.mxu0 0.0
        %6213 = vmatprep.subr.mxu0 0.0
        %6214 = vmatpush1.msra.mxu0 0.0
        %6215 = vmatprep.subr.mxu0 0.0
        %6216 = vmatpush1.msra.mxu0 0.0
        %6217 = vmatprep.subr.mxu0 0.0
        %6218 = vmatpush1.msra.mxu0 0.0
        %6219 = vmatprep.subr.mxu0 0.0
        %6220 = vmatpush1.msra.mxu0 0.0
        %6221 = vmatprep.subr.mxu0 0.0
        %6222 = vmatpush1.msra.mxu0 0.0
        %6223 = vmatprep.subr.mxu0 0.0
        %6224 = vmatpush1.msra.mxu0 0.0
        %6225 = vmatprep.subr.mxu0 0.0
        %6226 = vmatpush1.msra.mxu0 0.0
        %6227 = vmatprep.subr.mxu0 0.0
        %6228 = vmatpush1.msra.mxu0 0.0
        %6229 = vmatprep.subr.mxu0 0.0
        %6230 = vmatpush1.msra.mxu0 %v1395
        %6231 = vmatprep.subr.mxu0 0.0
        %6232 = vmatpush2.msra.mxu0 0.0
        %6233 = vmatprep.subr.mxu0 0.0
        %6234 = vmatpush2.msra.mxu0 0.0
        %6235 = vmatprep.subr.mxu0 0.0
        %6236 = vmatpush2.msra.mxu0 0.0
        %6237 = vmatprep.subr.mxu0 0.0
        %6238 = vmatpush2.msra.mxu0 0.0
        %6239 = vmatprep.subr.mxu0 0.0
        %6240 = vmatpush2.msra.mxu0 0.0
        %6241 = vmatprep.subr.mxu0 0.0
        %6242 = vmatpush2.msra.mxu0 0.0
        %6243 = vmatprep.subr.mxu0 0.0
        %6244 = vmatpush2.msra.mxu0 0.0
        %6245 = vmatprep.subr.mxu0 0.0
        %6246 = vmatpush2.msra.mxu0 0.0
        %6247 = vmatprep.subr.mxu0 0.0
        %6248 = vmatpush2.msra.mxu0 0.0
        %6249 = vmatprep.subr.mxu0 0.0
        %6250 = vmatpush2.msra.mxu0 0.0
        %6251 = vmatprep.subr.mxu0 0.0
        %6252 = vmatpush2.msra.mxu0 0.0
        %6253 = vmatprep.subr.mxu0 0.0
        %6254 = vmatpush2.msra.mxu0 0.0
        %6255 = vmatprep.subr.mxu0 0.0
        %6256 = vmatpush2.msra.mxu0 0.0
        %6257 = vmatprep.subr.mxu0 0.0
        %6258 = vmatpush2.msra.mxu0 0.0
        %6259 = vmatprep.subr.mxu0 0.0
        %6260 = vmatpush2.msra.mxu0 0.0
        %6261 = vmatprep.subr.mxu0 0.0
        %6262 = vmatpush2.msra.mxu0 0.0
        %6263 = vmatprep.mubr.f32.mxu0 0.0
        %6264 = vmatmul.mubr.f32.gmra.mxu0 %v6197
        %v6265 = vpop.f32.mrf.mxu0
        %v6266 = vadd.f32 0.0, %v6265
        %v6267 = vpop.f32.mrf.mxu0
        %6268 = vdwg.mxu0
        %v6270 = vsel %vm3945, %v4293, 0
        %6272 = vmatprep.subr.mxu0 0.0
        %6273 = vmatpush1.msra.mxu0 0.0
        %6274 = vmatprep.subr.mxu0 0.0
        %6275 = vmatpush1.msra.mxu0 0.0
        %6276 = vmatprep.subr.mxu0 0.0
        %6277 = vmatpush1.msra.mxu0 0.0
        %6278 = vmatprep.subr.mxu0 0.0
        %6279 = vmatpush1.msra.mxu0 0.0
        %6280 = vmatprep.subr.mxu0 0.0
        %6281 = vmatpush1.msra.mxu0 0.0
        %6282 = vmatprep.subr.mxu0 0.0
        %6283 = vmatpush1.msra.mxu0 0.0
        %6284 = vmatprep.subr.mxu0 0.0
        %6285 = vmatpush1.msra.mxu0 0.0
        %6286 = vmatprep.subr.mxu0 0.0
        %6287 = vmatpush1.msra.mxu0 0.0
        %6288 = vmatprep.subr.mxu0 0.0
        %6289 = vmatpush1.msra.mxu0 0.0
        %6290 = vmatprep.subr.mxu0 0.0
        %6291 = vmatpush1.msra.mxu0 0.0
        %6292 = vmatprep.subr.mxu0 0.0
        %6293 = vmatpush1.msra.mxu0 0.0
        %6294 = vmatprep.subr.mxu0 0.0
        %6295 = vmatpush1.msra.mxu0 0.0
        %6296 = vmatprep.subr.mxu0 0.0
        %6297 = vmatpush1.msra.mxu0 0.0
        %6298 = vmatprep.subr.mxu0 0.0
        %6299 = vmatpush1.msra.mxu0 0.0
        %6300 = vmatprep.subr.mxu0 0.0
        %6301 = vmatpush1.msra.mxu0 0.0
        %6302 = vmatprep.subr.mxu0 0.0
        %6303 = vmatpush1.msra.mxu0 %v1398
        %6304 = vmatprep.subr.mxu0 0.0
        %6305 = vmatpush2.msra.mxu0 0.0
        %6306 = vmatprep.subr.mxu0 0.0
        %6307 = vmatpush2.msra.mxu0 0.0
        %6308 = vmatprep.subr.mxu0 0.0
        %6309 = vmatpush2.msra.mxu0 0.0
        %6310 = vmatprep.subr.mxu0 0.0
        %6311 = vmatpush2.msra.mxu0 0.0
        %6312 = vmatprep.subr.mxu0 0.0
        %6313 = vmatpush2.msra.mxu0 0.0
        %6314 = vmatprep.subr.mxu0 0.0
        %6315 = vmatpush2.msra.mxu0 0.0
        %6316 = vmatprep.subr.mxu0 0.0
        %6317 = vmatpush2.msra.mxu0 0.0
        %6318 = vmatprep.subr.mxu0 0.0
        %6319 = vmatpush2.msra.mxu0 0.0
        %6320 = vmatprep.subr.mxu0 0.0
        %6321 = vmatpush2.msra.mxu0 0.0
        %6322 = vmatprep.subr.mxu0 0.0
        %6323 = vmatpush2.msra.mxu0 0.0
        %6324 = vmatprep.subr.mxu0 0.0
        %6325 = vmatpush2.msra.mxu0 0.0
        %6326 = vmatprep.subr.mxu0 0.0
        %6327 = vmatpush2.msra.mxu0 0.0
        %6328 = vmatprep.subr.mxu0 0.0
        %6329 = vmatpush2.msra.mxu0 0.0
        %6330 = vmatprep.subr.mxu0 0.0
        %6331 = vmatpush2.msra.mxu0 0.0
        %6332 = vmatprep.subr.mxu0 0.0
        %6333 = vmatpush2.msra.mxu0 0.0
        %6334 = vmatprep.subr.mxu0 0.0
        %6335 = vmatpush2.msra.mxu0 0.0
        %6336 = vmatprep.mubr.f32.mxu0 0.0
        %6337 = vmatmul.mubr.f32.gmra.mxu0 %v6270
        %v6338 = vpop.f32.mrf.mxu0
        %v6339 = vadd.f32 0.0, %v6338
        %v6340 = vpop.f32.mrf.mxu0
        %6341 = vdwg.mxu0
        %v6343 = vsel %vm3945, %v4294, 0
        %6345 = vmatprep.subr.mxu0 0.0
        %6346 = vmatpush1.msra.mxu0 0.0
        %6347 = vmatprep.subr.mxu0 0.0
        %6348 = vmatpush1.msra.mxu0 0.0
        %6349 = vmatprep.subr.mxu0 0.0
        %6350 = vmatpush1.msra.mxu0 0.0
        %6351 = vmatprep.subr.mxu0 0.0
        %6352 = vmatpush1.msra.mxu0 0.0
        %6353 = vmatprep.subr.mxu0 0.0
        %6354 = vmatpush1.msra.mxu0 0.0
        %6355 = vmatprep.subr.mxu0 0.0
        %6356 = vmatpush1.msra.mxu0 0.0
        %6357 = vmatprep.subr.mxu0 0.0
        %6358 = vmatpush1.msra.mxu0 0.0
        %6359 = vmatprep.subr.mxu0 0.0
        %6360 = vmatpush1.msra.mxu0 0.0
        %6361 = vmatprep.subr.mxu0 0.0
        %6362 = vmatpush1.msra.mxu0 0.0
        %6363 = vmatprep.subr.mxu0 0.0
        %6364 = vmatpush1.msra.mxu0 0.0
        %6365 = vmatprep.subr.mxu0 0.0
        %6366 = vmatpush1.msra.mxu0 0.0
        %6367 = vmatprep.subr.mxu0 0.0
        %6368 = vmatpush1.msra.mxu0 0.0
        %6369 = vmatprep.subr.mxu0 0.0
        %6370 = vmatpush1.msra.mxu0 0.0
        %6371 = vmatprep.subr.mxu0 0.0
        %6372 = vmatpush1.msra.mxu0 0.0
        %6373 = vmatprep.subr.mxu0 0.0
        %6374 = vmatpush1.msra.mxu0 0.0
        %6375 = vmatprep.subr.mxu0 0.0
        %6376 = vmatpush1.msra.mxu0 %v1403
        %6377 = vmatprep.subr.mxu0 0.0
        %6378 = vmatpush2.msra.mxu0 0.0
        %6379 = vmatprep.subr.mxu0 0.0
        %6380 = vmatpush2.msra.mxu0 0.0
        %6381 = vmatprep.subr.mxu0 0.0
        %6382 = vmatpush2.msra.mxu0 0.0
        %6383 = vmatprep.subr.mxu0 0.0
        %6384 = vmatpush2.msra.mxu0 0.0
        %6385 = vmatprep.subr.mxu0 0.0
        %6386 = vmatpush2.msra.mxu0 0.0
        %6387 = vmatprep.subr.mxu0 0.0
        %6388 = vmatpush2.msra.mxu0 0.0
        %6389 = vmatprep.subr.mxu0 0.0
        %6390 = vmatpush2.msra.mxu0 0.0
        %6391 = vmatprep.subr.mxu0 0.0
        %6392 = vmatpush2.msra.mxu0 0.0
        %6393 = vmatprep.subr.mxu0 0.0
        %6394 = vmatpush2.msra.mxu0 0.0
        %6395 = vmatprep.subr.mxu0 0.0
        %6396 = vmatpush2.msra.mxu0 0.0
        %6397 = vmatprep.subr.mxu0 0.0
        %6398 = vmatpush2.msra.mxu0 0.0
        %6399 = vmatprep.subr.mxu0 0.0
        %6400 = vmatpush2.msra.mxu0 0.0
        %6401 = vmatprep.subr.mxu0 0.0
        %6402 = vmatpush2.msra.mxu0 0.0
        %6403 = vmatprep.subr.mxu0 0.0
        %6404 = vmatpush2.msra.mxu0 0.0
        %6405 = vmatprep.subr.mxu0 0.0
        %6406 = vmatpush2.msra.mxu0 0.0
        %6407 = vmatprep.subr.mxu0 0.0
        %6408 = vmatpush2.msra.mxu0 0.0
        %6409 = vmatprep.mubr.f32.mxu0 0.0
        %6410 = vmatmul.mubr.f32.gmra.mxu0 %v6343
        %v6411 = vpop.f32.mrf.mxu0
        %v6412 = vadd.f32 0.0, %v6411
        %v6413 = vpop.f32.mrf.mxu0
        %6414 = vdwg.mxu0
        %v6416 = vsel %vm3945, %v4295, 0
        %6418 = vmatprep.subr.mxu0 0.0
        %6419 = vmatpush1.msra.mxu0 0.0
        %6420 = vmatprep.subr.mxu0 0.0
        %6421 = vmatpush1.msra.mxu0 0.0
        %6422 = vmatprep.subr.mxu0 0.0
        %6423 = vmatpush1.msra.mxu0 0.0
        %6424 = vmatprep.subr.mxu0 0.0
        %6425 = vmatpush1.msra.mxu0 0.0
        %6426 = vmatprep.subr.mxu0 0.0
        %6427 = vmatpush1.msra.mxu0 0.0
        %6428 = vmatprep.subr.mxu0 0.0
        %6429 = vmatpush1.msra.mxu0 0.0
        %6430 = vmatprep.subr.mxu0 0.0
        %6431 = vmatpush1.msra.mxu0 0.0
        %6432 = vmatprep.subr.mxu0 0.0
        %6433 = vmatpush1.msra.mxu0 0.0
        %6434 = vmatprep.subr.mxu0 0.0
        %6435 = vmatpush1.msra.mxu0 0.0
        %6436 = vmatprep.subr.mxu0 0.0
        %6437 = vmatpush1.msra.mxu0 0.0
        %6438 = vmatprep.subr.mxu0 0.0
        %6439 = vmatpush1.msra.mxu0 0.0
        %6440 = vmatprep.subr.mxu0 0.0
        %6441 = vmatpush1.msra.mxu0 0.0
        %6442 = vmatprep.subr.mxu0 0.0
        %6443 = vmatpush1.msra.mxu0 0.0
        %6444 = vmatprep.subr.mxu0 0.0
        %6445 = vmatpush1.msra.mxu0 0.0
        %6446 = vmatprep.subr.mxu0 0.0
        %6447 = vmatpush1.msra.mxu0 0.0
        %6448 = vmatprep.subr.mxu0 0.0
        %6449 = vmatpush1.msra.mxu0 %v1406
        %6450 = vmatprep.subr.mxu0 0.0
        %6451 = vmatpush2.msra.mxu0 0.0
        %6452 = vmatprep.subr.mxu0 0.0
        %6453 = vmatpush2.msra.mxu0 0.0
        %6454 = vmatprep.subr.mxu0 0.0
        %6455 = vmatpush2.msra.mxu0 0.0
        %6456 = vmatprep.subr.mxu0 0.0
        %6457 = vmatpush2.msra.mxu0 0.0
        %6458 = vmatprep.subr.mxu0 0.0
        %6459 = vmatpush2.msra.mxu0 0.0
        %6460 = vmatprep.subr.mxu0 0.0
        %6461 = vmatpush2.msra.mxu0 0.0
        %6462 = vmatprep.subr.mxu0 0.0
        %6463 = vmatpush2.msra.mxu0 0.0
        %6464 = vmatprep.subr.mxu0 0.0
        %6465 = vmatpush2.msra.mxu0 0.0
        %6466 = vmatprep.subr.mxu0 0.0
        %6467 = vmatpush2.msra.mxu0 0.0
        %6468 = vmatprep.subr.mxu0 0.0
        %6469 = vmatpush2.msra.mxu0 0.0
        %6470 = vmatprep.subr.mxu0 0.0
        %6471 = vmatpush2.msra.mxu0 0.0
        %6472 = vmatprep.subr.mxu0 0.0
        %6473 = vmatpush2.msra.mxu0 0.0
        %6474 = vmatprep.subr.mxu0 0.0
        %6475 = vmatpush2.msra.mxu0 0.0
        %6476 = vmatprep.subr.mxu0 0.0
        %6477 = vmatpush2.msra.mxu0 0.0
        %6478 = vmatprep.subr.mxu0 0.0
        %6479 = vmatpush2.msra.mxu0 0.0
        %6480 = vmatprep.subr.mxu0 0.0
        %6481 = vmatpush2.msra.mxu0 0.0
        %6482 = vmatprep.mubr.f32.mxu0 0.0
        %6483 = vmatmul.mubr.f32.gmra.mxu0 %v6416
        %v6484 = vpop.f32.mrf.mxu0
        %v6485 = vadd.f32 0.0, %v6484
        %v6486 = vpop.f32.mrf.mxu0
        %6487 = vdwg.mxu0
        %v6489 = vsel %vm3945, %v4296, 0
        %6491 = vmatprep.subr.mxu0 0.0
        %6492 = vmatpush1.msra.mxu0 0.0
        %6493 = vmatprep.subr.mxu0 0.0
        %6494 = vmatpush1.msra.mxu0 0.0
        %6495 = vmatprep.subr.mxu0 0.0
        %6496 = vmatpush1.msra.mxu0 0.0
        %6497 = vmatprep.subr.mxu0 0.0
        %6498 = vmatpush1.msra.mxu0 0.0
        %6499 = vmatprep.subr.mxu0 0.0
        %6500 = vmatpush1.msra.mxu0 0.0
        %6501 = vmatprep.subr.mxu0 0.0
        %6502 = vmatpush1.msra.mxu0 0.0
        %6503 = vmatprep.subr.mxu0 0.0
        %6504 = vmatpush1.msra.mxu0 0.0
        %6505 = vmatprep.subr.mxu0 0.0
        %6506 = vmatpush1.msra.mxu0 0.0
        %6507 = vmatprep.subr.mxu0 0.0
        %6508 = vmatpush1.msra.mxu0 0.0
        %6509 = vmatprep.subr.mxu0 0.0
        %6510 = vmatpush1.msra.mxu0 0.0
        %6511 = vmatprep.subr.mxu0 0.0
        %6512 = vmatpush1.msra.mxu0 0.0
        %6513 = vmatprep.subr.mxu0 0.0
        %6514 = vmatpush1.msra.mxu0 0.0
        %6515 = vmatprep.subr.mxu0 0.0
        %6516 = vmatpush1.msra.mxu0 0.0
        %6517 = vmatprep.subr.mxu0 0.0
        %6518 = vmatpush1.msra.mxu0 0.0
        %6519 = vmatprep.subr.mxu0 0.0
        %6520 = vmatpush1.msra.mxu0 0.0
        %6521 = vmatprep.subr.mxu0 0.0
        %6522 = vmatpush1.msra.mxu0 %v1411
        %6523 = vmatprep.subr.mxu0 0.0
        %6524 = vmatpush2.msra.mxu0 0.0
        %6525 = vmatprep.subr.mxu0 0.0
        %6526 = vmatpush2.msra.mxu0 0.0
        %6527 = vmatprep.subr.mxu0 0.0
        %6528 = vmatpush2.msra.mxu0 0.0
        %6529 = vmatprep.subr.mxu0 0.0
        %6530 = vmatpush2.msra.mxu0 0.0
        %6531 = vmatprep.subr.mxu0 0.0
        %6532 = vmatpush2.msra.mxu0 0.0
        %6533 = vmatprep.subr.mxu0 0.0
        %6534 = vmatpush2.msra.mxu0 0.0
        %6535 = vmatprep.subr.mxu0 0.0
        %6536 = vmatpush2.msra.mxu0 0.0
        %6537 = vmatprep.subr.mxu0 0.0
        %6538 = vmatpush2.msra.mxu0 0.0
        %6539 = vmatprep.subr.mxu0 0.0
        %6540 = vmatpush2.msra.mxu0 0.0
        %6541 = vmatprep.subr.mxu0 0.0
        %6542 = vmatpush2.msra.mxu0 0.0
        %6543 = vmatprep.subr.mxu0 0.0
        %6544 = vmatpush2.msra.mxu0 0.0
        %6545 = vmatprep.subr.mxu0 0.0
        %6546 = vmatpush2.msra.mxu0 0.0
        %6547 = vmatprep.subr.mxu0 0.0
        %6548 = vmatpush2.msra.mxu0 0.0
        %6549 = vmatprep.subr.mxu0 0.0
        %6550 = vmatpush2.msra.mxu0 0.0
        %6551 = vmatprep.subr.mxu0 0.0
        %6552 = vmatpush2.msra.mxu0 0.0
        %6553 = vmatprep.subr.mxu0 0.0
        %6554 = vmatpush2.msra.mxu0 0.0
        %6555 = vmatprep.mubr.f32.mxu0 0.0
        %6556 = vmatmul.mubr.f32.gmra.mxu0 %v6489
        %v6557 = vpop.f32.mrf.mxu0
        %v6558 = vadd.f32 0.0, %v6557
        %v6559 = vpop.f32.mrf.mxu0
        %6560 = vdwg.mxu0
        %v6562 = vsel %vm3945, %v4297, 0
        %6564 = vmatprep.subr.mxu0 0.0
        %6565 = vmatpush1.msra.mxu0 0.0
        %6566 = vmatprep.subr.mxu0 0.0
        %6567 = vmatpush1.msra.mxu0 0.0
        %6568 = vmatprep.subr.mxu0 0.0
        %6569 = vmatpush1.msra.mxu0 0.0
        %6570 = vmatprep.subr.mxu0 0.0
        %6571 = vmatpush1.msra.mxu0 0.0
        %6572 = vmatprep.subr.mxu0 0.0
        %6573 = vmatpush1.msra.mxu0 0.0
        %6574 = vmatprep.subr.mxu0 0.0
        %6575 = vmatpush1.msra.mxu0 0.0
        %6576 = vmatprep.subr.mxu0 0.0
        %6577 = vmatpush1.msra.mxu0 0.0
        %6578 = vmatprep.subr.mxu0 0.0
        %6579 = vmatpush1.msra.mxu0 0.0
        %6580 = vmatprep.subr.mxu0 0.0
        %6581 = vmatpush1.msra.mxu0 0.0
        %6582 = vmatprep.subr.mxu0 0.0
        %6583 = vmatpush1.msra.mxu0 0.0
        %6584 = vmatprep.subr.mxu0 0.0
        %6585 = vmatpush1.msra.mxu0 0.0
        %6586 = vmatprep.subr.mxu0 0.0
        %6587 = vmatpush1.msra.mxu0 0.0
        %6588 = vmatprep.subr.mxu0 0.0
        %6589 = vmatpush1.msra.mxu0 0.0
        %6590 = vmatprep.subr.mxu0 0.0
        %6591 = vmatpush1.msra.mxu0 0.0
        %6592 = vmatprep.subr.mxu0 0.0
        %6593 = vmatpush1.msra.mxu0 0.0
        %6594 = vmatprep.subr.mxu0 0.0
        %6595 = vmatpush1.msra.mxu0 %v1414
        %6596 = vmatprep.subr.mxu0 0.0
        %6597 = vmatpush2.msra.mxu0 0.0
        %6598 = vmatprep.subr.mxu0 0.0
        %6599 = vmatpush2.msra.mxu0 0.0
        %6600 = vmatprep.subr.mxu0 0.0
        %6601 = vmatpush2.msra.mxu0 0.0
        %6602 = vmatprep.subr.mxu0 0.0
        %6603 = vmatpush2.msra.mxu0 0.0
        %6604 = vmatprep.subr.mxu0 0.0
        %6605 = vmatpush2.msra.mxu0 0.0
        %6606 = vmatprep.subr.mxu0 0.0
        %6607 = vmatpush2.msra.mxu0 0.0
        %6608 = vmatprep.subr.mxu0 0.0
        %6609 = vmatpush2.msra.mxu0 0.0
        %6610 = vmatprep.subr.mxu0 0.0
        %6611 = vmatpush2.msra.mxu0 0.0
        %6612 = vmatprep.subr.mxu0 0.0
        %6613 = vmatpush2.msra.mxu0 0.0
        %6614 = vmatprep.subr.mxu0 0.0
        %6615 = vmatpush2.msra.mxu0 0.0
        %6616 = vmatprep.subr.mxu0 0.0
        %6617 = vmatpush2.msra.mxu0 0.0
        %6618 = vmatprep.subr.mxu0 0.0
        %6619 = vmatpush2.msra.mxu0 0.0
        %6620 = vmatprep.subr.mxu0 0.0
        %6621 = vmatpush2.msra.mxu0 0.0
        %6622 = vmatprep.subr.mxu0 0.0
        %6623 = vmatpush2.msra.mxu0 0.0
        %6624 = vmatprep.subr.mxu0 0.0
        %6625 = vmatpush2.msra.mxu0 0.0
        %6626 = vmatprep.subr.mxu0 0.0
        %6627 = vmatpush2.msra.mxu0 0.0
        %6628 = vmatprep.mubr.f32.mxu0 0.0
        %6629 = vmatmul.mubr.f32.gmra.mxu0 %v6562
        %v6630 = vpop.f32.mrf.mxu0
        %v6631 = vadd.f32 0.0, %v6630
        %v6632 = vpop.f32.mrf.mxu0
        %6633 = vdwg.mxu0
        %v6634 = vrot.slane %v4368, 4
        %v6635 = vmax.f32 %v4368, %v6634
        %v6636 = vrot.slane %v6635, 2
        %v6637 = vmax.f32 %v6635, %v6636
        %v6638 = vrot.slane %v6637, 1
        %v6639 = vmax.f32 %v6637, %v6638
        %v6640 = vrot.slane %v4441, 4
        %v6641 = vmax.f32 %v4441, %v6640
        %v6642 = vrot.slane %v6641, 2
        %v6643 = vmax.f32 %v6641, %v6642
        %v6644 = vrot.slane %v6643, 1
        %v6645 = vmax.f32 %v6643, %v6644
        %v6646 = vrot.slane %v4514, 4
        %v6647 = vmax.f32 %v4514, %v6646
        %v6648 = vrot.slane %v6647, 2
        %v6649 = vmax.f32 %v6647, %v6648
        %v6650 = vrot.slane %v6649, 1
        %v6651 = vmax.f32 %v6649, %v6650
        %v6652 = vrot.slane %v4587, 4
        %v6653 = vmax.f32 %v4587, %v6652
        %v6654 = vrot.slane %v6653, 2
        %v6655 = vmax.f32 %v6653, %v6654
        %v6656 = vrot.slane %v6655, 1
        %v6657 = vmax.f32 %v6655, %v6656
        %v6658 = vrot.slane %v4660, 4
        %v6659 = vmax.f32 %v4660, %v6658
        %v6660 = vrot.slane %v6659, 2
        %v6661 = vmax.f32 %v6659, %v6660
        %v6662 = vrot.slane %v6661, 1
        %v6663 = vmax.f32 %v6661, %v6662
        %v6664 = vrot.slane %v4733, 4
        %v6665 = vmax.f32 %v4733, %v6664
        %v6666 = vrot.slane %v6665, 2
        %v6667 = vmax.f32 %v6665, %v6666
        %v6668 = vrot.slane %v6667, 1
        %v6669 = vmax.f32 %v6667, %v6668
        %v6670 = vrot.slane %v4806, 4
        %v6671 = vmax.f32 %v4806, %v6670
        %v6672 = vrot.slane %v6671, 2
        %v6673 = vmax.f32 %v6671, %v6672
        %v6674 = vrot.slane %v6673, 1
        %v6675 = vmax.f32 %v6673, %v6674
        %v6676 = vrot.slane %v4879, 4
        %v6677 = vmax.f32 %v4879, %v6676
        %v6678 = vrot.slane %v6677, 2
        %v6679 = vmax.f32 %v6677, %v6678
        %v6680 = vrot.slane %v6679, 1
        %v6681 = vmax.f32 %v6679, %v6680
        %v6682 = vrot.slane %v4952, 4
        %v6683 = vmax.f32 %v4952, %v6682
        %v6684 = vrot.slane %v6683, 2
        %v6685 = vmax.f32 %v6683, %v6684
        %v6686 = vrot.slane %v6685, 1
        %v6687 = vmax.f32 %v6685, %v6686
        %v6688 = vrot.slane %v5025, 4
        %v6689 = vmax.f32 %v5025, %v6688
        %v6690 = vrot.slane %v6689, 2
        %v6691 = vmax.f32 %v6689, %v6690
        %v6692 = vrot.slane %v6691, 1
        %v6693 = vmax.f32 %v6691, %v6692
        %v6694 = vrot.slane %v5098, 4
        %v6695 = vmax.f32 %v5098, %v6694
        %v6696 = vrot.slane %v6695, 2
        %v6697 = vmax.f32 %v6695, %v6696
        %v6698 = vrot.slane %v6697, 1
        %v6699 = vmax.f32 %v6697, %v6698
        %v6700 = vrot.slane %v5171, 4
        %v6701 = vmax.f32 %v5171, %v6700
        %v6702 = vrot.slane %v6701, 2
        %v6703 = vmax.f32 %v6701, %v6702
        %v6704 = vrot.slane %v6703, 1
        %v6705 = vmax.f32 %v6703, %v6704
        %v6706 = vrot.slane %v5244, 4
        %v6707 = vmax.f32 %v5244, %v6706
        %v6708 = vrot.slane %v6707, 2
        %v6709 = vmax.f32 %v6707, %v6708
        %v6710 = vrot.slane %v6709, 1
        %v6711 = vmax.f32 %v6709, %v6710
        %v6712 = vrot.slane %v5317, 4
        %v6713 = vmax.f32 %v5317, %v6712
        %v6714 = vrot.slane %v6713, 2
        %v6715 = vmax.f32 %v6713, %v6714
        %v6716 = vrot.slane %v6715, 1
        %v6717 = vmax.f32 %v6715, %v6716
        %v6718 = vrot.slane %v5390, 4
        %v6719 = vmax.f32 %v5390, %v6718
        %v6720 = vrot.slane %v6719, 2
        %v6721 = vmax.f32 %v6719, %v6720
        %v6722 = vrot.slane %v6721, 1
        %v6723 = vmax.f32 %v6721, %v6722
        %v6724 = vrot.slane %v5463, 4
        %v6725 = vmax.f32 %v5463, %v6724
        %v6726 = vrot.slane %v6725, 2
        %v6727 = vmax.f32 %v6725, %v6726
        %v6728 = vrot.slane %v6727, 1
        %v6729 = vmax.f32 %v6727, %v6728
        %v6730 = vrot.slane %v5536, 4
        %v6731 = vmax.f32 %v5536, %v6730
        %v6732 = vrot.slane %v6731, 2
        %v6733 = vmax.f32 %v6731, %v6732
        %v6734 = vrot.slane %v6733, 1
        %v6735 = vmax.f32 %v6733, %v6734
        %v6736 = vrot.slane %v5609, 4
        %v6737 = vmax.f32 %v5609, %v6736
        %v6738 = vrot.slane %v6737, 2
        %v6739 = vmax.f32 %v6737, %v6738
        %v6740 = vrot.slane %v6739, 1
        %v6741 = vmax.f32 %v6739, %v6740
        %v6742 = vrot.slane %v5682, 4
        %v6743 = vmax.f32 %v5682, %v6742
        %v6744 = vrot.slane %v6743, 2
        %v6745 = vmax.f32 %v6743, %v6744
        %v6746 = vrot.slane %v6745, 1
        %v6747 = vmax.f32 %v6745, %v6746
        %v6748 = vrot.slane %v5755, 4
        %v6749 = vmax.f32 %v5755, %v6748
        %v6750 = vrot.slane %v6749, 2
        %v6751 = vmax.f32 %v6749, %v6750
        %v6752 = vrot.slane %v6751, 1
        %v6753 = vmax.f32 %v6751, %v6752
        %v6754 = vrot.slane %v5828, 4
        %v6755 = vmax.f32 %v5828, %v6754
        %v6756 = vrot.slane %v6755, 2
        %v6757 = vmax.f32 %v6755, %v6756
        %v6758 = vrot.slane %v6757, 1
        %v6759 = vmax.f32 %v6757, %v6758
        %v6760 = vrot.slane %v5901, 4
        %v6761 = vmax.f32 %v5901, %v6760
        %v6762 = vrot.slane %v6761, 2
        %v6763 = vmax.f32 %v6761, %v6762
        %v6764 = vrot.slane %v6763, 1
        %v6765 = vmax.f32 %v6763, %v6764
        %v6766 = vrot.slane %v5974, 4
        %v6767 = vmax.f32 %v5974, %v6766
        %v6768 = vrot.slane %v6767, 2
        %v6769 = vmax.f32 %v6767, %v6768
        %v6770 = vrot.slane %v6769, 1
        %v6771 = vmax.f32 %v6769, %v6770
        %v6772 = vrot.slane %v6047, 4
        %v6773 = vmax.f32 %v6047, %v6772
        %v6774 = vrot.slane %v6773, 2
        %v6775 = vmax.f32 %v6773, %v6774
        %v6776 = vrot.slane %v6775, 1
        %v6777 = vmax.f32 %v6775, %v6776
        %v6778 = vrot.slane %v6120, 4
        %v6779 = vmax.f32 %v6120, %v6778
        %v6780 = vrot.slane %v6779, 2
        %v6781 = vmax.f32 %v6779, %v6780
        %v6782 = vrot.slane %v6781, 1
        %v6783 = vmax.f32 %v6781, %v6782
        %v6784 = vrot.slane %v6193, 4
        %v6785 = vmax.f32 %v6193, %v6784
        %v6786 = vrot.slane %v6785, 2
        %v6787 = vmax.f32 %v6785, %v6786
        %v6788 = vrot.slane %v6787, 1
        %v6789 = vmax.f32 %v6787, %v6788
        %v6790 = vrot.slane %v6266, 4
        %v6791 = vmax.f32 %v6266, %v6790
        %v6792 = vrot.slane %v6791, 2
        %v6793 = vmax.f32 %v6791, %v6792
        %v6794 = vrot.slane %v6793, 1
        %v6795 = vmax.f32 %v6793, %v6794
        %v6796 = vrot.slane %v6339, 4
        %v6797 = vmax.f32 %v6339, %v6796
        %v6798 = vrot.slane %v6797, 2
        %v6799 = vmax.f32 %v6797, %v6798
        %v6800 = vrot.slane %v6799, 1
        %v6801 = vmax.f32 %v6799, %v6800
        %v6802 = vrot.slane %v6412, 4
        %v6803 = vmax.f32 %v6412, %v6802
        %v6804 = vrot.slane %v6803, 2
        %v6805 = vmax.f32 %v6803, %v6804
        %v6806 = vrot.slane %v6805, 1
        %v6807 = vmax.f32 %v6805, %v6806
        %v6808 = vrot.slane %v6485, 4
        %v6809 = vmax.f32 %v6485, %v6808
        %v6810 = vrot.slane %v6809, 2
        %v6811 = vmax.f32 %v6809, %v6810
        %v6812 = vrot.slane %v6811, 1
        %v6813 = vmax.f32 %v6811, %v6812
        %v6814 = vrot.slane %v6558, 4
        %v6815 = vmax.f32 %v6558, %v6814
        %v6816 = vrot.slane %v6815, 2
        %v6817 = vmax.f32 %v6815, %v6816
        %v6818 = vrot.slane %v6817, 1
        %v6819 = vmax.f32 %v6817, %v6818
        %v6820 = vrot.slane %v6631, 4
        %v6821 = vmax.f32 %v6631, %v6820
        %v6822 = vrot.slane %v6821, 2
        %v6823 = vmax.f32 %v6821, %v6822
        %v6824 = vrot.slane %v6823, 1
        %v6825 = vmax.f32 %v6823, %v6824
        %v6826 = vld [vmem:[%s5] sm:$0x1]
        %v6828 = vlaneseq
        %v6829 = vshrl.u32 %v6828, 7
        %v6830 = vsub.s32 0, %v6829
        %v6831 = vrot.slane %v6826, %v6830
        %v6833 = vadd.f32 %v6639, %v6831
        %v6834 = vadd.f32 %v6645, %v6831
        %v6835 = vadd.f32 %v6651, %v6831
        %v6836 = vadd.f32 %v6657, %v6831
        %v6837 = vadd.f32 %v6663, %v6831
        %v6838 = vadd.f32 %v6669, %v6831
        %v6839 = vadd.f32 %v6675, %v6831
        %v6840 = vadd.f32 %v6681, %v6831
        %v6841 = vadd.f32 %v6687, %v6831
        %v6842 = vadd.f32 %v6693, %v6831
        %v6843 = vadd.f32 %v6699, %v6831
        %v6844 = vadd.f32 %v6705, %v6831
        %v6845 = vadd.f32 %v6711, %v6831
        %v6846 = vadd.f32 %v6717, %v6831
        %v6847 = vadd.f32 %v6723, %v6831
        %v6848 = vadd.f32 %v6729, %v6831
        %v6849 = vadd.f32 %v6735, %v6831
        %v6850 = vadd.f32 %v6741, %v6831
        %v6851 = vadd.f32 %v6747, %v6831
        %v6852 = vadd.f32 %v6753, %v6831
        %v6853 = vadd.f32 %v6759, %v6831
        %v6854 = vadd.f32 %v6765, %v6831
        %v6855 = vadd.f32 %v6771, %v6831
        %v6856 = vadd.f32 %v6777, %v6831
        %v6857 = vadd.f32 %v6783, %v6831
        %v6858 = vadd.f32 %v6789, %v6831
        %v6859 = vadd.f32 %v6795, %v6831
        %v6860 = vadd.f32 %v6801, %v6831
        %v6861 = vadd.f32 %v6807, %v6831
        %v6862 = vadd.f32 %v6813, %v6831
        %v6863 = vadd.f32 %v6819, %v6831
        %v6864 = vadd.f32 %v6825, %v6831
        %v6897 = vrot.slane %v6834, 7
        %vm6898 = vcmask 1041409
        %v6899 = vsel %vm6898, %v6897, %v6833
        %v6900 = vrot.slane %v6835, 6
        %vm6901 = vcmask 1042434
        %v6902 = vsel %vm6901, %v6900, %v6899
        %v6903 = vrot.slane %v6836, 5
        %vm6904 = vcmask 1043459
        %v6905 = vsel %vm6904, %v6903, %v6902
        %v6906 = vrot.slane %v6837, 4
        %vm6907 = vcmask 1044484
        %v6908 = vsel %vm6907, %v6906, %v6905
        %v6909 = vrot.slane %v6838, 3
        %vm6910 = vcmask 1045509
        %v6911 = vsel %vm6910, %v6909, %v6908
        %v6912 = vrot.slane %v6839, 2
        %vm6913 = vcmask 1046534
        %v6914 = vsel %vm6913, %v6912, %v6911
        %v6915 = vrot.slane %v6840, 1
        %vm6916 = vcmask 1047559
        %v6917 = vsel %vm6916, %v6915, %v6914
        %v6918 = vrot.slane %v6842, 7
        %v6919 = vsel %vm6898, %v6918, %v6841
        %v6920 = vrot.slane %v6843, 6
        %v6921 = vsel %vm6901, %v6920, %v6919
        %v6922 = vrot.slane %v6844, 5
        %v6923 = vsel %vm6904, %v6922, %v6921
        %v6924 = vrot.slane %v6845, 4
        %v6925 = vsel %vm6907, %v6924, %v6923
        %v6926 = vrot.slane %v6846, 3
        %v6927 = vsel %vm6910, %v6926, %v6925
        %v6928 = vrot.slane %v6847, 2
        %v6929 = vsel %vm6913, %v6928, %v6927
        %v6930 = vrot.slane %v6848, 1
        %v6931 = vsel %vm6916, %v6930, %v6929
        %v6932 = vrot.slane %v6850, 7
        %v6933 = vsel %vm6898, %v6932, %v6849
        %v6934 = vrot.slane %v6851, 6
        %v6935 = vsel %vm6901, %v6934, %v6933
        %v6936 = vrot.slane %v6852, 5
        %v6937 = vsel %vm6904, %v6936, %v6935
        %v6938 = vrot.slane %v6853, 4
        %v6939 = vsel %vm6907, %v6938, %v6937
        %v6940 = vrot.slane %v6854, 3
        %v6941 = vsel %vm6910, %v6940, %v6939
        %v6942 = vrot.slane %v6855, 2
        %v6943 = vsel %vm6913, %v6942, %v6941
        %v6944 = vrot.slane %v6856, 1
        %v6945 = vsel %vm6916, %v6944, %v6943
        %v6946 = vrot.slane %v6858, 7
        %v6947 = vsel %vm6898, %v6946, %v6857
        %v6948 = vrot.slane %v6859, 6
        %v6949 = vsel %vm6901, %v6948, %v6947
        %v6950 = vrot.slane %v6860, 5
        %v6951 = vsel %vm6904, %v6950, %v6949
        %v6952 = vrot.slane %v6861, 4
        %v6953 = vsel %vm6907, %v6952, %v6951
        %v6954 = vrot.slane %v6862, 3
        %v6955 = vsel %vm6910, %v6954, %v6953
        %v6956 = vrot.slane %v6863, 2
        %v6957 = vsel %vm6913, %v6956, %v6955
        %v6958 = vrot.slane %v6864, 1
        %v6959 = vsel %vm6916, %v6958, %v6957
        %6964 = vst [vmem:[%s290] sm:$0xff] %v6917
        %6965 = vst [vmem:[%s290 + $0x8] sm:$0xff] %v6931
        %6966 = vst [vmem:[%s290 + $0x10] sm:$0xff] %v6945
        %6967 = vst [vmem:[%s290 + $0x18] sm:$0xff] %v6959
        %s6968 = sand.u32 %s170, 1
        %s6969 = scalar_lea.sflag [#allocation4], %s6968
        %s6970 = sand.u32 %s170, 1
        %s6971 = smul.addr %s6970, 32
        %s6972 = scalar_lea.vmem [#allocation5], %s6971
        // Predicated region
        $region49: #{tpu_custom_call.1} parent=43 // pred_check
          %p6973 = pneg %p180
        $region50: #{tpu_custom_call.1} parent=43 // pred_check_branch
          %6975 = sbr.rel (%p6973) target = $region52
        $region51: #{tpu_custom_call.1} parent=43 // pred_region
          %s6976 = smul.u32 4, %s21
          %s6978 = ssub.s32 512, 512
          %6979 = vsyncadd %s6969, %s6978
          %s6980 = smul.addr %s6976, 128
          %s6981 = scalar_lea.hbm %s6, %s6980
          %s6982 = sshll.u32 %s6972, 4
          %s6983 = int_to_ptr.vmem [resolvable:$true] %s6982
          %6988 = dma.vmem_to_hbm [thread:$0]  %s6983, 512, %s6981, %s6969, 128, 128, 8
        $region52: #{tpu_custom_call.1} parent=43 // pred_fallthru
          _
      $region44: #{tpu_custom_call.1} parent=5 // pred_fallthru
        _
      %p6989 = scmp.le.s32.totalorder 2, %s16
      // Predicated region
      $region53: #{tpu_custom_call.1} parent=5 // pred_check
        %p6990 = pneg %p6989
      $region54: #{tpu_custom_call.1} parent=5 // pred_check_branch
        %6992 = sbr.rel (%p6990) target = $region56
      $region55: #{tpu_custom_call.1} parent=5 // pred_region
        %s6993 = ssub.s32 %s16, 2
        // Predicated region
        $region57: #{tpu_custom_call.1} parent=55 // pred_check
          %p6994 = pneg %p186
        $region58: #{tpu_custom_call.1} parent=55 // pred_check_branch
          %6996 = sbr.rel (%p6994) target = $region60
        $region59: #{tpu_custom_call.1} parent=55 // pred_region
          %s6997 = sand.u32 %s171, 1
          %s6998 = scalar_lea.sflag [#allocation4], %s6997
          %s6999 = sand.u32 %s171, 1
          %s7000 = smul.addr %s6999, 32
          %s7001 = scalar_lea.vmem [#allocation5], %s7000
          %7002 = dma.done %s6998, 512
        $region60: #{tpu_custom_call.1} parent=55 // pred_fallthru
          _
      $region56: #{tpu_custom_call.1} parent=5 // pred_fallthru
        _
    $region6: #{tpu_custom_call.1} parent=1 // loop_footer
      %s20 = sadd.s32 1, %s16
    $region7: #{tpu_custom_call.1} parent=1 // loop_footer_branch
      %15 = sbr.rel target = $region3
    $region8: #{tpu_custom_call.1} parent=1 // loop_exit
      _
    %7003 = vsyncpa [#allocation3], 1
    %s7004 = scalar_lea.sflag [#allocation3], 1
    %7005 = vsyncpa %s7004, 1
    %7006 = vsyncpa [#allocation4], 1
    %s7007 = scalar_lea.sflag [#allocation4], 1
    %7008 = vsyncpa %s7007, 1

</llo_original>
